<compile_context>
chip_gen: v7x
topology: tpu7x:2x2x1
jax: 0.10.0
libtpu: 0.0.40
codegen_flags: <defaults>
</compile_context>

<pallas_src>
import jax
import jax.numpy as jnp
from jax.experimental import pallas as pl
from jax.experimental.pallas import tpu as pltpu

# ----------------------------------------------------------------------------
# Constants implied by the module (small, self-consistent choices).
# ----------------------------------------------------------------------------
Z = 32                      # latent dimension
IMG_SIZE = 8                # image height/width
IMG_CHANNELS = 1            # output channels
SIZE = IMG_CHANNELS * IMG_SIZE * IMG_SIZE   # flattened image size (64)

# Hidden widths exactly as in the PyTorch Sequential.
LAYER_DIMS = [
    Z,
    IMG_SIZE * 8,    # 64
    IMG_SIZE * 16,   # 128
    IMG_SIZE * 32,   # 256
    IMG_SIZE * 64,   # 512
    IMG_SIZE * 128,  # 1024
    IMG_SIZE * 256,  # 2048
    SIZE,            # 64
]
N_LAYERS = len(LAYER_DIMS) - 1          # 7

# Layers 0..3 are packed (K-concat) into a single bf16 slab of width SLAB_N.
N_SMALL = 4
SLAB_ROW_OFF = []
_off = 0
for _i in range(N_SMALL):
    SLAB_ROW_OFF.append(_off)
    _off += LAYER_DIMS[_i]
SLAB_K = _off                            # 480 (multiple of 16 -> bf16 aligned)
SLAB_N = LAYER_DIMS[N_SMALL]             # 512 (widest small-layer output)

MAX_N = max(LAYER_DIMS[1:])              # 2048
BIAS_ROWS = 8                            # >= N_LAYERS, sublane aligned

M_TILE_MAX = 256                         # batch tile for large B (use 128 on v5e)
SUM_KN = sum(LAYER_DIMS[i] * LAYER_DIMS[i + 1] for i in range(N_LAYERS))


# ----------------------------------------------------------------------------
# Fused Pallas kernel: 6 x (Linear + ReLU) + (Linear + Sigmoid) in one body.
# Refs: x, w_small_slab, w4, w5, w6, bias_pack, out
# ----------------------------------------------------------------------------
def _generator_kernel(x_ref, w_small_ref, w4_ref, w5_ref, w6_ref, b_ref, o_ref):
    # Activations stay bf16 between layers; matmuls accumulate in f32 (MXU).
    h = x_ref[...].astype(jnp.bfloat16)            # (M, Z)
    big_w_refs = {4: w4_ref, 5: w5_ref, 6: w6_ref}

    for layer in range(N_LAYERS):
        k = LAYER_DIMS[layer]
        n = LAYER_DIMS[layer + 1]
        if layer < N_SMALL:
            off = SLAB_ROW_OFF[layer]
            w = w_small_ref[off:off + k, 0:n]       # static slice of the slab
        else:
            w = big_w_refs[layer][...]              # (k, n) bf16
        y = jnp.dot(h, w, preferred_element_type=jnp.float32)
        y = y + b_ref[layer:layer + 1, 0:n]         # (1, n) f32 bias broadcast
        if layer < N_LAYERS - 1:
            h = jnp.maximum(y, 0.0).astype(jnp.bfloat16)   # ReLU, bf16 carry
        else:
            o_ref[...] = jax.nn.sigmoid(y).astype(o_ref.dtype)


def generator_forward(kparams, z):
    """Full generator forward: one fused pallas_call + NCHW reshape."""
    w_small, w4, w5, w6, bias = kparams
    B = z.shape[0]

    # Batch tiling: tiny batches -> one full-array block (no padding needed);
    # large batches -> M tile of 256 on a "parallel" grid axis (megacore).
    m_tile = B if B <= M_TILE_MAX else M_TILE_MAX
    grid_m = pl.cdiv(B, m_tile)

    weight_bytes = (w_small.size + w4.size + w5.size + w6.size) * 2 + bias.size * 4
    cost = pl.CostEstimate(
        flops=2 * B * SUM_KN,
        transcendentals=B * SIZE,                       # sigmoid on the output
        bytes_accessed=weight_bytes + z.size * 4 + B * SIZE * 4,
    )

    def const_spec(shape):
        # Full-array block, constant index map -> fetched once, not per step.
        return pl.BlockSpec(shape, lambda i: (0, 0))

    out = pl.pallas_call(
        _generator_kernel,
        out_shape=jax.ShapeDtypeStruct((B, SIZE), jnp.float32),
        grid=(grid_m,),
        in_specs=[
            pl.BlockSpec((m_tile, Z), lambda i: (i, 0)),
            const_spec(w_small.shape),
            const_spec(w4.shape),
            const_spec(w5.shape),
            const_spec(w6.shape),
            const_spec(bias.shape),
        ],
        out_specs=pl.BlockSpec((m_tile, SIZE), lambda i: (i, 0)),
        compiler_params=pltpu.CompilerParams(
            dimension_semantics=("parallel",),
            vmem_limit_bytes=32 << 20,
        ),
        cost_estimate=cost,
    )(z, w_small, w4, w5, w6, bias)

    # Matches PyTorch: output.view(B, IMG_CHANNELS, IMG_SIZE, IMG_SIZE)
    return out.reshape(B, IMG_CHANNELS, IMG_SIZE, IMG_SIZE)


# ----------------------------------------------------------------------------
# Parameter init (PyTorch nn.Linear-style uniform) and one-time kernel packing.
# ----------------------------------------------------------------------------
def init_generator_params(key):
    params = []
    for i in range(N_LAYERS):
        fan_in, fan_out = LAYER_DIMS[i], LAYER_DIMS[i + 1]
        key, kw, kb = jax.random.split(key, 3)
        bound = 1.0 / (fan_in ** 0.5)
        w = jax.random.uniform(kw, (fan_in, fan_out), jnp.float32, -bound, bound)
        b = jax.random.uniform(kb, (1, fan_out), jnp.float32, -bound, bound)
        params.append((w, b))
    return params


def prepare_kernel_params(params_f32):
    """Pack parameters for the kernel (call ONCE and cache the result):
       - layers 0..3 weights  -> one bf16 slab (SLAB_K, SLAB_N), K-concat
       - layers 4..6 weights  -> individual bf16 arrays (no lane padding)
       - all 7 biases         -> one f32 array (BIAS_ROWS, MAX_N)
    """
    w_small = jnp.zeros((SLAB_K, SLAB_N), jnp.bfloat16)
    for i in range(N_SMALL):
        w, _ = params_f32[i]
        off = SLAB_ROW_OFF[i]
        w_small = w_small.at[off:off + w.shape[0], 0:w.shape[1]].set(
            w.astype(jnp.bfloat16))

    w4 = params_f32[4][0].astype(jnp.bfloat16)
    w5 = params_f32[5][0].astype(jnp.bfloat16)
    w6 = params_f32[6][0].astype(jnp.bfloat16)

    bias = jnp.zeros((BIAS_ROWS, MAX_N), jnp.float32)
    for i, (_, b) in enumerate(params_f32):
        bias = bias.at[i, 0:b.shape[1]].set(b[0].astype(jnp.float32))

    return (w_small, w4, w5, w6, bias)


# ----------------------------------------------------------------------------
# Pure-JAX reference (same bf16-weight / f32-accumulate arithmetic).
# ----------------------------------------------------------------------------
def generator_forward_ref(params_f32, z):
    h = z.astype(jnp.bfloat16)
    for i, (w, b) in enumerate(params_f32):
        y = jnp.dot(h, w.astype(jnp.bfloat16),
                    preferred_element_type=jnp.float32) + b
        if i < len(params_f32) - 1:
            h = jnp.maximum(y, 0.0).astype(jnp.bfloat16)
        else:
            h = jax.nn.sigmoid(y)
    return h.reshape(z.shape[0], IMG_CHANNELS, IMG_SIZE, IMG_SIZE)


if __name__ == "__main__":
    key = jax.random.PRNGKey(0)
    key, k_z = jax.random.split(key)

    batch = 2
    z = jax.random.normal(k_z, (batch, Z), dtype=jnp.float32)

    params = init_generator_params(key)
    kparams = prepare_kernel_params(params)     # packed/cast once, cached

    fwd = jax.jit(generator_forward)
    out = jax.block_until_ready(fwd(kparams, z))

    assert out.shape == (batch, IMG_CHANNELS, IMG_SIZE, IMG_SIZE), out.shape

    ref = generator_forward_ref(params, z)
    assert jnp.allclose(out, ref, atol=2e-2, rtol=2e-2), "mismatch vs reference"

    print("KERNEL_OK")
</pallas_src>

<mosaic_0001>
module attributes {stable_mosaic.version = 11 : i64} {
  func.func @_generator_kernel(%arg0: i32, %arg1: memref<2x32xf32, #tpu.memory_space<vmem>>, %arg2: memref<480x512xbf16, #tpu.memory_space<vmem>>, %arg3: memref<512x1024xbf16, #tpu.memory_space<vmem>>, %arg4: memref<1024x2048xbf16, #tpu.memory_space<vmem>>, %arg5: memref<2048x64xbf16, #tpu.memory_space<vmem>>, %arg6: memref<8x2048xf32, #tpu.memory_space<vmem>>, %arg7: memref<2x64xf32, #tpu.memory_space<vmem>>) attributes {dimension_semantics = [#tpu.dimension_semantics<parallel>], iteration_bounds = array<i64: 1>, scalar_prefetch = 0 : i64, scratch_operands = 0 : i64, tpu.core_type = #tpu.core_type<tc>, window_params = [{transform_indices = @transform_0, window_bounds = array<i64: 2, 32>}, {pipeline_mode = #tpu.pipeline_mode<synchronous>, transform_indices = @transform_1, window_bounds = array<i64: 480, 512>}, {pipeline_mode = #tpu.pipeline_mode<synchronous>, transform_indices = @transform_2, window_bounds = array<i64: 512, 1024>}, {pipeline_mode = #tpu.pipeline_mode<synchronous>, transform_indices = @transform_3, window_bounds = array<i64: 1024, 2048>}, {pipeline_mode = #tpu.pipeline_mode<synchronous>, transform_indices = @transform_4, window_bounds = array<i64: 2048, 64>}, {pipeline_mode = #tpu.pipeline_mode<synchronous>, transform_indices = @transform_5, window_bounds = array<i64: 8, 2048>}, {transform_indices = @transform_6, window_bounds = array<i64: 2, 64>}]} {
    %c0 = arith.constant 0 : index
    %c0_0 = arith.constant 0 : index
    %0 = vector.load %arg1[%c0, %c0_0] : memref<2x32xf32, #tpu.memory_space<vmem>>, vector<2x32xf32>
    %1 = arith.truncf %0 : vector<2x32xf32> to vector<2x32xbf16>
    %c0_1 = arith.constant 0 : index
    %c0_2 = arith.constant 0 : index
    %2 = vector.load %arg2[%c0_1, %c0_2] : memref<480x512xbf16, #tpu.memory_space<vmem>>, vector<32x64xbf16>
    %cst = arith.constant dense<0.000000e+00> : vector<2x64xf32>
    %3 = tpu.matmul %1, %2, %cst {dimension_numbers = #tpu.dot_dimension_numbers<[1], [0], [0], [1], [0, 0, 1, 1], [], []>} : vector<2x32xbf16>, vector<32x64xbf16>, vector<2x64xf32> -> vector<2x64xf32>
    %c0_3 = arith.constant 0 : index
    %c0_4 = arith.constant 0 : index
    %4 = vector.load %arg6[%c0_3, %c0_4] : memref<8x2048xf32, #tpu.memory_space<vmem>>, vector<1x64xf32>
    %5 = vector.broadcast %4 : vector<1x64xf32> to vector<2x64xf32>
    %6 = arith.addf %3, %5 : vector<2x64xf32>
    %cst_5 = arith.constant 0.000000e+00 : f32
    %7 = vector.broadcast %cst_5 : f32 to vector<2x64xf32>
    %8 = arith.maximumf %6, %7 : vector<2x64xf32>
    %9 = arith.truncf %8 : vector<2x64xf32> to vector<2x64xbf16>
    %c32 = arith.constant 32 : index
    %c0_6 = arith.constant 0 : index
    %10 = vector.load %arg2[%c32, %c0_6] : memref<480x512xbf16, #tpu.memory_space<vmem>>, vector<64x128xbf16>
    %cst_7 = arith.constant dense<0.000000e+00> : vector<2x128xf32>
    %11 = tpu.matmul %9, %10, %cst_7 {dimension_numbers = #tpu.dot_dimension_numbers<[1], [0], [0], [1], [0, 0, 1, 1], [], []>} : vector<2x64xbf16>, vector<64x128xbf16>, vector<2x128xf32> -> vector<2x128xf32>
    %c1 = arith.constant 1 : index
    %c0_8 = arith.constant 0 : index
    %12 = vector.load %arg6[%c1, %c0_8] : memref<8x2048xf32, #tpu.memory_space<vmem>>, vector<1x128xf32>
    %13 = vector.broadcast %12 : vector<1x128xf32> to vector<2x128xf32>
    %14 = arith.addf %11, %13 : vector<2x128xf32>
    %cst_9 = arith.constant 0.000000e+00 : f32
    %15 = vector.broadcast %cst_9 : f32 to vector<2x128xf32>
    %16 = arith.maximumf %14, %15 : vector<2x128xf32>
    %17 = arith.truncf %16 : vector<2x128xf32> to vector<2x128xbf16>
    %c96 = arith.constant 96 : index
    %c0_10 = arith.constant 0 : index
    %18 = vector.load %arg2[%c96, %c0_10] : memref<480x512xbf16, #tpu.memory_space<vmem>>, vector<128x256xbf16>
    %cst_11 = arith.constant dense<0.000000e+00> : vector<2x256xf32>
    %19 = tpu.matmul %17, %18, %cst_11 {dimension_numbers = #tpu.dot_dimension_numbers<[1], [0], [0], [1], [0, 0, 1, 1], [], []>} : vector<2x128xbf16>, vector<128x256xbf16>, vector<2x256xf32> -> vector<2x256xf32>
    %c2 = arith.constant 2 : index
    %c0_12 = arith.constant 0 : index
    %20 = vector.load %arg6[%c2, %c0_12] : memref<8x2048xf32, #tpu.memory_space<vmem>>, vector<1x256xf32>
    %21 = vector.broadcast %20 : vector<1x256xf32> to vector<2x256xf32>
    %22 = arith.addf %19, %21 : vector<2x256xf32>
    %cst_13 = arith.constant 0.000000e+00 : f32
    %23 = vector.broadcast %cst_13 : f32 to vector<2x256xf32>
    %24 = arith.maximumf %22, %23 : vector<2x256xf32>
    %25 = arith.truncf %24 : vector<2x256xf32> to vector<2x256xbf16>
    %c224 = arith.constant 224 : index
    %c0_14 = arith.constant 0 : index
    %26 = vector.load %arg2[%c224, %c0_14] : memref<480x512xbf16, #tpu.memory_space<vmem>>, vector<256x512xbf16>
    %cst_15 = arith.constant dense<0.000000e+00> : vector<2x512xf32>
    %27 = tpu.matmul %25, %26, %cst_15 {dimension_numbers = #tpu.dot_dimension_numbers<[1], [0], [0], [1], [0, 0, 1, 1], [], []>} : vector<2x256xbf16>, vector<256x512xbf16>, vector<2x512xf32> -> vector<2x512xf32>
    %c3 = arith.constant 3 : index
    %c0_16 = arith.constant 0 : index
    %28 = vector.load %arg6[%c3, %c0_16] : memref<8x2048xf32, #tpu.memory_space<vmem>>, vector<1x512xf32>
    %29 = vector.broadcast %28 : vector<1x512xf32> to vector<2x512xf32>
    %30 = arith.addf %27, %29 : vector<2x512xf32>
    %cst_17 = arith.constant 0.000000e+00 : f32
    %31 = vector.broadcast %cst_17 : f32 to vector<2x512xf32>
    %32 = arith.maximumf %30, %31 : vector<2x512xf32>
    %33 = arith.truncf %32 : vector<2x512xf32> to vector<2x512xbf16>
    %c0_18 = arith.constant 0 : index
    %c0_19 = arith.constant 0 : index
    %34 = vector.load %arg3[%c0_18, %c0_19] : memref<512x1024xbf16, #tpu.memory_space<vmem>>, vector<512x1024xbf16>
    %cst_20 = arith.constant dense<0.000000e+00> : vector<2x1024xf32>
    %35 = tpu.matmul %33, %34, %cst_20 {dimension_numbers = #tpu.dot_dimension_numbers<[1], [0], [0], [1], [0, 0, 1, 1], [], []>} : vector<2x512xbf16>, vector<512x1024xbf16>, vector<2x1024xf32> -> vector<2x1024xf32>
    %c4 = arith.constant 4 : index
    %c0_21 = arith.constant 0 : index
    %36 = vector.load %arg6[%c4, %c0_21] : memref<8x2048xf32, #tpu.memory_space<vmem>>, vector<1x1024xf32>
    %37 = vector.broadcast %36 : vector<1x1024xf32> to vector<2x1024xf32>
    %38 = arith.addf %35, %37 : vector<2x1024xf32>
    %cst_22 = arith.constant 0.000000e+00 : f32
    %39 = vector.broadcast %cst_22 : f32 to vector<2x1024xf32>
    %40 = arith.maximumf %38, %39 : vector<2x1024xf32>
    %41 = arith.truncf %40 : vector<2x1024xf32> to vector<2x1024xbf16>
    %c0_23 = arith.constant 0 : index
    %c0_24 = arith.constant 0 : index
    %42 = vector.load %arg4[%c0_23, %c0_24] : memref<1024x2048xbf16, #tpu.memory_space<vmem>>, vector<1024x2048xbf16>
    %cst_25 = arith.constant dense<0.000000e+00> : vector<2x2048xf32>
    %43 = tpu.matmul %41, %42, %cst_25 {dimension_numbers = #tpu.dot_dimension_numbers<[1], [0], [0], [1], [0, 0, 1, 1], [], []>} : vector<2x1024xbf16>, vector<1024x2048xbf16>, vector<2x2048xf32> -> vector<2x2048xf32>
    %c5 = arith.constant 5 : index
    %c0_26 = arith.constant 0 : index
    %44 = vector.load %arg6[%c5, %c0_26] : memref<8x2048xf32, #tpu.memory_space<vmem>>, vector<1x2048xf32>
    %45 = vector.broadcast %44 : vector<1x2048xf32> to vector<2x2048xf32>
    %46 = arith.addf %43, %45 : vector<2x2048xf32>
    %cst_27 = arith.constant 0.000000e+00 : f32
    %47 = vector.broadcast %cst_27 : f32 to vector<2x2048xf32>
    %48 = arith.maximumf %46, %47 : vector<2x2048xf32>
    %49 = arith.truncf %48 : vector<2x2048xf32> to vector<2x2048xbf16>
    %c0_28 = arith.constant 0 : index
    %c0_29 = arith.constant 0 : index
    %50 = vector.load %arg5[%c0_28, %c0_29] : memref<2048x64xbf16, #tpu.memory_space<vmem>>, vector<2048x64xbf16>
    %cst_30 = arith.constant dense<0.000000e+00> : vector<2x64xf32>
    %51 = tpu.matmul %49, %50, %cst_30 {dimension_numbers = #tpu.dot_dimension_numbers<[1], [0], [0], [1], [0, 0, 1, 1], [], []>} : vector<2x2048xbf16>, vector<2048x64xbf16>, vector<2x64xf32> -> vector<2x64xf32>
    %c6 = arith.constant 6 : index
    %c0_31 = arith.constant 0 : index
    %52 = vector.load %arg6[%c6, %c0_31] : memref<8x2048xf32, #tpu.memory_space<vmem>>, vector<1x64xf32>
    %53 = vector.broadcast %52 : vector<1x64xf32> to vector<2x64xf32>
    %54 = arith.addf %51, %53 : vector<2x64xf32>
    %55 = arith.negf %54 : vector<2x64xf32>
    %56 = math.exp %55 : vector<2x64xf32>
    %cst_32 = arith.constant 1.000000e+00 : f32
    %57 = vector.broadcast %cst_32 : f32 to vector<2x64xf32>
    %58 = arith.addf %57, %56 : vector<2x64xf32>
    %59 = arith.divf %57, %58 : vector<2x64xf32>
    %c0_33 = arith.constant 0 : index
    %c0_34 = arith.constant 0 : index
    %60 = vector.load %arg7[%c0_33, %c0_34] : memref<2x64xf32, #tpu.memory_space<vmem>>, vector<2x64xf32>
    tpu.vector_store %arg7[%c0_33, %c0_34], %59 {strides = array<i32>} : memref<2x64xf32, #tpu.memory_space<vmem>>, vector<2x64xf32>,
    return
  }
  func.func @transform_0(%arg0: i32) -> (i32, i32) {
    %c0_i32 = arith.constant 0 : i32
    %c0_i32_0 = arith.constant 0 : i32
    return %arg0, %c0_i32 : i32, i32
  }
  func.func @transform_1(%arg0: i32) -> (i32, i32) {
    %c0_i32 = arith.constant 0 : i32
    %c0_i32_0 = arith.constant 0 : i32
    %c0_i32_1 = arith.constant 0 : i32
    return %c0_i32, %c0_i32_0 : i32, i32
  }
  func.func @transform_2(%arg0: i32) -> (i32, i32) {
    %c0_i32 = arith.constant 0 : i32
    %c0_i32_0 = arith.constant 0 : i32
    %c0_i32_1 = arith.constant 0 : i32
    return %c0_i32, %c0_i32_0 : i32, i32
  }
  func.func @transform_3(%arg0: i32) -> (i32, i32) {
    %c0_i32 = arith.constant 0 : i32
    %c0_i32_0 = arith.constant 0 : i32
    %c0_i32_1 = arith.constant 0 : i32
    return %c0_i32, %c0_i32_0 : i32, i32
  }
  func.func @transform_4(%arg0: i32) -> (i32, i32) {
    %c0_i32 = arith.constant 0 : i32
    %c0_i32_0 = arith.constant 0 : i32
    %c0_i32_1 = arith.constant 0 : i32
    return %c0_i32, %c0_i32_0 : i32, i32
  }
  func.func @transform_5(%arg0: i32) -> (i32, i32) {
    %c0_i32 = arith.constant 0 : i32
    %c0_i32_0 = arith.constant 0 : i32
    %c0_i32_1 = arith.constant 0 : i32
    return %c0_i32, %c0_i32_0 : i32, i32
  }
  func.func @transform_6(%arg0: i32) -> (i32, i32) {
    %c0_i32 = arith.constant 0 : i32
    %c0_i32_0 = arith.constant 0 : i32
    return %arg0, %c0_i32 : i32, i32
  }
}

</mosaic_0001>

<llo_original>
// kernel: generator_forward.1
$region0: #{generator_forward.1}
  #allocation0 [shape = 'u32[]', space=smem, size = 0x4, offset = 0x4, fixed_abs, tag = 'smem constant byte address 0x4 - core index']
  #allocation1 [shape = 'u32[144,128]{1,0:T(1,128)}', space=vmem, size = 0x12000, scoped, tag = 'internal scratch']
  %s0 = inlined_call_operand.hbm [shape: f32[2,32], index: 0, kind: input, shape index: {}]
  %s1 = inlined_call_operand.hbm [shape: bf16[480,512], index: 1, kind: input, shape index: {}]
  %s2 = inlined_call_operand.hbm [shape: bf16[512,1024], index: 2, kind: input, shape index: {}]
  %s3 = inlined_call_operand.hbm [shape: bf16[1024,2048], index: 3, kind: input, shape index: {}]
  %s4 = inlined_call_operand.vmem [shape: bf16[2048,64], index: 4, kind: input, shape index: {}]
  %s5 = inlined_call_operand.hbm [shape: f32[8,2048], index: 5, kind: input, shape index: {}]
  %s6 = inlined_call_operand.vmem [shape: f32[2,64], index: 6, kind: output, shape index: {}]
  %s7 = sld [smem:[#allocation0]]
  $region54: #{generator_forward.1} parent=0
    _
  %s9 = ssub.s32 1, %s7
  %s10 = scalar_select 0, %s9, %s7
  $region1: #{generator_forward.1} parent=0
    #allocation2 [shape = 'u8[1024]{0}', space=vmem, size = 0x400, scoped, tag = 'input window, operand 0, single buffered']
    #allocation3 [shape = 's32[1]{0}', space=sflag, size = 0x4, scoped, tag = 'scoped memory for generator_forward.1']
    #allocation4 [shape = 'u8[491520]{0}', space=vmem, size = 0x78000, scoped, tag = 'input window, operand 1, single buffered']
    #allocation5 [shape = 's32[1]{0}', space=sflag, size = 0x4, scoped, tag = 'scoped memory for generator_forward.1']
    #allocation6 [shape = 'u8[1048576]{0}', space=vmem, size = 0x100000, scoped, tag = 'input window, operand 2, single buffered']
    #allocation7 [shape = 'u8[4194304]{0}', space=vmem, size = 0x400000, scoped, tag = 'input window, operand 3, single buffered']
    #allocation8 [shape = 's32[1]{0}', space=sflag, size = 0x4, scoped, tag = 'scoped memory for generator_forward.1']
    #allocation9 [shape = 'u8[65536]{0}', space=vmem, size = 0x10000, scoped, tag = 'input window, operand 5, single buffered']
    %11 = vsyncpa [#allocation3], 0
    %12 = vsyncpa [#allocation5], 0
    %13 = vsyncpa [#allocation8], 0
    // Predicated region
    $region2: #{generator_forward.1} parent=1 // pred_check
      _
    $region3: #{generator_forward.1} parent=1 // pred_check_branch
      %15 = sbr.rel (0) target = $region5
    $region4: #{generator_forward.1} parent=1 // pred_region
      %s17 = ssub.s32 32, 32
      %18 = vsyncadd [#allocation3], %s17
      %s20 = sshll.u32 [#allocation2], 4
      %s21 = int_to_ptr.vmem [resolvable:$true] %s20
      %23 = dma.hbm_to_vmem [thread:$0]  %s0, 32, %s21, [#allocation3]
    $region5: #{generator_forward.1} parent=1 // pred_fallthru
      _
    // Predicated region
    $region6: #{generator_forward.1} parent=1 // pred_check
      _
    $region7: #{generator_forward.1} parent=1 // pred_check_branch
      %25 = sbr.rel (0) target = $region9
    $region8: #{generator_forward.1} parent=1 // pred_region
      %s27 = ssub.s32 15360, 15360
      %28 = vsyncadd [#allocation5], %s27
      %s29 = sshll.u32 [#allocation4], 4
      %s30 = int_to_ptr.vmem [resolvable:$true] %s29
      %35 = dma.hbm_to_vmem [thread:$0]  %s1, 15360, %s30, [#allocation5], 256, 256, 16
    $region9: #{generator_forward.1} parent=1 // pred_fallthru
      _
    // Predicated region
    $region10: #{generator_forward.1} parent=1 // pred_check
      _
    $region11: #{generator_forward.1} parent=1 // pred_check_branch
      %37 = sbr.rel (0) target = $region13
    $region12: #{generator_forward.1} parent=1 // pred_region
      %s39 = ssub.s32 32768, 32768
      %40 = vsyncadd [#allocation5], %s39
      %s41 = sshll.u32 [#allocation6], 4
      %s42 = int_to_ptr.vmem [resolvable:$true] %s41
      %47 = dma.hbm_to_vmem [thread:$0]  %s2, 32768, %s42, [#allocation5], 512, 512, 32
    $region13: #{generator_forward.1} parent=1 // pred_fallthru
      _
    // Predicated region
    $region14: #{generator_forward.1} parent=1 // pred_check
      _
    $region15: #{generator_forward.1} parent=1 // pred_check_branch
      %49 = sbr.rel (0) target = $region17
    $region16: #{generator_forward.1} parent=1 // pred_region
      %s51 = ssub.s32 131072, 131072
      %52 = vsyncadd [#allocation8], %s51
      %s53 = sshll.u32 [#allocation7], 4
      %s54 = int_to_ptr.vmem [resolvable:$true] %s53
      %59 = dma.hbm_to_vmem [thread:$0]  %s3, 131072, %s54, [#allocation8], 1024, 1024, 64
    $region17: #{generator_forward.1} parent=1 // pred_fallthru
      _
    // Predicated region
    $region18: #{generator_forward.1} parent=1 // pred_check
      _
    $region19: #{generator_forward.1} parent=1 // pred_check_branch
      %61 = sbr.rel (0) target = $region21
    $region20: #{generator_forward.1} parent=1 // pred_region
      _
    $region21: #{generator_forward.1} parent=1 // pred_fallthru
      _
    // Predicated region
    $region22: #{generator_forward.1} parent=1 // pred_check
      _
    $region23: #{generator_forward.1} parent=1 // pred_check_branch
      %63 = sbr.rel (0) target = $region25
    $region24: #{generator_forward.1} parent=1 // pred_region
      %s65 = ssub.s32 2048, 2048
      %66 = vsyncadd [#allocation8], %s65
      %s68 = sshll.u32 [#allocation9], 4
      %s69 = int_to_ptr.vmem [resolvable:$true] %s68
      %71 = dma.hbm_to_vmem [thread:$0]  %s5, 2048, %s69, [#allocation8]
    $region25: #{generator_forward.1} parent=1 // pred_fallthru
      _
    // Predicated region
    $region26: #{generator_forward.1} parent=1 // pred_check
      _
    $region27: #{generator_forward.1} parent=1 // pred_check_branch
      %73 = sbr.rel (0) target = $region29
    $region28: #{generator_forward.1} parent=1 // pred_region
      %74 = dma.done [#allocation3], 32
    $region29: #{generator_forward.1} parent=1 // pred_fallthru
      _
    // Predicated region
    $region30: #{generator_forward.1} parent=1 // pred_check
      _
    $region31: #{generator_forward.1} parent=1 // pred_check_branch
      %76 = sbr.rel (0) target = $region33
    $region32: #{generator_forward.1} parent=1 // pred_region
      %77 = dma.done [#allocation5], 15360
    $region33: #{generator_forward.1} parent=1 // pred_fallthru
      _
    // Predicated region
    $region34: #{generator_forward.1} parent=1 // pred_check
      _
    $region35: #{generator_forward.1} parent=1 // pred_check_branch
      %79 = sbr.rel (0) target = $region37
    $region36: #{generator_forward.1} parent=1 // pred_region
      %80 = dma.done [#allocation5], 32768
    $region37: #{generator_forward.1} parent=1 // pred_fallthru
      _
    // Predicated region
    $region38: #{generator_forward.1} parent=1 // pred_check
      _
    $region39: #{generator_forward.1} parent=1 // pred_check_branch
      %82 = sbr.rel (0) target = $region41
    $region40: #{generator_forward.1} parent=1 // pred_region
      %83 = dma.done [#allocation8], 131072
    $region41: #{generator_forward.1} parent=1 // pred_fallthru
      _
    // Predicated region
    $region42: #{generator_forward.1} parent=1 // pred_check
      _
    $region43: #{generator_forward.1} parent=1 // pred_check_branch
      %85 = sbr.rel (0) target = $region45
    $region44: #{generator_forward.1} parent=1 // pred_region
      %86 = dma.done [#allocation8], 2048
    $region45: #{generator_forward.1} parent=1 // pred_fallthru
      _
    %v88 = vld [vmem:[#allocation2] sm:$0x3]
    %v89 = vpack.c.bf16 %v88, %v88
    %v90 = vld [vmem:[#allocation4] sm:$0xf]
    %v91 = vld [vmem:[#allocation4 + $0x10] sm:$0xf]
    %v92 = vld [vmem:[#allocation4 + $0x20] sm:$0xf]
    %v93 = vld [vmem:[#allocation4 + $0x30] sm:$0xf]
    %v94 = vld [vmem:[#allocation9] ss:$0 sm:$0xff]
    %v99 = vunpack.c.l.b16 %v90
    %v100 = vunpack.c.l.b16 %v91
    %v101 = vunpack.c.l.b16 %v92
    %v102 = vunpack.c.l.b16 %v93
    %v103 = vpack.c.b16 %v100, %v99
    %v104 = vpack.c.b16 %v102, %v101
    %vm107 = vcmask 261120
    %v109 = vsel %vm107, %v89, 0
    %111 = vmatprep.subr.bf16.mxu0 0
    %112 = vmatpush1.bf16.msra.mxu0 %v103
    %113 = vmatprep.subr.bf16.mxu0 0
    %114 = vmatpush1.bf16.msra.mxu0 %v104
    %115 = vmatprep.subr.bf16.mxu0 0
    %116 = vmatpush1.bf16.msra.mxu0 0
    %117 = vmatprep.subr.bf16.mxu0 0
    %118 = vmatpush1.bf16.msra.mxu0 0
    %119 = vmatprep.subr.bf16.mxu0 0
    %120 = vmatpush1.bf16.msra.mxu0 0
    %121 = vmatprep.subr.bf16.mxu0 0
    %122 = vmatpush1.bf16.msra.mxu0 0
    %123 = vmatprep.subr.bf16.mxu0 0
    %124 = vmatpush1.bf16.msra.mxu0 0
    %125 = vmatprep.subr.bf16.mxu0 0
    %126 = vmatpush1.bf16.msra.mxu0 0
    %127 = vmatprep.subr.bf16.mxu0 0
    %128 = vmatpush1.bf16.msra.mxu0 0
    %129 = vmatprep.subr.bf16.mxu0 0
    %130 = vmatpush1.bf16.msra.mxu0 0
    %131 = vmatprep.subr.bf16.mxu0 0
    %132 = vmatpush1.bf16.msra.mxu0 0
    %133 = vmatprep.subr.bf16.mxu0 0
    %134 = vmatpush1.bf16.msra.mxu0 0
    %135 = vmatprep.subr.bf16.mxu0 0
    %136 = vmatpush1.bf16.msra.mxu0 0
    %137 = vmatprep.subr.bf16.mxu0 0
    %138 = vmatpush1.bf16.msra.mxu0 0
    %139 = vmatprep.subr.bf16.mxu0 0
    %140 = vmatpush1.bf16.msra.mxu0 0
    %141 = vmatprep.subr.bf16.mxu0 0
    %142 = vmatpush1.bf16.msra.mxu0 0
    %143 = vmatprep.mubr.bf16.mxu0 0
    %144 = vmatmul.mubr.bf16.gmra.mrb[0].mxu0 %v109
    %v145 = vpop.f32.mrb[0].mxu0
    %v146 = vadd.f32 %v94, %v145
    %v147 = vpop.f32.mrb[0].mxu0
    %v148 = vpop.f32.mrb[0].mxu0
    %v149 = vpop.f32.mrb[0].mxu0
    %150 = vdwg.mxu0
    %v151 = vmax.f32 %v146, 0.0
    %v152 = vpack.c.bf16 %v151, %v151
    %v153 = vld [vmem:[#allocation4 + $0x40] sm:$0xf]
    %v154 = vld [vmem:[#allocation4 + $0x50] sm:$0xf]
    %v155 = vld [vmem:[#allocation4 + $0x60] sm:$0xf]
    %v156 = vld [vmem:[#allocation4 + $0x70] sm:$0xf]
    %v157 = vld [vmem:[#allocation4 + $0x80] sm:$0xf]
    %v158 = vld [vmem:[#allocation4 + $0x90] sm:$0xf]
    %v159 = vld [vmem:[#allocation4 + $0xa0] sm:$0xf]
    %v160 = vld [vmem:[#allocation4 + $0xb0] sm:$0xf]
    %v161 = vld [vmem:[#allocation9 + $0x1] ss:$0 sm:$0xff]
    %v170 = vunpack.c.l.b16 %v153
    %v171 = vunpack.c.l.b16 %v154
    %v172 = vunpack.c.l.b16 %v155
    %v173 = vunpack.c.l.b16 %v156
    %v174 = vunpack.c.l.b16 %v157
    %v175 = vunpack.c.l.b16 %v158
    %v176 = vunpack.c.l.b16 %v159
    %v177 = vunpack.c.l.b16 %v160
    %v178 = vpack.c.b16 %v171, %v170
    %v179 = vpack.c.b16 %v173, %v172
    %v180 = vpack.c.b16 %v175, %v174
    %v181 = vpack.c.b16 %v177, %v176
    %vm186 = vcmask 523264
    %v188 = vsel %vm186, %v152, 0
    %190 = vmatprep.subr.bf16.mxu0 0
    %191 = vmatpush1.bf16.msra.mxu0 %v178
    %192 = vmatprep.subr.bf16.mxu0 0
    %193 = vmatpush1.bf16.msra.mxu0 %v179
    %194 = vmatprep.subr.bf16.mxu0 0
    %195 = vmatpush1.bf16.msra.mxu0 %v180
    %196 = vmatprep.subr.bf16.mxu0 0
    %197 = vmatpush1.bf16.msra.mxu0 %v181
    %198 = vmatprep.subr.bf16.mxu0 0
    %199 = vmatpush1.bf16.msra.mxu0 0
    %200 = vmatprep.subr.bf16.mxu0 0
    %201 = vmatpush1.bf16.msra.mxu0 0
    %202 = vmatprep.subr.bf16.mxu0 0
    %203 = vmatpush1.bf16.msra.mxu0 0
    %204 = vmatprep.subr.bf16.mxu0 0
    %205 = vmatpush1.bf16.msra.mxu0 0
    %206 = vmatprep.subr.bf16.mxu0 0
    %207 = vmatpush1.bf16.msra.mxu0 0
    %208 = vmatprep.subr.bf16.mxu0 0
    %209 = vmatpush1.bf16.msra.mxu0 0
    %210 = vmatprep.subr.bf16.mxu0 0
    %211 = vmatpush1.bf16.msra.mxu0 0
    %212 = vmatprep.subr.bf16.mxu0 0
    %213 = vmatpush1.bf16.msra.mxu0 0
    %214 = vmatprep.subr.bf16.mxu0 0
    %215 = vmatpush1.bf16.msra.mxu0 0
    %216 = vmatprep.subr.bf16.mxu0 0
    %217 = vmatpush1.bf16.msra.mxu0 0
    %218 = vmatprep.subr.bf16.mxu0 0
    %219 = vmatpush1.bf16.msra.mxu0 0
    %220 = vmatprep.subr.bf16.mxu0 0
    %221 = vmatpush1.bf16.msra.mxu0 0
    %222 = vmatprep.mubr.bf16.mxu0 0
    %223 = vmatmul.mubr.bf16.gmra.mrb[0].mxu0 %v188
    %v224 = vpop.f32.mrb[0].mxu0
    %v225 = vadd.f32 %v161, %v224
    %v226 = vpop.f32.mrb[0].mxu0
    %v227 = vpop.f32.mrb[0].mxu0
    %v228 = vpop.f32.mrb[0].mxu0
    %229 = vdwg.mxu0
    %v230 = vmax.f32 %v225, 0.0
    %v231 = vpack.c.bf16 %v230, %v230
    %v232 = vld [vmem:[#allocation4 + $0xc0] sm:$0xff]
    %v233 = vld [vmem:[#allocation4 + $0xd0] sm:$0xff]
    %v234 = vld [vmem:[#allocation4 + $0xe0] sm:$0xff]
    %v235 = vld [vmem:[#allocation4 + $0xf0] sm:$0xff]
    %v236 = vld [vmem:[#allocation4 + $0x100] sm:$0xff]
    %v237 = vld [vmem:[#allocation4 + $0x110] sm:$0xff]
    %v238 = vld [vmem:[#allocation4 + $0x120] sm:$0xff]
    %v239 = vld [vmem:[#allocation4 + $0x130] sm:$0xff]
    %v240 = vld [vmem:[#allocation4 + $0x140] sm:$0xff]
    %v241 = vld [vmem:[#allocation4 + $0x150] sm:$0xff]
    %v242 = vld [vmem:[#allocation4 + $0x160] sm:$0xff]
    %v243 = vld [vmem:[#allocation4 + $0x170] sm:$0xff]
    %v244 = vld [vmem:[#allocation4 + $0x180] sm:$0xff]
    %v245 = vld [vmem:[#allocation4 + $0x190] sm:$0xff]
    %v246 = vld [vmem:[#allocation4 + $0x1a0] sm:$0xff]
    %v247 = vld [vmem:[#allocation4 + $0x1b0] sm:$0xff]
    %s248 = scalar_lea.vmem [#allocation9], 2
    %v249 = vld [vmem:[%s248] ss:$8 sm:$0x3]
    %v251 = vlaneseq
    %v252 = vshrl.u32 %v251, 7
    %v253 = vsub.s32 0, %v252
    %v254 = vrot.slane %v249, %v253
    %v255 = vlaneseq
    %v256 = vshrl.u32 %v255, 7
    %v257 = vsub.s32 1, %v256
    %v258 = vrot.slane %v249, %v257
    %v277 = vunpack.c.l.b16 %v232
    %v278 = vunpack.c.h.b16 %v232
    %v279 = vunpack.c.l.b16 %v233
    %v280 = vunpack.c.h.b16 %v233
    %v281 = vunpack.c.l.b16 %v234
    %v282 = vunpack.c.h.b16 %v234
    %v283 = vunpack.c.l.b16 %v235
    %v284 = vunpack.c.h.b16 %v235
    %v285 = vunpack.c.l.b16 %v236
    %v286 = vunpack.c.h.b16 %v236
    %v287 = vunpack.c.l.b16 %v237
    %v288 = vunpack.c.h.b16 %v237
    %v289 = vunpack.c.l.b16 %v238
    %v290 = vunpack.c.h.b16 %v238
    %v291 = vunpack.c.l.b16 %v239
    %v292 = vunpack.c.h.b16 %v239
    %v293 = vunpack.c.l.b16 %v240
    %v294 = vunpack.c.h.b16 %v240
    %v295 = vunpack.c.l.b16 %v241
    %v296 = vunpack.c.h.b16 %v241
    %v297 = vunpack.c.l.b16 %v242
    %v298 = vunpack.c.h.b16 %v242
    %v299 = vunpack.c.l.b16 %v243
    %v300 = vunpack.c.h.b16 %v243
    %v301 = vunpack.c.l.b16 %v244
    %v302 = vunpack.c.h.b16 %v244
    %v303 = vunpack.c.l.b16 %v245
    %v304 = vunpack.c.h.b16 %v245
    %v305 = vunpack.c.l.b16 %v246
    %v306 = vunpack.c.h.b16 %v246
    %v307 = vunpack.c.l.b16 %v247
    %v308 = vunpack.c.h.b16 %v247
    %v309 = vpack.c.b16 %v279, %v277
    %v310 = vpack.c.b16 %v280, %v278
    %v311 = vpack.c.b16 %v283, %v281
    %v312 = vpack.c.b16 %v284, %v282
    %v313 = vpack.c.b16 %v287, %v285
    %v314 = vpack.c.b16 %v288, %v286
    %v315 = vpack.c.b16 %v291, %v289
    %v316 = vpack.c.b16 %v292, %v290
    %v317 = vpack.c.b16 %v295, %v293
    %v318 = vpack.c.b16 %v296, %v294
    %v319 = vpack.c.b16 %v299, %v297
    %v320 = vpack.c.b16 %v300, %v298
    %v321 = vpack.c.b16 %v303, %v301
    %v322 = vpack.c.b16 %v304, %v302
    %v323 = vpack.c.b16 %v307, %v305
    %v324 = vpack.c.b16 %v308, %v306
    %341 = vmatprep.subr.bf16.mxu0 %v310
    %342 = vmatpush1.bf16.msra.mxu0 %v309
    %343 = vmatprep.subr.bf16.mxu0 %v312
    %344 = vmatpush1.bf16.msra.mxu0 %v311
    %345 = vmatprep.subr.bf16.mxu0 %v314
    %346 = vmatpush1.bf16.msra.mxu0 %v313
    %347 = vmatprep.subr.bf16.mxu0 %v316
    %348 = vmatpush1.bf16.msra.mxu0 %v315
    %349 = vmatprep.subr.bf16.mxu0 %v318
    %350 = vmatpush1.bf16.msra.mxu0 %v317
    %351 = vmatprep.subr.bf16.mxu0 %v320
    %352 = vmatpush1.bf16.msra.mxu0 %v319
    %353 = vmatprep.subr.bf16.mxu0 %v322
    %354 = vmatpush1.bf16.msra.mxu0 %v321
    %355 = vmatprep.subr.bf16.mxu0 %v324
    %356 = vmatpush1.bf16.msra.mxu0 %v323
    %357 = vmatprep.subr.bf16.mxu0 0
    %358 = vmatpush1.bf16.msra.mxu0 0
    %359 = vmatprep.subr.bf16.mxu0 0
    %360 = vmatpush1.bf16.msra.mxu0 0
    %361 = vmatprep.subr.bf16.mxu0 0
    %362 = vmatpush1.bf16.msra.mxu0 0
    %363 = vmatprep.subr.bf16.mxu0 0
    %364 = vmatpush1.bf16.msra.mxu0 0
    %365 = vmatprep.subr.bf16.mxu0 0
    %366 = vmatpush1.bf16.msra.mxu0 0
    %367 = vmatprep.subr.bf16.mxu0 0
    %368 = vmatpush1.bf16.msra.mxu0 0
    %369 = vmatprep.subr.bf16.mxu0 0
    %370 = vmatpush1.bf16.msra.mxu0 0
    %371 = vmatprep.subr.bf16.mxu0 0
    %372 = vmatpush1.bf16.msra.mxu0 0
    %373 = vmatprep.mubr.bf16.mxu0 0
    %374 = vmatmul.mubr.bf16.gmra.mrb[0].mxu0 %v231
    %v375 = vpop.f32.mrb[0].mxu0
    %v376 = vadd.f32 %v254, %v375
    %v377 = vpop.f32.mrb[0].mxu0
    %v378 = vadd.f32 %v258, %v377
    %v379 = vpop.f32.mrb[0].mxu0
    %v380 = vpop.f32.mrb[0].mxu0
    %381 = vdwg.mxu0
    %v382 = vmax.f32 %v376, 0.0
    %v383 = vmax.f32 %v378, 0.0
    %v384 = vpack.c.bf16 %v382, %v382
    %v385 = vpack.c.bf16 %v383, %v383
    %v386 = vld [vmem:[#allocation4 + $0x1c0] sm:$0xff]
    %v387 = vld [vmem:[#allocation4 + $0x1c8] sm:$0xff]
    %v388 = vld [vmem:[#allocation4 + $0x1d0] sm:$0xff]
    %v389 = vld [vmem:[#allocation4 + $0x1d8] sm:$0xff]
    %v390 = vld [vmem:[#allocation4 + $0x1e0] sm:$0xff]
    %v391 = vld [vmem:[#allocation4 + $0x1e8] sm:$0xff]
    %v392 = vld [vmem:[#allocation4 + $0x1f0] sm:$0xff]
    %v393 = vld [vmem:[#allocation4 + $0x1f8] sm:$0xff]
    %v394 = vld [vmem:[#allocation4 + $0x200] sm:$0xff]
    %v395 = vld [vmem:[#allocation4 + $0x208] sm:$0xff]
    %v396 = vld [vmem:[#allocation4 + $0x210] sm:$0xff]
    %v397 = vld [vmem:[#allocation4 + $0x218] sm:$0xff]
    %v398 = vld [vmem:[#allocation4 + $0x220] sm:$0xff]
    %v399 = vld [vmem:[#allocation4 + $0x228] sm:$0xff]
    %v400 = vld [vmem:[#allocation4 + $0x230] sm:$0xff]
    %v401 = vld [vmem:[#allocation4 + $0x238] sm:$0xff]
    %v402 = vld [vmem:[#allocation4 + $0x240] sm:$0xff]
    %v403 = vld [vmem:[#allocation4 + $0x248] sm:$0xff]
    %v404 = vld [vmem:[#allocation4 + $0x250] sm:$0xff]
    %v405 = vld [vmem:[#allocation4 + $0x258] sm:$0xff]
    %v406 = vld [vmem:[#allocation4 + $0x260] sm:$0xff]
    %v407 = vld [vmem:[#allocation4 + $0x268] sm:$0xff]
    %v408 = vld [vmem:[#allocation4 + $0x270] sm:$0xff]
    %v409 = vld [vmem:[#allocation4 + $0x278] sm:$0xff]
    %v410 = vld [vmem:[#allocation4 + $0x280] sm:$0xff]
    %v411 = vld [vmem:[#allocation4 + $0x288] sm:$0xff]
    %v412 = vld [vmem:[#allocation4 + $0x290] sm:$0xff]
    %v413 = vld [vmem:[#allocation4 + $0x298] sm:$0xff]
    %v414 = vld [vmem:[#allocation4 + $0x2a0] sm:$0xff]
    %v415 = vld [vmem:[#allocation4 + $0x2a8] sm:$0xff]
    %v416 = vld [vmem:[#allocation4 + $0x2b0] sm:$0xff]
    %v417 = vld [vmem:[#allocation4 + $0x2b8] sm:$0xff]
    %v418 = vld [vmem:[#allocation4 + $0x2c0] sm:$0xff]
    %v419 = vld [vmem:[#allocation4 + $0x2c8] sm:$0xff]
    %v420 = vld [vmem:[#allocation4 + $0x2d0] sm:$0xff]
    %v421 = vld [vmem:[#allocation4 + $0x2d8] sm:$0xff]
    %v422 = vld [vmem:[#allocation4 + $0x2e0] sm:$0xff]
    %v423 = vld [vmem:[#allocation4 + $0x2e8] sm:$0xff]
    %v424 = vld [vmem:[#allocation4 + $0x2f0] sm:$0xff]
    %v425 = vld [vmem:[#allocation4 + $0x2f8] sm:$0xff]
    %v426 = vld [vmem:[#allocation4 + $0x300] sm:$0xff]
    %v427 = vld [vmem:[#allocation4 + $0x308] sm:$0xff]
    %v428 = vld [vmem:[#allocation4 + $0x310] sm:$0xff]
    %v429 = vld [vmem:[#allocation4 + $0x318] sm:$0xff]
    %v430 = vld [vmem:[#allocation4 + $0x320] sm:$0xff]
    %v431 = vld [vmem:[#allocation4 + $0x328] sm:$0xff]
    %v432 = vld [vmem:[#allocation4 + $0x330] sm:$0xff]
    %v433 = vld [vmem:[#allocation4 + $0x338] sm:$0xff]
    %v434 = vld [vmem:[#allocation4 + $0x340] sm:$0xff]
    %v435 = vld [vmem:[#allocation4 + $0x348] sm:$0xff]
    %v436 = vld [vmem:[#allocation4 + $0x350] sm:$0xff]
    %v437 = vld [vmem:[#allocation4 + $0x358] sm:$0xff]
    %v438 = vld [vmem:[#allocation4 + $0x360] sm:$0xff]
    %v439 = vld [vmem:[#allocation4 + $0x368] sm:$0xff]
    %v440 = vld [vmem:[#allocation4 + $0x370] sm:$0xff]
    %v441 = vld [vmem:[#allocation4 + $0x378] sm:$0xff]
    %v442 = vld [vmem:[#allocation4 + $0x380] sm:$0xff]
    %v443 = vld [vmem:[#allocation4 + $0x388] sm:$0xff]
    %v444 = vld [vmem:[#allocation4 + $0x390] sm:$0xff]
    %v445 = vld [vmem:[#allocation4 + $0x398] sm:$0xff]
    %v446 = vld [vmem:[#allocation4 + $0x3a0] sm:$0xff]
    %v447 = vld [vmem:[#allocation4 + $0x3a8] sm:$0xff]
    %v448 = vld [vmem:[#allocation4 + $0x3b0] sm:$0xff]
    %v449 = vld [vmem:[#allocation4 + $0x3b8] sm:$0xff]
    %s450 = scalar_lea.vmem [#allocation9], 3
    %v451 = vld [vmem:[%s450] ss:$8 sm:$0xf]
    %v453 = vlaneseq
    %v454 = vshrl.u32 %v453, 7
    %v455 = vsub.s32 0, %v454
    %v456 = vrot.slane %v451, %v455
    %v457 = vlaneseq
    %v458 = vshrl.u32 %v457, 7
    %v459 = vsub.s32 1, %v458
    %v460 = vrot.slane %v451, %v459
    %v461 = vlaneseq
    %v462 = vshrl.u32 %v461, 7
    %v463 = vsub.s32 2, %v462
    %v464 = vrot.slane %v451, %v463
    %v465 = vlaneseq
    %v466 = vshrl.u32 %v465, 7
    %v467 = vsub.s32 3, %v466
    %v468 = vrot.slane %v451, %v467
    %v537 = vunpack.c.l.b16 %v386
    %v538 = vunpack.c.h.b16 %v386
    %v539 = vunpack.c.l.b16 %v387
    %v540 = vunpack.c.h.b16 %v387
    %v541 = vunpack.c.l.b16 %v388
    %v542 = vunpack.c.h.b16 %v388
    %v543 = vunpack.c.l.b16 %v389
    %v544 = vunpack.c.h.b16 %v389
    %v545 = vunpack.c.l.b16 %v390
    %v546 = vunpack.c.h.b16 %v390
    %v547 = vunpack.c.l.b16 %v391
    %v548 = vunpack.c.h.b16 %v391
    %v549 = vunpack.c.l.b16 %v392
    %v550 = vunpack.c.h.b16 %v392
    %v551 = vunpack.c.l.b16 %v393
    %v552 = vunpack.c.h.b16 %v393
    %v553 = vunpack.c.l.b16 %v394
    %v554 = vunpack.c.h.b16 %v394
    %v555 = vunpack.c.l.b16 %v395
    %v556 = vunpack.c.h.b16 %v395
    %v557 = vunpack.c.l.b16 %v396
    %v558 = vunpack.c.h.b16 %v396
    %v559 = vunpack.c.l.b16 %v397
    %v560 = vunpack.c.h.b16 %v397
    %v561 = vunpack.c.l.b16 %v398
    %v562 = vunpack.c.h.b16 %v398
    %v563 = vunpack.c.l.b16 %v399
    %v564 = vunpack.c.h.b16 %v399
    %v565 = vunpack.c.l.b16 %v400
    %v566 = vunpack.c.h.b16 %v400
    %v567 = vunpack.c.l.b16 %v401
    %v568 = vunpack.c.h.b16 %v401
    %v569 = vunpack.c.l.b16 %v402
    %v570 = vunpack.c.h.b16 %v402
    %v571 = vunpack.c.l.b16 %v403
    %v572 = vunpack.c.h.b16 %v403
    %v573 = vunpack.c.l.b16 %v404
    %v574 = vunpack.c.h.b16 %v404
    %v575 = vunpack.c.l.b16 %v405
    %v576 = vunpack.c.h.b16 %v405
    %v577 = vunpack.c.l.b16 %v406
    %v578 = vunpack.c.h.b16 %v406
    %v579 = vunpack.c.l.b16 %v407
    %v580 = vunpack.c.h.b16 %v407
    %v581 = vunpack.c.l.b16 %v408
    %v582 = vunpack.c.h.b16 %v408
    %v583 = vunpack.c.l.b16 %v409
    %v584 = vunpack.c.h.b16 %v409
    %v585 = vunpack.c.l.b16 %v410
    %v586 = vunpack.c.h.b16 %v410
    %v587 = vunpack.c.l.b16 %v411
    %v588 = vunpack.c.h.b16 %v411
    %v589 = vunpack.c.l.b16 %v412
    %v590 = vunpack.c.h.b16 %v412
    %v591 = vunpack.c.l.b16 %v413
    %v592 = vunpack.c.h.b16 %v413
    %v593 = vunpack.c.l.b16 %v414
    %v594 = vunpack.c.h.b16 %v414
    %v595 = vunpack.c.l.b16 %v415
    %v596 = vunpack.c.h.b16 %v415
    %v597 = vunpack.c.l.b16 %v416
    %v598 = vunpack.c.h.b16 %v416
    %v599 = vunpack.c.l.b16 %v417
    %v600 = vunpack.c.h.b16 %v417
    %v601 = vunpack.c.l.b16 %v418
    %v602 = vunpack.c.h.b16 %v418
    %v603 = vunpack.c.l.b16 %v419
    %v604 = vunpack.c.h.b16 %v419
    %v605 = vunpack.c.l.b16 %v420
    %v606 = vunpack.c.h.b16 %v420
    %v607 = vunpack.c.l.b16 %v421
    %v608 = vunpack.c.h.b16 %v421
    %v609 = vunpack.c.l.b16 %v422
    %v610 = vunpack.c.h.b16 %v422
    %v611 = vunpack.c.l.b16 %v423
    %v612 = vunpack.c.h.b16 %v423
    %v613 = vunpack.c.l.b16 %v424
    %v614 = vunpack.c.h.b16 %v424
    %v615 = vunpack.c.l.b16 %v425
    %v616 = vunpack.c.h.b16 %v425
    %v617 = vunpack.c.l.b16 %v426
    %v618 = vunpack.c.h.b16 %v426
    %v619 = vunpack.c.l.b16 %v427
    %v620 = vunpack.c.h.b16 %v427
    %v621 = vunpack.c.l.b16 %v428
    %v622 = vunpack.c.h.b16 %v428
    %v623 = vunpack.c.l.b16 %v429
    %v624 = vunpack.c.h.b16 %v429
    %v625 = vunpack.c.l.b16 %v430
    %v626 = vunpack.c.h.b16 %v430
    %v627 = vunpack.c.l.b16 %v431
    %v628 = vunpack.c.h.b16 %v431
    %v629 = vunpack.c.l.b16 %v432
    %v630 = vunpack.c.h.b16 %v432
    %v631 = vunpack.c.l.b16 %v433
    %v632 = vunpack.c.h.b16 %v433
    %v633 = vunpack.c.l.b16 %v434
    %v634 = vunpack.c.h.b16 %v434
    %v635 = vunpack.c.l.b16 %v435
    %v636 = vunpack.c.h.b16 %v435
    %v637 = vunpack.c.l.b16 %v436
    %v638 = vunpack.c.h.b16 %v436
    %v639 = vunpack.c.l.b16 %v437
    %v640 = vunpack.c.h.b16 %v437
    %v641 = vunpack.c.l.b16 %v438
    %v642 = vunpack.c.h.b16 %v438
    %v643 = vunpack.c.l.b16 %v439
    %v644 = vunpack.c.h.b16 %v439
    %v645 = vunpack.c.l.b16 %v440
    %v646 = vunpack.c.h.b16 %v440
    %v647 = vunpack.c.l.b16 %v441
    %v648 = vunpack.c.h.b16 %v441
    %v649 = vunpack.c.l.b16 %v442
    %v650 = vunpack.c.h.b16 %v442
    %v651 = vunpack.c.l.b16 %v443
    %v652 = vunpack.c.h.b16 %v443
    %v653 = vunpack.c.l.b16 %v444
    %v654 = vunpack.c.h.b16 %v444
    %v655 = vunpack.c.l.b16 %v445
    %v656 = vunpack.c.h.b16 %v445
    %v657 = vunpack.c.l.b16 %v446
    %v658 = vunpack.c.h.b16 %v446
    %v659 = vunpack.c.l.b16 %v447
    %v660 = vunpack.c.h.b16 %v447
    %v661 = vunpack.c.l.b16 %v448
    %v662 = vunpack.c.h.b16 %v448
    %v663 = vunpack.c.l.b16 %v449
    %v664 = vunpack.c.h.b16 %v449
    %v665 = vpack.c.b16 %v541, %v537
    %v666 = vpack.c.b16 %v542, %v538
    %v667 = vpack.c.b16 %v543, %v539
    %v668 = vpack.c.b16 %v544, %v540
    %v669 = vpack.c.b16 %v549, %v545
    %v670 = vpack.c.b16 %v550, %v546
    %v671 = vpack.c.b16 %v551, %v547
    %v672 = vpack.c.b16 %v552, %v548
    %v673 = vpack.c.b16 %v557, %v553
    %v674 = vpack.c.b16 %v558, %v554
    %v675 = vpack.c.b16 %v559, %v555
    %v676 = vpack.c.b16 %v560, %v556
    %v677 = vpack.c.b16 %v565, %v561
    %v678 = vpack.c.b16 %v566, %v562
    %v679 = vpack.c.b16 %v567, %v563
    %v680 = vpack.c.b16 %v568, %v564
    %v681 = vpack.c.b16 %v573, %v569
    %v682 = vpack.c.b16 %v574, %v570
    %v683 = vpack.c.b16 %v575, %v571
    %v684 = vpack.c.b16 %v576, %v572
    %v685 = vpack.c.b16 %v581, %v577
    %v686 = vpack.c.b16 %v582, %v578
    %v687 = vpack.c.b16 %v583, %v579
    %v688 = vpack.c.b16 %v584, %v580
    %v689 = vpack.c.b16 %v589, %v585
    %v690 = vpack.c.b16 %v590, %v586
    %v691 = vpack.c.b16 %v591, %v587
    %v692 = vpack.c.b16 %v592, %v588
    %v693 = vpack.c.b16 %v597, %v593
    %v694 = vpack.c.b16 %v598, %v594
    %v695 = vpack.c.b16 %v599, %v595
    %v696 = vpack.c.b16 %v600, %v596
    %v697 = vpack.c.b16 %v605, %v601
    %v698 = vpack.c.b16 %v606, %v602
    %v699 = vpack.c.b16 %v607, %v603
    %v700 = vpack.c.b16 %v608, %v604
    %v701 = vpack.c.b16 %v613, %v609
    %v702 = vpack.c.b16 %v614, %v610
    %v703 = vpack.c.b16 %v615, %v611
    %v704 = vpack.c.b16 %v616, %v612
    %v705 = vpack.c.b16 %v621, %v617
    %v706 = vpack.c.b16 %v622, %v618
    %v707 = vpack.c.b16 %v623, %v619
    %v708 = vpack.c.b16 %v624, %v620
    %v709 = vpack.c.b16 %v629, %v625
    %v710 = vpack.c.b16 %v630, %v626
    %v711 = vpack.c.b16 %v631, %v627
    %v712 = vpack.c.b16 %v632, %v628
    %v713 = vpack.c.b16 %v637, %v633
    %v714 = vpack.c.b16 %v638, %v634
    %v715 = vpack.c.b16 %v639, %v635
    %v716 = vpack.c.b16 %v640, %v636
    %v717 = vpack.c.b16 %v645, %v641
    %v718 = vpack.c.b16 %v646, %v642
    %v719 = vpack.c.b16 %v647, %v643
    %v720 = vpack.c.b16 %v648, %v644
    %v721 = vpack.c.b16 %v653, %v649
    %v722 = vpack.c.b16 %v654, %v650
    %v723 = vpack.c.b16 %v655, %v651
    %v724 = vpack.c.b16 %v656, %v652
    %v725 = vpack.c.b16 %v661, %v657
    %v726 = vpack.c.b16 %v662, %v658
    %v727 = vpack.c.b16 %v663, %v659
    %v728 = vpack.c.b16 %v664, %v660
    %793 = vmatprep.subr.bf16.mxu0 %v666
    %794 = vmatpush1.bf16.msra.mxu0 %v665
    %795 = vmatprep.subr.bf16.mxu0 %v670
    %796 = vmatpush1.bf16.msra.mxu0 %v669
    %797 = vmatprep.subr.bf16.mxu0 %v674
    %798 = vmatpush1.bf16.msra.mxu0 %v673
    %799 = vmatprep.subr.bf16.mxu0 %v678
    %800 = vmatpush1.bf16.msra.mxu0 %v677
    %801 = vmatprep.subr.bf16.mxu0 %v682
    %802 = vmatpush1.bf16.msra.mxu0 %v681
    %803 = vmatprep.subr.bf16.mxu0 %v686
    %804 = vmatpush1.bf16.msra.mxu0 %v685
    %805 = vmatprep.subr.bf16.mxu0 %v690
    %806 = vmatpush1.bf16.msra.mxu0 %v689
    %807 = vmatprep.subr.bf16.mxu0 %v694
    %808 = vmatpush1.bf16.msra.mxu0 %v693
    %809 = vmatprep.subr.bf16.mxu0 %v698
    %810 = vmatpush1.bf16.msra.mxu0 %v697
    %811 = vmatprep.subr.bf16.mxu0 %v702
    %812 = vmatpush1.bf16.msra.mxu0 %v701
    %813 = vmatprep.subr.bf16.mxu0 %v706
    %814 = vmatpush1.bf16.msra.mxu0 %v705
    %815 = vmatprep.subr.bf16.mxu0 %v710
    %816 = vmatpush1.bf16.msra.mxu0 %v709
    %817 = vmatprep.subr.bf16.mxu0 %v714
    %818 = vmatpush1.bf16.msra.mxu0 %v713
    %819 = vmatprep.subr.bf16.mxu0 %v718
    %820 = vmatpush1.bf16.msra.mxu0 %v717
    %821 = vmatprep.subr.bf16.mxu0 %v722
    %822 = vmatpush1.bf16.msra.mxu0 %v721
    %823 = vmatprep.subr.bf16.mxu0 %v726
    %824 = vmatpush1.bf16.msra.mxu0 %v725
    %825 = vmatprep.mubr.bf16.mxu0 %v385
    %826 = vmatmul.mubr.bf16.gmra.mrb[0].mxu0 %v384
    %v827 = vpop.f32.mrb[0].mxu0
    %v828 = vadd.f32 %v456, %v827
    %v829 = vpop.f32.mrb[0].mxu0
    %v830 = vadd.f32 %v460, %v829
    %v831 = vpop.f32.mrb[0].mxu0
    %v832 = vpop.f32.mrb[0].mxu0
    %833 = vdwg.mxu0
    %834 = vmatprep.subr.bf16.mxu0 %v668
    %835 = vmatpush1.bf16.msra.mxu0 %v667
    %836 = vmatprep.subr.bf16.mxu0 %v672
    %837 = vmatpush1.bf16.msra.mxu0 %v671
    %838 = vmatprep.subr.bf16.mxu0 %v676
    %839 = vmatpush1.bf16.msra.mxu0 %v675
    %840 = vmatprep.subr.bf16.mxu0 %v680
    %841 = vmatpush1.bf16.msra.mxu0 %v679
    %842 = vmatprep.subr.bf16.mxu0 %v684
    %843 = vmatpush1.bf16.msra.mxu0 %v683
    %844 = vmatprep.subr.bf16.mxu0 %v688
    %845 = vmatpush1.bf16.msra.mxu0 %v687
    %846 = vmatprep.subr.bf16.mxu0 %v692
    %847 = vmatpush1.bf16.msra.mxu0 %v691
    %848 = vmatprep.subr.bf16.mxu0 %v696
    %849 = vmatpush1.bf16.msra.mxu0 %v695
    %850 = vmatprep.subr.bf16.mxu0 %v700
    %851 = vmatpush1.bf16.msra.mxu0 %v699
    %852 = vmatprep.subr.bf16.mxu0 %v704
    %853 = vmatpush1.bf16.msra.mxu0 %v703
    %854 = vmatprep.subr.bf16.mxu0 %v708
    %855 = vmatpush1.bf16.msra.mxu0 %v707
    %856 = vmatprep.subr.bf16.mxu0 %v712
    %857 = vmatpush1.bf16.msra.mxu0 %v711
    %858 = vmatprep.subr.bf16.mxu0 %v716
    %859 = vmatpush1.bf16.msra.mxu0 %v715
    %860 = vmatprep.subr.bf16.mxu0 %v720
    %861 = vmatpush1.bf16.msra.mxu0 %v719
    %862 = vmatprep.subr.bf16.mxu0 %v724
    %863 = vmatpush1.bf16.msra.mxu0 %v723
    %864 = vmatprep.subr.bf16.mxu0 %v728
    %865 = vmatpush1.bf16.msra.mxu0 %v727
    %866 = vmatprep.mubr.bf16.mxu0 %v385
    %867 = vmatmul.mubr.bf16.gmra.mrb[0].mxu0 %v384
    %v868 = vpop.f32.mrb[0].mxu0
    %v869 = vadd.f32 %v464, %v868
    %v870 = vpop.f32.mrb[0].mxu0
    %v871 = vadd.f32 %v468, %v870
    %v872 = vpop.f32.mrb[0].mxu0
    %v873 = vpop.f32.mrb[0].mxu0
    %874 = vdwg.mxu0
    %v875 = vmax.f32 %v828, 0.0
    %v876 = vmax.f32 %v830, 0.0
    %v877 = vmax.f32 %v869, 0.0
    %v878 = vmax.f32 %v871, 0.0
    %v879 = vpack.c.bf16 %v875, %v875
    %v880 = vpack.c.bf16 %v876, %v876
    %v881 = vpack.c.bf16 %v877, %v877
    %v882 = vpack.c.bf16 %v878, %v878
    %v883 = vld [vmem:[#allocation6] sm:$0xff]
    %v884 = vld [vmem:[#allocation6 + $0x8] sm:$0xff]
    %v885 = vld [vmem:[#allocation6 + $0x10] sm:$0xff]
    %v886 = vld [vmem:[#allocation6 + $0x18] sm:$0xff]
    %v887 = vld [vmem:[#allocation6 + $0x20] sm:$0xff]
    %v888 = vld [vmem:[#allocation6 + $0x28] sm:$0xff]
    %v889 = vld [vmem:[#allocation6 + $0x30] sm:$0xff]
    %v890 = vld [vmem:[#allocation6 + $0x38] sm:$0xff]
    %v891 = vld [vmem:[#allocation6 + $0x40] sm:$0xff]
    %v892 = vld [vmem:[#allocation6 + $0x48] sm:$0xff]
    %v893 = vld [vmem:[#allocation6 + $0x50] sm:$0xff]
    %v894 = vld [vmem:[#allocation6 + $0x58] sm:$0xff]
    %v895 = vld [vmem:[#allocation6 + $0x60] sm:$0xff]
    %v896 = vld [vmem:[#allocation6 + $0x68] sm:$0xff]
    %v897 = vld [vmem:[#allocation6 + $0x70] sm:$0xff]
    %v898 = vld [vmem:[#allocation6 + $0x78] sm:$0xff]
    %v899 = vld [vmem:[#allocation6 + $0x80] sm:$0xff]
    %v900 = vld [vmem:[#allocation6 + $0x88] sm:$0xff]
    %v901 = vld [vmem:[#allocation6 + $0x90] sm:$0xff]
    %v902 = vld [vmem:[#allocation6 + $0x98] sm:$0xff]
    %v903 = vld [vmem:[#allocation6 + $0xa0] sm:$0xff]
    %v904 = vld [vmem:[#allocation6 + $0xa8] sm:$0xff]
    %v905 = vld [vmem:[#allocation6 + $0xb0] sm:$0xff]
    %v906 = vld [vmem:[#allocation6 + $0xb8] sm:$0xff]
    %v907 = vld [vmem:[#allocation6 + $0xc0] sm:$0xff]
    %v908 = vld [vmem:[#allocation6 + $0xc8] sm:$0xff]
    %v909 = vld [vmem:[#allocation6 + $0xd0] sm:$0xff]
    %v910 = vld [vmem:[#allocation6 + $0xd8] sm:$0xff]
    %v911 = vld [vmem:[#allocation6 + $0xe0] sm:$0xff]
    %v912 = vld [vmem:[#allocation6 + $0xe8] sm:$0xff]
    %v913 = vld [vmem:[#allocation6 + $0xf0] sm:$0xff]
    %v914 = vld [vmem:[#allocation6 + $0xf8] sm:$0xff]
    %v915 = vld [vmem:[#allocation6 + $0x100] sm:$0xff]
    %v916 = vld [vmem:[#allocation6 + $0x108] sm:$0xff]
    %v917 = vld [vmem:[#allocation6 + $0x110] sm:$0xff]
    %v918 = vld [vmem:[#allocation6 + $0x118] sm:$0xff]
    %v919 = vld [vmem:[#allocation6 + $0x120] sm:$0xff]
    %v920 = vld [vmem:[#allocation6 + $0x128] sm:$0xff]
    %v921 = vld [vmem:[#allocation6 + $0x130] sm:$0xff]
    %v922 = vld [vmem:[#allocation6 + $0x138] sm:$0xff]
    %v923 = vld [vmem:[#allocation6 + $0x140] sm:$0xff]
    %v924 = vld [vmem:[#allocation6 + $0x148] sm:$0xff]
    %v925 = vld [vmem:[#allocation6 + $0x150] sm:$0xff]
    %v926 = vld [vmem:[#allocation6 + $0x158] sm:$0xff]
    %v927 = vld [vmem:[#allocation6 + $0x160] sm:$0xff]
    %v928 = vld [vmem:[#allocation6 + $0x168] sm:$0xff]
    %v929 = vld [vmem:[#allocation6 + $0x170] sm:$0xff]
    %v930 = vld [vmem:[#allocation6 + $0x178] sm:$0xff]
    %v931 = vld [vmem:[#allocation6 + $0x180] sm:$0xff]
    %v932 = vld [vmem:[#allocation6 + $0x188] sm:$0xff]
    %v933 = vld [vmem:[#allocation6 + $0x190] sm:$0xff]
    %v934 = vld [vmem:[#allocation6 + $0x198] sm:$0xff]
    %v935 = vld [vmem:[#allocation6 + $0x1a0] sm:$0xff]
    %v936 = vld [vmem:[#allocation6 + $0x1a8] sm:$0xff]
    %v937 = vld [vmem:[#allocation6 + $0x1b0] sm:$0xff]
    %v938 = vld [vmem:[#allocation6 + $0x1b8] sm:$0xff]
    %v939 = vld [vmem:[#allocation6 + $0x1c0] sm:$0xff]
    %v940 = vld [vmem:[#allocation6 + $0x1c8] sm:$0xff]
    %v941 = vld [vmem:[#allocation6 + $0x1d0] sm:$0xff]
    %v942 = vld [vmem:[#allocation6 + $0x1d8] sm:$0xff]
    %v943 = vld [vmem:[#allocation6 + $0x1e0] sm:$0xff]
    %v944 = vld [vmem:[#allocation6 + $0x1e8] sm:$0xff]
    %v945 = vld [vmem:[#allocation6 + $0x1f0] sm:$0xff]
    %v946 = vld [vmem:[#allocation6 + $0x1f8] sm:$0xff]
    %v947 = vld [vmem:[#allocation6 + $0x200] sm:$0xff]
    %v948 = vld [vmem:[#allocation6 + $0x208] sm:$0xff]
    %v949 = vld [vmem:[#allocation6 + $0x210] sm:$0xff]
    %v950 = vld [vmem:[#allocation6 + $0x218] sm:$0xff]
    %v951 = vld [vmem:[#allocation6 + $0x220] sm:$0xff]
    %v952 = vld [vmem:[#allocation6 + $0x228] sm:$0xff]
    %v953 = vld [vmem:[#allocation6 + $0x230] sm:$0xff]
    %v954 = vld [vmem:[#allocation6 + $0x238] sm:$0xff]
    %v955 = vld [vmem:[#allocation6 + $0x240] sm:$0xff]
    %v956 = vld [vmem:[#allocation6 + $0x248] sm:$0xff]
    %v957 = vld [vmem:[#allocation6 + $0x250] sm:$0xff]
    %v958 = vld [vmem:[#allocation6 + $0x258] sm:$0xff]
    %v959 = vld [vmem:[#allocation6 + $0x260] sm:$0xff]
    %v960 = vld [vmem:[#allocation6 + $0x268] sm:$0xff]
    %v961 = vld [vmem:[#allocation6 + $0x270] sm:$0xff]
    %v962 = vld [vmem:[#allocation6 + $0x278] sm:$0xff]
    %v963 = vld [vmem:[#allocation6 + $0x280] sm:$0xff]
    %v964 = vld [vmem:[#allocation6 + $0x288] sm:$0xff]
    %v965 = vld [vmem:[#allocation6 + $0x290] sm:$0xff]
    %v966 = vld [vmem:[#allocation6 + $0x298] sm:$0xff]
    %v967 = vld [vmem:[#allocation6 + $0x2a0] sm:$0xff]
    %v968 = vld [vmem:[#allocation6 + $0x2a8] sm:$0xff]
    %v969 = vld [vmem:[#allocation6 + $0x2b0] sm:$0xff]
    %v970 = vld [vmem:[#allocation6 + $0x2b8] sm:$0xff]
    %v971 = vld [vmem:[#allocation6 + $0x2c0] sm:$0xff]
    %v972 = vld [vmem:[#allocation6 + $0x2c8] sm:$0xff]
    %v973 = vld [vmem:[#allocation6 + $0x2d0] sm:$0xff]
    %v974 = vld [vmem:[#allocation6 + $0x2d8] sm:$0xff]
    %v975 = vld [vmem:[#allocation6 + $0x2e0] sm:$0xff]
    %v976 = vld [vmem:[#allocation6 + $0x2e8] sm:$0xff]
    %v977 = vld [vmem:[#allocation6 + $0x2f0] sm:$0xff]
    %v978 = vld [vmem:[#allocation6 + $0x2f8] sm:$0xff]
    %v979 = vld [vmem:[#allocation6 + $0x300] sm:$0xff]
    %v980 = vld [vmem:[#allocation6 + $0x308] sm:$0xff]
    %v981 = vld [vmem:[#allocation6 + $0x310] sm:$0xff]
    %v982 = vld [vmem:[#allocation6 + $0x318] sm:$0xff]
    %v983 = vld [vmem:[#allocation6 + $0x320] sm:$0xff]
    %v984 = vld [vmem:[#allocation6 + $0x328] sm:$0xff]
    %v985 = vld [vmem:[#allocation6 + $0x330] sm:$0xff]
    %v986 = vld [vmem:[#allocation6 + $0x338] sm:$0xff]
    %v987 = vld [vmem:[#allocation6 + $0x340] sm:$0xff]
    %v988 = vld [vmem:[#allocation6 + $0x348] sm:$0xff]
    %v989 = vld [vmem:[#allocation6 + $0x350] sm:$0xff]
    %v990 = vld [vmem:[#allocation6 + $0x358] sm:$0xff]
    %v991 = vld [vmem:[#allocation6 + $0x360] sm:$0xff]
    %v992 = vld [vmem:[#allocation6 + $0x368] sm:$0xff]
    %v993 = vld [vmem:[#allocation6 + $0x370] sm:$0xff]
    %v994 = vld [vmem:[#allocation6 + $0x378] sm:$0xff]
    %v995 = vld [vmem:[#allocation6 + $0x380] sm:$0xff]
    %v996 = vld [vmem:[#allocation6 + $0x388] sm:$0xff]
    %v997 = vld [vmem:[#allocation6 + $0x390] sm:$0xff]
    %v998 = vld [vmem:[#allocation6 + $0x398] sm:$0xff]
    %v999 = vld [vmem:[#allocation6 + $0x3a0] sm:$0xff]
    %v1000 = vld [vmem:[#allocation6 + $0x3a8] sm:$0xff]
    %v1001 = vld [vmem:[#allocation6 + $0x3b0] sm:$0xff]
    %v1002 = vld [vmem:[#allocation6 + $0x3b8] sm:$0xff]
    %v1003 = vld [vmem:[#allocation6 + $0x3c0] sm:$0xff]
    %v1004 = vld [vmem:[#allocation6 + $0x3c8] sm:$0xff]
    %v1005 = vld [vmem:[#allocation6 + $0x3d0] sm:$0xff]
    %v1006 = vld [vmem:[#allocation6 + $0x3d8] sm:$0xff]
    %v1007 = vld [vmem:[#allocation6 + $0x3e0] sm:$0xff]
    %v1008 = vld [vmem:[#allocation6 + $0x3e8] sm:$0xff]
    %v1009 = vld [vmem:[#allocation6 + $0x3f0] sm:$0xff]
    %v1010 = vld [vmem:[#allocation6 + $0x3f8] sm:$0xff]
    %v1011 = vld [vmem:[#allocation6 + $0x400] sm:$0xff]
    %v1012 = vld [vmem:[#allocation6 + $0x408] sm:$0xff]
    %v1013 = vld [vmem:[#allocation6 + $0x410] sm:$0xff]
    %v1014 = vld [vmem:[#allocation6 + $0x418] sm:$0xff]
    %v1015 = vld [vmem:[#allocation6 + $0x420] sm:$0xff]
    %v1016 = vld [vmem:[#allocation6 + $0x428] sm:$0xff]
    %v1017 = vld [vmem:[#allocation6 + $0x430] sm:$0xff]
    %v1018 = vld [vmem:[#allocation6 + $0x438] sm:$0xff]
    %v1019 = vld [vmem:[#allocation6 + $0x440] sm:$0xff]
    %v1020 = vld [vmem:[#allocation6 + $0x448] sm:$0xff]
    %v1021 = vld [vmem:[#allocation6 + $0x450] sm:$0xff]
    %v1022 = vld [vmem:[#allocation6 + $0x458] sm:$0xff]
    %v1023 = vld [vmem:[#allocation6 + $0x460] sm:$0xff]
    %v1024 = vld [vmem:[#allocation6 + $0x468] sm:$0xff]
    %v1025 = vld [vmem:[#allocation6 + $0x470] sm:$0xff]
    %v1026 = vld [vmem:[#allocation6 + $0x478] sm:$0xff]
    %v1027 = vld [vmem:[#allocation6 + $0x480] sm:$0xff]
    %v1028 = vld [vmem:[#allocation6 + $0x488] sm:$0xff]
    %v1029 = vld [vmem:[#allocation6 + $0x490] sm:$0xff]
    %v1030 = vld [vmem:[#allocation6 + $0x498] sm:$0xff]
    %v1031 = vld [vmem:[#allocation6 + $0x4a0] sm:$0xff]
    %v1032 = vld [vmem:[#allocation6 + $0x4a8] sm:$0xff]
    %v1033 = vld [vmem:[#allocation6 + $0x4b0] sm:$0xff]
    %v1034 = vld [vmem:[#allocation6 + $0x4b8] sm:$0xff]
    %v1035 = vld [vmem:[#allocation6 + $0x4c0] sm:$0xff]
    %v1036 = vld [vmem:[#allocation6 + $0x4c8] sm:$0xff]
    %v1037 = vld [vmem:[#allocation6 + $0x4d0] sm:$0xff]
    %v1038 = vld [vmem:[#allocation6 + $0x4d8] sm:$0xff]
    %v1039 = vld [vmem:[#allocation6 + $0x4e0] sm:$0xff]
    %v1040 = vld [vmem:[#allocation6 + $0x4e8] sm:$0xff]
    %v1041 = vld [vmem:[#allocation6 + $0x4f0] sm:$0xff]
    %v1042 = vld [vmem:[#allocation6 + $0x4f8] sm:$0xff]
    %v1043 = vld [vmem:[#allocation6 + $0x500] sm:$0xff]
    %v1044 = vld [vmem:[#allocation6 + $0x508] sm:$0xff]
    %v1045 = vld [vmem:[#allocation6 + $0x510] sm:$0xff]
    %v1046 = vld [vmem:[#allocation6 + $0x518] sm:$0xff]
    %v1047 = vld [vmem:[#allocation6 + $0x520] sm:$0xff]
    %v1048 = vld [vmem:[#allocation6 + $0x528] sm:$0xff]
    %v1049 = vld [vmem:[#allocation6 + $0x530] sm:$0xff]
    %v1050 = vld [vmem:[#allocation6 + $0x538] sm:$0xff]
    %v1051 = vld [vmem:[#allocation6 + $0x540] sm:$0xff]
    %v1052 = vld [vmem:[#allocation6 + $0x548] sm:$0xff]
    %v1053 = vld [vmem:[#allocation6 + $0x550] sm:$0xff]
    %v1054 = vld [vmem:[#allocation6 + $0x558] sm:$0xff]
    %v1055 = vld [vmem:[#allocation6 + $0x560] sm:$0xff]
    %v1056 = vld [vmem:[#allocation6 + $0x568] sm:$0xff]
    %v1057 = vld [vmem:[#allocation6 + $0x570] sm:$0xff]
    %v1058 = vld [vmem:[#allocation6 + $0x578] sm:$0xff]
    %v1059 = vld [vmem:[#allocation6 + $0x580] sm:$0xff]
    %v1060 = vld [vmem:[#allocation6 + $0x588] sm:$0xff]
    %v1061 = vld [vmem:[#allocation6 + $0x590] sm:$0xff]
    %v1062 = vld [vmem:[#allocation6 + $0x598] sm:$0xff]
    %v1063 = vld [vmem:[#allocation6 + $0x5a0] sm:$0xff]
    %v1064 = vld [vmem:[#allocation6 + $0x5a8] sm:$0xff]
    %v1065 = vld [vmem:[#allocation6 + $0x5b0] sm:$0xff]
    %v1066 = vld [vmem:[#allocation6 + $0x5b8] sm:$0xff]
    %v1067 = vld [vmem:[#allocation6 + $0x5c0] sm:$0xff]
    %v1068 = vld [vmem:[#allocation6 + $0x5c8] sm:$0xff]
    %v1069 = vld [vmem:[#allocation6 + $0x5d0] sm:$0xff]
    %v1070 = vld [vmem:[#allocation6 + $0x5d8] sm:$0xff]
    %v1071 = vld [vmem:[#allocation6 + $0x5e0] sm:$0xff]
    %v1072 = vld [vmem:[#allocation6 + $0x5e8] sm:$0xff]
    %v1073 = vld [vmem:[#allocation6 + $0x5f0] sm:$0xff]
    %v1074 = vld [vmem:[#allocation6 + $0x5f8] sm:$0xff]
    %v1075 = vld [vmem:[#allocation6 + $0x600] sm:$0xff]
    %v1076 = vld [vmem:[#allocation6 + $0x608] sm:$0xff]
    %v1077 = vld [vmem:[#allocation6 + $0x610] sm:$0xff]
    %v1078 = vld [vmem:[#allocation6 + $0x618] sm:$0xff]
    %v1079 = vld [vmem:[#allocation6 + $0x620] sm:$0xff]
    %v1080 = vld [vmem:[#allocation6 + $0x628] sm:$0xff]
    %v1081 = vld [vmem:[#allocation6 + $0x630] sm:$0xff]
    %v1082 = vld [vmem:[#allocation6 + $0x638] sm:$0xff]
    %v1083 = vld [vmem:[#allocation6 + $0x640] sm:$0xff]
    %v1084 = vld [vmem:[#allocation6 + $0x648] sm:$0xff]
    %v1085 = vld [vmem:[#allocation6 + $0x650] sm:$0xff]
    %v1086 = vld [vmem:[#allocation6 + $0x658] sm:$0xff]
    %v1087 = vld [vmem:[#allocation6 + $0x660] sm:$0xff]
    %v1088 = vld [vmem:[#allocation6 + $0x668] sm:$0xff]
    %v1089 = vld [vmem:[#allocation6 + $0x670] sm:$0xff]
    %v1090 = vld [vmem:[#allocation6 + $0x678] sm:$0xff]
    %v1091 = vld [vmem:[#allocation6 + $0x680] sm:$0xff]
    %v1092 = vld [vmem:[#allocation6 + $0x688] sm:$0xff]
    %v1093 = vld [vmem:[#allocation6 + $0x690] sm:$0xff]
    %v1094 = vld [vmem:[#allocation6 + $0x698] sm:$0xff]
    %v1095 = vld [vmem:[#allocation6 + $0x6a0] sm:$0xff]
    %v1096 = vld [vmem:[#allocation6 + $0x6a8] sm:$0xff]
    %v1097 = vld [vmem:[#allocation6 + $0x6b0] sm:$0xff]
    %v1098 = vld [vmem:[#allocation6 + $0x6b8] sm:$0xff]
    %v1099 = vld [vmem:[#allocation6 + $0x6c0] sm:$0xff]
    %v1100 = vld [vmem:[#allocation6 + $0x6c8] sm:$0xff]
    %v1101 = vld [vmem:[#allocation6 + $0x6d0] sm:$0xff]
    %v1102 = vld [vmem:[#allocation6 + $0x6d8] sm:$0xff]
    %v1103 = vld [vmem:[#allocation6 + $0x6e0] sm:$0xff]
    %v1104 = vld [vmem:[#allocation6 + $0x6e8] sm:$0xff]
    %v1105 = vld [vmem:[#allocation6 + $0x6f0] sm:$0xff]
    %v1106 = vld [vmem:[#allocation6 + $0x6f8] sm:$0xff]
    %v1107 = vld [vmem:[#allocation6 + $0x700] sm:$0xff]
    %v1108 = vld [vmem:[#allocation6 + $0x708] sm:$0xff]
    %v1109 = vld [vmem:[#allocation6 + $0x710] sm:$0xff]
    %v1110 = vld [vmem:[#allocation6 + $0x718] sm:$0xff]
    %v1111 = vld [vmem:[#allocation6 + $0x720] sm:$0xff]
    %v1112 = vld [vmem:[#allocation6 + $0x728] sm:$0xff]
    %v1113 = vld [vmem:[#allocation6 + $0x730] sm:$0xff]
    %v1114 = vld [vmem:[#allocation6 + $0x738] sm:$0xff]
    %v1115 = vld [vmem:[#allocation6 + $0x740] sm:$0xff]
    %v1116 = vld [vmem:[#allocation6 + $0x748] sm:$0xff]
    %v1117 = vld [vmem:[#allocation6 + $0x750] sm:$0xff]
    %v1118 = vld [vmem:[#allocation6 + $0x758] sm:$0xff]
    %v1119 = vld [vmem:[#allocation6 + $0x760] sm:$0xff]
    %v1120 = vld [vmem:[#allocation6 + $0x768] sm:$0xff]
    %v1121 = vld [vmem:[#allocation6 + $0x770] sm:$0xff]
    %v1122 = vld [vmem:[#allocation6 + $0x778] sm:$0xff]
    %v1123 = vld [vmem:[#allocation6 + $0x780] sm:$0xff]
    %v1124 = vld [vmem:[#allocation6 + $0x788] sm:$0xff]
    %v1125 = vld [vmem:[#allocation6 + $0x790] sm:$0xff]
    %v1126 = vld [vmem:[#allocation6 + $0x798] sm:$0xff]
    %v1127 = vld [vmem:[#allocation6 + $0x7a0] sm:$0xff]
    %v1128 = vld [vmem:[#allocation6 + $0x7a8] sm:$0xff]
    %v1129 = vld [vmem:[#allocation6 + $0x7b0] sm:$0xff]
    %v1130 = vld [vmem:[#allocation6 + $0x7b8] sm:$0xff]
    %v1131 = vld [vmem:[#allocation6 + $0x7c0] sm:$0xff]
    %v1132 = vld [vmem:[#allocation6 + $0x7c8] sm:$0xff]
    %v1133 = vld [vmem:[#allocation6 + $0x7d0] sm:$0xff]
    %v1134 = vld [vmem:[#allocation6 + $0x7d8] sm:$0xff]
    %v1135 = vld [vmem:[#allocation6 + $0x7e0] sm:$0xff]
    %v1136 = vld [vmem:[#allocation6 + $0x7e8] sm:$0xff]
    %v1137 = vld [vmem:[#allocation6 + $0x7f0] sm:$0xff]
    %v1138 = vld [vmem:[#allocation6 + $0x7f8] sm:$0xff]
    %s1139 = scalar_lea.vmem [#allocation9], 4
    %v1140 = vld [vmem:[%s1139] ss:$8 sm:$0xf]
    %v1141 = vld [vmem:[%s1139] ss:$8 sm:$0xf0]
    %v1142 = vor.u32 %v1140, %v1141
    %v1144 = vlaneseq
    %v1145 = vshrl.u32 %v1144, 7
    %v1146 = vsub.s32 0, %v1145
    %v1147 = vrot.slane %v1142, %v1146
    %v1148 = vlaneseq
    %v1149 = vshrl.u32 %v1148, 7
    %v1150 = vsub.s32 1, %v1149
    %v1151 = vrot.slane %v1142, %v1150
    %v1152 = vlaneseq
    %v1153 = vshrl.u32 %v1152, 7
    %v1154 = vsub.s32 2, %v1153
    %v1155 = vrot.slane %v1142, %v1154
    %v1156 = vlaneseq
    %v1157 = vshrl.u32 %v1156, 7
    %v1158 = vsub.s32 3, %v1157
    %v1159 = vrot.slane %v1142, %v1158
    %v1160 = vlaneseq
    %v1161 = vshrl.u32 %v1160, 7
    %v1162 = vsub.s32 4, %v1161
    %v1163 = vrot.slane %v1142, %v1162
    %v1164 = vlaneseq
    %v1165 = vshrl.u32 %v1164, 7
    %v1166 = vsub.s32 5, %v1165
    %v1167 = vrot.slane %v1142, %v1166
    %v1168 = vlaneseq
    %v1169 = vshrl.u32 %v1168, 7
    %v1170 = vsub.s32 6, %v1169
    %v1171 = vrot.slane %v1142, %v1170
    %v1172 = vlaneseq
    %v1173 = vshrl.u32 %v1172, 7
    %v1174 = vsub.s32 7, %v1173
    %v1175 = vrot.slane %v1142, %v1174
    %v1440 = vunpack.c.l.b16 %v883
    %v1441 = vunpack.c.h.b16 %v883
    %v1442 = vunpack.c.l.b16 %v884
    %v1443 = vunpack.c.h.b16 %v884
    %v1444 = vunpack.c.l.b16 %v885
    %v1445 = vunpack.c.h.b16 %v885
    %v1446 = vunpack.c.l.b16 %v886
    %v1447 = vunpack.c.h.b16 %v886
    %v1448 = vunpack.c.l.b16 %v887
    %v1449 = vunpack.c.h.b16 %v887
    %v1450 = vunpack.c.l.b16 %v888
    %v1451 = vunpack.c.h.b16 %v888
    %v1452 = vunpack.c.l.b16 %v889
    %v1453 = vunpack.c.h.b16 %v889
    %v1454 = vunpack.c.l.b16 %v890
    %v1455 = vunpack.c.h.b16 %v890
    %v1456 = vunpack.c.l.b16 %v891
    %v1457 = vunpack.c.h.b16 %v891
    %v1458 = vunpack.c.l.b16 %v892
    %v1459 = vunpack.c.h.b16 %v892
    %v1460 = vunpack.c.l.b16 %v893
    %v1461 = vunpack.c.h.b16 %v893
    %v1462 = vunpack.c.l.b16 %v894
    %v1463 = vunpack.c.h.b16 %v894
    %v1464 = vunpack.c.l.b16 %v895
    %v1465 = vunpack.c.h.b16 %v895
    %v1466 = vunpack.c.l.b16 %v896
    %v1467 = vunpack.c.h.b16 %v896
    %v1468 = vunpack.c.l.b16 %v897
    %v1469 = vunpack.c.h.b16 %v897
    %v1470 = vunpack.c.l.b16 %v898
    %v1471 = vunpack.c.h.b16 %v898
    %v1472 = vunpack.c.l.b16 %v899
    %v1473 = vunpack.c.h.b16 %v899
    %v1474 = vunpack.c.l.b16 %v900
    %v1475 = vunpack.c.h.b16 %v900
    %v1476 = vunpack.c.l.b16 %v901
    %v1477 = vunpack.c.h.b16 %v901
    %v1478 = vunpack.c.l.b16 %v902
    %v1479 = vunpack.c.h.b16 %v902
    %v1480 = vunpack.c.l.b16 %v903
    %v1481 = vunpack.c.h.b16 %v903
    %v1482 = vunpack.c.l.b16 %v904
    %v1483 = vunpack.c.h.b16 %v904
    %v1484 = vunpack.c.l.b16 %v905
    %v1485 = vunpack.c.h.b16 %v905
    %v1486 = vunpack.c.l.b16 %v906
    %v1487 = vunpack.c.h.b16 %v906
    %v1488 = vunpack.c.l.b16 %v907
    %v1489 = vunpack.c.h.b16 %v907
    %v1490 = vunpack.c.l.b16 %v908
    %v1491 = vunpack.c.h.b16 %v908
    %v1492 = vunpack.c.l.b16 %v909
    %v1493 = vunpack.c.h.b16 %v909
    %v1494 = vunpack.c.l.b16 %v910
    %v1495 = vunpack.c.h.b16 %v910
    %v1496 = vunpack.c.l.b16 %v911
    %v1497 = vunpack.c.h.b16 %v911
    %v1498 = vunpack.c.l.b16 %v912
    %v1499 = vunpack.c.h.b16 %v912
    %v1500 = vunpack.c.l.b16 %v913
    %v1501 = vunpack.c.h.b16 %v913
    %v1502 = vunpack.c.l.b16 %v914
    %v1503 = vunpack.c.h.b16 %v914
    %v1504 = vunpack.c.l.b16 %v915
    %v1505 = vunpack.c.h.b16 %v915
    %v1506 = vunpack.c.l.b16 %v916
    %v1507 = vunpack.c.h.b16 %v916
    %v1508 = vunpack.c.l.b16 %v917
    %v1509 = vunpack.c.h.b16 %v917
    %v1510 = vunpack.c.l.b16 %v918
    %v1511 = vunpack.c.h.b16 %v918
    %v1512 = vunpack.c.l.b16 %v919
    %v1513 = vunpack.c.h.b16 %v919
    %v1514 = vunpack.c.l.b16 %v920
    %v1515 = vunpack.c.h.b16 %v920
    %v1516 = vunpack.c.l.b16 %v921
    %v1517 = vunpack.c.h.b16 %v921
    %v1518 = vunpack.c.l.b16 %v922
    %v1519 = vunpack.c.h.b16 %v922
    %v1520 = vunpack.c.l.b16 %v923
    %v1521 = vunpack.c.h.b16 %v923
    %v1522 = vunpack.c.l.b16 %v924
    %v1523 = vunpack.c.h.b16 %v924
    %v1524 = vunpack.c.l.b16 %v925
    %v1525 = vunpack.c.h.b16 %v925
    %v1526 = vunpack.c.l.b16 %v926
    %v1527 = vunpack.c.h.b16 %v926
    %v1528 = vunpack.c.l.b16 %v927
    %v1529 = vunpack.c.h.b16 %v927
    %v1530 = vunpack.c.l.b16 %v928
    %v1531 = vunpack.c.h.b16 %v928
    %v1532 = vunpack.c.l.b16 %v929
    %v1533 = vunpack.c.h.b16 %v929
    %v1534 = vunpack.c.l.b16 %v930
    %v1535 = vunpack.c.h.b16 %v930
    %v1536 = vunpack.c.l.b16 %v931
    %v1537 = vunpack.c.h.b16 %v931
    %v1538 = vunpack.c.l.b16 %v932
    %v1539 = vunpack.c.h.b16 %v932
    %v1540 = vunpack.c.l.b16 %v933
    %v1541 = vunpack.c.h.b16 %v933
    %v1542 = vunpack.c.l.b16 %v934
    %v1543 = vunpack.c.h.b16 %v934
    %v1544 = vunpack.c.l.b16 %v935
    %v1545 = vunpack.c.h.b16 %v935
    %v1546 = vunpack.c.l.b16 %v936
    %v1547 = vunpack.c.h.b16 %v936
    %v1548 = vunpack.c.l.b16 %v937
    %v1549 = vunpack.c.h.b16 %v937
    %v1550 = vunpack.c.l.b16 %v938
    %v1551 = vunpack.c.h.b16 %v938
    %v1552 = vunpack.c.l.b16 %v939
    %v1553 = vunpack.c.h.b16 %v939
    %v1554 = vunpack.c.l.b16 %v940
    %v1555 = vunpack.c.h.b16 %v940
    %v1556 = vunpack.c.l.b16 %v941
    %v1557 = vunpack.c.h.b16 %v941
    %v1558 = vunpack.c.l.b16 %v942
    %v1559 = vunpack.c.h.b16 %v942
    %v1560 = vunpack.c.l.b16 %v943
    %v1561 = vunpack.c.h.b16 %v943
    %v1562 = vunpack.c.l.b16 %v944
    %v1563 = vunpack.c.h.b16 %v944
    %v1564 = vunpack.c.l.b16 %v945
    %v1565 = vunpack.c.h.b16 %v945
    %v1566 = vunpack.c.l.b16 %v946
    %v1567 = vunpack.c.h.b16 %v946
    %v1568 = vunpack.c.l.b16 %v947
    %v1569 = vunpack.c.h.b16 %v947
    %v1570 = vunpack.c.l.b16 %v948
    %v1571 = vunpack.c.h.b16 %v948
    %v1572 = vunpack.c.l.b16 %v949
    %v1573 = vunpack.c.h.b16 %v949
    %v1574 = vunpack.c.l.b16 %v950
    %v1575 = vunpack.c.h.b16 %v950
    %v1576 = vunpack.c.l.b16 %v951
    %v1577 = vunpack.c.h.b16 %v951
    %v1578 = vunpack.c.l.b16 %v952
    %v1579 = vunpack.c.h.b16 %v952
    %v1580 = vunpack.c.l.b16 %v953
    %v1581 = vunpack.c.h.b16 %v953
    %v1582 = vunpack.c.l.b16 %v954
    %v1583 = vunpack.c.h.b16 %v954
    %v1584 = vunpack.c.l.b16 %v955
    %v1585 = vunpack.c.h.b16 %v955
    %v1586 = vunpack.c.l.b16 %v956
    %v1587 = vunpack.c.h.b16 %v956
    %v1588 = vunpack.c.l.b16 %v957
    %v1589 = vunpack.c.h.b16 %v957
    %v1590 = vunpack.c.l.b16 %v958
    %v1591 = vunpack.c.h.b16 %v958
    %v1592 = vunpack.c.l.b16 %v959
    %v1593 = vunpack.c.h.b16 %v959
    %v1594 = vunpack.c.l.b16 %v960
    %v1595 = vunpack.c.h.b16 %v960
    %v1596 = vunpack.c.l.b16 %v961
    %v1597 = vunpack.c.h.b16 %v961
    %v1598 = vunpack.c.l.b16 %v962
    %v1599 = vunpack.c.h.b16 %v962
    %v1600 = vunpack.c.l.b16 %v963
    %v1601 = vunpack.c.h.b16 %v963
    %v1602 = vunpack.c.l.b16 %v964
    %v1603 = vunpack.c.h.b16 %v964
    %v1604 = vunpack.c.l.b16 %v965
    %v1605 = vunpack.c.h.b16 %v965
    %v1606 = vunpack.c.l.b16 %v966
    %v1607 = vunpack.c.h.b16 %v966
    %v1608 = vunpack.c.l.b16 %v967
    %v1609 = vunpack.c.h.b16 %v967
    %v1610 = vunpack.c.l.b16 %v968
    %v1611 = vunpack.c.h.b16 %v968
    %v1612 = vunpack.c.l.b16 %v969
    %v1613 = vunpack.c.h.b16 %v969
    %v1614 = vunpack.c.l.b16 %v970
    %v1615 = vunpack.c.h.b16 %v970
    %v1616 = vunpack.c.l.b16 %v971
    %v1617 = vunpack.c.h.b16 %v971
    %v1618 = vunpack.c.l.b16 %v972
    %v1619 = vunpack.c.h.b16 %v972
    %v1620 = vunpack.c.l.b16 %v973
    %v1621 = vunpack.c.h.b16 %v973
    %v1622 = vunpack.c.l.b16 %v974
    %v1623 = vunpack.c.h.b16 %v974
    %v1624 = vunpack.c.l.b16 %v975
    %v1625 = vunpack.c.h.b16 %v975
    %v1626 = vunpack.c.l.b16 %v976
    %v1627 = vunpack.c.h.b16 %v976
    %v1628 = vunpack.c.l.b16 %v977
    %v1629 = vunpack.c.h.b16 %v977
    %v1630 = vunpack.c.l.b16 %v978
    %v1631 = vunpack.c.h.b16 %v978
    %v1632 = vunpack.c.l.b16 %v979
    %v1633 = vunpack.c.h.b16 %v979
    %v1634 = vunpack.c.l.b16 %v980
    %v1635 = vunpack.c.h.b16 %v980
    %v1636 = vunpack.c.l.b16 %v981
    %v1637 = vunpack.c.h.b16 %v981
    %v1638 = vunpack.c.l.b16 %v982
    %v1639 = vunpack.c.h.b16 %v982
    %v1640 = vunpack.c.l.b16 %v983
    %v1641 = vunpack.c.h.b16 %v983
    %v1642 = vunpack.c.l.b16 %v984
    %v1643 = vunpack.c.h.b16 %v984
    %v1644 = vunpack.c.l.b16 %v985
    %v1645 = vunpack.c.h.b16 %v985
    %v1646 = vunpack.c.l.b16 %v986
    %v1647 = vunpack.c.h.b16 %v986
    %v1648 = vunpack.c.l.b16 %v987
    %v1649 = vunpack.c.h.b16 %v987
    %v1650 = vunpack.c.l.b16 %v988
    %v1651 = vunpack.c.h.b16 %v988
    %v1652 = vunpack.c.l.b16 %v989
    %v1653 = vunpack.c.h.b16 %v989
    %v1654 = vunpack.c.l.b16 %v990
    %v1655 = vunpack.c.h.b16 %v990
    %v1656 = vunpack.c.l.b16 %v991
    %v1657 = vunpack.c.h.b16 %v991
    %v1658 = vunpack.c.l.b16 %v992
    %v1659 = vunpack.c.h.b16 %v992
    %v1660 = vunpack.c.l.b16 %v993
    %v1661 = vunpack.c.h.b16 %v993
    %v1662 = vunpack.c.l.b16 %v994
    %v1663 = vunpack.c.h.b16 %v994
    %v1664 = vunpack.c.l.b16 %v995
    %v1665 = vunpack.c.h.b16 %v995
    %v1666 = vunpack.c.l.b16 %v996
    %v1667 = vunpack.c.h.b16 %v996
    %v1668 = vunpack.c.l.b16 %v997
    %v1669 = vunpack.c.h.b16 %v997
    %v1670 = vunpack.c.l.b16 %v998
    %v1671 = vunpack.c.h.b16 %v998
    %v1672 = vunpack.c.l.b16 %v999
    %v1673 = vunpack.c.h.b16 %v999
    %v1674 = vunpack.c.l.b16 %v1000
    %v1675 = vunpack.c.h.b16 %v1000
    %v1676 = vunpack.c.l.b16 %v1001
    %v1677 = vunpack.c.h.b16 %v1001
    %v1678 = vunpack.c.l.b16 %v1002
    %v1679 = vunpack.c.h.b16 %v1002
    %v1680 = vunpack.c.l.b16 %v1003
    %v1681 = vunpack.c.h.b16 %v1003
    %v1682 = vunpack.c.l.b16 %v1004
    %v1683 = vunpack.c.h.b16 %v1004
    %v1684 = vunpack.c.l.b16 %v1005
    %v1685 = vunpack.c.h.b16 %v1005
    %v1686 = vunpack.c.l.b16 %v1006
    %v1687 = vunpack.c.h.b16 %v1006
    %v1688 = vunpack.c.l.b16 %v1007
    %v1689 = vunpack.c.h.b16 %v1007
    %v1690 = vunpack.c.l.b16 %v1008
    %v1691 = vunpack.c.h.b16 %v1008
    %v1692 = vunpack.c.l.b16 %v1009
    %v1693 = vunpack.c.h.b16 %v1009
    %v1694 = vunpack.c.l.b16 %v1010
    %v1695 = vunpack.c.h.b16 %v1010
    %v1696 = vunpack.c.l.b16 %v1011
    %v1697 = vunpack.c.h.b16 %v1011
    %v1698 = vunpack.c.l.b16 %v1012
    %v1699 = vunpack.c.h.b16 %v1012
    %v1700 = vunpack.c.l.b16 %v1013
    %v1701 = vunpack.c.h.b16 %v1013
    %v1702 = vunpack.c.l.b16 %v1014
    %v1703 = vunpack.c.h.b16 %v1014
    %v1704 = vunpack.c.l.b16 %v1015
    %v1705 = vunpack.c.h.b16 %v1015
    %v1706 = vunpack.c.l.b16 %v1016
    %v1707 = vunpack.c.h.b16 %v1016
    %v1708 = vunpack.c.l.b16 %v1017
    %v1709 = vunpack.c.h.b16 %v1017
    %v1710 = vunpack.c.l.b16 %v1018
    %v1711 = vunpack.c.h.b16 %v1018
    %v1712 = vunpack.c.l.b16 %v1019
    %v1713 = vunpack.c.h.b16 %v1019
    %v1714 = vunpack.c.l.b16 %v1020
    %v1715 = vunpack.c.h.b16 %v1020
    %v1716 = vunpack.c.l.b16 %v1021
    %v1717 = vunpack.c.h.b16 %v1021
    %v1718 = vunpack.c.l.b16 %v1022
    %v1719 = vunpack.c.h.b16 %v1022
    %v1720 = vunpack.c.l.b16 %v1023
    %v1721 = vunpack.c.h.b16 %v1023
    %v1722 = vunpack.c.l.b16 %v1024
    %v1723 = vunpack.c.h.b16 %v1024
    %v1724 = vunpack.c.l.b16 %v1025
    %v1725 = vunpack.c.h.b16 %v1025
    %v1726 = vunpack.c.l.b16 %v1026
    %v1727 = vunpack.c.h.b16 %v1026
    %v1728 = vunpack.c.l.b16 %v1027
    %v1729 = vunpack.c.h.b16 %v1027
    %v1730 = vunpack.c.l.b16 %v1028
    %v1731 = vunpack.c.h.b16 %v1028
    %v1732 = vunpack.c.l.b16 %v1029
    %v1733 = vunpack.c.h.b16 %v1029
    %v1734 = vunpack.c.l.b16 %v1030
    %v1735 = vunpack.c.h.b16 %v1030
    %v1736 = vunpack.c.l.b16 %v1031
    %v1737 = vunpack.c.h.b16 %v1031
    %v1738 = vunpack.c.l.b16 %v1032
    %v1739 = vunpack.c.h.b16 %v1032
    %v1740 = vunpack.c.l.b16 %v1033
    %v1741 = vunpack.c.h.b16 %v1033
    %v1742 = vunpack.c.l.b16 %v1034
    %v1743 = vunpack.c.h.b16 %v1034
    %v1744 = vunpack.c.l.b16 %v1035
    %v1745 = vunpack.c.h.b16 %v1035
    %v1746 = vunpack.c.l.b16 %v1036
    %v1747 = vunpack.c.h.b16 %v1036
    %v1748 = vunpack.c.l.b16 %v1037
    %v1749 = vunpack.c.h.b16 %v1037
    %v1750 = vunpack.c.l.b16 %v1038
    %v1751 = vunpack.c.h.b16 %v1038
    %v1752 = vunpack.c.l.b16 %v1039
    %v1753 = vunpack.c.h.b16 %v1039
    %v1754 = vunpack.c.l.b16 %v1040
    %v1755 = vunpack.c.h.b16 %v1040
    %v1756 = vunpack.c.l.b16 %v1041
    %v1757 = vunpack.c.h.b16 %v1041
    %v1758 = vunpack.c.l.b16 %v1042
    %v1759 = vunpack.c.h.b16 %v1042
    %v1760 = vunpack.c.l.b16 %v1043
    %v1761 = vunpack.c.h.b16 %v1043
    %v1762 = vunpack.c.l.b16 %v1044
    %v1763 = vunpack.c.h.b16 %v1044
    %v1764 = vunpack.c.l.b16 %v1045
    %v1765 = vunpack.c.h.b16 %v1045
    %v1766 = vunpack.c.l.b16 %v1046
    %v1767 = vunpack.c.h.b16 %v1046
    %v1768 = vunpack.c.l.b16 %v1047
    %v1769 = vunpack.c.h.b16 %v1047
    %v1770 = vunpack.c.l.b16 %v1048
    %v1771 = vunpack.c.h.b16 %v1048
    %v1772 = vunpack.c.l.b16 %v1049
    %v1773 = vunpack.c.h.b16 %v1049
    %v1774 = vunpack.c.l.b16 %v1050
    %v1775 = vunpack.c.h.b16 %v1050
    %v1776 = vunpack.c.l.b16 %v1051
    %v1777 = vunpack.c.h.b16 %v1051
    %v1778 = vunpack.c.l.b16 %v1052
    %v1779 = vunpack.c.h.b16 %v1052
    %v1780 = vunpack.c.l.b16 %v1053
    %v1781 = vunpack.c.h.b16 %v1053
    %v1782 = vunpack.c.l.b16 %v1054
    %v1783 = vunpack.c.h.b16 %v1054
    %v1784 = vunpack.c.l.b16 %v1055
    %v1785 = vunpack.c.h.b16 %v1055
    %v1786 = vunpack.c.l.b16 %v1056
    %v1787 = vunpack.c.h.b16 %v1056
    %v1788 = vunpack.c.l.b16 %v1057
    %v1789 = vunpack.c.h.b16 %v1057
    %v1790 = vunpack.c.l.b16 %v1058
    %v1791 = vunpack.c.h.b16 %v1058
    %v1792 = vunpack.c.l.b16 %v1059
    %v1793 = vunpack.c.h.b16 %v1059
    %v1794 = vunpack.c.l.b16 %v1060
    %v1795 = vunpack.c.h.b16 %v1060
    %v1796 = vunpack.c.l.b16 %v1061
    %v1797 = vunpack.c.h.b16 %v1061
    %v1798 = vunpack.c.l.b16 %v1062
    %v1799 = vunpack.c.h.b16 %v1062
    %v1800 = vunpack.c.l.b16 %v1063
    %v1801 = vunpack.c.h.b16 %v1063
    %v1802 = vunpack.c.l.b16 %v1064
    %v1803 = vunpack.c.h.b16 %v1064
    %v1804 = vunpack.c.l.b16 %v1065
    %v1805 = vunpack.c.h.b16 %v1065
    %v1806 = vunpack.c.l.b16 %v1066
    %v1807 = vunpack.c.h.b16 %v1066
    %v1808 = vunpack.c.l.b16 %v1067
    %v1809 = vunpack.c.h.b16 %v1067
    %v1810 = vunpack.c.l.b16 %v1068
    %v1811 = vunpack.c.h.b16 %v1068
    %v1812 = vunpack.c.l.b16 %v1069
    %v1813 = vunpack.c.h.b16 %v1069
    %v1814 = vunpack.c.l.b16 %v1070
    %v1815 = vunpack.c.h.b16 %v1070
    %v1816 = vunpack.c.l.b16 %v1071
    %v1817 = vunpack.c.h.b16 %v1071
    %v1818 = vunpack.c.l.b16 %v1072
    %v1819 = vunpack.c.h.b16 %v1072
    %v1820 = vunpack.c.l.b16 %v1073
    %v1821 = vunpack.c.h.b16 %v1073
    %v1822 = vunpack.c.l.b16 %v1074
    %v1823 = vunpack.c.h.b16 %v1074
    %v1824 = vunpack.c.l.b16 %v1075
    %v1825 = vunpack.c.h.b16 %v1075
    %v1826 = vunpack.c.l.b16 %v1076
    %v1827 = vunpack.c.h.b16 %v1076
    %v1828 = vunpack.c.l.b16 %v1077
    %v1829 = vunpack.c.h.b16 %v1077
    %v1830 = vunpack.c.l.b16 %v1078
    %v1831 = vunpack.c.h.b16 %v1078
    %v1832 = vunpack.c.l.b16 %v1079
    %v1833 = vunpack.c.h.b16 %v1079
    %v1834 = vunpack.c.l.b16 %v1080
    %v1835 = vunpack.c.h.b16 %v1080
    %v1836 = vunpack.c.l.b16 %v1081
    %v1837 = vunpack.c.h.b16 %v1081
    %v1838 = vunpack.c.l.b16 %v1082
    %v1839 = vunpack.c.h.b16 %v1082
    %v1840 = vunpack.c.l.b16 %v1083
    %v1841 = vunpack.c.h.b16 %v1083
    %v1842 = vunpack.c.l.b16 %v1084
    %v1843 = vunpack.c.h.b16 %v1084
    %v1844 = vunpack.c.l.b16 %v1085
    %v1845 = vunpack.c.h.b16 %v1085
    %v1846 = vunpack.c.l.b16 %v1086
    %v1847 = vunpack.c.h.b16 %v1086
    %v1848 = vunpack.c.l.b16 %v1087
    %v1849 = vunpack.c.h.b16 %v1087
    %v1850 = vunpack.c.l.b16 %v1088
    %v1851 = vunpack.c.h.b16 %v1088
    %v1852 = vunpack.c.l.b16 %v1089
    %v1853 = vunpack.c.h.b16 %v1089
    %v1854 = vunpack.c.l.b16 %v1090
    %v1855 = vunpack.c.h.b16 %v1090
    %v1856 = vunpack.c.l.b16 %v1091
    %v1857 = vunpack.c.h.b16 %v1091
    %v1858 = vunpack.c.l.b16 %v1092
    %v1859 = vunpack.c.h.b16 %v1092
    %v1860 = vunpack.c.l.b16 %v1093
    %v1861 = vunpack.c.h.b16 %v1093
    %v1862 = vunpack.c.l.b16 %v1094
    %v1863 = vunpack.c.h.b16 %v1094
    %v1864 = vunpack.c.l.b16 %v1095
    %v1865 = vunpack.c.h.b16 %v1095
    %v1866 = vunpack.c.l.b16 %v1096
    %v1867 = vunpack.c.h.b16 %v1096
    %v1868 = vunpack.c.l.b16 %v1097
    %v1869 = vunpack.c.h.b16 %v1097
    %v1870 = vunpack.c.l.b16 %v1098
    %v1871 = vunpack.c.h.b16 %v1098
    %v1872 = vunpack.c.l.b16 %v1099
    %v1873 = vunpack.c.h.b16 %v1099
    %v1874 = vunpack.c.l.b16 %v1100
    %v1875 = vunpack.c.h.b16 %v1100
    %v1876 = vunpack.c.l.b16 %v1101
    %v1877 = vunpack.c.h.b16 %v1101
    %v1878 = vunpack.c.l.b16 %v1102
    %v1879 = vunpack.c.h.b16 %v1102
    %v1880 = vunpack.c.l.b16 %v1103
    %v1881 = vunpack.c.h.b16 %v1103
    %v1882 = vunpack.c.l.b16 %v1104
    %v1883 = vunpack.c.h.b16 %v1104
    %v1884 = vunpack.c.l.b16 %v1105
    %v1885 = vunpack.c.h.b16 %v1105
    %v1886 = vunpack.c.l.b16 %v1106
    %v1887 = vunpack.c.h.b16 %v1106
    %v1888 = vunpack.c.l.b16 %v1107
    %v1889 = vunpack.c.h.b16 %v1107
    %v1890 = vunpack.c.l.b16 %v1108
    %v1891 = vunpack.c.h.b16 %v1108
    %v1892 = vunpack.c.l.b16 %v1109
    %v1893 = vunpack.c.h.b16 %v1109
    %v1894 = vunpack.c.l.b16 %v1110
    %v1895 = vunpack.c.h.b16 %v1110
    %v1896 = vunpack.c.l.b16 %v1111
    %v1897 = vunpack.c.h.b16 %v1111
    %v1898 = vunpack.c.l.b16 %v1112
    %v1899 = vunpack.c.h.b16 %v1112
    %v1900 = vunpack.c.l.b16 %v1113
    %v1901 = vunpack.c.h.b16 %v1113
    %v1902 = vunpack.c.l.b16 %v1114
    %v1903 = vunpack.c.h.b16 %v1114
    %v1904 = vunpack.c.l.b16 %v1115
    %v1905 = vunpack.c.h.b16 %v1115
    %v1906 = vunpack.c.l.b16 %v1116
    %v1907 = vunpack.c.h.b16 %v1116
    %v1908 = vunpack.c.l.b16 %v1117
    %v1909 = vunpack.c.h.b16 %v1117
    %v1910 = vunpack.c.l.b16 %v1118
    %v1911 = vunpack.c.h.b16 %v1118
    %v1912 = vunpack.c.l.b16 %v1119
    %v1913 = vunpack.c.h.b16 %v1119
    %v1914 = vunpack.c.l.b16 %v1120
    %v1915 = vunpack.c.h.b16 %v1120
    %v1916 = vunpack.c.l.b16 %v1121
    %v1917 = vunpack.c.h.b16 %v1121
    %v1918 = vunpack.c.l.b16 %v1122
    %v1919 = vunpack.c.h.b16 %v1122
    %v1920 = vunpack.c.l.b16 %v1123
    %v1921 = vunpack.c.h.b16 %v1123
    %v1922 = vunpack.c.l.b16 %v1124
    %v1923 = vunpack.c.h.b16 %v1124
    %v1924 = vunpack.c.l.b16 %v1125
    %v1925 = vunpack.c.h.b16 %v1125
    %v1926 = vunpack.c.l.b16 %v1126
    %v1927 = vunpack.c.h.b16 %v1126
    %v1928 = vunpack.c.l.b16 %v1127
    %v1929 = vunpack.c.h.b16 %v1127
    %v1930 = vunpack.c.l.b16 %v1128
    %v1931 = vunpack.c.h.b16 %v1128
    %v1932 = vunpack.c.l.b16 %v1129
    %v1933 = vunpack.c.h.b16 %v1129
    %v1934 = vunpack.c.l.b16 %v1130
    %v1935 = vunpack.c.h.b16 %v1130
    %v1936 = vunpack.c.l.b16 %v1131
    %v1937 = vunpack.c.h.b16 %v1131
    %v1938 = vunpack.c.l.b16 %v1132
    %v1939 = vunpack.c.h.b16 %v1132
    %v1940 = vunpack.c.l.b16 %v1133
    %v1941 = vunpack.c.h.b16 %v1133
    %v1942 = vunpack.c.l.b16 %v1134
    %v1943 = vunpack.c.h.b16 %v1134
    %v1944 = vunpack.c.l.b16 %v1135
    %v1945 = vunpack.c.h.b16 %v1135
    %v1946 = vunpack.c.l.b16 %v1136
    %v1947 = vunpack.c.h.b16 %v1136
    %v1948 = vunpack.c.l.b16 %v1137
    %v1949 = vunpack.c.h.b16 %v1137
    %v1950 = vunpack.c.l.b16 %v1138
    %v1951 = vunpack.c.h.b16 %v1138
    %v1952 = vpack.c.b16 %v1448, %v1440
    %v1953 = vpack.c.b16 %v1449, %v1441
    %v1954 = vpack.c.b16 %v1450, %v1442
    %v1955 = vpack.c.b16 %v1451, %v1443
    %v1956 = vpack.c.b16 %v1452, %v1444
    %v1957 = vpack.c.b16 %v1453, %v1445
    %v1958 = vpack.c.b16 %v1454, %v1446
    %v1959 = vpack.c.b16 %v1455, %v1447
    %v1960 = vpack.c.b16 %v1464, %v1456
    %v1961 = vpack.c.b16 %v1465, %v1457
    %v1962 = vpack.c.b16 %v1466, %v1458
    %v1963 = vpack.c.b16 %v1467, %v1459
    %v1964 = vpack.c.b16 %v1468, %v1460
    %v1965 = vpack.c.b16 %v1469, %v1461
    %v1966 = vpack.c.b16 %v1470, %v1462
    %v1967 = vpack.c.b16 %v1471, %v1463
    %v1968 = vpack.c.b16 %v1480, %v1472
    %v1969 = vpack.c.b16 %v1481, %v1473
    %v1970 = vpack.c.b16 %v1482, %v1474
    %v1971 = vpack.c.b16 %v1483, %v1475
    %v1972 = vpack.c.b16 %v1484, %v1476
    %v1973 = vpack.c.b16 %v1485, %v1477
    %v1974 = vpack.c.b16 %v1486, %v1478
    %v1975 = vpack.c.b16 %v1487, %v1479
    %v1976 = vpack.c.b16 %v1496, %v1488
    %v1977 = vpack.c.b16 %v1497, %v1489
    %v1978 = vpack.c.b16 %v1498, %v1490
    %v1979 = vpack.c.b16 %v1499, %v1491
    %v1980 = vpack.c.b16 %v1500, %v1492
    %v1981 = vpack.c.b16 %v1501, %v1493
    %v1982 = vpack.c.b16 %v1502, %v1494
    %v1983 = vpack.c.b16 %v1503, %v1495
    %v1984 = vpack.c.b16 %v1512, %v1504
    %v1985 = vpack.c.b16 %v1513, %v1505
    %v1986 = vpack.c.b16 %v1514, %v1506
    %v1987 = vpack.c.b16 %v1515, %v1507
    %v1988 = vpack.c.b16 %v1516, %v1508
    %v1989 = vpack.c.b16 %v1517, %v1509
    %v1990 = vpack.c.b16 %v1518, %v1510
    %v1991 = vpack.c.b16 %v1519, %v1511
    %v1992 = vpack.c.b16 %v1528, %v1520
    %v1993 = vpack.c.b16 %v1529, %v1521
    %v1994 = vpack.c.b16 %v1530, %v1522
    %v1995 = vpack.c.b16 %v1531, %v1523
    %v1996 = vpack.c.b16 %v1532, %v1524
    %v1997 = vpack.c.b16 %v1533, %v1525
    %v1998 = vpack.c.b16 %v1534, %v1526
    %v1999 = vpack.c.b16 %v1535, %v1527
    %v2000 = vpack.c.b16 %v1544, %v1536
    %v2001 = vpack.c.b16 %v1545, %v1537
    %v2002 = vpack.c.b16 %v1546, %v1538
    %v2003 = vpack.c.b16 %v1547, %v1539
    %v2004 = vpack.c.b16 %v1548, %v1540
    %v2005 = vpack.c.b16 %v1549, %v1541
    %v2006 = vpack.c.b16 %v1550, %v1542
    %v2007 = vpack.c.b16 %v1551, %v1543
    %v2008 = vpack.c.b16 %v1560, %v1552
    %v2009 = vpack.c.b16 %v1561, %v1553
    %v2010 = vpack.c.b16 %v1562, %v1554
    %v2011 = vpack.c.b16 %v1563, %v1555
    %v2012 = vpack.c.b16 %v1564, %v1556
    %v2013 = vpack.c.b16 %v1565, %v1557
    %v2014 = vpack.c.b16 %v1566, %v1558
    %v2015 = vpack.c.b16 %v1567, %v1559
    %v2016 = vpack.c.b16 %v1576, %v1568
    %v2017 = vpack.c.b16 %v1577, %v1569
    %v2018 = vpack.c.b16 %v1578, %v1570
    %v2019 = vpack.c.b16 %v1579, %v1571
    %v2020 = vpack.c.b16 %v1580, %v1572
    %v2021 = vpack.c.b16 %v1581, %v1573
    %v2022 = vpack.c.b16 %v1582, %v1574
    %v2023 = vpack.c.b16 %v1583, %v1575
    %v2024 = vpack.c.b16 %v1592, %v1584
    %v2025 = vpack.c.b16 %v1593, %v1585
    %v2026 = vpack.c.b16 %v1594, %v1586
    %v2027 = vpack.c.b16 %v1595, %v1587
    %v2028 = vpack.c.b16 %v1596, %v1588
    %v2029 = vpack.c.b16 %v1597, %v1589
    %v2030 = vpack.c.b16 %v1598, %v1590
    %v2031 = vpack.c.b16 %v1599, %v1591
    %v2032 = vpack.c.b16 %v1608, %v1600
    %v2033 = vpack.c.b16 %v1609, %v1601
    %v2034 = vpack.c.b16 %v1610, %v1602
    %v2035 = vpack.c.b16 %v1611, %v1603
    %v2036 = vpack.c.b16 %v1612, %v1604
    %v2037 = vpack.c.b16 %v1613, %v1605
    %v2038 = vpack.c.b16 %v1614, %v1606
    %v2039 = vpack.c.b16 %v1615, %v1607
    %v2040 = vpack.c.b16 %v1624, %v1616
    %v2041 = vpack.c.b16 %v1625, %v1617
    %v2042 = vpack.c.b16 %v1626, %v1618
    %v2043 = vpack.c.b16 %v1627, %v1619
    %v2044 = vpack.c.b16 %v1628, %v1620
    %v2045 = vpack.c.b16 %v1629, %v1621
    %v2046 = vpack.c.b16 %v1630, %v1622
    %v2047 = vpack.c.b16 %v1631, %v1623
    %v2048 = vpack.c.b16 %v1640, %v1632
    %v2049 = vpack.c.b16 %v1641, %v1633
    %v2050 = vpack.c.b16 %v1642, %v1634
    %v2051 = vpack.c.b16 %v1643, %v1635
    %v2052 = vpack.c.b16 %v1644, %v1636
    %v2053 = vpack.c.b16 %v1645, %v1637
    %v2054 = vpack.c.b16 %v1646, %v1638
    %v2055 = vpack.c.b16 %v1647, %v1639
    %v2056 = vpack.c.b16 %v1656, %v1648
    %v2057 = vpack.c.b16 %v1657, %v1649
    %v2058 = vpack.c.b16 %v1658, %v1650
    %v2059 = vpack.c.b16 %v1659, %v1651
    %v2060 = vpack.c.b16 %v1660, %v1652
    %v2061 = vpack.c.b16 %v1661, %v1653
    %v2062 = vpack.c.b16 %v1662, %v1654
    %v2063 = vpack.c.b16 %v1663, %v1655
    %v2064 = vpack.c.b16 %v1672, %v1664
    %v2065 = vpack.c.b16 %v1673, %v1665
    %v2066 = vpack.c.b16 %v1674, %v1666
    %v2067 = vpack.c.b16 %v1675, %v1667
    %v2068 = vpack.c.b16 %v1676, %v1668
    %v2069 = vpack.c.b16 %v1677, %v1669
    %v2070 = vpack.c.b16 %v1678, %v1670
    %v2071 = vpack.c.b16 %v1679, %v1671
    %v2072 = vpack.c.b16 %v1688, %v1680
    %v2073 = vpack.c.b16 %v1689, %v1681
    %v2074 = vpack.c.b16 %v1690, %v1682
    %v2075 = vpack.c.b16 %v1691, %v1683
    %v2076 = vpack.c.b16 %v1692, %v1684
    %v2077 = vpack.c.b16 %v1693, %v1685
    %v2078 = vpack.c.b16 %v1694, %v1686
    %v2079 = vpack.c.b16 %v1695, %v1687
    %v2080 = vpack.c.b16 %v1704, %v1696
    %v2081 = vpack.c.b16 %v1705, %v1697
    %v2082 = vpack.c.b16 %v1706, %v1698
    %v2083 = vpack.c.b16 %v1707, %v1699
    %v2084 = vpack.c.b16 %v1708, %v1700
    %v2085 = vpack.c.b16 %v1709, %v1701
    %v2086 = vpack.c.b16 %v1710, %v1702
    %v2087 = vpack.c.b16 %v1711, %v1703
    %v2088 = vpack.c.b16 %v1720, %v1712
    %v2089 = vpack.c.b16 %v1721, %v1713
    %v2090 = vpack.c.b16 %v1722, %v1714
    %v2091 = vpack.c.b16 %v1723, %v1715
    %v2092 = vpack.c.b16 %v1724, %v1716
    %v2093 = vpack.c.b16 %v1725, %v1717
    %v2094 = vpack.c.b16 %v1726, %v1718
    %v2095 = vpack.c.b16 %v1727, %v1719
    %v2096 = vpack.c.b16 %v1736, %v1728
    %v2097 = vpack.c.b16 %v1737, %v1729
    %v2098 = vpack.c.b16 %v1738, %v1730
    %v2099 = vpack.c.b16 %v1739, %v1731
    %v2100 = vpack.c.b16 %v1740, %v1732
    %v2101 = vpack.c.b16 %v1741, %v1733
    %v2102 = vpack.c.b16 %v1742, %v1734
    %v2103 = vpack.c.b16 %v1743, %v1735
    %v2104 = vpack.c.b16 %v1752, %v1744
    %v2105 = vpack.c.b16 %v1753, %v1745
    %v2106 = vpack.c.b16 %v1754, %v1746
    %v2107 = vpack.c.b16 %v1755, %v1747
    %v2108 = vpack.c.b16 %v1756, %v1748
    %v2109 = vpack.c.b16 %v1757, %v1749
    %v2110 = vpack.c.b16 %v1758, %v1750
    %v2111 = vpack.c.b16 %v1759, %v1751
    %v2112 = vpack.c.b16 %v1768, %v1760
    %v2113 = vpack.c.b16 %v1769, %v1761
    %v2114 = vpack.c.b16 %v1770, %v1762
    %v2115 = vpack.c.b16 %v1771, %v1763
    %v2116 = vpack.c.b16 %v1772, %v1764
    %v2117 = vpack.c.b16 %v1773, %v1765
    %v2118 = vpack.c.b16 %v1774, %v1766
    %v2119 = vpack.c.b16 %v1775, %v1767
    %v2120 = vpack.c.b16 %v1784, %v1776
    %v2121 = vpack.c.b16 %v1785, %v1777
    %v2122 = vpack.c.b16 %v1786, %v1778
    %v2123 = vpack.c.b16 %v1787, %v1779
    %v2124 = vpack.c.b16 %v1788, %v1780
    %v2125 = vpack.c.b16 %v1789, %v1781
    %v2126 = vpack.c.b16 %v1790, %v1782
    %v2127 = vpack.c.b16 %v1791, %v1783
    %v2128 = vpack.c.b16 %v1800, %v1792
    %v2129 = vpack.c.b16 %v1801, %v1793
    %v2130 = vpack.c.b16 %v1802, %v1794
    %v2131 = vpack.c.b16 %v1803, %v1795
    %v2132 = vpack.c.b16 %v1804, %v1796
    %v2133 = vpack.c.b16 %v1805, %v1797
    %v2134 = vpack.c.b16 %v1806, %v1798
    %v2135 = vpack.c.b16 %v1807, %v1799
    %v2136 = vpack.c.b16 %v1816, %v1808
    %v2137 = vpack.c.b16 %v1817, %v1809
    %v2138 = vpack.c.b16 %v1818, %v1810
    %v2139 = vpack.c.b16 %v1819, %v1811
    %v2140 = vpack.c.b16 %v1820, %v1812
    %v2141 = vpack.c.b16 %v1821, %v1813
    %v2142 = vpack.c.b16 %v1822, %v1814
    %v2143 = vpack.c.b16 %v1823, %v1815
    %v2144 = vpack.c.b16 %v1832, %v1824
    %v2145 = vpack.c.b16 %v1833, %v1825
    %v2146 = vpack.c.b16 %v1834, %v1826
    %v2147 = vpack.c.b16 %v1835, %v1827
    %v2148 = vpack.c.b16 %v1836, %v1828
    %v2149 = vpack.c.b16 %v1837, %v1829
    %v2150 = vpack.c.b16 %v1838, %v1830
    %v2151 = vpack.c.b16 %v1839, %v1831
    %v2152 = vpack.c.b16 %v1848, %v1840
    %v2153 = vpack.c.b16 %v1849, %v1841
    %v2154 = vpack.c.b16 %v1850, %v1842
    %v2155 = vpack.c.b16 %v1851, %v1843
    %v2156 = vpack.c.b16 %v1852, %v1844
    %v2157 = vpack.c.b16 %v1853, %v1845
    %v2158 = vpack.c.b16 %v1854, %v1846
    %v2159 = vpack.c.b16 %v1855, %v1847
    %v2160 = vpack.c.b16 %v1864, %v1856
    %v2161 = vpack.c.b16 %v1865, %v1857
    %v2162 = vpack.c.b16 %v1866, %v1858
    %v2163 = vpack.c.b16 %v1867, %v1859
    %v2164 = vpack.c.b16 %v1868, %v1860
    %v2165 = vpack.c.b16 %v1869, %v1861
    %v2166 = vpack.c.b16 %v1870, %v1862
    %v2167 = vpack.c.b16 %v1871, %v1863
    %v2168 = vpack.c.b16 %v1880, %v1872
    %v2169 = vpack.c.b16 %v1881, %v1873
    %v2170 = vpack.c.b16 %v1882, %v1874
    %v2171 = vpack.c.b16 %v1883, %v1875
    %v2172 = vpack.c.b16 %v1884, %v1876
    %v2173 = vpack.c.b16 %v1885, %v1877
    %v2174 = vpack.c.b16 %v1886, %v1878
    %v2175 = vpack.c.b16 %v1887, %v1879
    %v2176 = vpack.c.b16 %v1896, %v1888
    %v2177 = vpack.c.b16 %v1897, %v1889
    %v2178 = vpack.c.b16 %v1898, %v1890
    %v2179 = vpack.c.b16 %v1899, %v1891
    %v2180 = vpack.c.b16 %v1900, %v1892
    %v2181 = vpack.c.b16 %v1901, %v1893
    %v2182 = vpack.c.b16 %v1902, %v1894
    %v2183 = vpack.c.b16 %v1903, %v1895
    %v2184 = vpack.c.b16 %v1912, %v1904
    %v2185 = vpack.c.b16 %v1913, %v1905
    %v2186 = vpack.c.b16 %v1914, %v1906
    %v2187 = vpack.c.b16 %v1915, %v1907
    %v2188 = vpack.c.b16 %v1916, %v1908
    %v2189 = vpack.c.b16 %v1917, %v1909
    %v2190 = vpack.c.b16 %v1918, %v1910
    %v2191 = vpack.c.b16 %v1919, %v1911
    %v2192 = vpack.c.b16 %v1928, %v1920
    %v2193 = vpack.c.b16 %v1929, %v1921
    %v2194 = vpack.c.b16 %v1930, %v1922
    %v2195 = vpack.c.b16 %v1931, %v1923
    %v2196 = vpack.c.b16 %v1932, %v1924
    %v2197 = vpack.c.b16 %v1933, %v1925
    %v2198 = vpack.c.b16 %v1934, %v1926
    %v2199 = vpack.c.b16 %v1935, %v1927
    %v2200 = vpack.c.b16 %v1944, %v1936
    %v2201 = vpack.c.b16 %v1945, %v1937
    %v2202 = vpack.c.b16 %v1946, %v1938
    %v2203 = vpack.c.b16 %v1947, %v1939
    %v2204 = vpack.c.b16 %v1948, %v1940
    %v2205 = vpack.c.b16 %v1949, %v1941
    %v2206 = vpack.c.b16 %v1950, %v1942
    %v2207 = vpack.c.b16 %v1951, %v1943
    %2464 = vmatprep.subr.bf16.mxu0 %v1953
    %2465 = vmatpush1.bf16.msra.mxu0 %v1952
    %2466 = vmatprep.subr.bf16.mxu0 %v1961
    %2467 = vmatpush1.bf16.msra.mxu0 %v1960
    %2468 = vmatprep.subr.bf16.mxu0 %v1969
    %2469 = vmatpush1.bf16.msra.mxu0 %v1968
    %2470 = vmatprep.subr.bf16.mxu0 %v1977
    %2471 = vmatpush1.bf16.msra.mxu0 %v1976
    %2472 = vmatprep.subr.bf16.mxu0 %v1985
    %2473 = vmatpush1.bf16.msra.mxu0 %v1984
    %2474 = vmatprep.subr.bf16.mxu0 %v1993
    %2475 = vmatpush1.bf16.msra.mxu0 %v1992
    %2476 = vmatprep.subr.bf16.mxu0 %v2001
    %2477 = vmatpush1.bf16.msra.mxu0 %v2000
    %2478 = vmatprep.subr.bf16.mxu0 %v2009
    %2479 = vmatpush1.bf16.msra.mxu0 %v2008
    %2480 = vmatprep.subr.bf16.mxu0 %v2017
    %2481 = vmatpush1.bf16.msra.mxu0 %v2016
    %2482 = vmatprep.subr.bf16.mxu0 %v2025
    %2483 = vmatpush1.bf16.msra.mxu0 %v2024
    %2484 = vmatprep.subr.bf16.mxu0 %v2033
    %2485 = vmatpush1.bf16.msra.mxu0 %v2032
    %2486 = vmatprep.subr.bf16.mxu0 %v2041
    %2487 = vmatpush1.bf16.msra.mxu0 %v2040
    %2488 = vmatprep.subr.bf16.mxu0 %v2049
    %2489 = vmatpush1.bf16.msra.mxu0 %v2048
    %2490 = vmatprep.subr.bf16.mxu0 %v2057
    %2491 = vmatpush1.bf16.msra.mxu0 %v2056
    %2492 = vmatprep.subr.bf16.mxu0 %v2065
    %2493 = vmatpush1.bf16.msra.mxu0 %v2064
    %2494 = vmatprep.subr.bf16.mxu0 %v2073
    %2495 = vmatpush1.bf16.msra.mxu0 %v2072
    %2496 = vmatprep.mubr.bf16.mxu0 %v880
    %2497 = vmatmul.mubr.bf16.gmra.mrb[0].mxu0 %v879
    %v2498 = vpop.f32.mrb[0].mxu0
    %v2499 = vadd.f32 %v1147, %v2498
    %v2500 = vpop.f32.mrb[0].mxu0
    %v2501 = vadd.f32 %v1151, %v2500
    %v2502 = vpop.f32.mrb[0].mxu0
    %v2503 = vpop.f32.mrb[0].mxu0
    %2504 = vdwg.mxu0
    %2505 = vmatprep.subr.bf16.mxu0 %v2081
    %2506 = vmatpush1.bf16.msra.mxu0 %v2080
    %2507 = vmatprep.subr.bf16.mxu0 %v2089
    %2508 = vmatpush1.bf16.msra.mxu0 %v2088
    %2509 = vmatprep.subr.bf16.mxu0 %v2097
    %2510 = vmatpush1.bf16.msra.mxu0 %v2096
    %2511 = vmatprep.subr.bf16.mxu0 %v2105
    %2512 = vmatpush1.bf16.msra.mxu0 %v2104
    %2513 = vmatprep.subr.bf16.mxu0 %v2113
    %2514 = vmatpush1.bf16.msra.mxu0 %v2112
    %2515 = vmatprep.subr.bf16.mxu0 %v2121
    %2516 = vmatpush1.bf16.msra.mxu0 %v2120
    %2517 = vmatprep.subr.bf16.mxu0 %v2129
    %2518 = vmatpush1.bf16.msra.mxu0 %v2128
    %2519 = vmatprep.subr.bf16.mxu0 %v2137
    %2520 = vmatpush1.bf16.msra.mxu0 %v2136
    %2521 = vmatprep.subr.bf16.mxu0 %v2145
    %2522 = vmatpush1.bf16.msra.mxu0 %v2144
    %2523 = vmatprep.subr.bf16.mxu0 %v2153
    %2524 = vmatpush1.bf16.msra.mxu0 %v2152
    %2525 = vmatprep.subr.bf16.mxu0 %v2161
    %2526 = vmatpush1.bf16.msra.mxu0 %v2160
    %2527 = vmatprep.subr.bf16.mxu0 %v2169
    %2528 = vmatpush1.bf16.msra.mxu0 %v2168
    %2529 = vmatprep.subr.bf16.mxu0 %v2177
    %2530 = vmatpush1.bf16.msra.mxu0 %v2176
    %2531 = vmatprep.subr.bf16.mxu0 %v2185
    %2532 = vmatpush1.bf16.msra.mxu0 %v2184
    %2533 = vmatprep.subr.bf16.mxu0 %v2193
    %2534 = vmatpush1.bf16.msra.mxu0 %v2192
    %2535 = vmatprep.subr.bf16.mxu0 %v2201
    %2536 = vmatpush1.bf16.msra.mxu0 %v2200
    %2537 = vmatprep.mubr.bf16.mxu0 %v882
    %2538 = vmatmul.mubr.bf16.gmra.mrb[0].mxu0 %v881
    %v2539 = vpop.f32.mrb[0].mxu0
    %v2540 = vadd.f32 %v2499, %v2539
    %v2541 = vpop.f32.mrb[0].mxu0
    %v2542 = vadd.f32 %v2501, %v2541
    %v2543 = vpop.f32.mrb[0].mxu0
    %v2544 = vpop.f32.mrb[0].mxu0
    %2545 = vdwg.mxu0
    %2546 = vmatprep.subr.bf16.mxu0 %v1955
    %2547 = vmatpush1.bf16.msra.mxu0 %v1954
    %2548 = vmatprep.subr.bf16.mxu0 %v1963
    %2549 = vmatpush1.bf16.msra.mxu0 %v1962
    %2550 = vmatprep.subr.bf16.mxu0 %v1971
    %2551 = vmatpush1.bf16.msra.mxu0 %v1970
    %2552 = vmatprep.subr.bf16.mxu0 %v1979
    %2553 = vmatpush1.bf16.msra.mxu0 %v1978
    %2554 = vmatprep.subr.bf16.mxu0 %v1987
    %2555 = vmatpush1.bf16.msra.mxu0 %v1986
    %2556 = vmatprep.subr.bf16.mxu0 %v1995
    %2557 = vmatpush1.bf16.msra.mxu0 %v1994
    %2558 = vmatprep.subr.bf16.mxu0 %v2003
    %2559 = vmatpush1.bf16.msra.mxu0 %v2002
    %2560 = vmatprep.subr.bf16.mxu0 %v2011
    %2561 = vmatpush1.bf16.msra.mxu0 %v2010
    %2562 = vmatprep.subr.bf16.mxu0 %v2019
    %2563 = vmatpush1.bf16.msra.mxu0 %v2018
    %2564 = vmatprep.subr.bf16.mxu0 %v2027
    %2565 = vmatpush1.bf16.msra.mxu0 %v2026
    %2566 = vmatprep.subr.bf16.mxu0 %v2035
    %2567 = vmatpush1.bf16.msra.mxu0 %v2034
    %2568 = vmatprep.subr.bf16.mxu0 %v2043
    %2569 = vmatpush1.bf16.msra.mxu0 %v2042
    %2570 = vmatprep.subr.bf16.mxu0 %v2051
    %2571 = vmatpush1.bf16.msra.mxu0 %v2050
    %2572 = vmatprep.subr.bf16.mxu0 %v2059
    %2573 = vmatpush1.bf16.msra.mxu0 %v2058
    %2574 = vmatprep.subr.bf16.mxu0 %v2067
    %2575 = vmatpush1.bf16.msra.mxu0 %v2066
    %2576 = vmatprep.subr.bf16.mxu0 %v2075
    %2577 = vmatpush1.bf16.msra.mxu0 %v2074
    %2578 = vmatprep.mubr.bf16.mxu0 %v880
    %2579 = vmatmul.mubr.bf16.gmra.mrb[0].mxu0 %v879
    %v2580 = vpop.f32.mrb[0].mxu0
    %v2581 = vadd.f32 %v1155, %v2580
    %v2582 = vpop.f32.mrb[0].mxu0
    %v2583 = vadd.f32 %v1159, %v2582
    %v2584 = vpop.f32.mrb[0].mxu0
    %v2585 = vpop.f32.mrb[0].mxu0
    %2586 = vdwg.mxu0
    %2587 = vmatprep.subr.bf16.mxu0 %v2083
    %2588 = vmatpush1.bf16.msra.mxu0 %v2082
    %2589 = vmatprep.subr.bf16.mxu0 %v2091
    %2590 = vmatpush1.bf16.msra.mxu0 %v2090
    %2591 = vmatprep.subr.bf16.mxu0 %v2099
    %2592 = vmatpush1.bf16.msra.mxu0 %v2098
    %2593 = vmatprep.subr.bf16.mxu0 %v2107
    %2594 = vmatpush1.bf16.msra.mxu0 %v2106
    %2595 = vmatprep.subr.bf16.mxu0 %v2115
    %2596 = vmatpush1.bf16.msra.mxu0 %v2114
    %2597 = vmatprep.subr.bf16.mxu0 %v2123
    %2598 = vmatpush1.bf16.msra.mxu0 %v2122
    %2599 = vmatprep.subr.bf16.mxu0 %v2131
    %2600 = vmatpush1.bf16.msra.mxu0 %v2130
    %2601 = vmatprep.subr.bf16.mxu0 %v2139
    %2602 = vmatpush1.bf16.msra.mxu0 %v2138
    %2603 = vmatprep.subr.bf16.mxu0 %v2147
    %2604 = vmatpush1.bf16.msra.mxu0 %v2146
    %2605 = vmatprep.subr.bf16.mxu0 %v2155
    %2606 = vmatpush1.bf16.msra.mxu0 %v2154
    %2607 = vmatprep.subr.bf16.mxu0 %v2163
    %2608 = vmatpush1.bf16.msra.mxu0 %v2162
    %2609 = vmatprep.subr.bf16.mxu0 %v2171
    %2610 = vmatpush1.bf16.msra.mxu0 %v2170
    %2611 = vmatprep.subr.bf16.mxu0 %v2179
    %2612 = vmatpush1.bf16.msra.mxu0 %v2178
    %2613 = vmatprep.subr.bf16.mxu0 %v2187
    %2614 = vmatpush1.bf16.msra.mxu0 %v2186
    %2615 = vmatprep.subr.bf16.mxu0 %v2195
    %2616 = vmatpush1.bf16.msra.mxu0 %v2194
    %2617 = vmatprep.subr.bf16.mxu0 %v2203
    %2618 = vmatpush1.bf16.msra.mxu0 %v2202
    %2619 = vmatprep.mubr.bf16.mxu0 %v882
    %2620 = vmatmul.mubr.bf16.gmra.mrb[0].mxu0 %v881
    %v2621 = vpop.f32.mrb[0].mxu0
    %v2622 = vadd.f32 %v2581, %v2621
    %v2623 = vpop.f32.mrb[0].mxu0
    %v2624 = vadd.f32 %v2583, %v2623
    %v2625 = vpop.f32.mrb[0].mxu0
    %v2626 = vpop.f32.mrb[0].mxu0
    %2627 = vdwg.mxu0
    %2628 = vmatprep.subr.bf16.mxu0 %v1957
    %2629 = vmatpush1.bf16.msra.mxu0 %v1956
    %2630 = vmatprep.subr.bf16.mxu0 %v1965
    %2631 = vmatpush1.bf16.msra.mxu0 %v1964
    %2632 = vmatprep.subr.bf16.mxu0 %v1973
    %2633 = vmatpush1.bf16.msra.mxu0 %v1972
    %2634 = vmatprep.subr.bf16.mxu0 %v1981
    %2635 = vmatpush1.bf16.msra.mxu0 %v1980
    %2636 = vmatprep.subr.bf16.mxu0 %v1989
    %2637 = vmatpush1.bf16.msra.mxu0 %v1988
    %2638 = vmatprep.subr.bf16.mxu0 %v1997
    %2639 = vmatpush1.bf16.msra.mxu0 %v1996
    %2640 = vmatprep.subr.bf16.mxu0 %v2005
    %2641 = vmatpush1.bf16.msra.mxu0 %v2004
    %2642 = vmatprep.subr.bf16.mxu0 %v2013
    %2643 = vmatpush1.bf16.msra.mxu0 %v2012
    %2644 = vmatprep.subr.bf16.mxu0 %v2021
    %2645 = vmatpush1.bf16.msra.mxu0 %v2020
    %2646 = vmatprep.subr.bf16.mxu0 %v2029
    %2647 = vmatpush1.bf16.msra.mxu0 %v2028
    %2648 = vmatprep.subr.bf16.mxu0 %v2037
    %2649 = vmatpush1.bf16.msra.mxu0 %v2036
    %2650 = vmatprep.subr.bf16.mxu0 %v2045
    %2651 = vmatpush1.bf16.msra.mxu0 %v2044
    %2652 = vmatprep.subr.bf16.mxu0 %v2053
    %2653 = vmatpush1.bf16.msra.mxu0 %v2052
    %2654 = vmatprep.subr.bf16.mxu0 %v2061
    %2655 = vmatpush1.bf16.msra.mxu0 %v2060
    %2656 = vmatprep.subr.bf16.mxu0 %v2069
    %2657 = vmatpush1.bf16.msra.mxu0 %v2068
    %2658 = vmatprep.subr.bf16.mxu0 %v2077
    %2659 = vmatpush1.bf16.msra.mxu0 %v2076
    %2660 = vmatprep.mubr.bf16.mxu0 %v880
    %2661 = vmatmul.mubr.bf16.gmra.mrb[0].mxu0 %v879
    %v2662 = vpop.f32.mrb[0].mxu0
    %v2663 = vadd.f32 %v1163, %v2662
    %v2664 = vpop.f32.mrb[0].mxu0
    %v2665 = vadd.f32 %v1167, %v2664
    %v2666 = vpop.f32.mrb[0].mxu0
    %v2667 = vpop.f32.mrb[0].mxu0
    %2668 = vdwg.mxu0
    %2669 = vmatprep.subr.bf16.mxu0 %v2085
    %2670 = vmatpush1.bf16.msra.mxu0 %v2084
    %2671 = vmatprep.subr.bf16.mxu0 %v2093
    %2672 = vmatpush1.bf16.msra.mxu0 %v2092
    %2673 = vmatprep.subr.bf16.mxu0 %v2101
    %2674 = vmatpush1.bf16.msra.mxu0 %v2100
    %2675 = vmatprep.subr.bf16.mxu0 %v2109
    %2676 = vmatpush1.bf16.msra.mxu0 %v2108
    %2677 = vmatprep.subr.bf16.mxu0 %v2117
    %2678 = vmatpush1.bf16.msra.mxu0 %v2116
    %2679 = vmatprep.subr.bf16.mxu0 %v2125
    %2680 = vmatpush1.bf16.msra.mxu0 %v2124
    %2681 = vmatprep.subr.bf16.mxu0 %v2133
    %2682 = vmatpush1.bf16.msra.mxu0 %v2132
    %2683 = vmatprep.subr.bf16.mxu0 %v2141
    %2684 = vmatpush1.bf16.msra.mxu0 %v2140
    %2685 = vmatprep.subr.bf16.mxu0 %v2149
    %2686 = vmatpush1.bf16.msra.mxu0 %v2148
    %2687 = vmatprep.subr.bf16.mxu0 %v2157
    %2688 = vmatpush1.bf16.msra.mxu0 %v2156
    %2689 = vmatprep.subr.bf16.mxu0 %v2165
    %2690 = vmatpush1.bf16.msra.mxu0 %v2164
    %2691 = vmatprep.subr.bf16.mxu0 %v2173
    %2692 = vmatpush1.bf16.msra.mxu0 %v2172
    %2693 = vmatprep.subr.bf16.mxu0 %v2181
    %2694 = vmatpush1.bf16.msra.mxu0 %v2180
    %2695 = vmatprep.subr.bf16.mxu0 %v2189
    %2696 = vmatpush1.bf16.msra.mxu0 %v2188
    %2697 = vmatprep.subr.bf16.mxu0 %v2197
    %2698 = vmatpush1.bf16.msra.mxu0 %v2196
    %2699 = vmatprep.subr.bf16.mxu0 %v2205
    %2700 = vmatpush1.bf16.msra.mxu0 %v2204
    %2701 = vmatprep.mubr.bf16.mxu0 %v882
    %2702 = vmatmul.mubr.bf16.gmra.mrb[0].mxu0 %v881
    %v2703 = vpop.f32.mrb[0].mxu0
    %v2704 = vadd.f32 %v2663, %v2703
    %v2705 = vpop.f32.mrb[0].mxu0
    %v2706 = vadd.f32 %v2665, %v2705
    %v2707 = vpop.f32.mrb[0].mxu0
    %v2708 = vpop.f32.mrb[0].mxu0
    %2709 = vdwg.mxu0
    %2710 = vmatprep.subr.bf16.mxu0 %v1959
    %2711 = vmatpush1.bf16.msra.mxu0 %v1958
    %2712 = vmatprep.subr.bf16.mxu0 %v1967
    %2713 = vmatpush1.bf16.msra.mxu0 %v1966
    %2714 = vmatprep.subr.bf16.mxu0 %v1975
    %2715 = vmatpush1.bf16.msra.mxu0 %v1974
    %2716 = vmatprep.subr.bf16.mxu0 %v1983
    %2717 = vmatpush1.bf16.msra.mxu0 %v1982
    %2718 = vmatprep.subr.bf16.mxu0 %v1991
    %2719 = vmatpush1.bf16.msra.mxu0 %v1990
    %2720 = vmatprep.subr.bf16.mxu0 %v1999
    %2721 = vmatpush1.bf16.msra.mxu0 %v1998
    %2722 = vmatprep.subr.bf16.mxu0 %v2007
    %2723 = vmatpush1.bf16.msra.mxu0 %v2006
    %2724 = vmatprep.subr.bf16.mxu0 %v2015
    %2725 = vmatpush1.bf16.msra.mxu0 %v2014
    %2726 = vmatprep.subr.bf16.mxu0 %v2023
    %2727 = vmatpush1.bf16.msra.mxu0 %v2022
    %2728 = vmatprep.subr.bf16.mxu0 %v2031
    %2729 = vmatpush1.bf16.msra.mxu0 %v2030
    %2730 = vmatprep.subr.bf16.mxu0 %v2039
    %2731 = vmatpush1.bf16.msra.mxu0 %v2038
    %2732 = vmatprep.subr.bf16.mxu0 %v2047
    %2733 = vmatpush1.bf16.msra.mxu0 %v2046
    %2734 = vmatprep.subr.bf16.mxu0 %v2055
    %2735 = vmatpush1.bf16.msra.mxu0 %v2054
    %2736 = vmatprep.subr.bf16.mxu0 %v2063
    %2737 = vmatpush1.bf16.msra.mxu0 %v2062
    %2738 = vmatprep.subr.bf16.mxu0 %v2071
    %2739 = vmatpush1.bf16.msra.mxu0 %v2070
    %2740 = vmatprep.subr.bf16.mxu0 %v2079
    %2741 = vmatpush1.bf16.msra.mxu0 %v2078
    %2742 = vmatprep.mubr.bf16.mxu0 %v880
    %2743 = vmatmul.mubr.bf16.gmra.mrb[0].mxu0 %v879
    %v2744 = vpop.f32.mrb[0].mxu0
    %v2745 = vadd.f32 %v1171, %v2744
    %v2746 = vpop.f32.mrb[0].mxu0
    %v2747 = vadd.f32 %v1175, %v2746
    %v2748 = vpop.f32.mrb[0].mxu0
    %v2749 = vpop.f32.mrb[0].mxu0
    %2750 = vdwg.mxu0
    %2751 = vmatprep.subr.bf16.mxu0 %v2087
    %2752 = vmatpush1.bf16.msra.mxu0 %v2086
    %2753 = vmatprep.subr.bf16.mxu0 %v2095
    %2754 = vmatpush1.bf16.msra.mxu0 %v2094
    %2755 = vmatprep.subr.bf16.mxu0 %v2103
    %2756 = vmatpush1.bf16.msra.mxu0 %v2102
    %2757 = vmatprep.subr.bf16.mxu0 %v2111
    %2758 = vmatpush1.bf16.msra.mxu0 %v2110
    %2759 = vmatprep.subr.bf16.mxu0 %v2119
    %2760 = vmatpush1.bf16.msra.mxu0 %v2118
    %2761 = vmatprep.subr.bf16.mxu0 %v2127
    %2762 = vmatpush1.bf16.msra.mxu0 %v2126
    %2763 = vmatprep.subr.bf16.mxu0 %v2135
    %2764 = vmatpush1.bf16.msra.mxu0 %v2134
    %2765 = vmatprep.subr.bf16.mxu0 %v2143
    %2766 = vmatpush1.bf16.msra.mxu0 %v2142
    %2767 = vmatprep.subr.bf16.mxu0 %v2151
    %2768 = vmatpush1.bf16.msra.mxu0 %v2150
    %2769 = vmatprep.subr.bf16.mxu0 %v2159
    %2770 = vmatpush1.bf16.msra.mxu0 %v2158
    %2771 = vmatprep.subr.bf16.mxu0 %v2167
    %2772 = vmatpush1.bf16.msra.mxu0 %v2166
    %2773 = vmatprep.subr.bf16.mxu0 %v2175
    %2774 = vmatpush1.bf16.msra.mxu0 %v2174
    %2775 = vmatprep.subr.bf16.mxu0 %v2183
    %2776 = vmatpush1.bf16.msra.mxu0 %v2182
    %2777 = vmatprep.subr.bf16.mxu0 %v2191
    %2778 = vmatpush1.bf16.msra.mxu0 %v2190
    %2779 = vmatprep.subr.bf16.mxu0 %v2199
    %2780 = vmatpush1.bf16.msra.mxu0 %v2198
    %2781 = vmatprep.subr.bf16.mxu0 %v2207
    %2782 = vmatpush1.bf16.msra.mxu0 %v2206
    %2783 = vmatprep.mubr.bf16.mxu0 %v882
    %2784 = vmatmul.mubr.bf16.gmra.mrb[0].mxu0 %v881
    %v2785 = vpop.f32.mrb[0].mxu0
    %v2786 = vadd.f32 %v2745, %v2785
    %v2787 = vpop.f32.mrb[0].mxu0
    %v2788 = vadd.f32 %v2747, %v2787
    %v2789 = vpop.f32.mrb[0].mxu0
    %v2790 = vpop.f32.mrb[0].mxu0
    %2791 = vdwg.mxu0
    %v2792 = vmax.f32 %v2540, 0.0
    %v2793 = vmax.f32 %v2542, 0.0
    %v2794 = vmax.f32 %v2622, 0.0
    %v2795 = vmax.f32 %v2624, 0.0
    %v2796 = vmax.f32 %v2704, 0.0
    %v2797 = vmax.f32 %v2706, 0.0
    %v2798 = vmax.f32 %v2786, 0.0
    %v2799 = vmax.f32 %v2788, 0.0
    %v2800 = vpack.c.bf16 %v2792, %v2792
    %v2801 = vpack.c.bf16 %v2793, %v2793
    %v2802 = vpack.c.bf16 %v2794, %v2794
    %v2803 = vpack.c.bf16 %v2795, %v2795
    %v2804 = vpack.c.bf16 %v2796, %v2796
    %v2805 = vpack.c.bf16 %v2797, %v2797
    %v2806 = vpack.c.bf16 %v2798, %v2798
    %v2807 = vpack.c.bf16 %v2799, %v2799
    %v2808 = vld [vmem:[#allocation7] sm:$0xff]
    %v2809 = vld [vmem:[#allocation7 + $0x8] sm:$0xff]
    %v2810 = vld [vmem:[#allocation7 + $0x10] sm:$0xff]
    %v2811 = vld [vmem:[#allocation7 + $0x18] sm:$0xff]
    %v2812 = vld [vmem:[#allocation7 + $0x20] sm:$0xff]
    %v2813 = vld [vmem:[#allocation7 + $0x28] sm:$0xff]
    %v2814 = vld [vmem:[#allocation7 + $0x30] sm:$0xff]
    %v2815 = vld [vmem:[#allocation7 + $0x38] sm:$0xff]
    %v2816 = vld [vmem:[#allocation7 + $0x40] sm:$0xff]
    %v2817 = vld [vmem:[#allocation7 + $0x48] sm:$0xff]
    %v2818 = vld [vmem:[#allocation7 + $0x50] sm:$0xff]
    %v2819 = vld [vmem:[#allocation7 + $0x58] sm:$0xff]
    %v2820 = vld [vmem:[#allocation7 + $0x60] sm:$0xff]
    %v2821 = vld [vmem:[#allocation7 + $0x68] sm:$0xff]
    %v2822 = vld [vmem:[#allocation7 + $0x70] sm:$0xff]
    %v2823 = vld [vmem:[#allocation7 + $0x78] sm:$0xff]
    %v2824 = vld [vmem:[#allocation7 + $0x80] sm:$0xff]
    %v2825 = vld [vmem:[#allocation7 + $0x88] sm:$0xff]
    %v2826 = vld [vmem:[#allocation7 + $0x90] sm:$0xff]
    %v2827 = vld [vmem:[#allocation7 + $0x98] sm:$0xff]
    %v2828 = vld [vmem:[#allocation7 + $0xa0] sm:$0xff]
    %v2829 = vld [vmem:[#allocation7 + $0xa8] sm:$0xff]
    %v2830 = vld [vmem:[#allocation7 + $0xb0] sm:$0xff]
    %v2831 = vld [vmem:[#allocation7 + $0xb8] sm:$0xff]
    %v2832 = vld [vmem:[#allocation7 + $0xc0] sm:$0xff]
    %v2833 = vld [vmem:[#allocation7 + $0xc8] sm:$0xff]
    %v2834 = vld [vmem:[#allocation7 + $0xd0] sm:$0xff]
    %v2835 = vld [vmem:[#allocation7 + $0xd8] sm:$0xff]
    %v2836 = vld [vmem:[#allocation7 + $0xe0] sm:$0xff]
    %v2837 = vld [vmem:[#allocation7 + $0xe8] sm:$0xff]
    %v2838 = vld [vmem:[#allocation7 + $0xf0] sm:$0xff]
    %v2839 = vld [vmem:[#allocation7 + $0xf8] sm:$0xff]
    %v2840 = vld [vmem:[#allocation7 + $0x100] sm:$0xff]
    %v2841 = vld [vmem:[#allocation7 + $0x108] sm:$0xff]
    %v2842 = vld [vmem:[#allocation7 + $0x110] sm:$0xff]
    %v2843 = vld [vmem:[#allocation7 + $0x118] sm:$0xff]
    %v2844 = vld [vmem:[#allocation7 + $0x120] sm:$0xff]
    %v2845 = vld [vmem:[#allocation7 + $0x128] sm:$0xff]
    %v2846 = vld [vmem:[#allocation7 + $0x130] sm:$0xff]
    %v2847 = vld [vmem:[#allocation7 + $0x138] sm:$0xff]
    %v2848 = vld [vmem:[#allocation7 + $0x140] sm:$0xff]
    %v2849 = vld [vmem:[#allocation7 + $0x148] sm:$0xff]
    %v2850 = vld [vmem:[#allocation7 + $0x150] sm:$0xff]
    %v2851 = vld [vmem:[#allocation7 + $0x158] sm:$0xff]
    %v2852 = vld [vmem:[#allocation7 + $0x160] sm:$0xff]
    %v2853 = vld [vmem:[#allocation7 + $0x168] sm:$0xff]
    %v2854 = vld [vmem:[#allocation7 + $0x170] sm:$0xff]
    %v2855 = vld [vmem:[#allocation7 + $0x178] sm:$0xff]
    %v2856 = vld [vmem:[#allocation7 + $0x180] sm:$0xff]
    %v2857 = vld [vmem:[#allocation7 + $0x188] sm:$0xff]
    %v2858 = vld [vmem:[#allocation7 + $0x190] sm:$0xff]
    %v2859 = vld [vmem:[#allocation7 + $0x198] sm:$0xff]
    %v2860 = vld [vmem:[#allocation7 + $0x1a0] sm:$0xff]
    %v2861 = vld [vmem:[#allocation7 + $0x1a8] sm:$0xff]
    %v2862 = vld [vmem:[#allocation7 + $0x1b0] sm:$0xff]
    %v2863 = vld [vmem:[#allocation7 + $0x1b8] sm:$0xff]
    %v2864 = vld [vmem:[#allocation7 + $0x1c0] sm:$0xff]
    %v2865 = vld [vmem:[#allocation7 + $0x1c8] sm:$0xff]
    %v2866 = vld [vmem:[#allocation7 + $0x1d0] sm:$0xff]
    %v2867 = vld [vmem:[#allocation7 + $0x1d8] sm:$0xff]
    %v2868 = vld [vmem:[#allocation7 + $0x1e0] sm:$0xff]
    %v2869 = vld [vmem:[#allocation7 + $0x1e8] sm:$0xff]
    %v2870 = vld [vmem:[#allocation7 + $0x1f0] sm:$0xff]
    %v2871 = vld [vmem:[#allocation7 + $0x1f8] sm:$0xff]
    %v2872 = vld [vmem:[#allocation7 + $0x200] sm:$0xff]
    %v2873 = vld [vmem:[#allocation7 + $0x208] sm:$0xff]
    %v2874 = vld [vmem:[#allocation7 + $0x210] sm:$0xff]
    %v2875 = vld [vmem:[#allocation7 + $0x218] sm:$0xff]
    %v2876 = vld [vmem:[#allocation7 + $0x220] sm:$0xff]
    %v2877 = vld [vmem:[#allocation7 + $0x228] sm:$0xff]
    %v2878 = vld [vmem:[#allocation7 + $0x230] sm:$0xff]
    %v2879 = vld [vmem:[#allocation7 + $0x238] sm:$0xff]
    %v2880 = vld [vmem:[#allocation7 + $0x240] sm:$0xff]
    %v2881 = vld [vmem:[#allocation7 + $0x248] sm:$0xff]
    %v2882 = vld [vmem:[#allocation7 + $0x250] sm:$0xff]
    %v2883 = vld [vmem:[#allocation7 + $0x258] sm:$0xff]
    %v2884 = vld [vmem:[#allocation7 + $0x260] sm:$0xff]
    %v2885 = vld [vmem:[#allocation7 + $0x268] sm:$0xff]
    %v2886 = vld [vmem:[#allocation7 + $0x270] sm:$0xff]
    %v2887 = vld [vmem:[#allocation7 + $0x278] sm:$0xff]
    %v2888 = vld [vmem:[#allocation7 + $0x280] sm:$0xff]
    %v2889 = vld [vmem:[#allocation7 + $0x288] sm:$0xff]
    %v2890 = vld [vmem:[#allocation7 + $0x290] sm:$0xff]
    %v2891 = vld [vmem:[#allocation7 + $0x298] sm:$0xff]
    %v2892 = vld [vmem:[#allocation7 + $0x2a0] sm:$0xff]
    %v2893 = vld [vmem:[#allocation7 + $0x2a8] sm:$0xff]
    %v2894 = vld [vmem:[#allocation7 + $0x2b0] sm:$0xff]
    %v2895 = vld [vmem:[#allocation7 + $0x2b8] sm:$0xff]
    %v2896 = vld [vmem:[#allocation7 + $0x2c0] sm:$0xff]
    %v2897 = vld [vmem:[#allocation7 + $0x2c8] sm:$0xff]
    %v2898 = vld [vmem:[#allocation7 + $0x2d0] sm:$0xff]
    %v2899 = vld [vmem:[#allocation7 + $0x2d8] sm:$0xff]
    %v2900 = vld [vmem:[#allocation7 + $0x2e0] sm:$0xff]
    %v2901 = vld [vmem:[#allocation7 + $0x2e8] sm:$0xff]
    %v2902 = vld [vmem:[#allocation7 + $0x2f0] sm:$0xff]
    %v2903 = vld [vmem:[#allocation7 + $0x2f8] sm:$0xff]
    %v2904 = vld [vmem:[#allocation7 + $0x300] sm:$0xff]
    %v2905 = vld [vmem:[#allocation7 + $0x308] sm:$0xff]
    %v2906 = vld [vmem:[#allocation7 + $0x310] sm:$0xff]
    %v2907 = vld [vmem:[#allocation7 + $0x318] sm:$0xff]
    %v2908 = vld [vmem:[#allocation7 + $0x320] sm:$0xff]
    %v2909 = vld [vmem:[#allocation7 + $0x328] sm:$0xff]
    %v2910 = vld [vmem:[#allocation7 + $0x330] sm:$0xff]
    %v2911 = vld [vmem:[#allocation7 + $0x338] sm:$0xff]
    %v2912 = vld [vmem:[#allocation7 + $0x340] sm:$0xff]
    %v2913 = vld [vmem:[#allocation7 + $0x348] sm:$0xff]
    %v2914 = vld [vmem:[#allocation7 + $0x350] sm:$0xff]
    %v2915 = vld [vmem:[#allocation7 + $0x358] sm:$0xff]
    %v2916 = vld [vmem:[#allocation7 + $0x360] sm:$0xff]
    %v2917 = vld [vmem:[#allocation7 + $0x368] sm:$0xff]
    %v2918 = vld [vmem:[#allocation7 + $0x370] sm:$0xff]
    %v2919 = vld [vmem:[#allocation7 + $0x378] sm:$0xff]
    %v2920 = vld [vmem:[#allocation7 + $0x380] sm:$0xff]
    %v2921 = vld [vmem:[#allocation7 + $0x388] sm:$0xff]
    %v2922 = vld [vmem:[#allocation7 + $0x390] sm:$0xff]
    %v2923 = vld [vmem:[#allocation7 + $0x398] sm:$0xff]
    %v2924 = vld [vmem:[#allocation7 + $0x3a0] sm:$0xff]
    %v2925 = vld [vmem:[#allocation7 + $0x3a8] sm:$0xff]
    %v2926 = vld [vmem:[#allocation7 + $0x3b0] sm:$0xff]
    %v2927 = vld [vmem:[#allocation7 + $0x3b8] sm:$0xff]
    %v2928 = vld [vmem:[#allocation7 + $0x3c0] sm:$0xff]
    %v2929 = vld [vmem:[#allocation7 + $0x3c8] sm:$0xff]
    %v2930 = vld [vmem:[#allocation7 + $0x3d0] sm:$0xff]
    %v2931 = vld [vmem:[#allocation7 + $0x3d8] sm:$0xff]
    %v2932 = vld [vmem:[#allocation7 + $0x3e0] sm:$0xff]
    %v2933 = vld [vmem:[#allocation7 + $0x3e8] sm:$0xff]
    %v2934 = vld [vmem:[#allocation7 + $0x3f0] sm:$0xff]
    %v2935 = vld [vmem:[#allocation7 + $0x3f8] sm:$0xff]
    %v2936 = vld [vmem:[#allocation7 + $0x400] sm:$0xff]
    %v2937 = vld [vmem:[#allocation7 + $0x408] sm:$0xff]
    %v2938 = vld [vmem:[#allocation7 + $0x410] sm:$0xff]
    %v2939 = vld [vmem:[#allocation7 + $0x418] sm:$0xff]
    %v2940 = vld [vmem:[#allocation7 + $0x420] sm:$0xff]
    %v2941 = vld [vmem:[#allocation7 + $0x428] sm:$0xff]
    %v2942 = vld [vmem:[#allocation7 + $0x430] sm:$0xff]
    %v2943 = vld [vmem:[#allocation7 + $0x438] sm:$0xff]
    %v2944 = vld [vmem:[#allocation7 + $0x440] sm:$0xff]
    %v2945 = vld [vmem:[#allocation7 + $0x448] sm:$0xff]
    %v2946 = vld [vmem:[#allocation7 + $0x450] sm:$0xff]
    %v2947 = vld [vmem:[#allocation7 + $0x458] sm:$0xff]
    %v2948 = vld [vmem:[#allocation7 + $0x460] sm:$0xff]
    %v2949 = vld [vmem:[#allocation7 + $0x468] sm:$0xff]
    %v2950 = vld [vmem:[#allocation7 + $0x470] sm:$0xff]
    %v2951 = vld [vmem:[#allocation7 + $0x478] sm:$0xff]
    %v2952 = vld [vmem:[#allocation7 + $0x480] sm:$0xff]
    %v2953 = vld [vmem:[#allocation7 + $0x488] sm:$0xff]
    %v2954 = vld [vmem:[#allocation7 + $0x490] sm:$0xff]
    %v2955 = vld [vmem:[#allocation7 + $0x498] sm:$0xff]
    %v2956 = vld [vmem:[#allocation7 + $0x4a0] sm:$0xff]
    %v2957 = vld [vmem:[#allocation7 + $0x4a8] sm:$0xff]
    %v2958 = vld [vmem:[#allocation7 + $0x4b0] sm:$0xff]
    %v2959 = vld [vmem:[#allocation7 + $0x4b8] sm:$0xff]
    %v2960 = vld [vmem:[#allocation7 + $0x4c0] sm:$0xff]
    %v2961 = vld [vmem:[#allocation7 + $0x4c8] sm:$0xff]
    %v2962 = vld [vmem:[#allocation7 + $0x4d0] sm:$0xff]
    %v2963 = vld [vmem:[#allocation7 + $0x4d8] sm:$0xff]
    %v2964 = vld [vmem:[#allocation7 + $0x4e0] sm:$0xff]
    %v2965 = vld [vmem:[#allocation7 + $0x4e8] sm:$0xff]
    %v2966 = vld [vmem:[#allocation7 + $0x4f0] sm:$0xff]
    %v2967 = vld [vmem:[#allocation7 + $0x4f8] sm:$0xff]
    %v2968 = vld [vmem:[#allocation7 + $0x500] sm:$0xff]
    %v2969 = vld [vmem:[#allocation7 + $0x508] sm:$0xff]
    %v2970 = vld [vmem:[#allocation7 + $0x510] sm:$0xff]
    %v2971 = vld [vmem:[#allocation7 + $0x518] sm:$0xff]
    %v2972 = vld [vmem:[#allocation7 + $0x520] sm:$0xff]
    %v2973 = vld [vmem:[#allocation7 + $0x528] sm:$0xff]
    %v2974 = vld [vmem:[#allocation7 + $0x530] sm:$0xff]
    %v2975 = vld [vmem:[#allocation7 + $0x538] sm:$0xff]
    %v2976 = vld [vmem:[#allocation7 + $0x540] sm:$0xff]
    %v2977 = vld [vmem:[#allocation7 + $0x548] sm:$0xff]
    %v2978 = vld [vmem:[#allocation7 + $0x550] sm:$0xff]
    %v2979 = vld [vmem:[#allocation7 + $0x558] sm:$0xff]
    %v2980 = vld [vmem:[#allocation7 + $0x560] sm:$0xff]
    %v2981 = vld [vmem:[#allocation7 + $0x568] sm:$0xff]
    %v2982 = vld [vmem:[#allocation7 + $0x570] sm:$0xff]
    %v2983 = vld [vmem:[#allocation7 + $0x578] sm:$0xff]
    %v2984 = vld [vmem:[#allocation7 + $0x580] sm:$0xff]
    %v2985 = vld [vmem:[#allocation7 + $0x588] sm:$0xff]
    %v2986 = vld [vmem:[#allocation7 + $0x590] sm:$0xff]
    %v2987 = vld [vmem:[#allocation7 + $0x598] sm:$0xff]
    %v2988 = vld [vmem:[#allocation7 + $0x5a0] sm:$0xff]
    %v2989 = vld [vmem:[#allocation7 + $0x5a8] sm:$0xff]
    %v2990 = vld [vmem:[#allocation7 + $0x5b0] sm:$0xff]
    %v2991 = vld [vmem:[#allocation7 + $0x5b8] sm:$0xff]
    %v2992 = vld [vmem:[#allocation7 + $0x5c0] sm:$0xff]
    %v2993 = vld [vmem:[#allocation7 + $0x5c8] sm:$0xff]
    %v2994 = vld [vmem:[#allocation7 + $0x5d0] sm:$0xff]
    %v2995 = vld [vmem:[#allocation7 + $0x5d8] sm:$0xff]
    %v2996 = vld [vmem:[#allocation7 + $0x5e0] sm:$0xff]
    %v2997 = vld [vmem:[#allocation7 + $0x5e8] sm:$0xff]
    %v2998 = vld [vmem:[#allocation7 + $0x5f0] sm:$0xff]
    %v2999 = vld [vmem:[#allocation7 + $0x5f8] sm:$0xff]
    %v3000 = vld [vmem:[#allocation7 + $0x600] sm:$0xff]
    %v3001 = vld [vmem:[#allocation7 + $0x608] sm:$0xff]
    %v3002 = vld [vmem:[#allocation7 + $0x610] sm:$0xff]
    %v3003 = vld [vmem:[#allocation7 + $0x618] sm:$0xff]
    %v3004 = vld [vmem:[#allocation7 + $0x620] sm:$0xff]
    %v3005 = vld [vmem:[#allocation7 + $0x628] sm:$0xff]
    %v3006 = vld [vmem:[#allocation7 + $0x630] sm:$0xff]
    %v3007 = vld [vmem:[#allocation7 + $0x638] sm:$0xff]
    %v3008 = vld [vmem:[#allocation7 + $0x640] sm:$0xff]
    %v3009 = vld [vmem:[#allocation7 + $0x648] sm:$0xff]
    %v3010 = vld [vmem:[#allocation7 + $0x650] sm:$0xff]
    %v3011 = vld [vmem:[#allocation7 + $0x658] sm:$0xff]
    %v3012 = vld [vmem:[#allocation7 + $0x660] sm:$0xff]
    %v3013 = vld [vmem:[#allocation7 + $0x668] sm:$0xff]
    %v3014 = vld [vmem:[#allocation7 + $0x670] sm:$0xff]
    %v3015 = vld [vmem:[#allocation7 + $0x678] sm:$0xff]
    %v3016 = vld [vmem:[#allocation7 + $0x680] sm:$0xff]
    %v3017 = vld [vmem:[#allocation7 + $0x688] sm:$0xff]
    %v3018 = vld [vmem:[#allocation7 + $0x690] sm:$0xff]
    %v3019 = vld [vmem:[#allocation7 + $0x698] sm:$0xff]
    %v3020 = vld [vmem:[#allocation7 + $0x6a0] sm:$0xff]
    %v3021 = vld [vmem:[#allocation7 + $0x6a8] sm:$0xff]
    %v3022 = vld [vmem:[#allocation7 + $0x6b0] sm:$0xff]
    %v3023 = vld [vmem:[#allocation7 + $0x6b8] sm:$0xff]
    %v3024 = vld [vmem:[#allocation7 + $0x6c0] sm:$0xff]
    %v3025 = vld [vmem:[#allocation7 + $0x6c8] sm:$0xff]
    %v3026 = vld [vmem:[#allocation7 + $0x6d0] sm:$0xff]
    %v3027 = vld [vmem:[#allocation7 + $0x6d8] sm:$0xff]
    %v3028 = vld [vmem:[#allocation7 + $0x6e0] sm:$0xff]
    %v3029 = vld [vmem:[#allocation7 + $0x6e8] sm:$0xff]
    %v3030 = vld [vmem:[#allocation7 + $0x6f0] sm:$0xff]
    %v3031 = vld [vmem:[#allocation7 + $0x6f8] sm:$0xff]
    %v3032 = vld [vmem:[#allocation7 + $0x700] sm:$0xff]
    %v3033 = vld [vmem:[#allocation7 + $0x708] sm:$0xff]
    %v3034 = vld [vmem:[#allocation7 + $0x710] sm:$0xff]
    %v3035 = vld [vmem:[#allocation7 + $0x718] sm:$0xff]
    %v3036 = vld [vmem:[#allocation7 + $0x720] sm:$0xff]
    %v3037 = vld [vmem:[#allocation7 + $0x728] sm:$0xff]
    %v3038 = vld [vmem:[#allocation7 + $0x730] sm:$0xff]
    %v3039 = vld [vmem:[#allocation7 + $0x738] sm:$0xff]
    %v3040 = vld [vmem:[#allocation7 + $0x740] sm:$0xff]
    %v3041 = vld [vmem:[#allocation7 + $0x748] sm:$0xff]
    %v3042 = vld [vmem:[#allocation7 + $0x750] sm:$0xff]
    %v3043 = vld [vmem:[#allocation7 + $0x758] sm:$0xff]
    %v3044 = vld [vmem:[#allocation7 + $0x760] sm:$0xff]
    %v3045 = vld [vmem:[#allocation7 + $0x768] sm:$0xff]
    %v3046 = vld [vmem:[#allocation7 + $0x770] sm:$0xff]
    %v3047 = vld [vmem:[#allocation7 + $0x778] sm:$0xff]
    %v3048 = vld [vmem:[#allocation7 + $0x780] sm:$0xff]
    %v3049 = vld [vmem:[#allocation7 + $0x788] sm:$0xff]
    %v3050 = vld [vmem:[#allocation7 + $0x790] sm:$0xff]
    %v3051 = vld [vmem:[#allocation7 + $0x798] sm:$0xff]
    %v3052 = vld [vmem:[#allocation7 + $0x7a0] sm:$0xff]
    %v3053 = vld [vmem:[#allocation7 + $0x7a8] sm:$0xff]
    %v3054 = vld [vmem:[#allocation7 + $0x7b0] sm:$0xff]
    %v3055 = vld [vmem:[#allocation7 + $0x7b8] sm:$0xff]
    %v3056 = vld [vmem:[#allocation7 + $0x7c0] sm:$0xff]
    %v3057 = vld [vmem:[#allocation7 + $0x7c8] sm:$0xff]
    %v3058 = vld [vmem:[#allocation7 + $0x7d0] sm:$0xff]
    %v3059 = vld [vmem:[#allocation7 + $0x7d8] sm:$0xff]
    %v3060 = vld [vmem:[#allocation7 + $0x7e0] sm:$0xff]
    %v3061 = vld [vmem:[#allocation7 + $0x7e8] sm:$0xff]
    %v3062 = vld [vmem:[#allocation7 + $0x7f0] sm:$0xff]
    %v3063 = vld [vmem:[#allocation7 + $0x7f8] sm:$0xff]
    %v3064 = vld [vmem:[#allocation7 + $0x800] sm:$0xff]
    %v3065 = vld [vmem:[#allocation7 + $0x808] sm:$0xff]
    %v3066 = vld [vmem:[#allocation7 + $0x810] sm:$0xff]
    %v3067 = vld [vmem:[#allocation7 + $0x818] sm:$0xff]
    %v3068 = vld [vmem:[#allocation7 + $0x820] sm:$0xff]
    %v3069 = vld [vmem:[#allocation7 + $0x828] sm:$0xff]
    %v3070 = vld [vmem:[#allocation7 + $0x830] sm:$0xff]
    %v3071 = vld [vmem:[#allocation7 + $0x838] sm:$0xff]
    %v3072 = vld [vmem:[#allocation7 + $0x840] sm:$0xff]
    %v3073 = vld [vmem:[#allocation7 + $0x848] sm:$0xff]
    %v3074 = vld [vmem:[#allocation7 + $0x850] sm:$0xff]
    %v3075 = vld [vmem:[#allocation7 + $0x858] sm:$0xff]
    %v3076 = vld [vmem:[#allocation7 + $0x860] sm:$0xff]
    %v3077 = vld [vmem:[#allocation7 + $0x868] sm:$0xff]
    %v3078 = vld [vmem:[#allocation7 + $0x870] sm:$0xff]
    %v3079 = vld [vmem:[#allocation7 + $0x878] sm:$0xff]
    %v3080 = vld [vmem:[#allocation7 + $0x880] sm:$0xff]
    %v3081 = vld [vmem:[#allocation7 + $0x888] sm:$0xff]
    %v3082 = vld [vmem:[#allocation7 + $0x890] sm:$0xff]
    %v3083 = vld [vmem:[#allocation7 + $0x898] sm:$0xff]
    %v3084 = vld [vmem:[#allocation7 + $0x8a0] sm:$0xff]
    %v3085 = vld [vmem:[#allocation7 + $0x8a8] sm:$0xff]
    %v3086 = vld [vmem:[#allocation7 + $0x8b0] sm:$0xff]
    %v3087 = vld [vmem:[#allocation7 + $0x8b8] sm:$0xff]
    %v3088 = vld [vmem:[#allocation7 + $0x8c0] sm:$0xff]
    %v3089 = vld [vmem:[#allocation7 + $0x8c8] sm:$0xff]
    %v3090 = vld [vmem:[#allocation7 + $0x8d0] sm:$0xff]
    %v3091 = vld [vmem:[#allocation7 + $0x8d8] sm:$0xff]
    %v3092 = vld [vmem:[#allocation7 + $0x8e0] sm:$0xff]
    %v3093 = vld [vmem:[#allocation7 + $0x8e8] sm:$0xff]
    %v3094 = vld [vmem:[#allocation7 + $0x8f0] sm:$0xff]
    %v3095 = vld [vmem:[#allocation7 + $0x8f8] sm:$0xff]
    %v3096 = vld [vmem:[#allocation7 + $0x900] sm:$0xff]
    %v3097 = vld [vmem:[#allocation7 + $0x908] sm:$0xff]
    %v3098 = vld [vmem:[#allocation7 + $0x910] sm:$0xff]
    %v3099 = vld [vmem:[#allocation7 + $0x918] sm:$0xff]
    %v3100 = vld [vmem:[#allocation7 + $0x920] sm:$0xff]
    %v3101 = vld [vmem:[#allocation7 + $0x928] sm:$0xff]
    %v3102 = vld [vmem:[#allocation7 + $0x930] sm:$0xff]
    %v3103 = vld [vmem:[#allocation7 + $0x938] sm:$0xff]
    %v3104 = vld [vmem:[#allocation7 + $0x940] sm:$0xff]
    %v3105 = vld [vmem:[#allocation7 + $0x948] sm:$0xff]
    %v3106 = vld [vmem:[#allocation7 + $0x950] sm:$0xff]
    %v3107 = vld [vmem:[#allocation7 + $0x958] sm:$0xff]
    %v3108 = vld [vmem:[#allocation7 + $0x960] sm:$0xff]
    %v3109 = vld [vmem:[#allocation7 + $0x968] sm:$0xff]
    %v3110 = vld [vmem:[#allocation7 + $0x970] sm:$0xff]
    %v3111 = vld [vmem:[#allocation7 + $0x978] sm:$0xff]
    %v3112 = vld [vmem:[#allocation7 + $0x980] sm:$0xff]
    %v3113 = vld [vmem:[#allocation7 + $0x988] sm:$0xff]
    %v3114 = vld [vmem:[#allocation7 + $0x990] sm:$0xff]
    %v3115 = vld [vmem:[#allocation7 + $0x998] sm:$0xff]
    %v3116 = vld [vmem:[#allocation7 + $0x9a0] sm:$0xff]
    %v3117 = vld [vmem:[#allocation7 + $0x9a8] sm:$0xff]
    %v3118 = vld [vmem:[#allocation7 + $0x9b0] sm:$0xff]
    %v3119 = vld [vmem:[#allocation7 + $0x9b8] sm:$0xff]
    %v3120 = vld [vmem:[#allocation7 + $0x9c0] sm:$0xff]
    %v3121 = vld [vmem:[#allocation7 + $0x9c8] sm:$0xff]
    %v3122 = vld [vmem:[#allocation7 + $0x9d0] sm:$0xff]
    %v3123 = vld [vmem:[#allocation7 + $0x9d8] sm:$0xff]
    %v3124 = vld [vmem:[#allocation7 + $0x9e0] sm:$0xff]
    %v3125 = vld [vmem:[#allocation7 + $0x9e8] sm:$0xff]
    %v3126 = vld [vmem:[#allocation7 + $0x9f0] sm:$0xff]
    %v3127 = vld [vmem:[#allocation7 + $0x9f8] sm:$0xff]
    %v3128 = vld [vmem:[#allocation7 + $0xa00] sm:$0xff]
    %v3129 = vld [vmem:[#allocation7 + $0xa08] sm:$0xff]
    %v3130 = vld [vmem:[#allocation7 + $0xa10] sm:$0xff]
    %v3131 = vld [vmem:[#allocation7 + $0xa18] sm:$0xff]
    %v3132 = vld [vmem:[#allocation7 + $0xa20] sm:$0xff]
    %v3133 = vld [vmem:[#allocation7 + $0xa28] sm:$0xff]
    %v3134 = vld [vmem:[#allocation7 + $0xa30] sm:$0xff]
    %v3135 = vld [vmem:[#allocation7 + $0xa38] sm:$0xff]
    %v3136 = vld [vmem:[#allocation7 + $0xa40] sm:$0xff]
    %v3137 = vld [vmem:[#allocation7 + $0xa48] sm:$0xff]
    %v3138 = vld [vmem:[#allocation7 + $0xa50] sm:$0xff]
    %v3139 = vld [vmem:[#allocation7 + $0xa58] sm:$0xff]
    %v3140 = vld [vmem:[#allocation7 + $0xa60] sm:$0xff]
    %v3141 = vld [vmem:[#allocation7 + $0xa68] sm:$0xff]
    %v3142 = vld [vmem:[#allocation7 + $0xa70] sm:$0xff]
    %v3143 = vld [vmem:[#allocation7 + $0xa78] sm:$0xff]
    %v3144 = vld [vmem:[#allocation7 + $0xa80] sm:$0xff]
    %v3145 = vld [vmem:[#allocation7 + $0xa88] sm:$0xff]
    %v3146 = vld [vmem:[#allocation7 + $0xa90] sm:$0xff]
    %v3147 = vld [vmem:[#allocation7 + $0xa98] sm:$0xff]
    %v3148 = vld [vmem:[#allocation7 + $0xaa0] sm:$0xff]
    %v3149 = vld [vmem:[#allocation7 + $0xaa8] sm:$0xff]
    %v3150 = vld [vmem:[#allocation7 + $0xab0] sm:$0xff]
    %v3151 = vld [vmem:[#allocation7 + $0xab8] sm:$0xff]
    %v3152 = vld [vmem:[#allocation7 + $0xac0] sm:$0xff]
    %v3153 = vld [vmem:[#allocation7 + $0xac8] sm:$0xff]
    %v3154 = vld [vmem:[#allocation7 + $0xad0] sm:$0xff]
    %v3155 = vld [vmem:[#allocation7 + $0xad8] sm:$0xff]
    %v3156 = vld [vmem:[#allocation7 + $0xae0] sm:$0xff]
    %v3157 = vld [vmem:[#allocation7 + $0xae8] sm:$0xff]
    %v3158 = vld [vmem:[#allocation7 + $0xaf0] sm:$0xff]
    %v3159 = vld [vmem:[#allocation7 + $0xaf8] sm:$0xff]
    %v3160 = vld [vmem:[#allocation7 + $0xb00] sm:$0xff]
    %v3161 = vld [vmem:[#allocation7 + $0xb08] sm:$0xff]
    %v3162 = vld [vmem:[#allocation7 + $0xb10] sm:$0xff]
    %v3163 = vld [vmem:[#allocation7 + $0xb18] sm:$0xff]
    %v3164 = vld [vmem:[#allocation7 + $0xb20] sm:$0xff]
    %v3165 = vld [vmem:[#allocation7 + $0xb28] sm:$0xff]
    %v3166 = vld [vmem:[#allocation7 + $0xb30] sm:$0xff]
    %v3167 = vld [vmem:[#allocation7 + $0xb38] sm:$0xff]
    %v3168 = vld [vmem:[#allocation7 + $0xb40] sm:$0xff]
    %v3169 = vld [vmem:[#allocation7 + $0xb48] sm:$0xff]
    %v3170 = vld [vmem:[#allocation7 + $0xb50] sm:$0xff]
    %v3171 = vld [vmem:[#allocation7 + $0xb58] sm:$0xff]
    %v3172 = vld [vmem:[#allocation7 + $0xb60] sm:$0xff]
    %v3173 = vld [vmem:[#allocation7 + $0xb68] sm:$0xff]
    %v3174 = vld [vmem:[#allocation7 + $0xb70] sm:$0xff]
    %v3175 = vld [vmem:[#allocation7 + $0xb78] sm:$0xff]
    %v3176 = vld [vmem:[#allocation7 + $0xb80] sm:$0xff]
    %v3177 = vld [vmem:[#allocation7 + $0xb88] sm:$0xff]
    %v3178 = vld [vmem:[#allocation7 + $0xb90] sm:$0xff]
    %v3179 = vld [vmem:[#allocation7 + $0xb98] sm:$0xff]
    %v3180 = vld [vmem:[#allocation7 + $0xba0] sm:$0xff]
    %v3181 = vld [vmem:[#allocation7 + $0xba8] sm:$0xff]
    %v3182 = vld [vmem:[#allocation7 + $0xbb0] sm:$0xff]
    %v3183 = vld [vmem:[#allocation7 + $0xbb8] sm:$0xff]
    %v3184 = vld [vmem:[#allocation7 + $0xbc0] sm:$0xff]
    %v3185 = vld [vmem:[#allocation7 + $0xbc8] sm:$0xff]
    %v3186 = vld [vmem:[#allocation7 + $0xbd0] sm:$0xff]
    %v3187 = vld [vmem:[#allocation7 + $0xbd8] sm:$0xff]
    %v3188 = vld [vmem:[#allocation7 + $0xbe0] sm:$0xff]
    %v3189 = vld [vmem:[#allocation7 + $0xbe8] sm:$0xff]
    %v3190 = vld [vmem:[#allocation7 + $0xbf0] sm:$0xff]
    %v3191 = vld [vmem:[#allocation7 + $0xbf8] sm:$0xff]
    %v3192 = vld [vmem:[#allocation7 + $0xc00] sm:$0xff]
    %v3193 = vld [vmem:[#allocation7 + $0xc08] sm:$0xff]
    %v3194 = vld [vmem:[#allocation7 + $0xc10] sm:$0xff]
    %v3195 = vld [vmem:[#allocation7 + $0xc18] sm:$0xff]
    %v3196 = vld [vmem:[#allocation7 + $0xc20] sm:$0xff]
    %v3197 = vld [vmem:[#allocation7 + $0xc28] sm:$0xff]
    %v3198 = vld [vmem:[#allocation7 + $0xc30] sm:$0xff]
    %v3199 = vld [vmem:[#allocation7 + $0xc38] sm:$0xff]
    %v3200 = vld [vmem:[#allocation7 + $0xc40] sm:$0xff]
    %v3201 = vld [vmem:[#allocation7 + $0xc48] sm:$0xff]
    %v3202 = vld [vmem:[#allocation7 + $0xc50] sm:$0xff]
    %v3203 = vld [vmem:[#allocation7 + $0xc58] sm:$0xff]
    %v3204 = vld [vmem:[#allocation7 + $0xc60] sm:$0xff]
    %v3205 = vld [vmem:[#allocation7 + $0xc68] sm:$0xff]
    %v3206 = vld [vmem:[#allocation7 + $0xc70] sm:$0xff]
    %v3207 = vld [vmem:[#allocation7 + $0xc78] sm:$0xff]
    %v3208 = vld [vmem:[#allocation7 + $0xc80] sm:$0xff]
    %v3209 = vld [vmem:[#allocation7 + $0xc88] sm:$0xff]
    %v3210 = vld [vmem:[#allocation7 + $0xc90] sm:$0xff]
    %v3211 = vld [vmem:[#allocation7 + $0xc98] sm:$0xff]
    %v3212 = vld [vmem:[#allocation7 + $0xca0] sm:$0xff]
    %v3213 = vld [vmem:[#allocation7 + $0xca8] sm:$0xff]
    %v3214 = vld [vmem:[#allocation7 + $0xcb0] sm:$0xff]
    %v3215 = vld [vmem:[#allocation7 + $0xcb8] sm:$0xff]
    %v3216 = vld [vmem:[#allocation7 + $0xcc0] sm:$0xff]
    %v3217 = vld [vmem:[#allocation7 + $0xcc8] sm:$0xff]
    %v3218 = vld [vmem:[#allocation7 + $0xcd0] sm:$0xff]
    %v3219 = vld [vmem:[#allocation7 + $0xcd8] sm:$0xff]
    %v3220 = vld [vmem:[#allocation7 + $0xce0] sm:$0xff]
    %v3221 = vld [vmem:[#allocation7 + $0xce8] sm:$0xff]
    %v3222 = vld [vmem:[#allocation7 + $0xcf0] sm:$0xff]
    %v3223 = vld [vmem:[#allocation7 + $0xcf8] sm:$0xff]
    %v3224 = vld [vmem:[#allocation7 + $0xd00] sm:$0xff]
    %v3225 = vld [vmem:[#allocation7 + $0xd08] sm:$0xff]
    %v3226 = vld [vmem:[#allocation7 + $0xd10] sm:$0xff]
    %v3227 = vld [vmem:[#allocation7 + $0xd18] sm:$0xff]
    %v3228 = vld [vmem:[#allocation7 + $0xd20] sm:$0xff]
    %v3229 = vld [vmem:[#allocation7 + $0xd28] sm:$0xff]
    %v3230 = vld [vmem:[#allocation7 + $0xd30] sm:$0xff]
    %v3231 = vld [vmem:[#allocation7 + $0xd38] sm:$0xff]
    %v3232 = vld [vmem:[#allocation7 + $0xd40] sm:$0xff]
    %v3233 = vld [vmem:[#allocation7 + $0xd48] sm:$0xff]
    %v3234 = vld [vmem:[#allocation7 + $0xd50] sm:$0xff]
    %v3235 = vld [vmem:[#allocation7 + $0xd58] sm:$0xff]
    %v3236 = vld [vmem:[#allocation7 + $0xd60] sm:$0xff]
    %v3237 = vld [vmem:[#allocation7 + $0xd68] sm:$0xff]
    %v3238 = vld [vmem:[#allocation7 + $0xd70] sm:$0xff]
    %v3239 = vld [vmem:[#allocation7 + $0xd78] sm:$0xff]
    %v3240 = vld [vmem:[#allocation7 + $0xd80] sm:$0xff]
    %v3241 = vld [vmem:[#allocation7 + $0xd88] sm:$0xff]
    %v3242 = vld [vmem:[#allocation7 + $0xd90] sm:$0xff]
    %v3243 = vld [vmem:[#allocation7 + $0xd98] sm:$0xff]
    %v3244 = vld [vmem:[#allocation7 + $0xda0] sm:$0xff]
    %v3245 = vld [vmem:[#allocation7 + $0xda8] sm:$0xff]
    %v3246 = vld [vmem:[#allocation7 + $0xdb0] sm:$0xff]
    %v3247 = vld [vmem:[#allocation7 + $0xdb8] sm:$0xff]
    %v3248 = vld [vmem:[#allocation7 + $0xdc0] sm:$0xff]
    %v3249 = vld [vmem:[#allocation7 + $0xdc8] sm:$0xff]
    %v3250 = vld [vmem:[#allocation7 + $0xdd0] sm:$0xff]
    %v3251 = vld [vmem:[#allocation7 + $0xdd8] sm:$0xff]
    %v3252 = vld [vmem:[#allocation7 + $0xde0] sm:$0xff]
    %v3253 = vld [vmem:[#allocation7 + $0xde8] sm:$0xff]
    %v3254 = vld [vmem:[#allocation7 + $0xdf0] sm:$0xff]
    %v3255 = vld [vmem:[#allocation7 + $0xdf8] sm:$0xff]
    %v3256 = vld [vmem:[#allocation7 + $0xe00] sm:$0xff]
    %v3257 = vld [vmem:[#allocation7 + $0xe08] sm:$0xff]
    %v3258 = vld [vmem:[#allocation7 + $0xe10] sm:$0xff]
    %v3259 = vld [vmem:[#allocation7 + $0xe18] sm:$0xff]
    %v3260 = vld [vmem:[#allocation7 + $0xe20] sm:$0xff]
    %v3261 = vld [vmem:[#allocation7 + $0xe28] sm:$0xff]
    %v3262 = vld [vmem:[#allocation7 + $0xe30] sm:$0xff]
    %v3263 = vld [vmem:[#allocation7 + $0xe38] sm:$0xff]
    %v3264 = vld [vmem:[#allocation7 + $0xe40] sm:$0xff]
    %v3265 = vld [vmem:[#allocation7 + $0xe48] sm:$0xff]
    %v3266 = vld [vmem:[#allocation7 + $0xe50] sm:$0xff]
    %v3267 = vld [vmem:[#allocation7 + $0xe58] sm:$0xff]
    %v3268 = vld [vmem:[#allocation7 + $0xe60] sm:$0xff]
    %v3269 = vld [vmem:[#allocation7 + $0xe68] sm:$0xff]
    %v3270 = vld [vmem:[#allocation7 + $0xe70] sm:$0xff]
    %v3271 = vld [vmem:[#allocation7 + $0xe78] sm:$0xff]
    %v3272 = vld [vmem:[#allocation7 + $0xe80] sm:$0xff]
    %v3273 = vld [vmem:[#allocation7 + $0xe88] sm:$0xff]
    %v3274 = vld [vmem:[#allocation7 + $0xe90] sm:$0xff]
    %v3275 = vld [vmem:[#allocation7 + $0xe98] sm:$0xff]
    %v3276 = vld [vmem:[#allocation7 + $0xea0] sm:$0xff]
    %v3277 = vld [vmem:[#allocation7 + $0xea8] sm:$0xff]
    %v3278 = vld [vmem:[#allocation7 + $0xeb0] sm:$0xff]
    %v3279 = vld [vmem:[#allocation7 + $0xeb8] sm:$0xff]
    %v3280 = vld [vmem:[#allocation7 + $0xec0] sm:$0xff]
    %v3281 = vld [vmem:[#allocation7 + $0xec8] sm:$0xff]
    %v3282 = vld [vmem:[#allocation7 + $0xed0] sm:$0xff]
    %v3283 = vld [vmem:[#allocation7 + $0xed8] sm:$0xff]
    %v3284 = vld [vmem:[#allocation7 + $0xee0] sm:$0xff]
    %v3285 = vld [vmem:[#allocation7 + $0xee8] sm:$0xff]
    %v3286 = vld [vmem:[#allocation7 + $0xef0] sm:$0xff]
    %v3287 = vld [vmem:[#allocation7 + $0xef8] sm:$0xff]
    %v3288 = vld [vmem:[#allocation7 + $0xf00] sm:$0xff]
    %v3289 = vld [vmem:[#allocation7 + $0xf08] sm:$0xff]
    %v3290 = vld [vmem:[#allocation7 + $0xf10] sm:$0xff]
    %v3291 = vld [vmem:[#allocation7 + $0xf18] sm:$0xff]
    %v3292 = vld [vmem:[#allocation7 + $0xf20] sm:$0xff]
    %v3293 = vld [vmem:[#allocation7 + $0xf28] sm:$0xff]
    %v3294 = vld [vmem:[#allocation7 + $0xf30] sm:$0xff]
    %v3295 = vld [vmem:[#allocation7 + $0xf38] sm:$0xff]
    %v3296 = vld [vmem:[#allocation7 + $0xf40] sm:$0xff]
    %v3297 = vld [vmem:[#allocation7 + $0xf48] sm:$0xff]
    %v3298 = vld [vmem:[#allocation7 + $0xf50] sm:$0xff]
    %v3299 = vld [vmem:[#allocation7 + $0xf58] sm:$0xff]
    %v3300 = vld [vmem:[#allocation7 + $0xf60] sm:$0xff]
    %v3301 = vld [vmem:[#allocation7 + $0xf68] sm:$0xff]
    %v3302 = vld [vmem:[#allocation7 + $0xf70] sm:$0xff]
    %v3303 = vld [vmem:[#allocation7 + $0xf78] sm:$0xff]
    %v3304 = vld [vmem:[#allocation7 + $0xf80] sm:$0xff]
    %v3305 = vld [vmem:[#allocation7 + $0xf88] sm:$0xff]
    %v3306 = vld [vmem:[#allocation7 + $0xf90] sm:$0xff]
    %v3307 = vld [vmem:[#allocation7 + $0xf98] sm:$0xff]
    %v3308 = vld [vmem:[#allocation7 + $0xfa0] sm:$0xff]
    %v3309 = vld [vmem:[#allocation7 + $0xfa8] sm:$0xff]
    %v3310 = vld [vmem:[#allocation7 + $0xfb0] sm:$0xff]
    %v3311 = vld [vmem:[#allocation7 + $0xfb8] sm:$0xff]
    %v3312 = vld [vmem:[#allocation7 + $0xfc0] sm:$0xff]
    %v3313 = vld [vmem:[#allocation7 + $0xfc8] sm:$0xff]
    %v3314 = vld [vmem:[#allocation7 + $0xfd0] sm:$0xff]
    %v3315 = vld [vmem:[#allocation7 + $0xfd8] sm:$0xff]
    %v3316 = vld [vmem:[#allocation7 + $0xfe0] sm:$0xff]
    %v3317 = vld [vmem:[#allocation7 + $0xfe8] sm:$0xff]
    %v3318 = vld [vmem:[#allocation7 + $0xff0] sm:$0xff]
    %v3319 = vld [vmem:[#allocation7 + $0xff8] sm:$0xff]
    %v3320 = vld [vmem:[#allocation7 + $0x1000] sm:$0xff]
    %v3321 = vld [vmem:[#allocation7 + $0x1008] sm:$0xff]
    %v3322 = vld [vmem:[#allocation7 + $0x1010] sm:$0xff]
    %v3323 = vld [vmem:[#allocation7 + $0x1018] sm:$0xff]
    %v3324 = vld [vmem:[#allocation7 + $0x1020] sm:$0xff]
    %v3325 = vld [vmem:[#allocation7 + $0x1028] sm:$0xff]
    %v3326 = vld [vmem:[#allocation7 + $0x1030] sm:$0xff]
    %v3327 = vld [vmem:[#allocation7 + $0x1038] sm:$0xff]
    %v3328 = vld [vmem:[#allocation7 + $0x1040] sm:$0xff]
    %v3329 = vld [vmem:[#allocation7 + $0x1048] sm:$0xff]
    %v3330 = vld [vmem:[#allocation7 + $0x1050] sm:$0xff]
    %v3331 = vld [vmem:[#allocation7 + $0x1058] sm:$0xff]
    %v3332 = vld [vmem:[#allocation7 + $0x1060] sm:$0xff]
    %v3333 = vld [vmem:[#allocation7 + $0x1068] sm:$0xff]
    %v3334 = vld [vmem:[#allocation7 + $0x1070] sm:$0xff]
    %v3335 = vld [vmem:[#allocation7 + $0x1078] sm:$0xff]
    %v3336 = vld [vmem:[#allocation7 + $0x1080] sm:$0xff]
    %v3337 = vld [vmem:[#allocation7 + $0x1088] sm:$0xff]
    %v3338 = vld [vmem:[#allocation7 + $0x1090] sm:$0xff]
    %v3339 = vld [vmem:[#allocation7 + $0x1098] sm:$0xff]
    %v3340 = vld [vmem:[#allocation7 + $0x10a0] sm:$0xff]
    %v3341 = vld [vmem:[#allocation7 + $0x10a8] sm:$0xff]
    %v3342 = vld [vmem:[#allocation7 + $0x10b0] sm:$0xff]
    %v3343 = vld [vmem:[#allocation7 + $0x10b8] sm:$0xff]
    %v3344 = vld [vmem:[#allocation7 + $0x10c0] sm:$0xff]
    %v3345 = vld [vmem:[#allocation7 + $0x10c8] sm:$0xff]
    %v3346 = vld [vmem:[#allocation7 + $0x10d0] sm:$0xff]
    %v3347 = vld [vmem:[#allocation7 + $0x10d8] sm:$0xff]
    %v3348 = vld [vmem:[#allocation7 + $0x10e0] sm:$0xff]
    %v3349 = vld [vmem:[#allocation7 + $0x10e8] sm:$0xff]
    %v3350 = vld [vmem:[#allocation7 + $0x10f0] sm:$0xff]
    %v3351 = vld [vmem:[#allocation7 + $0x10f8] sm:$0xff]
    %v3352 = vld [vmem:[#allocation7 + $0x1100] sm:$0xff]
    %v3353 = vld [vmem:[#allocation7 + $0x1108] sm:$0xff]
    %v3354 = vld [vmem:[#allocation7 + $0x1110] sm:$0xff]
    %v3355 = vld [vmem:[#allocation7 + $0x1118] sm:$0xff]
    %v3356 = vld [vmem:[#allocation7 + $0x1120] sm:$0xff]
    %v3357 = vld [vmem:[#allocation7 + $0x1128] sm:$0xff]
    %v3358 = vld [vmem:[#allocation7 + $0x1130] sm:$0xff]
    %v3359 = vld [vmem:[#allocation7 + $0x1138] sm:$0xff]
    %v3360 = vld [vmem:[#allocation7 + $0x1140] sm:$0xff]
    %v3361 = vld [vmem:[#allocation7 + $0x1148] sm:$0xff]
    %v3362 = vld [vmem:[#allocation7 + $0x1150] sm:$0xff]
    %v3363 = vld [vmem:[#allocation7 + $0x1158] sm:$0xff]
    %v3364 = vld [vmem:[#allocation7 + $0x1160] sm:$0xff]
    %v3365 = vld [vmem:[#allocation7 + $0x1168] sm:$0xff]
    %v3366 = vld [vmem:[#allocation7 + $0x1170] sm:$0xff]
    %v3367 = vld [vmem:[#allocation7 + $0x1178] sm:$0xff]
    %v3368 = vld [vmem:[#allocation7 + $0x1180] sm:$0xff]
    %v3369 = vld [vmem:[#allocation7 + $0x1188] sm:$0xff]
    %v3370 = vld [vmem:[#allocation7 + $0x1190] sm:$0xff]
    %v3371 = vld [vmem:[#allocation7 + $0x1198] sm:$0xff]
    %v3372 = vld [vmem:[#allocation7 + $0x11a0] sm:$0xff]
    %v3373 = vld [vmem:[#allocation7 + $0x11a8] sm:$0xff]
    %v3374 = vld [vmem:[#allocation7 + $0x11b0] sm:$0xff]
    %v3375 = vld [vmem:[#allocation7 + $0x11b8] sm:$0xff]
    %v3376 = vld [vmem:[#allocation7 + $0x11c0] sm:$0xff]
    %v3377 = vld [vmem:[#allocation7 + $0x11c8] sm:$0xff]
    %v3378 = vld [vmem:[#allocation7 + $0x11d0] sm:$0xff]
    %v3379 = vld [vmem:[#allocation7 + $0x11d8] sm:$0xff]
    %v3380 = vld [vmem:[#allocation7 + $0x11e0] sm:$0xff]
    %v3381 = vld [vmem:[#allocation7 + $0x11e8] sm:$0xff]
    %v3382 = vld [vmem:[#allocation7 + $0x11f0] sm:$0xff]
    %v3383 = vld [vmem:[#allocation7 + $0x11f8] sm:$0xff]
    %v3384 = vld [vmem:[#allocation7 + $0x1200] sm:$0xff]
    %v3385 = vld [vmem:[#allocation7 + $0x1208] sm:$0xff]
    %v3386 = vld [vmem:[#allocation7 + $0x1210] sm:$0xff]
    %v3387 = vld [vmem:[#allocation7 + $0x1218] sm:$0xff]
    %v3388 = vld [vmem:[#allocation7 + $0x1220] sm:$0xff]
    %v3389 = vld [vmem:[#allocation7 + $0x1228] sm:$0xff]
    %v3390 = vld [vmem:[#allocation7 + $0x1230] sm:$0xff]
    %v3391 = vld [vmem:[#allocation7 + $0x1238] sm:$0xff]
    %v3392 = vld [vmem:[#allocation7 + $0x1240] sm:$0xff]
    %v3393 = vld [vmem:[#allocation7 + $0x1248] sm:$0xff]
    %v3394 = vld [vmem:[#allocation7 + $0x1250] sm:$0xff]
    %v3395 = vld [vmem:[#allocation7 + $0x1258] sm:$0xff]
    %v3396 = vld [vmem:[#allocation7 + $0x1260] sm:$0xff]
    %v3397 = vld [vmem:[#allocation7 + $0x1268] sm:$0xff]
    %v3398 = vld [vmem:[#allocation7 + $0x1270] sm:$0xff]
    %v3399 = vld [vmem:[#allocation7 + $0x1278] sm:$0xff]
    %v3400 = vld [vmem:[#allocation7 + $0x1280] sm:$0xff]
    %v3401 = vld [vmem:[#allocation7 + $0x1288] sm:$0xff]
    %v3402 = vld [vmem:[#allocation7 + $0x1290] sm:$0xff]
    %v3403 = vld [vmem:[#allocation7 + $0x1298] sm:$0xff]
    %v3404 = vld [vmem:[#allocation7 + $0x12a0] sm:$0xff]
    %v3405 = vld [vmem:[#allocation7 + $0x12a8] sm:$0xff]
    %v3406 = vld [vmem:[#allocation7 + $0x12b0] sm:$0xff]
    %v3407 = vld [vmem:[#allocation7 + $0x12b8] sm:$0xff]
    %v3408 = vld [vmem:[#allocation7 + $0x12c0] sm:$0xff]
    %v3409 = vld [vmem:[#allocation7 + $0x12c8] sm:$0xff]
    %v3410 = vld [vmem:[#allocation7 + $0x12d0] sm:$0xff]
    %v3411 = vld [vmem:[#allocation7 + $0x12d8] sm:$0xff]
    %v3412 = vld [vmem:[#allocation7 + $0x12e0] sm:$0xff]
    %v3413 = vld [vmem:[#allocation7 + $0x12e8] sm:$0xff]
    %v3414 = vld [vmem:[#allocation7 + $0x12f0] sm:$0xff]
    %v3415 = vld [vmem:[#allocation7 + $0x12f8] sm:$0xff]
    %v3416 = vld [vmem:[#allocation7 + $0x1300] sm:$0xff]
    %v3417 = vld [vmem:[#allocation7 + $0x1308] sm:$0xff]
    %v3418 = vld [vmem:[#allocation7 + $0x1310] sm:$0xff]
    %v3419 = vld [vmem:[#allocation7 + $0x1318] sm:$0xff]
    %v3420 = vld [vmem:[#allocation7 + $0x1320] sm:$0xff]
    %v3421 = vld [vmem:[#allocation7 + $0x1328] sm:$0xff]
    %v3422 = vld [vmem:[#allocation7 + $0x1330] sm:$0xff]
    %v3423 = vld [vmem:[#allocation7 + $0x1338] sm:$0xff]
    %v3424 = vld [vmem:[#allocation7 + $0x1340] sm:$0xff]
    %v3425 = vld [vmem:[#allocation7 + $0x1348] sm:$0xff]
    %v3426 = vld [vmem:[#allocation7 + $0x1350] sm:$0xff]
    %v3427 = vld [vmem:[#allocation7 + $0x1358] sm:$0xff]
    %v3428 = vld [vmem:[#allocation7 + $0x1360] sm:$0xff]
    %v3429 = vld [vmem:[#allocation7 + $0x1368] sm:$0xff]
    %v3430 = vld [vmem:[#allocation7 + $0x1370] sm:$0xff]
    %v3431 = vld [vmem:[#allocation7 + $0x1378] sm:$0xff]
    %v3432 = vld [vmem:[#allocation7 + $0x1380] sm:$0xff]
    %v3433 = vld [vmem:[#allocation7 + $0x1388] sm:$0xff]
    %v3434 = vld [vmem:[#allocation7 + $0x1390] sm:$0xff]
    %v3435 = vld [vmem:[#allocation7 + $0x1398] sm:$0xff]
    %v3436 = vld [vmem:[#allocation7 + $0x13a0] sm:$0xff]
    %v3437 = vld [vmem:[#allocation7 + $0x13a8] sm:$0xff]
    %v3438 = vld [vmem:[#allocation7 + $0x13b0] sm:$0xff]
    %v3439 = vld [vmem:[#allocation7 + $0x13b8] sm:$0xff]
    %v3440 = vld [vmem:[#allocation7 + $0x13c0] sm:$0xff]
    %v3441 = vld [vmem:[#allocation7 + $0x13c8] sm:$0xff]
    %v3442 = vld [vmem:[#allocation7 + $0x13d0] sm:$0xff]
    %v3443 = vld [vmem:[#allocation7 + $0x13d8] sm:$0xff]
    %v3444 = vld [vmem:[#allocation7 + $0x13e0] sm:$0xff]
    %v3445 = vld [vmem:[#allocation7 + $0x13e8] sm:$0xff]
    %v3446 = vld [vmem:[#allocation7 + $0x13f0] sm:$0xff]
    %v3447 = vld [vmem:[#allocation7 + $0x13f8] sm:$0xff]
    %v3448 = vld [vmem:[#allocation7 + $0x1400] sm:$0xff]
    %v3449 = vld [vmem:[#allocation7 + $0x1408] sm:$0xff]
    %v3450 = vld [vmem:[#allocation7 + $0x1410] sm:$0xff]
    %v3451 = vld [vmem:[#allocation7 + $0x1418] sm:$0xff]
    %v3452 = vld [vmem:[#allocation7 + $0x1420] sm:$0xff]
    %v3453 = vld [vmem:[#allocation7 + $0x1428] sm:$0xff]
    %v3454 = vld [vmem:[#allocation7 + $0x1430] sm:$0xff]
    %v3455 = vld [vmem:[#allocation7 + $0x1438] sm:$0xff]
    %v3456 = vld [vmem:[#allocation7 + $0x1440] sm:$0xff]
    %v3457 = vld [vmem:[#allocation7 + $0x1448] sm:$0xff]
    %v3458 = vld [vmem:[#allocation7 + $0x1450] sm:$0xff]
    %v3459 = vld [vmem:[#allocation7 + $0x1458] sm:$0xff]
    %v3460 = vld [vmem:[#allocation7 + $0x1460] sm:$0xff]
    %v3461 = vld [vmem:[#allocation7 + $0x1468] sm:$0xff]
    %v3462 = vld [vmem:[#allocation7 + $0x1470] sm:$0xff]
    %v3463 = vld [vmem:[#allocation7 + $0x1478] sm:$0xff]
    %v3464 = vld [vmem:[#allocation7 + $0x1480] sm:$0xff]
    %v3465 = vld [vmem:[#allocation7 + $0x1488] sm:$0xff]
    %v3466 = vld [vmem:[#allocation7 + $0x1490] sm:$0xff]
    %v3467 = vld [vmem:[#allocation7 + $0x1498] sm:$0xff]
    %v3468 = vld [vmem:[#allocation7 + $0x14a0] sm:$0xff]
    %v3469 = vld [vmem:[#allocation7 + $0x14a8] sm:$0xff]
    %v3470 = vld [vmem:[#allocation7 + $0x14b0] sm:$0xff]
    %v3471 = vld [vmem:[#allocation7 + $0x14b8] sm:$0xff]
    %v3472 = vld [vmem:[#allocation7 + $0x14c0] sm:$0xff]
    %v3473 = vld [vmem:[#allocation7 + $0x14c8] sm:$0xff]
    %v3474 = vld [vmem:[#allocation7 + $0x14d0] sm:$0xff]
    %v3475 = vld [vmem:[#allocation7 + $0x14d8] sm:$0xff]
    %v3476 = vld [vmem:[#allocation7 + $0x14e0] sm:$0xff]
    %v3477 = vld [vmem:[#allocation7 + $0x14e8] sm:$0xff]
    %v3478 = vld [vmem:[#allocation7 + $0x14f0] sm:$0xff]
    %v3479 = vld [vmem:[#allocation7 + $0x14f8] sm:$0xff]
    %v3480 = vld [vmem:[#allocation7 + $0x1500] sm:$0xff]
    %v3481 = vld [vmem:[#allocation7 + $0x1508] sm:$0xff]
    %v3482 = vld [vmem:[#allocation7 + $0x1510] sm:$0xff]
    %v3483 = vld [vmem:[#allocation7 + $0x1518] sm:$0xff]
    %v3484 = vld [vmem:[#allocation7 + $0x1520] sm:$0xff]
    %v3485 = vld [vmem:[#allocation7 + $0x1528] sm:$0xff]
    %v3486 = vld [vmem:[#allocation7 + $0x1530] sm:$0xff]
    %v3487 = vld [vmem:[#allocation7 + $0x1538] sm:$0xff]
    %v3488 = vld [vmem:[#allocation7 + $0x1540] sm:$0xff]
    %v3489 = vld [vmem:[#allocation7 + $0x1548] sm:$0xff]
    %v3490 = vld [vmem:[#allocation7 + $0x1550] sm:$0xff]
    %v3491 = vld [vmem:[#allocation7 + $0x1558] sm:$0xff]
    %v3492 = vld [vmem:[#allocation7 + $0x1560] sm:$0xff]
    %v3493 = vld [vmem:[#allocation7 + $0x1568] sm:$0xff]
    %v3494 = vld [vmem:[#allocation7 + $0x1570] sm:$0xff]
    %v3495 = vld [vmem:[#allocation7 + $0x1578] sm:$0xff]
    %v3496 = vld [vmem:[#allocation7 + $0x1580] sm:$0xff]
    %v3497 = vld [vmem:[#allocation7 + $0x1588] sm:$0xff]
    %v3498 = vld [vmem:[#allocation7 + $0x1590] sm:$0xff]
    %v3499 = vld [vmem:[#allocation7 + $0x1598] sm:$0xff]
    %v3500 = vld [vmem:[#allocation7 + $0x15a0] sm:$0xff]
    %v3501 = vld [vmem:[#allocation7 + $0x15a8] sm:$0xff]
    %v3502 = vld [vmem:[#allocation7 + $0x15b0] sm:$0xff]
    %v3503 = vld [vmem:[#allocation7 + $0x15b8] sm:$0xff]
    %v3504 = vld [vmem:[#allocation7 + $0x15c0] sm:$0xff]
    %v3505 = vld [vmem:[#allocation7 + $0x15c8] sm:$0xff]
    %v3506 = vld [vmem:[#allocation7 + $0x15d0] sm:$0xff]
    %v3507 = vld [vmem:[#allocation7 + $0x15d8] sm:$0xff]
    %v3508 = vld [vmem:[#allocation7 + $0x15e0] sm:$0xff]
    %v3509 = vld [vmem:[#allocation7 + $0x15e8] sm:$0xff]
    %v3510 = vld [vmem:[#allocation7 + $0x15f0] sm:$0xff]
    %v3511 = vld [vmem:[#allocation7 + $0x15f8] sm:$0xff]
    %v3512 = vld [vmem:[#allocation7 + $0x1600] sm:$0xff]
    %v3513 = vld [vmem:[#allocation7 + $0x1608] sm:$0xff]
    %v3514 = vld [vmem:[#allocation7 + $0x1610] sm:$0xff]
    %v3515 = vld [vmem:[#allocation7 + $0x1618] sm:$0xff]
    %v3516 = vld [vmem:[#allocation7 + $0x1620] sm:$0xff]
    %v3517 = vld [vmem:[#allocation7 + $0x1628] sm:$0xff]
    %v3518 = vld [vmem:[#allocation7 + $0x1630] sm:$0xff]
    %v3519 = vld [vmem:[#allocation7 + $0x1638] sm:$0xff]
    %v3520 = vld [vmem:[#allocation7 + $0x1640] sm:$0xff]
    %v3521 = vld [vmem:[#allocation7 + $0x1648] sm:$0xff]
    %v3522 = vld [vmem:[#allocation7 + $0x1650] sm:$0xff]
    %v3523 = vld [vmem:[#allocation7 + $0x1658] sm:$0xff]
    %v3524 = vld [vmem:[#allocation7 + $0x1660] sm:$0xff]
    %v3525 = vld [vmem:[#allocation7 + $0x1668] sm:$0xff]
    %v3526 = vld [vmem:[#allocation7 + $0x1670] sm:$0xff]
    %v3527 = vld [vmem:[#allocation7 + $0x1678] sm:$0xff]
    %v3528 = vld [vmem:[#allocation7 + $0x1680] sm:$0xff]
    %v3529 = vld [vmem:[#allocation7 + $0x1688] sm:$0xff]
    %v3530 = vld [vmem:[#allocation7 + $0x1690] sm:$0xff]
    %v3531 = vld [vmem:[#allocation7 + $0x1698] sm:$0xff]
    %v3532 = vld [vmem:[#allocation7 + $0x16a0] sm:$0xff]
    %v3533 = vld [vmem:[#allocation7 + $0x16a8] sm:$0xff]
    %v3534 = vld [vmem:[#allocation7 + $0x16b0] sm:$0xff]
    %v3535 = vld [vmem:[#allocation7 + $0x16b8] sm:$0xff]
    %v3536 = vld [vmem:[#allocation7 + $0x16c0] sm:$0xff]
    %v3537 = vld [vmem:[#allocation7 + $0x16c8] sm:$0xff]
    %v3538 = vld [vmem:[#allocation7 + $0x16d0] sm:$0xff]
    %v3539 = vld [vmem:[#allocation7 + $0x16d8] sm:$0xff]
    %v3540 = vld [vmem:[#allocation7 + $0x16e0] sm:$0xff]
    %v3541 = vld [vmem:[#allocation7 + $0x16e8] sm:$0xff]
    %v3542 = vld [vmem:[#allocation7 + $0x16f0] sm:$0xff]
    %v3543 = vld [vmem:[#allocation7 + $0x16f8] sm:$0xff]
    %v3544 = vld [vmem:[#allocation7 + $0x1700] sm:$0xff]
    %v3545 = vld [vmem:[#allocation7 + $0x1708] sm:$0xff]
    %v3546 = vld [vmem:[#allocation7 + $0x1710] sm:$0xff]
    %v3547 = vld [vmem:[#allocation7 + $0x1718] sm:$0xff]
    %v3548 = vld [vmem:[#allocation7 + $0x1720] sm:$0xff]
    %v3549 = vld [vmem:[#allocation7 + $0x1728] sm:$0xff]
    %v3550 = vld [vmem:[#allocation7 + $0x1730] sm:$0xff]
    %v3551 = vld [vmem:[#allocation7 + $0x1738] sm:$0xff]
    %v3552 = vld [vmem:[#allocation7 + $0x1740] sm:$0xff]
    %v3553 = vld [vmem:[#allocation7 + $0x1748] sm:$0xff]
    %v3554 = vld [vmem:[#allocation7 + $0x1750] sm:$0xff]
    %v3555 = vld [vmem:[#allocation7 + $0x1758] sm:$0xff]
    %v3556 = vld [vmem:[#allocation7 + $0x1760] sm:$0xff]
    %v3557 = vld [vmem:[#allocation7 + $0x1768] sm:$0xff]
    %v3558 = vld [vmem:[#allocation7 + $0x1770] sm:$0xff]
    %v3559 = vld [vmem:[#allocation7 + $0x1778] sm:$0xff]
    %v3560 = vld [vmem:[#allocation7 + $0x1780] sm:$0xff]
    %v3561 = vld [vmem:[#allocation7 + $0x1788] sm:$0xff]
    %v3562 = vld [vmem:[#allocation7 + $0x1790] sm:$0xff]
    %v3563 = vld [vmem:[#allocation7 + $0x1798] sm:$0xff]
    %v3564 = vld [vmem:[#allocation7 + $0x17a0] sm:$0xff]
    %v3565 = vld [vmem:[#allocation7 + $0x17a8] sm:$0xff]
    %v3566 = vld [vmem:[#allocation7 + $0x17b0] sm:$0xff]
    %v3567 = vld [vmem:[#allocation7 + $0x17b8] sm:$0xff]
    %v3568 = vld [vmem:[#allocation7 + $0x17c0] sm:$0xff]
    %v3569 = vld [vmem:[#allocation7 + $0x17c8] sm:$0xff]
    %v3570 = vld [vmem:[#allocation7 + $0x17d0] sm:$0xff]
    %v3571 = vld [vmem:[#allocation7 + $0x17d8] sm:$0xff]
    %v3572 = vld [vmem:[#allocation7 + $0x17e0] sm:$0xff]
    %v3573 = vld [vmem:[#allocation7 + $0x17e8] sm:$0xff]
    %v3574 = vld [vmem:[#allocation7 + $0x17f0] sm:$0xff]
    %v3575 = vld [vmem:[#allocation7 + $0x17f8] sm:$0xff]
    %v3576 = vld [vmem:[#allocation7 + $0x1800] sm:$0xff]
    %v3577 = vld [vmem:[#allocation7 + $0x1808] sm:$0xff]
    %v3578 = vld [vmem:[#allocation7 + $0x1810] sm:$0xff]
    %v3579 = vld [vmem:[#allocation7 + $0x1818] sm:$0xff]
    %v3580 = vld [vmem:[#allocation7 + $0x1820] sm:$0xff]
    %v3581 = vld [vmem:[#allocation7 + $0x1828] sm:$0xff]
    %v3582 = vld [vmem:[#allocation7 + $0x1830] sm:$0xff]
    %v3583 = vld [vmem:[#allocation7 + $0x1838] sm:$0xff]
    %v3584 = vld [vmem:[#allocation7 + $0x1840] sm:$0xff]
    %v3585 = vld [vmem:[#allocation7 + $0x1848] sm:$0xff]
    %v3586 = vld [vmem:[#allocation7 + $0x1850] sm:$0xff]
    %v3587 = vld [vmem:[#allocation7 + $0x1858] sm:$0xff]
    %v3588 = vld [vmem:[#allocation7 + $0x1860] sm:$0xff]
    %v3589 = vld [vmem:[#allocation7 + $0x1868] sm:$0xff]
    %v3590 = vld [vmem:[#allocation7 + $0x1870] sm:$0xff]
    %v3591 = vld [vmem:[#allocation7 + $0x1878] sm:$0xff]
    %v3592 = vld [vmem:[#allocation7 + $0x1880] sm:$0xff]
    %v3593 = vld [vmem:[#allocation7 + $0x1888] sm:$0xff]
    %v3594 = vld [vmem:[#allocation7 + $0x1890] sm:$0xff]
    %v3595 = vld [vmem:[#allocation7 + $0x1898] sm:$0xff]
    %v3596 = vld [vmem:[#allocation7 + $0x18a0] sm:$0xff]
    %v3597 = vld [vmem:[#allocation7 + $0x18a8] sm:$0xff]
    %v3598 = vld [vmem:[#allocation7 + $0x18b0] sm:$0xff]
    %v3599 = vld [vmem:[#allocation7 + $0x18b8] sm:$0xff]
    %v3600 = vld [vmem:[#allocation7 + $0x18c0] sm:$0xff]
    %v3601 = vld [vmem:[#allocation7 + $0x18c8] sm:$0xff]
    %v3602 = vld [vmem:[#allocation7 + $0x18d0] sm:$0xff]
    %v3603 = vld [vmem:[#allocation7 + $0x18d8] sm:$0xff]
    %v3604 = vld [vmem:[#allocation7 + $0x18e0] sm:$0xff]
    %v3605 = vld [vmem:[#allocation7 + $0x18e8] sm:$0xff]
    %v3606 = vld [vmem:[#allocation7 + $0x18f0] sm:$0xff]
    %v3607 = vld [vmem:[#allocation7 + $0x18f8] sm:$0xff]
    %v3608 = vld [vmem:[#allocation7 + $0x1900] sm:$0xff]
    %v3609 = vld [vmem:[#allocation7 + $0x1908] sm:$0xff]
    %v3610 = vld [vmem:[#allocation7 + $0x1910] sm:$0xff]
    %v3611 = vld [vmem:[#allocation7 + $0x1918] sm:$0xff]
    %v3612 = vld [vmem:[#allocation7 + $0x1920] sm:$0xff]
    %v3613 = vld [vmem:[#allocation7 + $0x1928] sm:$0xff]
    %v3614 = vld [vmem:[#allocation7 + $0x1930] sm:$0xff]
    %v3615 = vld [vmem:[#allocation7 + $0x1938] sm:$0xff]
    %v3616 = vld [vmem:[#allocation7 + $0x1940] sm:$0xff]
    %v3617 = vld [vmem:[#allocation7 + $0x1948] sm:$0xff]
    %v3618 = vld [vmem:[#allocation7 + $0x1950] sm:$0xff]
    %v3619 = vld [vmem:[#allocation7 + $0x1958] sm:$0xff]
    %v3620 = vld [vmem:[#allocation7 + $0x1960] sm:$0xff]
    %v3621 = vld [vmem:[#allocation7 + $0x1968] sm:$0xff]
    %v3622 = vld [vmem:[#allocation7 + $0x1970] sm:$0xff]
    %v3623 = vld [vmem:[#allocation7 + $0x1978] sm:$0xff]
    %v3624 = vld [vmem:[#allocation7 + $0x1980] sm:$0xff]
    %v3625 = vld [vmem:[#allocation7 + $0x1988] sm:$0xff]
    %v3626 = vld [vmem:[#allocation7 + $0x1990] sm:$0xff]
    %v3627 = vld [vmem:[#allocation7 + $0x1998] sm:$0xff]
    %v3628 = vld [vmem:[#allocation7 + $0x19a0] sm:$0xff]
    %v3629 = vld [vmem:[#allocation7 + $0x19a8] sm:$0xff]
    %v3630 = vld [vmem:[#allocation7 + $0x19b0] sm:$0xff]
    %v3631 = vld [vmem:[#allocation7 + $0x19b8] sm:$0xff]
    %v3632 = vld [vmem:[#allocation7 + $0x19c0] sm:$0xff]
    %v3633 = vld [vmem:[#allocation7 + $0x19c8] sm:$0xff]
    %v3634 = vld [vmem:[#allocation7 + $0x19d0] sm:$0xff]
    %v3635 = vld [vmem:[#allocation7 + $0x19d8] sm:$0xff]
    %v3636 = vld [vmem:[#allocation7 + $0x19e0] sm:$0xff]
    %v3637 = vld [vmem:[#allocation7 + $0x19e8] sm:$0xff]
    %v3638 = vld [vmem:[#allocation7 + $0x19f0] sm:$0xff]
    %v3639 = vld [vmem:[#allocation7 + $0x19f8] sm:$0xff]
    %v3640 = vld [vmem:[#allocation7 + $0x1a00] sm:$0xff]
    %v3641 = vld [vmem:[#allocation7 + $0x1a08] sm:$0xff]
    %v3642 = vld [vmem:[#allocation7 + $0x1a10] sm:$0xff]
    %v3643 = vld [vmem:[#allocation7 + $0x1a18] sm:$0xff]
    %v3644 = vld [vmem:[#allocation7 + $0x1a20] sm:$0xff]
    %v3645 = vld [vmem:[#allocation7 + $0x1a28] sm:$0xff]
    %v3646 = vld [vmem:[#allocation7 + $0x1a30] sm:$0xff]
    %v3647 = vld [vmem:[#allocation7 + $0x1a38] sm:$0xff]
    %v3648 = vld [vmem:[#allocation7 + $0x1a40] sm:$0xff]
    %v3649 = vld [vmem:[#allocation7 + $0x1a48] sm:$0xff]
    %v3650 = vld [vmem:[#allocation7 + $0x1a50] sm:$0xff]
    %v3651 = vld [vmem:[#allocation7 + $0x1a58] sm:$0xff]
    %v3652 = vld [vmem:[#allocation7 + $0x1a60] sm:$0xff]
    %v3653 = vld [vmem:[#allocation7 + $0x1a68] sm:$0xff]
    %v3654 = vld [vmem:[#allocation7 + $0x1a70] sm:$0xff]
    %v3655 = vld [vmem:[#allocation7 + $0x1a78] sm:$0xff]
    %v3656 = vld [vmem:[#allocation7 + $0x1a80] sm:$0xff]
    %v3657 = vld [vmem:[#allocation7 + $0x1a88] sm:$0xff]
    %v3658 = vld [vmem:[#allocation7 + $0x1a90] sm:$0xff]
    %v3659 = vld [vmem:[#allocation7 + $0x1a98] sm:$0xff]
    %v3660 = vld [vmem:[#allocation7 + $0x1aa0] sm:$0xff]
    %v3661 = vld [vmem:[#allocation7 + $0x1aa8] sm:$0xff]
    %v3662 = vld [vmem:[#allocation7 + $0x1ab0] sm:$0xff]
    %v3663 = vld [vmem:[#allocation7 + $0x1ab8] sm:$0xff]
    %v3664 = vld [vmem:[#allocation7 + $0x1ac0] sm:$0xff]
    %v3665 = vld [vmem:[#allocation7 + $0x1ac8] sm:$0xff]
    %v3666 = vld [vmem:[#allocation7 + $0x1ad0] sm:$0xff]
    %v3667 = vld [vmem:[#allocation7 + $0x1ad8] sm:$0xff]
    %v3668 = vld [vmem:[#allocation7 + $0x1ae0] sm:$0xff]
    %v3669 = vld [vmem:[#allocation7 + $0x1ae8] sm:$0xff]
    %v3670 = vld [vmem:[#allocation7 + $0x1af0] sm:$0xff]
    %v3671 = vld [vmem:[#allocation7 + $0x1af8] sm:$0xff]
    %v3672 = vld [vmem:[#allocation7 + $0x1b00] sm:$0xff]
    %v3673 = vld [vmem:[#allocation7 + $0x1b08] sm:$0xff]
    %v3674 = vld [vmem:[#allocation7 + $0x1b10] sm:$0xff]
    %v3675 = vld [vmem:[#allocation7 + $0x1b18] sm:$0xff]
    %v3676 = vld [vmem:[#allocation7 + $0x1b20] sm:$0xff]
    %v3677 = vld [vmem:[#allocation7 + $0x1b28] sm:$0xff]
    %v3678 = vld [vmem:[#allocation7 + $0x1b30] sm:$0xff]
    %v3679 = vld [vmem:[#allocation7 + $0x1b38] sm:$0xff]
    %v3680 = vld [vmem:[#allocation7 + $0x1b40] sm:$0xff]
    %v3681 = vld [vmem:[#allocation7 + $0x1b48] sm:$0xff]
    %v3682 = vld [vmem:[#allocation7 + $0x1b50] sm:$0xff]
    %v3683 = vld [vmem:[#allocation7 + $0x1b58] sm:$0xff]
    %v3684 = vld [vmem:[#allocation7 + $0x1b60] sm:$0xff]
    %v3685 = vld [vmem:[#allocation7 + $0x1b68] sm:$0xff]
    %v3686 = vld [vmem:[#allocation7 + $0x1b70] sm:$0xff]
    %v3687 = vld [vmem:[#allocation7 + $0x1b78] sm:$0xff]
    %v3688 = vld [vmem:[#allocation7 + $0x1b80] sm:$0xff]
    %v3689 = vld [vmem:[#allocation7 + $0x1b88] sm:$0xff]
    %v3690 = vld [vmem:[#allocation7 + $0x1b90] sm:$0xff]
    %v3691 = vld [vmem:[#allocation7 + $0x1b98] sm:$0xff]
    %v3692 = vld [vmem:[#allocation7 + $0x1ba0] sm:$0xff]
    %v3693 = vld [vmem:[#allocation7 + $0x1ba8] sm:$0xff]
    %v3694 = vld [vmem:[#allocation7 + $0x1bb0] sm:$0xff]
    %v3695 = vld [vmem:[#allocation7 + $0x1bb8] sm:$0xff]
    %v3696 = vld [vmem:[#allocation7 + $0x1bc0] sm:$0xff]
    %v3697 = vld [vmem:[#allocation7 + $0x1bc8] sm:$0xff]
    %v3698 = vld [vmem:[#allocation7 + $0x1bd0] sm:$0xff]
    %v3699 = vld [vmem:[#allocation7 + $0x1bd8] sm:$0xff]
    %v3700 = vld [vmem:[#allocation7 + $0x1be0] sm:$0xff]
    %v3701 = vld [vmem:[#allocation7 + $0x1be8] sm:$0xff]
    %v3702 = vld [vmem:[#allocation7 + $0x1bf0] sm:$0xff]
    %v3703 = vld [vmem:[#allocation7 + $0x1bf8] sm:$0xff]
    %v3704 = vld [vmem:[#allocation7 + $0x1c00] sm:$0xff]
    %v3705 = vld [vmem:[#allocation7 + $0x1c08] sm:$0xff]
    %v3706 = vld [vmem:[#allocation7 + $0x1c10] sm:$0xff]
    %v3707 = vld [vmem:[#allocation7 + $0x1c18] sm:$0xff]
    %v3708 = vld [vmem:[#allocation7 + $0x1c20] sm:$0xff]
    %v3709 = vld [vmem:[#allocation7 + $0x1c28] sm:$0xff]
    %v3710 = vld [vmem:[#allocation7 + $0x1c30] sm:$0xff]
    %v3711 = vld [vmem:[#allocation7 + $0x1c38] sm:$0xff]
    %v3712 = vld [vmem:[#allocation7 + $0x1c40] sm:$0xff]
    %v3713 = vld [vmem:[#allocation7 + $0x1c48] sm:$0xff]
    %v3714 = vld [vmem:[#allocation7 + $0x1c50] sm:$0xff]
    %v3715 = vld [vmem:[#allocation7 + $0x1c58] sm:$0xff]
    %v3716 = vld [vmem:[#allocation7 + $0x1c60] sm:$0xff]
    %v3717 = vld [vmem:[#allocation7 + $0x1c68] sm:$0xff]
    %v3718 = vld [vmem:[#allocation7 + $0x1c70] sm:$0xff]
    %v3719 = vld [vmem:[#allocation7 + $0x1c78] sm:$0xff]
    %v3720 = vld [vmem:[#allocation7 + $0x1c80] sm:$0xff]
    %v3721 = vld [vmem:[#allocation7 + $0x1c88] sm:$0xff]
    %v3722 = vld [vmem:[#allocation7 + $0x1c90] sm:$0xff]
    %v3723 = vld [vmem:[#allocation7 + $0x1c98] sm:$0xff]
    %v3724 = vld [vmem:[#allocation7 + $0x1ca0] sm:$0xff]
    %v3725 = vld [vmem:[#allocation7 + $0x1ca8] sm:$0xff]
    %v3726 = vld [vmem:[#allocation7 + $0x1cb0] sm:$0xff]
    %v3727 = vld [vmem:[#allocation7 + $0x1cb8] sm:$0xff]
    %v3728 = vld [vmem:[#allocation7 + $0x1cc0] sm:$0xff]
    %v3729 = vld [vmem:[#allocation7 + $0x1cc8] sm:$0xff]
    %v3730 = vld [vmem:[#allocation7 + $0x1cd0] sm:$0xff]
    %v3731 = vld [vmem:[#allocation7 + $0x1cd8] sm:$0xff]
    %v3732 = vld [vmem:[#allocation7 + $0x1ce0] sm:$0xff]
    %v3733 = vld [vmem:[#allocation7 + $0x1ce8] sm:$0xff]
    %v3734 = vld [vmem:[#allocation7 + $0x1cf0] sm:$0xff]
    %v3735 = vld [vmem:[#allocation7 + $0x1cf8] sm:$0xff]
    %v3736 = vld [vmem:[#allocation7 + $0x1d00] sm:$0xff]
    %v3737 = vld [vmem:[#allocation7 + $0x1d08] sm:$0xff]
    %v3738 = vld [vmem:[#allocation7 + $0x1d10] sm:$0xff]
    %v3739 = vld [vmem:[#allocation7 + $0x1d18] sm:$0xff]
    %v3740 = vld [vmem:[#allocation7 + $0x1d20] sm:$0xff]
    %v3741 = vld [vmem:[#allocation7 + $0x1d28] sm:$0xff]
    %v3742 = vld [vmem:[#allocation7 + $0x1d30] sm:$0xff]
    %v3743 = vld [vmem:[#allocation7 + $0x1d38] sm:$0xff]
    %v3744 = vld [vmem:[#allocation7 + $0x1d40] sm:$0xff]
    %v3745 = vld [vmem:[#allocation7 + $0x1d48] sm:$0xff]
    %v3746 = vld [vmem:[#allocation7 + $0x1d50] sm:$0xff]
    %v3747 = vld [vmem:[#allocation7 + $0x1d58] sm:$0xff]
    %v3748 = vld [vmem:[#allocation7 + $0x1d60] sm:$0xff]
    %v3749 = vld [vmem:[#allocation7 + $0x1d68] sm:$0xff]
    %v3750 = vld [vmem:[#allocation7 + $0x1d70] sm:$0xff]
    %v3751 = vld [vmem:[#allocation7 + $0x1d78] sm:$0xff]
    %v3752 = vld [vmem:[#allocation7 + $0x1d80] sm:$0xff]
    %v3753 = vld [vmem:[#allocation7 + $0x1d88] sm:$0xff]
    %v3754 = vld [vmem:[#allocation7 + $0x1d90] sm:$0xff]
    %v3755 = vld [vmem:[#allocation7 + $0x1d98] sm:$0xff]
    %v3756 = vld [vmem:[#allocation7 + $0x1da0] sm:$0xff]
    %v3757 = vld [vmem:[#allocation7 + $0x1da8] sm:$0xff]
    %v3758 = vld [vmem:[#allocation7 + $0x1db0] sm:$0xff]
    %v3759 = vld [vmem:[#allocation7 + $0x1db8] sm:$0xff]
    %v3760 = vld [vmem:[#allocation7 + $0x1dc0] sm:$0xff]
    %v3761 = vld [vmem:[#allocation7 + $0x1dc8] sm:$0xff]
    %v3762 = vld [vmem:[#allocation7 + $0x1dd0] sm:$0xff]
    %v3763 = vld [vmem:[#allocation7 + $0x1dd8] sm:$0xff]
    %v3764 = vld [vmem:[#allocation7 + $0x1de0] sm:$0xff]
    %v3765 = vld [vmem:[#allocation7 + $0x1de8] sm:$0xff]
    %v3766 = vld [vmem:[#allocation7 + $0x1df0] sm:$0xff]
    %v3767 = vld [vmem:[#allocation7 + $0x1df8] sm:$0xff]
    %v3768 = vld [vmem:[#allocation7 + $0x1e00] sm:$0xff]
    %v3769 = vld [vmem:[#allocation7 + $0x1e08] sm:$0xff]
    %v3770 = vld [vmem:[#allocation7 + $0x1e10] sm:$0xff]
    %v3771 = vld [vmem:[#allocation7 + $0x1e18] sm:$0xff]
    %v3772 = vld [vmem:[#allocation7 + $0x1e20] sm:$0xff]
    %v3773 = vld [vmem:[#allocation7 + $0x1e28] sm:$0xff]
    %v3774 = vld [vmem:[#allocation7 + $0x1e30] sm:$0xff]
    %v3775 = vld [vmem:[#allocation7 + $0x1e38] sm:$0xff]
    %v3776 = vld [vmem:[#allocation7 + $0x1e40] sm:$0xff]
    %v3777 = vld [vmem:[#allocation7 + $0x1e48] sm:$0xff]
    %v3778 = vld [vmem:[#allocation7 + $0x1e50] sm:$0xff]
    %v3779 = vld [vmem:[#allocation7 + $0x1e58] sm:$0xff]
    %v3780 = vld [vmem:[#allocation7 + $0x1e60] sm:$0xff]
    %v3781 = vld [vmem:[#allocation7 + $0x1e68] sm:$0xff]
    %v3782 = vld [vmem:[#allocation7 + $0x1e70] sm:$0xff]
    %v3783 = vld [vmem:[#allocation7 + $0x1e78] sm:$0xff]
    %v3784 = vld [vmem:[#allocation7 + $0x1e80] sm:$0xff]
    %v3785 = vld [vmem:[#allocation7 + $0x1e88] sm:$0xff]
    %v3786 = vld [vmem:[#allocation7 + $0x1e90] sm:$0xff]
    %v3787 = vld [vmem:[#allocation7 + $0x1e98] sm:$0xff]
    %v3788 = vld [vmem:[#allocation7 + $0x1ea0] sm:$0xff]
    %v3789 = vld [vmem:[#allocation7 + $0x1ea8] sm:$0xff]
    %v3790 = vld [vmem:[#allocation7 + $0x1eb0] sm:$0xff]
    %v3791 = vld [vmem:[#allocation7 + $0x1eb8] sm:$0xff]
    %v3792 = vld [vmem:[#allocation7 + $0x1ec0] sm:$0xff]
    %v3793 = vld [vmem:[#allocation7 + $0x1ec8] sm:$0xff]
    %v3794 = vld [vmem:[#allocation7 + $0x1ed0] sm:$0xff]
    %v3795 = vld [vmem:[#allocation7 + $0x1ed8] sm:$0xff]
    %v3796 = vld [vmem:[#allocation7 + $0x1ee0] sm:$0xff]
    %v3797 = vld [vmem:[#allocation7 + $0x1ee8] sm:$0xff]
    %v3798 = vld [vmem:[#allocation7 + $0x1ef0] sm:$0xff]
    %v3799 = vld [vmem:[#allocation7 + $0x1ef8] sm:$0xff]
    %v3800 = vld [vmem:[#allocation7 + $0x1f00] sm:$0xff]
    %v3801 = vld [vmem:[#allocation7 + $0x1f08] sm:$0xff]
    %v3802 = vld [vmem:[#allocation7 + $0x1f10] sm:$0xff]
    %v3803 = vld [vmem:[#allocation7 + $0x1f18] sm:$0xff]
    %v3804 = vld [vmem:[#allocation7 + $0x1f20] sm:$0xff]
    %v3805 = vld [vmem:[#allocation7 + $0x1f28] sm:$0xff]
    %v3806 = vld [vmem:[#allocation7 + $0x1f30] sm:$0xff]
    %v3807 = vld [vmem:[#allocation7 + $0x1f38] sm:$0xff]
    %v3808 = vld [vmem:[#allocation7 + $0x1f40] sm:$0xff]
    %v3809 = vld [vmem:[#allocation7 + $0x1f48] sm:$0xff]
    %v3810 = vld [vmem:[#allocation7 + $0x1f50] sm:$0xff]
    %v3811 = vld [vmem:[#allocation7 + $0x1f58] sm:$0xff]
    %v3812 = vld [vmem:[#allocation7 + $0x1f60] sm:$0xff]
    %v3813 = vld [vmem:[#allocation7 + $0x1f68] sm:$0xff]
    %v3814 = vld [vmem:[#allocation7 + $0x1f70] sm:$0xff]
    %v3815 = vld [vmem:[#allocation7 + $0x1f78] sm:$0xff]
    %v3816 = vld [vmem:[#allocation7 + $0x1f80] sm:$0xff]
    %v3817 = vld [vmem:[#allocation7 + $0x1f88] sm:$0xff]
    %v3818 = vld [vmem:[#allocation7 + $0x1f90] sm:$0xff]
    %v3819 = vld [vmem:[#allocation7 + $0x1f98] sm:$0xff]
    %v3820 = vld [vmem:[#allocation7 + $0x1fa0] sm:$0xff]
    %v3821 = vld [vmem:[#allocation7 + $0x1fa8] sm:$0xff]
    %v3822 = vld [vmem:[#allocation7 + $0x1fb0] sm:$0xff]
    %v3823 = vld [vmem:[#allocation7 + $0x1fb8] sm:$0xff]
    %v3824 = vld [vmem:[#allocation7 + $0x1fc0] sm:$0xff]
    %v3825 = vld [vmem:[#allocation7 + $0x1fc8] sm:$0xff]
    %v3826 = vld [vmem:[#allocation7 + $0x1fd0] sm:$0xff]
    %v3827 = vld [vmem:[#allocation7 + $0x1fd8] sm:$0xff]
    %v3828 = vld [vmem:[#allocation7 + $0x1fe0] sm:$0xff]
    %v3829 = vld [vmem:[#allocation7 + $0x1fe8] sm:$0xff]
    %v3830 = vld [vmem:[#allocation7 + $0x1ff0] sm:$0xff]
    %v3831 = vld [vmem:[#allocation7 + $0x1ff8] sm:$0xff]
    %s3832 = scalar_lea.vmem [#allocation9], 5
    %v3833 = vld [vmem:[%s3832] ss:$8 sm:$0xf]
    %v3834 = vld [vmem:[%s3832] ss:$8 sm:$0xf0]
    %v3835 = vor.u32 %v3833, %v3834
    %s3836 = scalar_lea.vmem [#allocation9], 69
    %v3837 = vld [vmem:[%s3836] ss:$8 sm:$0xf]
    %v3838 = vld [vmem:[%s3836] ss:$8 sm:$0xf0]
    %v3839 = vor.u32 %v3837, %v3838
    %v3842 = vlaneseq
    %v3843 = vshrl.u32 %v3842, 7
    %v3844 = vsub.s32 0, %v3843
    %v3845 = vrot.slane %v3835, %v3844
    %v3846 = vlaneseq
    %v3847 = vshrl.u32 %v3846, 7
    %v3848 = vsub.s32 1, %v3847
    %v3849 = vrot.slane %v3835, %v3848
    %v3850 = vlaneseq
    %v3851 = vshrl.u32 %v3850, 7
    %v3852 = vsub.s32 2, %v3851
    %v3853 = vrot.slane %v3835, %v3852
    %v3854 = vlaneseq
    %v3855 = vshrl.u32 %v3854, 7
    %v3856 = vsub.s32 3, %v3855
    %v3857 = vrot.slane %v3835, %v3856
    %v3858 = vlaneseq
    %v3859 = vshrl.u32 %v3858, 7
    %v3860 = vsub.s32 4, %v3859
    %v3861 = vrot.slane %v3835, %v3860
    %v3862 = vlaneseq
    %v3863 = vshrl.u32 %v3862, 7
    %v3864 = vsub.s32 5, %v3863
    %v3865 = vrot.slane %v3835, %v3864
    %v3866 = vlaneseq
    %v3867 = vshrl.u32 %v3866, 7
    %v3868 = vsub.s32 6, %v3867
    %v3869 = vrot.slane %v3835, %v3868
    %v3870 = vlaneseq
    %v3871 = vshrl.u32 %v3870, 7
    %v3872 = vsub.s32 7, %v3871
    %v3873 = vrot.slane %v3835, %v3872
    %v3874 = vlaneseq
    %v3875 = vshrl.u32 %v3874, 7
    %v3876 = vsub.s32 0, %v3875
    %v3877 = vrot.slane %v3839, %v3876
    %v3878 = vlaneseq
    %v3879 = vshrl.u32 %v3878, 7
    %v3880 = vsub.s32 1, %v3879
    %v3881 = vrot.slane %v3839, %v3880
    %v3882 = vlaneseq
    %v3883 = vshrl.u32 %v3882, 7
    %v3884 = vsub.s32 2, %v3883
    %v3885 = vrot.slane %v3839, %v3884
    %v3886 = vlaneseq
    %v3887 = vshrl.u32 %v3886, 7
    %v3888 = vsub.s32 3, %v3887
    %v3889 = vrot.slane %v3839, %v3888
    %v3890 = vlaneseq
    %v3891 = vshrl.u32 %v3890, 7
    %v3892 = vsub.s32 4, %v3891
    %v3893 = vrot.slane %v3839, %v3892
    %v3894 = vlaneseq
    %v3895 = vshrl.u32 %v3894, 7
    %v3896 = vsub.s32 5, %v3895
    %v3897 = vrot.slane %v3839, %v3896
    %v3898 = vlaneseq
    %v3899 = vshrl.u32 %v3898, 7
    %v3900 = vsub.s32 6, %v3899
    %v3901 = vrot.slane %v3839, %v3900
    %v3902 = vlaneseq
    %v3903 = vshrl.u32 %v3902, 7
    %v3904 = vsub.s32 7, %v3903
    %v3905 = vrot.slane %v3839, %v3904
    %v4946 = vunpack.c.l.b16 %v2808
    %v4947 = vunpack.c.h.b16 %v2808
    %v4948 = vunpack.c.l.b16 %v2809
    %v4949 = vunpack.c.h.b16 %v2809
    %v4950 = vunpack.c.l.b16 %v2810
    %v4951 = vunpack.c.h.b16 %v2810
    %v4952 = vunpack.c.l.b16 %v2811
    %v4953 = vunpack.c.h.b16 %v2811
    %v4954 = vunpack.c.l.b16 %v2812
    %v4955 = vunpack.c.h.b16 %v2812
    %v4956 = vunpack.c.l.b16 %v2813
    %v4957 = vunpack.c.h.b16 %v2813
    %v4958 = vunpack.c.l.b16 %v2814
    %v4959 = vunpack.c.h.b16 %v2814
    %v4960 = vunpack.c.l.b16 %v2815
    %v4961 = vunpack.c.h.b16 %v2815
    %v4962 = vunpack.c.l.b16 %v2816
    %v4963 = vunpack.c.h.b16 %v2816
    %v4964 = vunpack.c.l.b16 %v2817
    %v4965 = vunpack.c.h.b16 %v2817
    %v4966 = vunpack.c.l.b16 %v2818
    %v4967 = vunpack.c.h.b16 %v2818
    %v4968 = vunpack.c.l.b16 %v2819
    %v4969 = vunpack.c.h.b16 %v2819
    %v4970 = vunpack.c.l.b16 %v2820
    %v4971 = vunpack.c.h.b16 %v2820
    %v4972 = vunpack.c.l.b16 %v2821
    %v4973 = vunpack.c.h.b16 %v2821
    %v4974 = vunpack.c.l.b16 %v2822
    %v4975 = vunpack.c.h.b16 %v2822
    %v4976 = vunpack.c.l.b16 %v2823
    %v4977 = vunpack.c.h.b16 %v2823
    %v4978 = vunpack.c.l.b16 %v2824
    %v4979 = vunpack.c.h.b16 %v2824
    %v4980 = vunpack.c.l.b16 %v2825
    %v4981 = vunpack.c.h.b16 %v2825
    %v4982 = vunpack.c.l.b16 %v2826
    %v4983 = vunpack.c.h.b16 %v2826
    %v4984 = vunpack.c.l.b16 %v2827
    %v4985 = vunpack.c.h.b16 %v2827
    %v4986 = vunpack.c.l.b16 %v2828
    %v4987 = vunpack.c.h.b16 %v2828
    %v4988 = vunpack.c.l.b16 %v2829
    %v4989 = vunpack.c.h.b16 %v2829
    %v4990 = vunpack.c.l.b16 %v2830
    %v4991 = vunpack.c.h.b16 %v2830
    %v4992 = vunpack.c.l.b16 %v2831
    %v4993 = vunpack.c.h.b16 %v2831
    %v4994 = vunpack.c.l.b16 %v2832
    %v4995 = vunpack.c.h.b16 %v2832
    %v4996 = vunpack.c.l.b16 %v2833
    %v4997 = vunpack.c.h.b16 %v2833
    %v4998 = vunpack.c.l.b16 %v2834
    %v4999 = vunpack.c.h.b16 %v2834
    %v5000 = vunpack.c.l.b16 %v2835
    %v5001 = vunpack.c.h.b16 %v2835
    %v5002 = vunpack.c.l.b16 %v2836
    %v5003 = vunpack.c.h.b16 %v2836
    %v5004 = vunpack.c.l.b16 %v2837
    %v5005 = vunpack.c.h.b16 %v2837
    %v5006 = vunpack.c.l.b16 %v2838
    %v5007 = vunpack.c.h.b16 %v2838
    %v5008 = vunpack.c.l.b16 %v2839
    %v5009 = vunpack.c.h.b16 %v2839
    %v5010 = vunpack.c.l.b16 %v2840
    %v5011 = vunpack.c.h.b16 %v2840
    %v5012 = vunpack.c.l.b16 %v2841
    %v5013 = vunpack.c.h.b16 %v2841
    %v5014 = vunpack.c.l.b16 %v2842
    %v5015 = vunpack.c.h.b16 %v2842
    %v5016 = vunpack.c.l.b16 %v2843
    %v5017 = vunpack.c.h.b16 %v2843
    %v5018 = vunpack.c.l.b16 %v2844
    %v5019 = vunpack.c.h.b16 %v2844
    %v5020 = vunpack.c.l.b16 %v2845
    %v5021 = vunpack.c.h.b16 %v2845
    %v5022 = vunpack.c.l.b16 %v2846
    %v5023 = vunpack.c.h.b16 %v2846
    %v5024 = vunpack.c.l.b16 %v2847
    %v5025 = vunpack.c.h.b16 %v2847
    %v5026 = vunpack.c.l.b16 %v2848
    %v5027 = vunpack.c.h.b16 %v2848
    %v5028 = vunpack.c.l.b16 %v2849
    %v5029 = vunpack.c.h.b16 %v2849
    %v5030 = vunpack.c.l.b16 %v2850
    %v5031 = vunpack.c.h.b16 %v2850
    %v5032 = vunpack.c.l.b16 %v2851
    %v5033 = vunpack.c.h.b16 %v2851
    %v5034 = vunpack.c.l.b16 %v2852
    %v5035 = vunpack.c.h.b16 %v2852
    %v5036 = vunpack.c.l.b16 %v2853
    %v5037 = vunpack.c.h.b16 %v2853
    %v5038 = vunpack.c.l.b16 %v2854
    %v5039 = vunpack.c.h.b16 %v2854
    %v5040 = vunpack.c.l.b16 %v2855
    %v5041 = vunpack.c.h.b16 %v2855
    %v5042 = vunpack.c.l.b16 %v2856
    %v5043 = vunpack.c.h.b16 %v2856
    %v5044 = vunpack.c.l.b16 %v2857
    %v5045 = vunpack.c.h.b16 %v2857
    %v5046 = vunpack.c.l.b16 %v2858
    %v5047 = vunpack.c.h.b16 %v2858
    %v5048 = vunpack.c.l.b16 %v2859
    %v5049 = vunpack.c.h.b16 %v2859
    %v5050 = vunpack.c.l.b16 %v2860
    %v5051 = vunpack.c.h.b16 %v2860
    %v5052 = vunpack.c.l.b16 %v2861
    %v5053 = vunpack.c.h.b16 %v2861
    %v5054 = vunpack.c.l.b16 %v2862
    %v5055 = vunpack.c.h.b16 %v2862
    %v5056 = vunpack.c.l.b16 %v2863
    %v5057 = vunpack.c.h.b16 %v2863
    %v5058 = vunpack.c.l.b16 %v2864
    %v5059 = vunpack.c.h.b16 %v2864
    %v5060 = vunpack.c.l.b16 %v2865
    %v5061 = vunpack.c.h.b16 %v2865
    %v5062 = vunpack.c.l.b16 %v2866
    %v5063 = vunpack.c.h.b16 %v2866
    %v5064 = vunpack.c.l.b16 %v2867
    %v5065 = vunpack.c.h.b16 %v2867
    %v5066 = vunpack.c.l.b16 %v2868
    %v5067 = vunpack.c.h.b16 %v2868
    %v5068 = vunpack.c.l.b16 %v2869
    %v5069 = vunpack.c.h.b16 %v2869
    %v5070 = vunpack.c.l.b16 %v2870
    %v5071 = vunpack.c.h.b16 %v2870
    %v5072 = vunpack.c.l.b16 %v2871
    %v5073 = vunpack.c.h.b16 %v2871
    %v5074 = vunpack.c.l.b16 %v2872
    %v5075 = vunpack.c.h.b16 %v2872
    %v5076 = vunpack.c.l.b16 %v2873
    %v5077 = vunpack.c.h.b16 %v2873
    %v5078 = vunpack.c.l.b16 %v2874
    %v5079 = vunpack.c.h.b16 %v2874
    %v5080 = vunpack.c.l.b16 %v2875
    %v5081 = vunpack.c.h.b16 %v2875
    %v5082 = vunpack.c.l.b16 %v2876
    %v5083 = vunpack.c.h.b16 %v2876
    %v5084 = vunpack.c.l.b16 %v2877
    %v5085 = vunpack.c.h.b16 %v2877
    %v5086 = vunpack.c.l.b16 %v2878
    %v5087 = vunpack.c.h.b16 %v2878
    %v5088 = vunpack.c.l.b16 %v2879
    %v5089 = vunpack.c.h.b16 %v2879
    %v5090 = vunpack.c.l.b16 %v2880
    %v5091 = vunpack.c.h.b16 %v2880
    %v5092 = vunpack.c.l.b16 %v2881
    %v5093 = vunpack.c.h.b16 %v2881
    %v5094 = vunpack.c.l.b16 %v2882
    %v5095 = vunpack.c.h.b16 %v2882
    %v5096 = vunpack.c.l.b16 %v2883
    %v5097 = vunpack.c.h.b16 %v2883
    %v5098 = vunpack.c.l.b16 %v2884
    %v5099 = vunpack.c.h.b16 %v2884
    %v5100 = vunpack.c.l.b16 %v2885
    %v5101 = vunpack.c.h.b16 %v2885
    %v5102 = vunpack.c.l.b16 %v2886
    %v5103 = vunpack.c.h.b16 %v2886
    %v5104 = vunpack.c.l.b16 %v2887
    %v5105 = vunpack.c.h.b16 %v2887
    %v5106 = vunpack.c.l.b16 %v2888
    %v5107 = vunpack.c.h.b16 %v2888
    %v5108 = vunpack.c.l.b16 %v2889
    %v5109 = vunpack.c.h.b16 %v2889
    %v5110 = vunpack.c.l.b16 %v2890
    %v5111 = vunpack.c.h.b16 %v2890
    %v5112 = vunpack.c.l.b16 %v2891
    %v5113 = vunpack.c.h.b16 %v2891
    %v5114 = vunpack.c.l.b16 %v2892
    %v5115 = vunpack.c.h.b16 %v2892
    %v5116 = vunpack.c.l.b16 %v2893
    %v5117 = vunpack.c.h.b16 %v2893
    %v5118 = vunpack.c.l.b16 %v2894
    %v5119 = vunpack.c.h.b16 %v2894
    %v5120 = vunpack.c.l.b16 %v2895
    %v5121 = vunpack.c.h.b16 %v2895
    %v5122 = vunpack.c.l.b16 %v2896
    %v5123 = vunpack.c.h.b16 %v2896
    %v5124 = vunpack.c.l.b16 %v2897
    %v5125 = vunpack.c.h.b16 %v2897
    %v5126 = vunpack.c.l.b16 %v2898
    %v5127 = vunpack.c.h.b16 %v2898
    %v5128 = vunpack.c.l.b16 %v2899
    %v5129 = vunpack.c.h.b16 %v2899
    %v5130 = vunpack.c.l.b16 %v2900
    %v5131 = vunpack.c.h.b16 %v2900
    %v5132 = vunpack.c.l.b16 %v2901
    %v5133 = vunpack.c.h.b16 %v2901
    %v5134 = vunpack.c.l.b16 %v2902
    %v5135 = vunpack.c.h.b16 %v2902
    %v5136 = vunpack.c.l.b16 %v2903
    %v5137 = vunpack.c.h.b16 %v2903
    %v5138 = vunpack.c.l.b16 %v2904
    %v5139 = vunpack.c.h.b16 %v2904
    %v5140 = vunpack.c.l.b16 %v2905
    %v5141 = vunpack.c.h.b16 %v2905
    %v5142 = vunpack.c.l.b16 %v2906
    %v5143 = vunpack.c.h.b16 %v2906
    %v5144 = vunpack.c.l.b16 %v2907
    %v5145 = vunpack.c.h.b16 %v2907
    %v5146 = vunpack.c.l.b16 %v2908
    %v5147 = vunpack.c.h.b16 %v2908
    %v5148 = vunpack.c.l.b16 %v2909
    %v5149 = vunpack.c.h.b16 %v2909
    %v5150 = vunpack.c.l.b16 %v2910
    %v5151 = vunpack.c.h.b16 %v2910
    %v5152 = vunpack.c.l.b16 %v2911
    %v5153 = vunpack.c.h.b16 %v2911
    %v5154 = vunpack.c.l.b16 %v2912
    %v5155 = vunpack.c.h.b16 %v2912
    %v5156 = vunpack.c.l.b16 %v2913
    %v5157 = vunpack.c.h.b16 %v2913
    %v5158 = vunpack.c.l.b16 %v2914
    %v5159 = vunpack.c.h.b16 %v2914
    %v5160 = vunpack.c.l.b16 %v2915
    %v5161 = vunpack.c.h.b16 %v2915
    %v5162 = vunpack.c.l.b16 %v2916
    %v5163 = vunpack.c.h.b16 %v2916
    %v5164 = vunpack.c.l.b16 %v2917
    %v5165 = vunpack.c.h.b16 %v2917
    %v5166 = vunpack.c.l.b16 %v2918
    %v5167 = vunpack.c.h.b16 %v2918
    %v5168 = vunpack.c.l.b16 %v2919
    %v5169 = vunpack.c.h.b16 %v2919
    %v5170 = vunpack.c.l.b16 %v2920
    %v5171 = vunpack.c.h.b16 %v2920
    %v5172 = vunpack.c.l.b16 %v2921
    %v5173 = vunpack.c.h.b16 %v2921
    %v5174 = vunpack.c.l.b16 %v2922
    %v5175 = vunpack.c.h.b16 %v2922
    %v5176 = vunpack.c.l.b16 %v2923
    %v5177 = vunpack.c.h.b16 %v2923
    %v5178 = vunpack.c.l.b16 %v2924
    %v5179 = vunpack.c.h.b16 %v2924
    %v5180 = vunpack.c.l.b16 %v2925
    %v5181 = vunpack.c.h.b16 %v2925
    %v5182 = vunpack.c.l.b16 %v2926
    %v5183 = vunpack.c.h.b16 %v2926
    %v5184 = vunpack.c.l.b16 %v2927
    %v5185 = vunpack.c.h.b16 %v2927
    %v5186 = vunpack.c.l.b16 %v2928
    %v5187 = vunpack.c.h.b16 %v2928
    %v5188 = vunpack.c.l.b16 %v2929
    %v5189 = vunpack.c.h.b16 %v2929
    %v5190 = vunpack.c.l.b16 %v2930
    %v5191 = vunpack.c.h.b16 %v2930
    %v5192 = vunpack.c.l.b16 %v2931
    %v5193 = vunpack.c.h.b16 %v2931
    %v5194 = vunpack.c.l.b16 %v2932
    %v5195 = vunpack.c.h.b16 %v2932
    %v5196 = vunpack.c.l.b16 %v2933
    %v5197 = vunpack.c.h.b16 %v2933
    %v5198 = vunpack.c.l.b16 %v2934
    %v5199 = vunpack.c.h.b16 %v2934
    %v5200 = vunpack.c.l.b16 %v2935
    %v5201 = vunpack.c.h.b16 %v2935
    %v5202 = vunpack.c.l.b16 %v2936
    %v5203 = vunpack.c.h.b16 %v2936
    %v5204 = vunpack.c.l.b16 %v2937
    %v5205 = vunpack.c.h.b16 %v2937
    %v5206 = vunpack.c.l.b16 %v2938
    %v5207 = vunpack.c.h.b16 %v2938
    %v5208 = vunpack.c.l.b16 %v2939
    %v5209 = vunpack.c.h.b16 %v2939
    %v5210 = vunpack.c.l.b16 %v2940
    %v5211 = vunpack.c.h.b16 %v2940
    %v5212 = vunpack.c.l.b16 %v2941
    %v5213 = vunpack.c.h.b16 %v2941
    %v5214 = vunpack.c.l.b16 %v2942
    %v5215 = vunpack.c.h.b16 %v2942
    %v5216 = vunpack.c.l.b16 %v2943
    %v5217 = vunpack.c.h.b16 %v2943
    %v5218 = vunpack.c.l.b16 %v2944
    %v5219 = vunpack.c.h.b16 %v2944
    %v5220 = vunpack.c.l.b16 %v2945
    %v5221 = vunpack.c.h.b16 %v2945
    %v5222 = vunpack.c.l.b16 %v2946
    %v5223 = vunpack.c.h.b16 %v2946
    %v5224 = vunpack.c.l.b16 %v2947
    %v5225 = vunpack.c.h.b16 %v2947
    %v5226 = vunpack.c.l.b16 %v2948
    %v5227 = vunpack.c.h.b16 %v2948
    %v5228 = vunpack.c.l.b16 %v2949
    %v5229 = vunpack.c.h.b16 %v2949
    %v5230 = vunpack.c.l.b16 %v2950
    %v5231 = vunpack.c.h.b16 %v2950
    %v5232 = vunpack.c.l.b16 %v2951
    %v5233 = vunpack.c.h.b16 %v2951
    %v5234 = vunpack.c.l.b16 %v2952
    %v5235 = vunpack.c.h.b16 %v2952
    %v5236 = vunpack.c.l.b16 %v2953
    %v5237 = vunpack.c.h.b16 %v2953
    %v5238 = vunpack.c.l.b16 %v2954
    %v5239 = vunpack.c.h.b16 %v2954
    %v5240 = vunpack.c.l.b16 %v2955
    %v5241 = vunpack.c.h.b16 %v2955
    %v5242 = vunpack.c.l.b16 %v2956
    %v5243 = vunpack.c.h.b16 %v2956
    %v5244 = vunpack.c.l.b16 %v2957
    %v5245 = vunpack.c.h.b16 %v2957
    %v5246 = vunpack.c.l.b16 %v2958
    %v5247 = vunpack.c.h.b16 %v2958
    %v5248 = vunpack.c.l.b16 %v2959
    %v5249 = vunpack.c.h.b16 %v2959
    %v5250 = vunpack.c.l.b16 %v2960
    %v5251 = vunpack.c.h.b16 %v2960
    %v5252 = vunpack.c.l.b16 %v2961
    %v5253 = vunpack.c.h.b16 %v2961
    %v5254 = vunpack.c.l.b16 %v2962
    %v5255 = vunpack.c.h.b16 %v2962
    %v5256 = vunpack.c.l.b16 %v2963
    %v5257 = vunpack.c.h.b16 %v2963
    %v5258 = vunpack.c.l.b16 %v2964
    %v5259 = vunpack.c.h.b16 %v2964
    %v5260 = vunpack.c.l.b16 %v2965
    %v5261 = vunpack.c.h.b16 %v2965
    %v5262 = vunpack.c.l.b16 %v2966
    %v5263 = vunpack.c.h.b16 %v2966
    %v5264 = vunpack.c.l.b16 %v2967
    %v5265 = vunpack.c.h.b16 %v2967
    %v5266 = vunpack.c.l.b16 %v2968
    %v5267 = vunpack.c.h.b16 %v2968
    %v5268 = vunpack.c.l.b16 %v2969
    %v5269 = vunpack.c.h.b16 %v2969
    %v5270 = vunpack.c.l.b16 %v2970
    %v5271 = vunpack.c.h.b16 %v2970
    %v5272 = vunpack.c.l.b16 %v2971
    %v5273 = vunpack.c.h.b16 %v2971
    %v5274 = vunpack.c.l.b16 %v2972
    %v5275 = vunpack.c.h.b16 %v2972
    %v5276 = vunpack.c.l.b16 %v2973
    %v5277 = vunpack.c.h.b16 %v2973
    %v5278 = vunpack.c.l.b16 %v2974
    %v5279 = vunpack.c.h.b16 %v2974
    %v5280 = vunpack.c.l.b16 %v2975
    %v5281 = vunpack.c.h.b16 %v2975
    %v5282 = vunpack.c.l.b16 %v2976
    %v5283 = vunpack.c.h.b16 %v2976
    %v5284 = vunpack.c.l.b16 %v2977
    %v5285 = vunpack.c.h.b16 %v2977
    %v5286 = vunpack.c.l.b16 %v2978
    %v5287 = vunpack.c.h.b16 %v2978
    %v5288 = vunpack.c.l.b16 %v2979
    %v5289 = vunpack.c.h.b16 %v2979
    %v5290 = vunpack.c.l.b16 %v2980
    %v5291 = vunpack.c.h.b16 %v2980
    %v5292 = vunpack.c.l.b16 %v2981
    %v5293 = vunpack.c.h.b16 %v2981
    %v5294 = vunpack.c.l.b16 %v2982
    %v5295 = vunpack.c.h.b16 %v2982
    %v5296 = vunpack.c.l.b16 %v2983
    %v5297 = vunpack.c.h.b16 %v2983
    %v5298 = vunpack.c.l.b16 %v2984
    %v5299 = vunpack.c.h.b16 %v2984
    %v5300 = vunpack.c.l.b16 %v2985
    %v5301 = vunpack.c.h.b16 %v2985
    %v5302 = vunpack.c.l.b16 %v2986
    %v5303 = vunpack.c.h.b16 %v2986
    %v5304 = vunpack.c.l.b16 %v2987
    %v5305 = vunpack.c.h.b16 %v2987
    %v5306 = vunpack.c.l.b16 %v2988
    %v5307 = vunpack.c.h.b16 %v2988
    %v5308 = vunpack.c.l.b16 %v2989
    %v5309 = vunpack.c.h.b16 %v2989
    %v5310 = vunpack.c.l.b16 %v2990
    %v5311 = vunpack.c.h.b16 %v2990
    %v5312 = vunpack.c.l.b16 %v2991
    %v5313 = vunpack.c.h.b16 %v2991
    %v5314 = vunpack.c.l.b16 %v2992
    %v5315 = vunpack.c.h.b16 %v2992
    %v5316 = vunpack.c.l.b16 %v2993
    %v5317 = vunpack.c.h.b16 %v2993
    %v5318 = vunpack.c.l.b16 %v2994
    %v5319 = vunpack.c.h.b16 %v2994
    %v5320 = vunpack.c.l.b16 %v2995
    %v5321 = vunpack.c.h.b16 %v2995
    %v5322 = vunpack.c.l.b16 %v2996
    %v5323 = vunpack.c.h.b16 %v2996
    %v5324 = vunpack.c.l.b16 %v2997
    %v5325 = vunpack.c.h.b16 %v2997
    %v5326 = vunpack.c.l.b16 %v2998
    %v5327 = vunpack.c.h.b16 %v2998
    %v5328 = vunpack.c.l.b16 %v2999
    %v5329 = vunpack.c.h.b16 %v2999
    %v5330 = vunpack.c.l.b16 %v3000
    %v5331 = vunpack.c.h.b16 %v3000
    %v5332 = vunpack.c.l.b16 %v3001
    %v5333 = vunpack.c.h.b16 %v3001
    %v5334 = vunpack.c.l.b16 %v3002
    %v5335 = vunpack.c.h.b16 %v3002
    %v5336 = vunpack.c.l.b16 %v3003
    %v5337 = vunpack.c.h.b16 %v3003
    %v5338 = vunpack.c.l.b16 %v3004
    %v5339 = vunpack.c.h.b16 %v3004
    %v5340 = vunpack.c.l.b16 %v3005
    %v5341 = vunpack.c.h.b16 %v3005
    %v5342 = vunpack.c.l.b16 %v3006
    %v5343 = vunpack.c.h.b16 %v3006
    %v5344 = vunpack.c.l.b16 %v3007
    %v5345 = vunpack.c.h.b16 %v3007
    %v5346 = vunpack.c.l.b16 %v3008
    %v5347 = vunpack.c.h.b16 %v3008
    %v5348 = vunpack.c.l.b16 %v3009
    %v5349 = vunpack.c.h.b16 %v3009
    %v5350 = vunpack.c.l.b16 %v3010
    %v5351 = vunpack.c.h.b16 %v3010
    %v5352 = vunpack.c.l.b16 %v3011
    %v5353 = vunpack.c.h.b16 %v3011
    %v5354 = vunpack.c.l.b16 %v3012
    %v5355 = vunpack.c.h.b16 %v3012
    %v5356 = vunpack.c.l.b16 %v3013
    %v5357 = vunpack.c.h.b16 %v3013
    %v5358 = vunpack.c.l.b16 %v3014
    %v5359 = vunpack.c.h.b16 %v3014
    %v5360 = vunpack.c.l.b16 %v3015
    %v5361 = vunpack.c.h.b16 %v3015
    %v5362 = vunpack.c.l.b16 %v3016
    %v5363 = vunpack.c.h.b16 %v3016
    %v5364 = vunpack.c.l.b16 %v3017
    %v5365 = vunpack.c.h.b16 %v3017
    %v5366 = vunpack.c.l.b16 %v3018
    %v5367 = vunpack.c.h.b16 %v3018
    %v5368 = vunpack.c.l.b16 %v3019
    %v5369 = vunpack.c.h.b16 %v3019
    %v5370 = vunpack.c.l.b16 %v3020
    %v5371 = vunpack.c.h.b16 %v3020
    %v5372 = vunpack.c.l.b16 %v3021
    %v5373 = vunpack.c.h.b16 %v3021
    %v5374 = vunpack.c.l.b16 %v3022
    %v5375 = vunpack.c.h.b16 %v3022
    %v5376 = vunpack.c.l.b16 %v3023
    %v5377 = vunpack.c.h.b16 %v3023
    %v5378 = vunpack.c.l.b16 %v3024
    %v5379 = vunpack.c.h.b16 %v3024
    %v5380 = vunpack.c.l.b16 %v3025
    %v5381 = vunpack.c.h.b16 %v3025
    %v5382 = vunpack.c.l.b16 %v3026
    %v5383 = vunpack.c.h.b16 %v3026
    %v5384 = vunpack.c.l.b16 %v3027
    %v5385 = vunpack.c.h.b16 %v3027
    %v5386 = vunpack.c.l.b16 %v3028
    %v5387 = vunpack.c.h.b16 %v3028
    %v5388 = vunpack.c.l.b16 %v3029
    %v5389 = vunpack.c.h.b16 %v3029
    %v5390 = vunpack.c.l.b16 %v3030
    %v5391 = vunpack.c.h.b16 %v3030
    %v5392 = vunpack.c.l.b16 %v3031
    %v5393 = vunpack.c.h.b16 %v3031
    %v5394 = vunpack.c.l.b16 %v3032
    %v5395 = vunpack.c.h.b16 %v3032
    %v5396 = vunpack.c.l.b16 %v3033
    %v5397 = vunpack.c.h.b16 %v3033
    %v5398 = vunpack.c.l.b16 %v3034
    %v5399 = vunpack.c.h.b16 %v3034
    %v5400 = vunpack.c.l.b16 %v3035
    %v5401 = vunpack.c.h.b16 %v3035
    %v5402 = vunpack.c.l.b16 %v3036
    %v5403 = vunpack.c.h.b16 %v3036
    %v5404 = vunpack.c.l.b16 %v3037
    %v5405 = vunpack.c.h.b16 %v3037
    %v5406 = vunpack.c.l.b16 %v3038
    %v5407 = vunpack.c.h.b16 %v3038
    %v5408 = vunpack.c.l.b16 %v3039
    %v5409 = vunpack.c.h.b16 %v3039
    %v5410 = vunpack.c.l.b16 %v3040
    %v5411 = vunpack.c.h.b16 %v3040
    %v5412 = vunpack.c.l.b16 %v3041
    %v5413 = vunpack.c.h.b16 %v3041
    %v5414 = vunpack.c.l.b16 %v3042
    %v5415 = vunpack.c.h.b16 %v3042
    %v5416 = vunpack.c.l.b16 %v3043
    %v5417 = vunpack.c.h.b16 %v3043
    %v5418 = vunpack.c.l.b16 %v3044
    %v5419 = vunpack.c.h.b16 %v3044
    %v5420 = vunpack.c.l.b16 %v3045
    %v5421 = vunpack.c.h.b16 %v3045
    %v5422 = vunpack.c.l.b16 %v3046
    %v5423 = vunpack.c.h.b16 %v3046
    %v5424 = vunpack.c.l.b16 %v3047
    %v5425 = vunpack.c.h.b16 %v3047
    %v5426 = vunpack.c.l.b16 %v3048
    %v5427 = vunpack.c.h.b16 %v3048
    %v5428 = vunpack.c.l.b16 %v3049
    %v5429 = vunpack.c.h.b16 %v3049
    %v5430 = vunpack.c.l.b16 %v3050
    %v5431 = vunpack.c.h.b16 %v3050
    %v5432 = vunpack.c.l.b16 %v3051
    %v5433 = vunpack.c.h.b16 %v3051
    %v5434 = vunpack.c.l.b16 %v3052
    %v5435 = vunpack.c.h.b16 %v3052
    %v5436 = vunpack.c.l.b16 %v3053
    %v5437 = vunpack.c.h.b16 %v3053
    %v5438 = vunpack.c.l.b16 %v3054
    %v5439 = vunpack.c.h.b16 %v3054
    %v5440 = vunpack.c.l.b16 %v3055
    %v5441 = vunpack.c.h.b16 %v3055
    %v5442 = vunpack.c.l.b16 %v3056
    %v5443 = vunpack.c.h.b16 %v3056
    %v5444 = vunpack.c.l.b16 %v3057
    %v5445 = vunpack.c.h.b16 %v3057
    %v5446 = vunpack.c.l.b16 %v3058
    %v5447 = vunpack.c.h.b16 %v3058
    %v5448 = vunpack.c.l.b16 %v3059
    %v5449 = vunpack.c.h.b16 %v3059
    %v5450 = vunpack.c.l.b16 %v3060
    %v5451 = vunpack.c.h.b16 %v3060
    %v5452 = vunpack.c.l.b16 %v3061
    %v5453 = vunpack.c.h.b16 %v3061
    %v5454 = vunpack.c.l.b16 %v3062
    %v5455 = vunpack.c.h.b16 %v3062
    %v5456 = vunpack.c.l.b16 %v3063
    %v5457 = vunpack.c.h.b16 %v3063
    %v5458 = vunpack.c.l.b16 %v3064
    %v5459 = vunpack.c.h.b16 %v3064
    %v5460 = vunpack.c.l.b16 %v3065
    %v5461 = vunpack.c.h.b16 %v3065
    %v5462 = vunpack.c.l.b16 %v3066
    %v5463 = vunpack.c.h.b16 %v3066
    %v5464 = vunpack.c.l.b16 %v3067
    %v5465 = vunpack.c.h.b16 %v3067
    %v5466 = vunpack.c.l.b16 %v3068
    %v5467 = vunpack.c.h.b16 %v3068
    %v5468 = vunpack.c.l.b16 %v3069
    %v5469 = vunpack.c.h.b16 %v3069
    %v5470 = vunpack.c.l.b16 %v3070
    %v5471 = vunpack.c.h.b16 %v3070
    %v5472 = vunpack.c.l.b16 %v3071
    %v5473 = vunpack.c.h.b16 %v3071
    %v5474 = vunpack.c.l.b16 %v3072
    %v5475 = vunpack.c.h.b16 %v3072
    %v5476 = vunpack.c.l.b16 %v3073
    %v5477 = vunpack.c.h.b16 %v3073
    %v5478 = vunpack.c.l.b16 %v3074
    %v5479 = vunpack.c.h.b16 %v3074
    %v5480 = vunpack.c.l.b16 %v3075
    %v5481 = vunpack.c.h.b16 %v3075
    %v5482 = vunpack.c.l.b16 %v3076
    %v5483 = vunpack.c.h.b16 %v3076
    %v5484 = vunpack.c.l.b16 %v3077
    %v5485 = vunpack.c.h.b16 %v3077
    %v5486 = vunpack.c.l.b16 %v3078
    %v5487 = vunpack.c.h.b16 %v3078
    %v5488 = vunpack.c.l.b16 %v3079
    %v5489 = vunpack.c.h.b16 %v3079
    %v5490 = vunpack.c.l.b16 %v3080
    %v5491 = vunpack.c.h.b16 %v3080
    %v5492 = vunpack.c.l.b16 %v3081
    %v5493 = vunpack.c.h.b16 %v3081
    %v5494 = vunpack.c.l.b16 %v3082
    %v5495 = vunpack.c.h.b16 %v3082
    %v5496 = vunpack.c.l.b16 %v3083
    %v5497 = vunpack.c.h.b16 %v3083
    %v5498 = vunpack.c.l.b16 %v3084
    %v5499 = vunpack.c.h.b16 %v3084
    %v5500 = vunpack.c.l.b16 %v3085
    %v5501 = vunpack.c.h.b16 %v3085
    %v5502 = vunpack.c.l.b16 %v3086
    %v5503 = vunpack.c.h.b16 %v3086
    %v5504 = vunpack.c.l.b16 %v3087
    %v5505 = vunpack.c.h.b16 %v3087
    %v5506 = vunpack.c.l.b16 %v3088
    %v5507 = vunpack.c.h.b16 %v3088
    %v5508 = vunpack.c.l.b16 %v3089
    %v5509 = vunpack.c.h.b16 %v3089
    %v5510 = vunpack.c.l.b16 %v3090
    %v5511 = vunpack.c.h.b16 %v3090
    %v5512 = vunpack.c.l.b16 %v3091
    %v5513 = vunpack.c.h.b16 %v3091
    %v5514 = vunpack.c.l.b16 %v3092
    %v5515 = vunpack.c.h.b16 %v3092
    %v5516 = vunpack.c.l.b16 %v3093
    %v5517 = vunpack.c.h.b16 %v3093
    %v5518 = vunpack.c.l.b16 %v3094
    %v5519 = vunpack.c.h.b16 %v3094
    %v5520 = vunpack.c.l.b16 %v3095
    %v5521 = vunpack.c.h.b16 %v3095
    %v5522 = vunpack.c.l.b16 %v3096
    %v5523 = vunpack.c.h.b16 %v3096
    %v5524 = vunpack.c.l.b16 %v3097
    %v5525 = vunpack.c.h.b16 %v3097
    %v5526 = vunpack.c.l.b16 %v3098
    %v5527 = vunpack.c.h.b16 %v3098
    %v5528 = vunpack.c.l.b16 %v3099
    %v5529 = vunpack.c.h.b16 %v3099
    %v5530 = vunpack.c.l.b16 %v3100
    %v5531 = vunpack.c.h.b16 %v3100
    %v5532 = vunpack.c.l.b16 %v3101
    %v5533 = vunpack.c.h.b16 %v3101
    %v5534 = vunpack.c.l.b16 %v3102
    %v5535 = vunpack.c.h.b16 %v3102
    %v5536 = vunpack.c.l.b16 %v3103
    %v5537 = vunpack.c.h.b16 %v3103
    %v5538 = vunpack.c.l.b16 %v3104
    %v5539 = vunpack.c.h.b16 %v3104
    %v5540 = vunpack.c.l.b16 %v3105
    %v5541 = vunpack.c.h.b16 %v3105
    %v5542 = vunpack.c.l.b16 %v3106
    %v5543 = vunpack.c.h.b16 %v3106
    %v5544 = vunpack.c.l.b16 %v3107
    %v5545 = vunpack.c.h.b16 %v3107
    %v5546 = vunpack.c.l.b16 %v3108
    %v5547 = vunpack.c.h.b16 %v3108
    %v5548 = vunpack.c.l.b16 %v3109
    %v5549 = vunpack.c.h.b16 %v3109
    %v5550 = vunpack.c.l.b16 %v3110
    %v5551 = vunpack.c.h.b16 %v3110
    %v5552 = vunpack.c.l.b16 %v3111
    %v5553 = vunpack.c.h.b16 %v3111
    %v5554 = vunpack.c.l.b16 %v3112
    %v5555 = vunpack.c.h.b16 %v3112
    %v5556 = vunpack.c.l.b16 %v3113
    %v5557 = vunpack.c.h.b16 %v3113
    %v5558 = vunpack.c.l.b16 %v3114
    %v5559 = vunpack.c.h.b16 %v3114
    %v5560 = vunpack.c.l.b16 %v3115
    %v5561 = vunpack.c.h.b16 %v3115
    %v5562 = vunpack.c.l.b16 %v3116
    %v5563 = vunpack.c.h.b16 %v3116
    %v5564 = vunpack.c.l.b16 %v3117
    %v5565 = vunpack.c.h.b16 %v3117
    %v5566 = vunpack.c.l.b16 %v3118
    %v5567 = vunpack.c.h.b16 %v3118
    %v5568 = vunpack.c.l.b16 %v3119
    %v5569 = vunpack.c.h.b16 %v3119
    %v5570 = vunpack.c.l.b16 %v3120
    %v5571 = vunpack.c.h.b16 %v3120
    %v5572 = vunpack.c.l.b16 %v3121
    %v5573 = vunpack.c.h.b16 %v3121
    %v5574 = vunpack.c.l.b16 %v3122
    %v5575 = vunpack.c.h.b16 %v3122
    %v5576 = vunpack.c.l.b16 %v3123
    %v5577 = vunpack.c.h.b16 %v3123
    %v5578 = vunpack.c.l.b16 %v3124
    %v5579 = vunpack.c.h.b16 %v3124
    %v5580 = vunpack.c.l.b16 %v3125
    %v5581 = vunpack.c.h.b16 %v3125
    %v5582 = vunpack.c.l.b16 %v3126
    %v5583 = vunpack.c.h.b16 %v3126
    %v5584 = vunpack.c.l.b16 %v3127
    %v5585 = vunpack.c.h.b16 %v3127
    %v5586 = vunpack.c.l.b16 %v3128
    %v5587 = vunpack.c.h.b16 %v3128
    %v5588 = vunpack.c.l.b16 %v3129
    %v5589 = vunpack.c.h.b16 %v3129
    %v5590 = vunpack.c.l.b16 %v3130
    %v5591 = vunpack.c.h.b16 %v3130
    %v5592 = vunpack.c.l.b16 %v3131
    %v5593 = vunpack.c.h.b16 %v3131
    %v5594 = vunpack.c.l.b16 %v3132
    %v5595 = vunpack.c.h.b16 %v3132
    %v5596 = vunpack.c.l.b16 %v3133
    %v5597 = vunpack.c.h.b16 %v3133
    %v5598 = vunpack.c.l.b16 %v3134
    %v5599 = vunpack.c.h.b16 %v3134
    %v5600 = vunpack.c.l.b16 %v3135
    %v5601 = vunpack.c.h.b16 %v3135
    %v5602 = vunpack.c.l.b16 %v3136
    %v5603 = vunpack.c.h.b16 %v3136
    %v5604 = vunpack.c.l.b16 %v3137
    %v5605 = vunpack.c.h.b16 %v3137
    %v5606 = vunpack.c.l.b16 %v3138
    %v5607 = vunpack.c.h.b16 %v3138
    %v5608 = vunpack.c.l.b16 %v3139
    %v5609 = vunpack.c.h.b16 %v3139
    %v5610 = vunpack.c.l.b16 %v3140
    %v5611 = vunpack.c.h.b16 %v3140
    %v5612 = vunpack.c.l.b16 %v3141
    %v5613 = vunpack.c.h.b16 %v3141
    %v5614 = vunpack.c.l.b16 %v3142
    %v5615 = vunpack.c.h.b16 %v3142
    %v5616 = vunpack.c.l.b16 %v3143
    %v5617 = vunpack.c.h.b16 %v3143
    %v5618 = vunpack.c.l.b16 %v3144
    %v5619 = vunpack.c.h.b16 %v3144
    %v5620 = vunpack.c.l.b16 %v3145
    %v5621 = vunpack.c.h.b16 %v3145
    %v5622 = vunpack.c.l.b16 %v3146
    %v5623 = vunpack.c.h.b16 %v3146
    %v5624 = vunpack.c.l.b16 %v3147
    %v5625 = vunpack.c.h.b16 %v3147
    %v5626 = vunpack.c.l.b16 %v3148
    %v5627 = vunpack.c.h.b16 %v3148
    %v5628 = vunpack.c.l.b16 %v3149
    %v5629 = vunpack.c.h.b16 %v3149
    %v5630 = vunpack.c.l.b16 %v3150
    %v5631 = vunpack.c.h.b16 %v3150
    %v5632 = vunpack.c.l.b16 %v3151
    %v5633 = vunpack.c.h.b16 %v3151
    %v5634 = vunpack.c.l.b16 %v3152
    %v5635 = vunpack.c.h.b16 %v3152
    %v5636 = vunpack.c.l.b16 %v3153
    %v5637 = vunpack.c.h.b16 %v3153
    %v5638 = vunpack.c.l.b16 %v3154
    %v5639 = vunpack.c.h.b16 %v3154
    %v5640 = vunpack.c.l.b16 %v3155
    %v5641 = vunpack.c.h.b16 %v3155
    %v5642 = vunpack.c.l.b16 %v3156
    %v5643 = vunpack.c.h.b16 %v3156
    %v5644 = vunpack.c.l.b16 %v3157
    %v5645 = vunpack.c.h.b16 %v3157
    %v5646 = vunpack.c.l.b16 %v3158
    %v5647 = vunpack.c.h.b16 %v3158
    %v5648 = vunpack.c.l.b16 %v3159
    %v5649 = vunpack.c.h.b16 %v3159
    %v5650 = vunpack.c.l.b16 %v3160
    %v5651 = vunpack.c.h.b16 %v3160
    %v5652 = vunpack.c.l.b16 %v3161
    %v5653 = vunpack.c.h.b16 %v3161
    %v5654 = vunpack.c.l.b16 %v3162
    %v5655 = vunpack.c.h.b16 %v3162
    %v5656 = vunpack.c.l.b16 %v3163
    %v5657 = vunpack.c.h.b16 %v3163
    %v5658 = vunpack.c.l.b16 %v3164
    %v5659 = vunpack.c.h.b16 %v3164
    %v5660 = vunpack.c.l.b16 %v3165
    %v5661 = vunpack.c.h.b16 %v3165
    %v5662 = vunpack.c.l.b16 %v3166
    %v5663 = vunpack.c.h.b16 %v3166
    %v5664 = vunpack.c.l.b16 %v3167
    %v5665 = vunpack.c.h.b16 %v3167
    %v5666 = vunpack.c.l.b16 %v3168
    %v5667 = vunpack.c.h.b16 %v3168
    %v5668 = vunpack.c.l.b16 %v3169
    %v5669 = vunpack.c.h.b16 %v3169
    %v5670 = vunpack.c.l.b16 %v3170
    %v5671 = vunpack.c.h.b16 %v3170
    %v5672 = vunpack.c.l.b16 %v3171
    %v5673 = vunpack.c.h.b16 %v3171
    %v5674 = vunpack.c.l.b16 %v3172
    %v5675 = vunpack.c.h.b16 %v3172
    %v5676 = vunpack.c.l.b16 %v3173
    %v5677 = vunpack.c.h.b16 %v3173
    %v5678 = vunpack.c.l.b16 %v3174
    %v5679 = vunpack.c.h.b16 %v3174
    %v5680 = vunpack.c.l.b16 %v3175
    %v5681 = vunpack.c.h.b16 %v3175
    %v5682 = vunpack.c.l.b16 %v3176
    %v5683 = vunpack.c.h.b16 %v3176
    %v5684 = vunpack.c.l.b16 %v3177
    %v5685 = vunpack.c.h.b16 %v3177
    %v5686 = vunpack.c.l.b16 %v3178
    %v5687 = vunpack.c.h.b16 %v3178
    %v5688 = vunpack.c.l.b16 %v3179
    %v5689 = vunpack.c.h.b16 %v3179
    %v5690 = vunpack.c.l.b16 %v3180
    %v5691 = vunpack.c.h.b16 %v3180
    %v5692 = vunpack.c.l.b16 %v3181
    %v5693 = vunpack.c.h.b16 %v3181
    %v5694 = vunpack.c.l.b16 %v3182
    %v5695 = vunpack.c.h.b16 %v3182
    %v5696 = vunpack.c.l.b16 %v3183
    %v5697 = vunpack.c.h.b16 %v3183
    %v5698 = vunpack.c.l.b16 %v3184
    %v5699 = vunpack.c.h.b16 %v3184
    %v5700 = vunpack.c.l.b16 %v3185
    %v5701 = vunpack.c.h.b16 %v3185
    %v5702 = vunpack.c.l.b16 %v3186
    %v5703 = vunpack.c.h.b16 %v3186
    %v5704 = vunpack.c.l.b16 %v3187
    %v5705 = vunpack.c.h.b16 %v3187
    %v5706 = vunpack.c.l.b16 %v3188
    %v5707 = vunpack.c.h.b16 %v3188
    %v5708 = vunpack.c.l.b16 %v3189
    %v5709 = vunpack.c.h.b16 %v3189
    %v5710 = vunpack.c.l.b16 %v3190
    %v5711 = vunpack.c.h.b16 %v3190
    %v5712 = vunpack.c.l.b16 %v3191
    %v5713 = vunpack.c.h.b16 %v3191
    %v5714 = vunpack.c.l.b16 %v3192
    %v5715 = vunpack.c.h.b16 %v3192
    %v5716 = vunpack.c.l.b16 %v3193
    %v5717 = vunpack.c.h.b16 %v3193
    %v5718 = vunpack.c.l.b16 %v3194
    %v5719 = vunpack.c.h.b16 %v3194
    %v5720 = vunpack.c.l.b16 %v3195
    %v5721 = vunpack.c.h.b16 %v3195
    %v5722 = vunpack.c.l.b16 %v3196
    %v5723 = vunpack.c.h.b16 %v3196
    %v5724 = vunpack.c.l.b16 %v3197
    %v5725 = vunpack.c.h.b16 %v3197
    %v5726 = vunpack.c.l.b16 %v3198
    %v5727 = vunpack.c.h.b16 %v3198
    %v5728 = vunpack.c.l.b16 %v3199
    %v5729 = vunpack.c.h.b16 %v3199
    %v5730 = vunpack.c.l.b16 %v3200
    %v5731 = vunpack.c.h.b16 %v3200
    %v5732 = vunpack.c.l.b16 %v3201
    %v5733 = vunpack.c.h.b16 %v3201
    %v5734 = vunpack.c.l.b16 %v3202
    %v5735 = vunpack.c.h.b16 %v3202
    %v5736 = vunpack.c.l.b16 %v3203
    %v5737 = vunpack.c.h.b16 %v3203
    %v5738 = vunpack.c.l.b16 %v3204
    %v5739 = vunpack.c.h.b16 %v3204
    %v5740 = vunpack.c.l.b16 %v3205
    %v5741 = vunpack.c.h.b16 %v3205
    %v5742 = vunpack.c.l.b16 %v3206
    %v5743 = vunpack.c.h.b16 %v3206
    %v5744 = vunpack.c.l.b16 %v3207
    %v5745 = vunpack.c.h.b16 %v3207
    %v5746 = vunpack.c.l.b16 %v3208
    %v5747 = vunpack.c.h.b16 %v3208
    %v5748 = vunpack.c.l.b16 %v3209
    %v5749 = vunpack.c.h.b16 %v3209
    %v5750 = vunpack.c.l.b16 %v3210
    %v5751 = vunpack.c.h.b16 %v3210
    %v5752 = vunpack.c.l.b16 %v3211
    %v5753 = vunpack.c.h.b16 %v3211
    %v5754 = vunpack.c.l.b16 %v3212
    %v5755 = vunpack.c.h.b16 %v3212
    %v5756 = vunpack.c.l.b16 %v3213
    %v5757 = vunpack.c.h.b16 %v3213
    %v5758 = vunpack.c.l.b16 %v3214
    %v5759 = vunpack.c.h.b16 %v3214
    %v5760 = vunpack.c.l.b16 %v3215
    %v5761 = vunpack.c.h.b16 %v3215
    %v5762 = vunpack.c.l.b16 %v3216
    %v5763 = vunpack.c.h.b16 %v3216
    %v5764 = vunpack.c.l.b16 %v3217
    %v5765 = vunpack.c.h.b16 %v3217
    %v5766 = vunpack.c.l.b16 %v3218
    %v5767 = vunpack.c.h.b16 %v3218
    %v5768 = vunpack.c.l.b16 %v3219
    %v5769 = vunpack.c.h.b16 %v3219
    %v5770 = vunpack.c.l.b16 %v3220
    %v5771 = vunpack.c.h.b16 %v3220
    %v5772 = vunpack.c.l.b16 %v3221
    %v5773 = vunpack.c.h.b16 %v3221
    %v5774 = vunpack.c.l.b16 %v3222
    %v5775 = vunpack.c.h.b16 %v3222
    %v5776 = vunpack.c.l.b16 %v3223
    %v5777 = vunpack.c.h.b16 %v3223
    %v5778 = vunpack.c.l.b16 %v3224
    %v5779 = vunpack.c.h.b16 %v3224
    %v5780 = vunpack.c.l.b16 %v3225
    %v5781 = vunpack.c.h.b16 %v3225
    %v5782 = vunpack.c.l.b16 %v3226
    %v5783 = vunpack.c.h.b16 %v3226
    %v5784 = vunpack.c.l.b16 %v3227
    %v5785 = vunpack.c.h.b16 %v3227
    %v5786 = vunpack.c.l.b16 %v3228
    %v5787 = vunpack.c.h.b16 %v3228
    %v5788 = vunpack.c.l.b16 %v3229
    %v5789 = vunpack.c.h.b16 %v3229
    %v5790 = vunpack.c.l.b16 %v3230
    %v5791 = vunpack.c.h.b16 %v3230
    %v5792 = vunpack.c.l.b16 %v3231
    %v5793 = vunpack.c.h.b16 %v3231
    %v5794 = vunpack.c.l.b16 %v3232
    %v5795 = vunpack.c.h.b16 %v3232
    %v5796 = vunpack.c.l.b16 %v3233
    %v5797 = vunpack.c.h.b16 %v3233
    %v5798 = vunpack.c.l.b16 %v3234
    %v5799 = vunpack.c.h.b16 %v3234
    %v5800 = vunpack.c.l.b16 %v3235
    %v5801 = vunpack.c.h.b16 %v3235
    %v5802 = vunpack.c.l.b16 %v3236
    %v5803 = vunpack.c.h.b16 %v3236
    %v5804 = vunpack.c.l.b16 %v3237
    %v5805 = vunpack.c.h.b16 %v3237
    %v5806 = vunpack.c.l.b16 %v3238
    %v5807 = vunpack.c.h.b16 %v3238
    %v5808 = vunpack.c.l.b16 %v3239
    %v5809 = vunpack.c.h.b16 %v3239
    %v5810 = vunpack.c.l.b16 %v3240
    %v5811 = vunpack.c.h.b16 %v3240
    %v5812 = vunpack.c.l.b16 %v3241
    %v5813 = vunpack.c.h.b16 %v3241
    %v5814 = vunpack.c.l.b16 %v3242
    %v5815 = vunpack.c.h.b16 %v3242
    %v5816 = vunpack.c.l.b16 %v3243
    %v5817 = vunpack.c.h.b16 %v3243
    %v5818 = vunpack.c.l.b16 %v3244
    %v5819 = vunpack.c.h.b16 %v3244
    %v5820 = vunpack.c.l.b16 %v3245
    %v5821 = vunpack.c.h.b16 %v3245
    %v5822 = vunpack.c.l.b16 %v3246
    %v5823 = vunpack.c.h.b16 %v3246
    %v5824 = vunpack.c.l.b16 %v3247
    %v5825 = vunpack.c.h.b16 %v3247
    %v5826 = vunpack.c.l.b16 %v3248
    %v5827 = vunpack.c.h.b16 %v3248
    %v5828 = vunpack.c.l.b16 %v3249
    %v5829 = vunpack.c.h.b16 %v3249
    %v5830 = vunpack.c.l.b16 %v3250
    %v5831 = vunpack.c.h.b16 %v3250
    %v5832 = vunpack.c.l.b16 %v3251
    %v5833 = vunpack.c.h.b16 %v3251
    %v5834 = vunpack.c.l.b16 %v3252
    %v5835 = vunpack.c.h.b16 %v3252
    %v5836 = vunpack.c.l.b16 %v3253
    %v5837 = vunpack.c.h.b16 %v3253
    %v5838 = vunpack.c.l.b16 %v3254
    %v5839 = vunpack.c.h.b16 %v3254
    %v5840 = vunpack.c.l.b16 %v3255
    %v5841 = vunpack.c.h.b16 %v3255
    %v5842 = vunpack.c.l.b16 %v3256
    %v5843 = vunpack.c.h.b16 %v3256
    %v5844 = vunpack.c.l.b16 %v3257
    %v5845 = vunpack.c.h.b16 %v3257
    %v5846 = vunpack.c.l.b16 %v3258
    %v5847 = vunpack.c.h.b16 %v3258
    %v5848 = vunpack.c.l.b16 %v3259
    %v5849 = vunpack.c.h.b16 %v3259
    %v5850 = vunpack.c.l.b16 %v3260
    %v5851 = vunpack.c.h.b16 %v3260
    %v5852 = vunpack.c.l.b16 %v3261
    %v5853 = vunpack.c.h.b16 %v3261
    %v5854 = vunpack.c.l.b16 %v3262
    %v5855 = vunpack.c.h.b16 %v3262
    %v5856 = vunpack.c.l.b16 %v3263
    %v5857 = vunpack.c.h.b16 %v3263
    %v5858 = vunpack.c.l.b16 %v3264
    %v5859 = vunpack.c.h.b16 %v3264
    %v5860 = vunpack.c.l.b16 %v3265
    %v5861 = vunpack.c.h.b16 %v3265
    %v5862 = vunpack.c.l.b16 %v3266
    %v5863 = vunpack.c.h.b16 %v3266
    %v5864 = vunpack.c.l.b16 %v3267
    %v5865 = vunpack.c.h.b16 %v3267
    %v5866 = vunpack.c.l.b16 %v3268
    %v5867 = vunpack.c.h.b16 %v3268
    %v5868 = vunpack.c.l.b16 %v3269
    %v5869 = vunpack.c.h.b16 %v3269
    %v5870 = vunpack.c.l.b16 %v3270
    %v5871 = vunpack.c.h.b16 %v3270
    %v5872 = vunpack.c.l.b16 %v3271
    %v5873 = vunpack.c.h.b16 %v3271
    %v5874 = vunpack.c.l.b16 %v3272
    %v5875 = vunpack.c.h.b16 %v3272
    %v5876 = vunpack.c.l.b16 %v3273
    %v5877 = vunpack.c.h.b16 %v3273
    %v5878 = vunpack.c.l.b16 %v3274
    %v5879 = vunpack.c.h.b16 %v3274
    %v5880 = vunpack.c.l.b16 %v3275
    %v5881 = vunpack.c.h.b16 %v3275
    %v5882 = vunpack.c.l.b16 %v3276
    %v5883 = vunpack.c.h.b16 %v3276
    %v5884 = vunpack.c.l.b16 %v3277
    %v5885 = vunpack.c.h.b16 %v3277
    %v5886 = vunpack.c.l.b16 %v3278
    %v5887 = vunpack.c.h.b16 %v3278
    %v5888 = vunpack.c.l.b16 %v3279
    %v5889 = vunpack.c.h.b16 %v3279
    %v5890 = vunpack.c.l.b16 %v3280
    %v5891 = vunpack.c.h.b16 %v3280
    %v5892 = vunpack.c.l.b16 %v3281
    %v5893 = vunpack.c.h.b16 %v3281
    %v5894 = vunpack.c.l.b16 %v3282
    %v5895 = vunpack.c.h.b16 %v3282
    %v5896 = vunpack.c.l.b16 %v3283
    %v5897 = vunpack.c.h.b16 %v3283
    %v5898 = vunpack.c.l.b16 %v3284
    %v5899 = vunpack.c.h.b16 %v3284
    %v5900 = vunpack.c.l.b16 %v3285
    %v5901 = vunpack.c.h.b16 %v3285
    %v5902 = vunpack.c.l.b16 %v3286
    %v5903 = vunpack.c.h.b16 %v3286
    %v5904 = vunpack.c.l.b16 %v3287
    %v5905 = vunpack.c.h.b16 %v3287
    %v5906 = vunpack.c.l.b16 %v3288
    %v5907 = vunpack.c.h.b16 %v3288
    %v5908 = vunpack.c.l.b16 %v3289
    %v5909 = vunpack.c.h.b16 %v3289
    %v5910 = vunpack.c.l.b16 %v3290
    %v5911 = vunpack.c.h.b16 %v3290
    %v5912 = vunpack.c.l.b16 %v3291
    %v5913 = vunpack.c.h.b16 %v3291
    %v5914 = vunpack.c.l.b16 %v3292
    %v5915 = vunpack.c.h.b16 %v3292
    %v5916 = vunpack.c.l.b16 %v3293
    %v5917 = vunpack.c.h.b16 %v3293
    %v5918 = vunpack.c.l.b16 %v3294
    %v5919 = vunpack.c.h.b16 %v3294
    %v5920 = vunpack.c.l.b16 %v3295
    %v5921 = vunpack.c.h.b16 %v3295
    %v5922 = vunpack.c.l.b16 %v3296
    %v5923 = vunpack.c.h.b16 %v3296
    %v5924 = vunpack.c.l.b16 %v3297
    %v5925 = vunpack.c.h.b16 %v3297
    %v5926 = vunpack.c.l.b16 %v3298
    %v5927 = vunpack.c.h.b16 %v3298
    %v5928 = vunpack.c.l.b16 %v3299
    %v5929 = vunpack.c.h.b16 %v3299
    %v5930 = vunpack.c.l.b16 %v3300
    %v5931 = vunpack.c.h.b16 %v3300
    %v5932 = vunpack.c.l.b16 %v3301
    %v5933 = vunpack.c.h.b16 %v3301
    %v5934 = vunpack.c.l.b16 %v3302
    %v5935 = vunpack.c.h.b16 %v3302
    %v5936 = vunpack.c.l.b16 %v3303
    %v5937 = vunpack.c.h.b16 %v3303
    %v5938 = vunpack.c.l.b16 %v3304
    %v5939 = vunpack.c.h.b16 %v3304
    %v5940 = vunpack.c.l.b16 %v3305
    %v5941 = vunpack.c.h.b16 %v3305
    %v5942 = vunpack.c.l.b16 %v3306
    %v5943 = vunpack.c.h.b16 %v3306
    %v5944 = vunpack.c.l.b16 %v3307
    %v5945 = vunpack.c.h.b16 %v3307
    %v5946 = vunpack.c.l.b16 %v3308
    %v5947 = vunpack.c.h.b16 %v3308
    %v5948 = vunpack.c.l.b16 %v3309
    %v5949 = vunpack.c.h.b16 %v3309
    %v5950 = vunpack.c.l.b16 %v3310
    %v5951 = vunpack.c.h.b16 %v3310
    %v5952 = vunpack.c.l.b16 %v3311
    %v5953 = vunpack.c.h.b16 %v3311
    %v5954 = vunpack.c.l.b16 %v3312
    %v5955 = vunpack.c.h.b16 %v3312
    %v5956 = vunpack.c.l.b16 %v3313
    %v5957 = vunpack.c.h.b16 %v3313
    %v5958 = vunpack.c.l.b16 %v3314
    %v5959 = vunpack.c.h.b16 %v3314
    %v5960 = vunpack.c.l.b16 %v3315
    %v5961 = vunpack.c.h.b16 %v3315
    %v5962 = vunpack.c.l.b16 %v3316
    %v5963 = vunpack.c.h.b16 %v3316
    %v5964 = vunpack.c.l.b16 %v3317
    %v5965 = vunpack.c.h.b16 %v3317
    %v5966 = vunpack.c.l.b16 %v3318
    %v5967 = vunpack.c.h.b16 %v3318
    %v5968 = vunpack.c.l.b16 %v3319
    %v5969 = vunpack.c.h.b16 %v3319
    %v5970 = vunpack.c.l.b16 %v3320
    %v5971 = vunpack.c.h.b16 %v3320
    %v5972 = vunpack.c.l.b16 %v3321
    %v5973 = vunpack.c.h.b16 %v3321
    %v5974 = vunpack.c.l.b16 %v3322
    %v5975 = vunpack.c.h.b16 %v3322
    %v5976 = vunpack.c.l.b16 %v3323
    %v5977 = vunpack.c.h.b16 %v3323
    %v5978 = vunpack.c.l.b16 %v3324
    %v5979 = vunpack.c.h.b16 %v3324
    %v5980 = vunpack.c.l.b16 %v3325
    %v5981 = vunpack.c.h.b16 %v3325
    %v5982 = vunpack.c.l.b16 %v3326
    %v5983 = vunpack.c.h.b16 %v3326
    %v5984 = vunpack.c.l.b16 %v3327
    %v5985 = vunpack.c.h.b16 %v3327
    %v5986 = vunpack.c.l.b16 %v3328
    %v5987 = vunpack.c.h.b16 %v3328
    %v5988 = vunpack.c.l.b16 %v3329
    %v5989 = vunpack.c.h.b16 %v3329
    %v5990 = vunpack.c.l.b16 %v3330
    %v5991 = vunpack.c.h.b16 %v3330
    %v5992 = vunpack.c.l.b16 %v3331
    %v5993 = vunpack.c.h.b16 %v3331
    %v5994 = vunpack.c.l.b16 %v3332
    %v5995 = vunpack.c.h.b16 %v3332
    %v5996 = vunpack.c.l.b16 %v3333
    %v5997 = vunpack.c.h.b16 %v3333
    %v5998 = vunpack.c.l.b16 %v3334
    %v5999 = vunpack.c.h.b16 %v3334
    %v6000 = vunpack.c.l.b16 %v3335
    %v6001 = vunpack.c.h.b16 %v3335
    %v6002 = vunpack.c.l.b16 %v3336
    %v6003 = vunpack.c.h.b16 %v3336
    %v6004 = vunpack.c.l.b16 %v3337
    %v6005 = vunpack.c.h.b16 %v3337
    %v6006 = vunpack.c.l.b16 %v3338
    %v6007 = vunpack.c.h.b16 %v3338
    %v6008 = vunpack.c.l.b16 %v3339
    %v6009 = vunpack.c.h.b16 %v3339
    %v6010 = vunpack.c.l.b16 %v3340
    %v6011 = vunpack.c.h.b16 %v3340
    %v6012 = vunpack.c.l.b16 %v3341
    %v6013 = vunpack.c.h.b16 %v3341
    %v6014 = vunpack.c.l.b16 %v3342
    %v6015 = vunpack.c.h.b16 %v3342
    %v6016 = vunpack.c.l.b16 %v3343
    %v6017 = vunpack.c.h.b16 %v3343
    %v6018 = vunpack.c.l.b16 %v3344
    %v6019 = vunpack.c.h.b16 %v3344
    %v6020 = vunpack.c.l.b16 %v3345
    %v6021 = vunpack.c.h.b16 %v3345
    %v6022 = vunpack.c.l.b16 %v3346
    %v6023 = vunpack.c.h.b16 %v3346
    %v6024 = vunpack.c.l.b16 %v3347
    %v6025 = vunpack.c.h.b16 %v3347
    %v6026 = vunpack.c.l.b16 %v3348
    %v6027 = vunpack.c.h.b16 %v3348
    %v6028 = vunpack.c.l.b16 %v3349
    %v6029 = vunpack.c.h.b16 %v3349
    %v6030 = vunpack.c.l.b16 %v3350
    %v6031 = vunpack.c.h.b16 %v3350
    %v6032 = vunpack.c.l.b16 %v3351
    %v6033 = vunpack.c.h.b16 %v3351
    %v6034 = vunpack.c.l.b16 %v3352
    %v6035 = vunpack.c.h.b16 %v3352
    %v6036 = vunpack.c.l.b16 %v3353
    %v6037 = vunpack.c.h.b16 %v3353
    %v6038 = vunpack.c.l.b16 %v3354
    %v6039 = vunpack.c.h.b16 %v3354
    %v6040 = vunpack.c.l.b16 %v3355
    %v6041 = vunpack.c.h.b16 %v3355
    %v6042 = vunpack.c.l.b16 %v3356
    %v6043 = vunpack.c.h.b16 %v3356
    %v6044 = vunpack.c.l.b16 %v3357
    %v6045 = vunpack.c.h.b16 %v3357
    %v6046 = vunpack.c.l.b16 %v3358
    %v6047 = vunpack.c.h.b16 %v3358
    %v6048 = vunpack.c.l.b16 %v3359
    %v6049 = vunpack.c.h.b16 %v3359
    %v6050 = vunpack.c.l.b16 %v3360
    %v6051 = vunpack.c.h.b16 %v3360
    %v6052 = vunpack.c.l.b16 %v3361
    %v6053 = vunpack.c.h.b16 %v3361
    %v6054 = vunpack.c.l.b16 %v3362
    %v6055 = vunpack.c.h.b16 %v3362
    %v6056 = vunpack.c.l.b16 %v3363
    %v6057 = vunpack.c.h.b16 %v3363
    %v6058 = vunpack.c.l.b16 %v3364
    %v6059 = vunpack.c.h.b16 %v3364
    %v6060 = vunpack.c.l.b16 %v3365
    %v6061 = vunpack.c.h.b16 %v3365
    %v6062 = vunpack.c.l.b16 %v3366
    %v6063 = vunpack.c.h.b16 %v3366
    %v6064 = vunpack.c.l.b16 %v3367
    %v6065 = vunpack.c.h.b16 %v3367
    %v6066 = vunpack.c.l.b16 %v3368
    %v6067 = vunpack.c.h.b16 %v3368
    %v6068 = vunpack.c.l.b16 %v3369
    %v6069 = vunpack.c.h.b16 %v3369
    %v6070 = vunpack.c.l.b16 %v3370
    %v6071 = vunpack.c.h.b16 %v3370
    %v6072 = vunpack.c.l.b16 %v3371
    %v6073 = vunpack.c.h.b16 %v3371
    %v6074 = vunpack.c.l.b16 %v3372
    %v6075 = vunpack.c.h.b16 %v3372
    %v6076 = vunpack.c.l.b16 %v3373
    %v6077 = vunpack.c.h.b16 %v3373
    %v6078 = vunpack.c.l.b16 %v3374
    %v6079 = vunpack.c.h.b16 %v3374
    %v6080 = vunpack.c.l.b16 %v3375
    %v6081 = vunpack.c.h.b16 %v3375
    %v6082 = vunpack.c.l.b16 %v3376
    %v6083 = vunpack.c.h.b16 %v3376
    %v6084 = vunpack.c.l.b16 %v3377
    %v6085 = vunpack.c.h.b16 %v3377
    %v6086 = vunpack.c.l.b16 %v3378
    %v6087 = vunpack.c.h.b16 %v3378
    %v6088 = vunpack.c.l.b16 %v3379
    %v6089 = vunpack.c.h.b16 %v3379
    %v6090 = vunpack.c.l.b16 %v3380
    %v6091 = vunpack.c.h.b16 %v3380
    %v6092 = vunpack.c.l.b16 %v3381
    %v6093 = vunpack.c.h.b16 %v3381
    %v6094 = vunpack.c.l.b16 %v3382
    %v6095 = vunpack.c.h.b16 %v3382
    %v6096 = vunpack.c.l.b16 %v3383
    %v6097 = vunpack.c.h.b16 %v3383
    %v6098 = vunpack.c.l.b16 %v3384
    %v6099 = vunpack.c.h.b16 %v3384
    %v6100 = vunpack.c.l.b16 %v3385
    %v6101 = vunpack.c.h.b16 %v3385
    %v6102 = vunpack.c.l.b16 %v3386
    %v6103 = vunpack.c.h.b16 %v3386
    %v6104 = vunpack.c.l.b16 %v3387
    %v6105 = vunpack.c.h.b16 %v3387
    %v6106 = vunpack.c.l.b16 %v3388
    %v6107 = vunpack.c.h.b16 %v3388
    %v6108 = vunpack.c.l.b16 %v3389
    %v6109 = vunpack.c.h.b16 %v3389
    %v6110 = vunpack.c.l.b16 %v3390
    %v6111 = vunpack.c.h.b16 %v3390
    %v6112 = vunpack.c.l.b16 %v3391
    %v6113 = vunpack.c.h.b16 %v3391
    %v6114 = vunpack.c.l.b16 %v3392
    %v6115 = vunpack.c.h.b16 %v3392
    %v6116 = vunpack.c.l.b16 %v3393
    %v6117 = vunpack.c.h.b16 %v3393
    %v6118 = vunpack.c.l.b16 %v3394
    %v6119 = vunpack.c.h.b16 %v3394
    %v6120 = vunpack.c.l.b16 %v3395
    %v6121 = vunpack.c.h.b16 %v3395
    %v6122 = vunpack.c.l.b16 %v3396
    %v6123 = vunpack.c.h.b16 %v3396
    %v6124 = vunpack.c.l.b16 %v3397
    %v6125 = vunpack.c.h.b16 %v3397
    %v6126 = vunpack.c.l.b16 %v3398
    %v6127 = vunpack.c.h.b16 %v3398
    %v6128 = vunpack.c.l.b16 %v3399
    %v6129 = vunpack.c.h.b16 %v3399
    %v6130 = vunpack.c.l.b16 %v3400
    %v6131 = vunpack.c.h.b16 %v3400
    %v6132 = vunpack.c.l.b16 %v3401
    %v6133 = vunpack.c.h.b16 %v3401
    %v6134 = vunpack.c.l.b16 %v3402
    %v6135 = vunpack.c.h.b16 %v3402
    %v6136 = vunpack.c.l.b16 %v3403
    %v6137 = vunpack.c.h.b16 %v3403
    %v6138 = vunpack.c.l.b16 %v3404
    %v6139 = vunpack.c.h.b16 %v3404
    %v6140 = vunpack.c.l.b16 %v3405
    %v6141 = vunpack.c.h.b16 %v3405
    %v6142 = vunpack.c.l.b16 %v3406
    %v6143 = vunpack.c.h.b16 %v3406
    %v6144 = vunpack.c.l.b16 %v3407
    %v6145 = vunpack.c.h.b16 %v3407
    %v6146 = vunpack.c.l.b16 %v3408
    %v6147 = vunpack.c.h.b16 %v3408
    %v6148 = vunpack.c.l.b16 %v3409
    %v6149 = vunpack.c.h.b16 %v3409
    %v6150 = vunpack.c.l.b16 %v3410
    %v6151 = vunpack.c.h.b16 %v3410
    %v6152 = vunpack.c.l.b16 %v3411
    %v6153 = vunpack.c.h.b16 %v3411
    %v6154 = vunpack.c.l.b16 %v3412
    %v6155 = vunpack.c.h.b16 %v3412
    %v6156 = vunpack.c.l.b16 %v3413
    %v6157 = vunpack.c.h.b16 %v3413
    %v6158 = vunpack.c.l.b16 %v3414
    %v6159 = vunpack.c.h.b16 %v3414
    %v6160 = vunpack.c.l.b16 %v3415
    %v6161 = vunpack.c.h.b16 %v3415
    %v6162 = vunpack.c.l.b16 %v3416
    %v6163 = vunpack.c.h.b16 %v3416
    %v6164 = vunpack.c.l.b16 %v3417
    %v6165 = vunpack.c.h.b16 %v3417
    %v6166 = vunpack.c.l.b16 %v3418
    %v6167 = vunpack.c.h.b16 %v3418
    %v6168 = vunpack.c.l.b16 %v3419
    %v6169 = vunpack.c.h.b16 %v3419
    %v6170 = vunpack.c.l.b16 %v3420
    %v6171 = vunpack.c.h.b16 %v3420
    %v6172 = vunpack.c.l.b16 %v3421
    %v6173 = vunpack.c.h.b16 %v3421
    %v6174 = vunpack.c.l.b16 %v3422
    %v6175 = vunpack.c.h.b16 %v3422
    %v6176 = vunpack.c.l.b16 %v3423
    %v6177 = vunpack.c.h.b16 %v3423
    %v6178 = vunpack.c.l.b16 %v3424
    %v6179 = vunpack.c.h.b16 %v3424
    %v6180 = vunpack.c.l.b16 %v3425
    %v6181 = vunpack.c.h.b16 %v3425
    %v6182 = vunpack.c.l.b16 %v3426
    %v6183 = vunpack.c.h.b16 %v3426
    %v6184 = vunpack.c.l.b16 %v3427
    %v6185 = vunpack.c.h.b16 %v3427
    %v6186 = vunpack.c.l.b16 %v3428
    %v6187 = vunpack.c.h.b16 %v3428
    %v6188 = vunpack.c.l.b16 %v3429
    %v6189 = vunpack.c.h.b16 %v3429
    %v6190 = vunpack.c.l.b16 %v3430
    %v6191 = vunpack.c.h.b16 %v3430
    %v6192 = vunpack.c.l.b16 %v3431
    %v6193 = vunpack.c.h.b16 %v3431
    %v6194 = vunpack.c.l.b16 %v3432
    %v6195 = vunpack.c.h.b16 %v3432
    %v6196 = vunpack.c.l.b16 %v3433
    %v6197 = vunpack.c.h.b16 %v3433
    %v6198 = vunpack.c.l.b16 %v3434
    %v6199 = vunpack.c.h.b16 %v3434
    %v6200 = vunpack.c.l.b16 %v3435
    %v6201 = vunpack.c.h.b16 %v3435
    %v6202 = vunpack.c.l.b16 %v3436
    %v6203 = vunpack.c.h.b16 %v3436
    %v6204 = vunpack.c.l.b16 %v3437
    %v6205 = vunpack.c.h.b16 %v3437
    %v6206 = vunpack.c.l.b16 %v3438
    %v6207 = vunpack.c.h.b16 %v3438
    %v6208 = vunpack.c.l.b16 %v3439
    %v6209 = vunpack.c.h.b16 %v3439
    %v6210 = vunpack.c.l.b16 %v3440
    %v6211 = vunpack.c.h.b16 %v3440
    %v6212 = vunpack.c.l.b16 %v3441
    %v6213 = vunpack.c.h.b16 %v3441
    %v6214 = vunpack.c.l.b16 %v3442
    %v6215 = vunpack.c.h.b16 %v3442
    %v6216 = vunpack.c.l.b16 %v3443
    %v6217 = vunpack.c.h.b16 %v3443
    %v6218 = vunpack.c.l.b16 %v3444
    %v6219 = vunpack.c.h.b16 %v3444
    %v6220 = vunpack.c.l.b16 %v3445
    %v6221 = vunpack.c.h.b16 %v3445
    %v6222 = vunpack.c.l.b16 %v3446
    %v6223 = vunpack.c.h.b16 %v3446
    %v6224 = vunpack.c.l.b16 %v3447
    %v6225 = vunpack.c.h.b16 %v3447
    %v6226 = vunpack.c.l.b16 %v3448
    %v6227 = vunpack.c.h.b16 %v3448
    %v6228 = vunpack.c.l.b16 %v3449
    %v6229 = vunpack.c.h.b16 %v3449
    %v6230 = vunpack.c.l.b16 %v3450
    %v6231 = vunpack.c.h.b16 %v3450
    %v6232 = vunpack.c.l.b16 %v3451
    %v6233 = vunpack.c.h.b16 %v3451
    %v6234 = vunpack.c.l.b16 %v3452
    %v6235 = vunpack.c.h.b16 %v3452
    %v6236 = vunpack.c.l.b16 %v3453
    %v6237 = vunpack.c.h.b16 %v3453
    %v6238 = vunpack.c.l.b16 %v3454
    %v6239 = vunpack.c.h.b16 %v3454
    %v6240 = vunpack.c.l.b16 %v3455
    %v6241 = vunpack.c.h.b16 %v3455
    %v6242 = vunpack.c.l.b16 %v3456
    %v6243 = vunpack.c.h.b16 %v3456
    %v6244 = vunpack.c.l.b16 %v3457
    %v6245 = vunpack.c.h.b16 %v3457
    %v6246 = vunpack.c.l.b16 %v3458
    %v6247 = vunpack.c.h.b16 %v3458
    %v6248 = vunpack.c.l.b16 %v3459
    %v6249 = vunpack.c.h.b16 %v3459
    %v6250 = vunpack.c.l.b16 %v3460
    %v6251 = vunpack.c.h.b16 %v3460
    %v6252 = vunpack.c.l.b16 %v3461
    %v6253 = vunpack.c.h.b16 %v3461
    %v6254 = vunpack.c.l.b16 %v3462
    %v6255 = vunpack.c.h.b16 %v3462
    %v6256 = vunpack.c.l.b16 %v3463
    %v6257 = vunpack.c.h.b16 %v3463
    %v6258 = vunpack.c.l.b16 %v3464
    %v6259 = vunpack.c.h.b16 %v3464
    %v6260 = vunpack.c.l.b16 %v3465
    %v6261 = vunpack.c.h.b16 %v3465
    %v6262 = vunpack.c.l.b16 %v3466
    %v6263 = vunpack.c.h.b16 %v3466
    %v6264 = vunpack.c.l.b16 %v3467
    %v6265 = vunpack.c.h.b16 %v3467
    %v6266 = vunpack.c.l.b16 %v3468
    %v6267 = vunpack.c.h.b16 %v3468
    %v6268 = vunpack.c.l.b16 %v3469
    %v6269 = vunpack.c.h.b16 %v3469
    %v6270 = vunpack.c.l.b16 %v3470
    %v6271 = vunpack.c.h.b16 %v3470
    %v6272 = vunpack.c.l.b16 %v3471
    %v6273 = vunpack.c.h.b16 %v3471
    %v6274 = vunpack.c.l.b16 %v3472
    %v6275 = vunpack.c.h.b16 %v3472
    %v6276 = vunpack.c.l.b16 %v3473
    %v6277 = vunpack.c.h.b16 %v3473
    %v6278 = vunpack.c.l.b16 %v3474
    %v6279 = vunpack.c.h.b16 %v3474
    %v6280 = vunpack.c.l.b16 %v3475
    %v6281 = vunpack.c.h.b16 %v3475
    %v6282 = vunpack.c.l.b16 %v3476
    %v6283 = vunpack.c.h.b16 %v3476
    %v6284 = vunpack.c.l.b16 %v3477
    %v6285 = vunpack.c.h.b16 %v3477
    %v6286 = vunpack.c.l.b16 %v3478
    %v6287 = vunpack.c.h.b16 %v3478
    %v6288 = vunpack.c.l.b16 %v3479
    %v6289 = vunpack.c.h.b16 %v3479
    %v6290 = vunpack.c.l.b16 %v3480
    %v6291 = vunpack.c.h.b16 %v3480
    %v6292 = vunpack.c.l.b16 %v3481
    %v6293 = vunpack.c.h.b16 %v3481
    %v6294 = vunpack.c.l.b16 %v3482
    %v6295 = vunpack.c.h.b16 %v3482
    %v6296 = vunpack.c.l.b16 %v3483
    %v6297 = vunpack.c.h.b16 %v3483
    %v6298 = vunpack.c.l.b16 %v3484
    %v6299 = vunpack.c.h.b16 %v3484
    %v6300 = vunpack.c.l.b16 %v3485
    %v6301 = vunpack.c.h.b16 %v3485
    %v6302 = vunpack.c.l.b16 %v3486
    %v6303 = vunpack.c.h.b16 %v3486
    %v6304 = vunpack.c.l.b16 %v3487
    %v6305 = vunpack.c.h.b16 %v3487
    %v6306 = vunpack.c.l.b16 %v3488
    %v6307 = vunpack.c.h.b16 %v3488
    %v6308 = vunpack.c.l.b16 %v3489
    %v6309 = vunpack.c.h.b16 %v3489
    %v6310 = vunpack.c.l.b16 %v3490
    %v6311 = vunpack.c.h.b16 %v3490
    %v6312 = vunpack.c.l.b16 %v3491
    %v6313 = vunpack.c.h.b16 %v3491
    %v6314 = vunpack.c.l.b16 %v3492
    %v6315 = vunpack.c.h.b16 %v3492
    %v6316 = vunpack.c.l.b16 %v3493
    %v6317 = vunpack.c.h.b16 %v3493
    %v6318 = vunpack.c.l.b16 %v3494
    %v6319 = vunpack.c.h.b16 %v3494
    %v6320 = vunpack.c.l.b16 %v3495
    %v6321 = vunpack.c.h.b16 %v3495
    %v6322 = vunpack.c.l.b16 %v3496
    %v6323 = vunpack.c.h.b16 %v3496
    %v6324 = vunpack.c.l.b16 %v3497
    %v6325 = vunpack.c.h.b16 %v3497
    %v6326 = vunpack.c.l.b16 %v3498
    %v6327 = vunpack.c.h.b16 %v3498
    %v6328 = vunpack.c.l.b16 %v3499
    %v6329 = vunpack.c.h.b16 %v3499
    %v6330 = vunpack.c.l.b16 %v3500
    %v6331 = vunpack.c.h.b16 %v3500
    %v6332 = vunpack.c.l.b16 %v3501
    %v6333 = vunpack.c.h.b16 %v3501
    %v6334 = vunpack.c.l.b16 %v3502
    %v6335 = vunpack.c.h.b16 %v3502
    %v6336 = vunpack.c.l.b16 %v3503
    %v6337 = vunpack.c.h.b16 %v3503
    %v6338 = vunpack.c.l.b16 %v3504
    %v6339 = vunpack.c.h.b16 %v3504
    %v6340 = vunpack.c.l.b16 %v3505
    %v6341 = vunpack.c.h.b16 %v3505
    %v6342 = vunpack.c.l.b16 %v3506
    %v6343 = vunpack.c.h.b16 %v3506
    %v6344 = vunpack.c.l.b16 %v3507
    %v6345 = vunpack.c.h.b16 %v3507
    %v6346 = vunpack.c.l.b16 %v3508
    %v6347 = vunpack.c.h.b16 %v3508
    %v6348 = vunpack.c.l.b16 %v3509
    %v6349 = vunpack.c.h.b16 %v3509
    %v6350 = vunpack.c.l.b16 %v3510
    %v6351 = vunpack.c.h.b16 %v3510
    %v6352 = vunpack.c.l.b16 %v3511
    %v6353 = vunpack.c.h.b16 %v3511
    %v6354 = vunpack.c.l.b16 %v3512
    %v6355 = vunpack.c.h.b16 %v3512
    %v6356 = vunpack.c.l.b16 %v3513
    %v6357 = vunpack.c.h.b16 %v3513
    %v6358 = vunpack.c.l.b16 %v3514
    %v6359 = vunpack.c.h.b16 %v3514
    %v6360 = vunpack.c.l.b16 %v3515
    %v6361 = vunpack.c.h.b16 %v3515
    %v6362 = vunpack.c.l.b16 %v3516
    %v6363 = vunpack.c.h.b16 %v3516
    %v6364 = vunpack.c.l.b16 %v3517
    %v6365 = vunpack.c.h.b16 %v3517
    %v6366 = vunpack.c.l.b16 %v3518
    %v6367 = vunpack.c.h.b16 %v3518
    %v6368 = vunpack.c.l.b16 %v3519
    %v6369 = vunpack.c.h.b16 %v3519
    %v6370 = vunpack.c.l.b16 %v3520
    %v6371 = vunpack.c.h.b16 %v3520
    %v6372 = vunpack.c.l.b16 %v3521
    %v6373 = vunpack.c.h.b16 %v3521
    %v6374 = vunpack.c.l.b16 %v3522
    %v6375 = vunpack.c.h.b16 %v3522
    %v6376 = vunpack.c.l.b16 %v3523
    %v6377 = vunpack.c.h.b16 %v3523
    %v6378 = vunpack.c.l.b16 %v3524
    %v6379 = vunpack.c.h.b16 %v3524
    %v6380 = vunpack.c.l.b16 %v3525
    %v6381 = vunpack.c.h.b16 %v3525
    %v6382 = vunpack.c.l.b16 %v3526
    %v6383 = vunpack.c.h.b16 %v3526
    %v6384 = vunpack.c.l.b16 %v3527
    %v6385 = vunpack.c.h.b16 %v3527
    %v6386 = vunpack.c.l.b16 %v3528
    %v6387 = vunpack.c.h.b16 %v3528
    %v6388 = vunpack.c.l.b16 %v3529
    %v6389 = vunpack.c.h.b16 %v3529
    %v6390 = vunpack.c.l.b16 %v3530
    %v6391 = vunpack.c.h.b16 %v3530
    %v6392 = vunpack.c.l.b16 %v3531
    %v6393 = vunpack.c.h.b16 %v3531
    %v6394 = vunpack.c.l.b16 %v3532
    %v6395 = vunpack.c.h.b16 %v3532
    %v6396 = vunpack.c.l.b16 %v3533
    %v6397 = vunpack.c.h.b16 %v3533
    %v6398 = vunpack.c.l.b16 %v3534
    %v6399 = vunpack.c.h.b16 %v3534
    %v6400 = vunpack.c.l.b16 %v3535
    %v6401 = vunpack.c.h.b16 %v3535
    %v6402 = vunpack.c.l.b16 %v3536
    %v6403 = vunpack.c.h.b16 %v3536
    %v6404 = vunpack.c.l.b16 %v3537
    %v6405 = vunpack.c.h.b16 %v3537
    %v6406 = vunpack.c.l.b16 %v3538
    %v6407 = vunpack.c.h.b16 %v3538
    %v6408 = vunpack.c.l.b16 %v3539
    %v6409 = vunpack.c.h.b16 %v3539
    %v6410 = vunpack.c.l.b16 %v3540
    %v6411 = vunpack.c.h.b16 %v3540
    %v6412 = vunpack.c.l.b16 %v3541
    %v6413 = vunpack.c.h.b16 %v3541
    %v6414 = vunpack.c.l.b16 %v3542
    %v6415 = vunpack.c.h.b16 %v3542
    %v6416 = vunpack.c.l.b16 %v3543
    %v6417 = vunpack.c.h.b16 %v3543
    %v6418 = vunpack.c.l.b16 %v3544
    %v6419 = vunpack.c.h.b16 %v3544
    %v6420 = vunpack.c.l.b16 %v3545
    %v6421 = vunpack.c.h.b16 %v3545
    %v6422 = vunpack.c.l.b16 %v3546
    %v6423 = vunpack.c.h.b16 %v3546
    %v6424 = vunpack.c.l.b16 %v3547
    %v6425 = vunpack.c.h.b16 %v3547
    %v6426 = vunpack.c.l.b16 %v3548
    %v6427 = vunpack.c.h.b16 %v3548
    %v6428 = vunpack.c.l.b16 %v3549
    %v6429 = vunpack.c.h.b16 %v3549
    %v6430 = vunpack.c.l.b16 %v3550
    %v6431 = vunpack.c.h.b16 %v3550
    %v6432 = vunpack.c.l.b16 %v3551
    %v6433 = vunpack.c.h.b16 %v3551
    %v6434 = vunpack.c.l.b16 %v3552
    %v6435 = vunpack.c.h.b16 %v3552
    %v6436 = vunpack.c.l.b16 %v3553
    %v6437 = vunpack.c.h.b16 %v3553
    %v6438 = vunpack.c.l.b16 %v3554
    %v6439 = vunpack.c.h.b16 %v3554
    %v6440 = vunpack.c.l.b16 %v3555
    %v6441 = vunpack.c.h.b16 %v3555
    %v6442 = vunpack.c.l.b16 %v3556
    %v6443 = vunpack.c.h.b16 %v3556
    %v6444 = vunpack.c.l.b16 %v3557
    %v6445 = vunpack.c.h.b16 %v3557
    %v6446 = vunpack.c.l.b16 %v3558
    %v6447 = vunpack.c.h.b16 %v3558
    %v6448 = vunpack.c.l.b16 %v3559
    %v6449 = vunpack.c.h.b16 %v3559
    %v6450 = vunpack.c.l.b16 %v3560
    %v6451 = vunpack.c.h.b16 %v3560
    %v6452 = vunpack.c.l.b16 %v3561
    %v6453 = vunpack.c.h.b16 %v3561
    %v6454 = vunpack.c.l.b16 %v3562
    %v6455 = vunpack.c.h.b16 %v3562
    %v6456 = vunpack.c.l.b16 %v3563
    %v6457 = vunpack.c.h.b16 %v3563
    %v6458 = vunpack.c.l.b16 %v3564
    %v6459 = vunpack.c.h.b16 %v3564
    %v6460 = vunpack.c.l.b16 %v3565
    %v6461 = vunpack.c.h.b16 %v3565
    %v6462 = vunpack.c.l.b16 %v3566
    %v6463 = vunpack.c.h.b16 %v3566
    %v6464 = vunpack.c.l.b16 %v3567
    %v6465 = vunpack.c.h.b16 %v3567
    %v6466 = vunpack.c.l.b16 %v3568
    %v6467 = vunpack.c.h.b16 %v3568
    %v6468 = vunpack.c.l.b16 %v3569
    %v6469 = vunpack.c.h.b16 %v3569
    %v6470 = vunpack.c.l.b16 %v3570
    %v6471 = vunpack.c.h.b16 %v3570
    %v6472 = vunpack.c.l.b16 %v3571
    %v6473 = vunpack.c.h.b16 %v3571
    %v6474 = vunpack.c.l.b16 %v3572
    %v6475 = vunpack.c.h.b16 %v3572
    %v6476 = vunpack.c.l.b16 %v3573
    %v6477 = vunpack.c.h.b16 %v3573
    %v6478 = vunpack.c.l.b16 %v3574
    %v6479 = vunpack.c.h.b16 %v3574
    %v6480 = vunpack.c.l.b16 %v3575
    %v6481 = vunpack.c.h.b16 %v3575
    %v6482 = vunpack.c.l.b16 %v3576
    %v6483 = vunpack.c.h.b16 %v3576
    %v6484 = vunpack.c.l.b16 %v3577
    %v6485 = vunpack.c.h.b16 %v3577
    %v6486 = vunpack.c.l.b16 %v3578
    %v6487 = vunpack.c.h.b16 %v3578
    %v6488 = vunpack.c.l.b16 %v3579
    %v6489 = vunpack.c.h.b16 %v3579
    %v6490 = vunpack.c.l.b16 %v3580
    %v6491 = vunpack.c.h.b16 %v3580
    %v6492 = vunpack.c.l.b16 %v3581
    %v6493 = vunpack.c.h.b16 %v3581
    %v6494 = vunpack.c.l.b16 %v3582
    %v6495 = vunpack.c.h.b16 %v3582
    %v6496 = vunpack.c.l.b16 %v3583
    %v6497 = vunpack.c.h.b16 %v3583
    %v6498 = vunpack.c.l.b16 %v3584
    %v6499 = vunpack.c.h.b16 %v3584
    %v6500 = vunpack.c.l.b16 %v3585
    %v6501 = vunpack.c.h.b16 %v3585
    %v6502 = vunpack.c.l.b16 %v3586
    %v6503 = vunpack.c.h.b16 %v3586
    %v6504 = vunpack.c.l.b16 %v3587
    %v6505 = vunpack.c.h.b16 %v3587
    %v6506 = vunpack.c.l.b16 %v3588
    %v6507 = vunpack.c.h.b16 %v3588
    %v6508 = vunpack.c.l.b16 %v3589
    %v6509 = vunpack.c.h.b16 %v3589
    %v6510 = vunpack.c.l.b16 %v3590
    %v6511 = vunpack.c.h.b16 %v3590
    %v6512 = vunpack.c.l.b16 %v3591
    %v6513 = vunpack.c.h.b16 %v3591
    %v6514 = vunpack.c.l.b16 %v3592
    %v6515 = vunpack.c.h.b16 %v3592
    %v6516 = vunpack.c.l.b16 %v3593
    %v6517 = vunpack.c.h.b16 %v3593
    %v6518 = vunpack.c.l.b16 %v3594
    %v6519 = vunpack.c.h.b16 %v3594
    %v6520 = vunpack.c.l.b16 %v3595
    %v6521 = vunpack.c.h.b16 %v3595
    %v6522 = vunpack.c.l.b16 %v3596
    %v6523 = vunpack.c.h.b16 %v3596
    %v6524 = vunpack.c.l.b16 %v3597
    %v6525 = vunpack.c.h.b16 %v3597
    %v6526 = vunpack.c.l.b16 %v3598
    %v6527 = vunpack.c.h.b16 %v3598
    %v6528 = vunpack.c.l.b16 %v3599
    %v6529 = vunpack.c.h.b16 %v3599
    %v6530 = vunpack.c.l.b16 %v3600
    %v6531 = vunpack.c.h.b16 %v3600
    %v6532 = vunpack.c.l.b16 %v3601
    %v6533 = vunpack.c.h.b16 %v3601
    %v6534 = vunpack.c.l.b16 %v3602
    %v6535 = vunpack.c.h.b16 %v3602
    %v6536 = vunpack.c.l.b16 %v3603
    %v6537 = vunpack.c.h.b16 %v3603
    %v6538 = vunpack.c.l.b16 %v3604
    %v6539 = vunpack.c.h.b16 %v3604
    %v6540 = vunpack.c.l.b16 %v3605
    %v6541 = vunpack.c.h.b16 %v3605
    %v6542 = vunpack.c.l.b16 %v3606
    %v6543 = vunpack.c.h.b16 %v3606
    %v6544 = vunpack.c.l.b16 %v3607
    %v6545 = vunpack.c.h.b16 %v3607
    %v6546 = vunpack.c.l.b16 %v3608
    %v6547 = vunpack.c.h.b16 %v3608
    %v6548 = vunpack.c.l.b16 %v3609
    %v6549 = vunpack.c.h.b16 %v3609
    %v6550 = vunpack.c.l.b16 %v3610
    %v6551 = vunpack.c.h.b16 %v3610
    %v6552 = vunpack.c.l.b16 %v3611
    %v6553 = vunpack.c.h.b16 %v3611
    %v6554 = vunpack.c.l.b16 %v3612
    %v6555 = vunpack.c.h.b16 %v3612
    %v6556 = vunpack.c.l.b16 %v3613
    %v6557 = vunpack.c.h.b16 %v3613
    %v6558 = vunpack.c.l.b16 %v3614
    %v6559 = vunpack.c.h.b16 %v3614
    %v6560 = vunpack.c.l.b16 %v3615
    %v6561 = vunpack.c.h.b16 %v3615
    %v6562 = vunpack.c.l.b16 %v3616
    %v6563 = vunpack.c.h.b16 %v3616
    %v6564 = vunpack.c.l.b16 %v3617
    %v6565 = vunpack.c.h.b16 %v3617
    %v6566 = vunpack.c.l.b16 %v3618
    %v6567 = vunpack.c.h.b16 %v3618
    %v6568 = vunpack.c.l.b16 %v3619
    %v6569 = vunpack.c.h.b16 %v3619
    %v6570 = vunpack.c.l.b16 %v3620
    %v6571 = vunpack.c.h.b16 %v3620
    %v6572 = vunpack.c.l.b16 %v3621
    %v6573 = vunpack.c.h.b16 %v3621
    %v6574 = vunpack.c.l.b16 %v3622
    %v6575 = vunpack.c.h.b16 %v3622
    %v6576 = vunpack.c.l.b16 %v3623
    %v6577 = vunpack.c.h.b16 %v3623
    %v6578 = vunpack.c.l.b16 %v3624
    %v6579 = vunpack.c.h.b16 %v3624
    %v6580 = vunpack.c.l.b16 %v3625
    %v6581 = vunpack.c.h.b16 %v3625
    %v6582 = vunpack.c.l.b16 %v3626
    %v6583 = vunpack.c.h.b16 %v3626
    %v6584 = vunpack.c.l.b16 %v3627
    %v6585 = vunpack.c.h.b16 %v3627
    %v6586 = vunpack.c.l.b16 %v3628
    %v6587 = vunpack.c.h.b16 %v3628
    %v6588 = vunpack.c.l.b16 %v3629
    %v6589 = vunpack.c.h.b16 %v3629
    %v6590 = vunpack.c.l.b16 %v3630
    %v6591 = vunpack.c.h.b16 %v3630
    %v6592 = vunpack.c.l.b16 %v3631
    %v6593 = vunpack.c.h.b16 %v3631
    %v6594 = vunpack.c.l.b16 %v3632
    %v6595 = vunpack.c.h.b16 %v3632
    %v6596 = vunpack.c.l.b16 %v3633
    %v6597 = vunpack.c.h.b16 %v3633
    %v6598 = vunpack.c.l.b16 %v3634
    %v6599 = vunpack.c.h.b16 %v3634
    %v6600 = vunpack.c.l.b16 %v3635
    %v6601 = vunpack.c.h.b16 %v3635
    %v6602 = vunpack.c.l.b16 %v3636
    %v6603 = vunpack.c.h.b16 %v3636
    %v6604 = vunpack.c.l.b16 %v3637
    %v6605 = vunpack.c.h.b16 %v3637
    %v6606 = vunpack.c.l.b16 %v3638
    %v6607 = vunpack.c.h.b16 %v3638
    %v6608 = vunpack.c.l.b16 %v3639
    %v6609 = vunpack.c.h.b16 %v3639
    %v6610 = vunpack.c.l.b16 %v3640
    %v6611 = vunpack.c.h.b16 %v3640
    %v6612 = vunpack.c.l.b16 %v3641
    %v6613 = vunpack.c.h.b16 %v3641
    %v6614 = vunpack.c.l.b16 %v3642
    %v6615 = vunpack.c.h.b16 %v3642
    %v6616 = vunpack.c.l.b16 %v3643
    %v6617 = vunpack.c.h.b16 %v3643
    %v6618 = vunpack.c.l.b16 %v3644
    %v6619 = vunpack.c.h.b16 %v3644
    %v6620 = vunpack.c.l.b16 %v3645
    %v6621 = vunpack.c.h.b16 %v3645
    %v6622 = vunpack.c.l.b16 %v3646
    %v6623 = vunpack.c.h.b16 %v3646
    %v6624 = vunpack.c.l.b16 %v3647
    %v6625 = vunpack.c.h.b16 %v3647
    %v6626 = vunpack.c.l.b16 %v3648
    %v6627 = vunpack.c.h.b16 %v3648
    %v6628 = vunpack.c.l.b16 %v3649
    %v6629 = vunpack.c.h.b16 %v3649
    %v6630 = vunpack.c.l.b16 %v3650
    %v6631 = vunpack.c.h.b16 %v3650
    %v6632 = vunpack.c.l.b16 %v3651
    %v6633 = vunpack.c.h.b16 %v3651
    %v6634 = vunpack.c.l.b16 %v3652
    %v6635 = vunpack.c.h.b16 %v3652
    %v6636 = vunpack.c.l.b16 %v3653
    %v6637 = vunpack.c.h.b16 %v3653
    %v6638 = vunpack.c.l.b16 %v3654
    %v6639 = vunpack.c.h.b16 %v3654
    %v6640 = vunpack.c.l.b16 %v3655
    %v6641 = vunpack.c.h.b16 %v3655
    %v6642 = vunpack.c.l.b16 %v3656
    %v6643 = vunpack.c.h.b16 %v3656
    %v6644 = vunpack.c.l.b16 %v3657
    %v6645 = vunpack.c.h.b16 %v3657
    %v6646 = vunpack.c.l.b16 %v3658
    %v6647 = vunpack.c.h.b16 %v3658
    %v6648 = vunpack.c.l.b16 %v3659
    %v6649 = vunpack.c.h.b16 %v3659
    %v6650 = vunpack.c.l.b16 %v3660
    %v6651 = vunpack.c.h.b16 %v3660
    %v6652 = vunpack.c.l.b16 %v3661
    %v6653 = vunpack.c.h.b16 %v3661
    %v6654 = vunpack.c.l.b16 %v3662
    %v6655 = vunpack.c.h.b16 %v3662
    %v6656 = vunpack.c.l.b16 %v3663
    %v6657 = vunpack.c.h.b16 %v3663
    %v6658 = vunpack.c.l.b16 %v3664
    %v6659 = vunpack.c.h.b16 %v3664
    %v6660 = vunpack.c.l.b16 %v3665
    %v6661 = vunpack.c.h.b16 %v3665
    %v6662 = vunpack.c.l.b16 %v3666
    %v6663 = vunpack.c.h.b16 %v3666
    %v6664 = vunpack.c.l.b16 %v3667
    %v6665 = vunpack.c.h.b16 %v3667
    %v6666 = vunpack.c.l.b16 %v3668
    %v6667 = vunpack.c.h.b16 %v3668
    %v6668 = vunpack.c.l.b16 %v3669
    %v6669 = vunpack.c.h.b16 %v3669
    %v6670 = vunpack.c.l.b16 %v3670
    %v6671 = vunpack.c.h.b16 %v3670
    %v6672 = vunpack.c.l.b16 %v3671
    %v6673 = vunpack.c.h.b16 %v3671
    %v6674 = vunpack.c.l.b16 %v3672
    %v6675 = vunpack.c.h.b16 %v3672
    %v6676 = vunpack.c.l.b16 %v3673
    %v6677 = vunpack.c.h.b16 %v3673
    %v6678 = vunpack.c.l.b16 %v3674
    %v6679 = vunpack.c.h.b16 %v3674
    %v6680 = vunpack.c.l.b16 %v3675
    %v6681 = vunpack.c.h.b16 %v3675
    %v6682 = vunpack.c.l.b16 %v3676
    %v6683 = vunpack.c.h.b16 %v3676
    %v6684 = vunpack.c.l.b16 %v3677
    %v6685 = vunpack.c.h.b16 %v3677
    %v6686 = vunpack.c.l.b16 %v3678
    %v6687 = vunpack.c.h.b16 %v3678
    %v6688 = vunpack.c.l.b16 %v3679
    %v6689 = vunpack.c.h.b16 %v3679
    %v6690 = vunpack.c.l.b16 %v3680
    %v6691 = vunpack.c.h.b16 %v3680
    %v6692 = vunpack.c.l.b16 %v3681
    %v6693 = vunpack.c.h.b16 %v3681
    %v6694 = vunpack.c.l.b16 %v3682
    %v6695 = vunpack.c.h.b16 %v3682
    %v6696 = vunpack.c.l.b16 %v3683
    %v6697 = vunpack.c.h.b16 %v3683
    %v6698 = vunpack.c.l.b16 %v3684
    %v6699 = vunpack.c.h.b16 %v3684
    %v6700 = vunpack.c.l.b16 %v3685
    %v6701 = vunpack.c.h.b16 %v3685
    %v6702 = vunpack.c.l.b16 %v3686
    %v6703 = vunpack.c.h.b16 %v3686
    %v6704 = vunpack.c.l.b16 %v3687
    %v6705 = vunpack.c.h.b16 %v3687
    %v6706 = vunpack.c.l.b16 %v3688
    %v6707 = vunpack.c.h.b16 %v3688
    %v6708 = vunpack.c.l.b16 %v3689
    %v6709 = vunpack.c.h.b16 %v3689
    %v6710 = vunpack.c.l.b16 %v3690
    %v6711 = vunpack.c.h.b16 %v3690
    %v6712 = vunpack.c.l.b16 %v3691
    %v6713 = vunpack.c.h.b16 %v3691
    %v6714 = vunpack.c.l.b16 %v3692
    %v6715 = vunpack.c.h.b16 %v3692
    %v6716 = vunpack.c.l.b16 %v3693
    %v6717 = vunpack.c.h.b16 %v3693
    %v6718 = vunpack.c.l.b16 %v3694
    %v6719 = vunpack.c.h.b16 %v3694
    %v6720 = vunpack.c.l.b16 %v3695
    %v6721 = vunpack.c.h.b16 %v3695
    %v6722 = vunpack.c.l.b16 %v3696
    %v6723 = vunpack.c.h.b16 %v3696
    %v6724 = vunpack.c.l.b16 %v3697
    %v6725 = vunpack.c.h.b16 %v3697
    %v6726 = vunpack.c.l.b16 %v3698
    %v6727 = vunpack.c.h.b16 %v3698
    %v6728 = vunpack.c.l.b16 %v3699
    %v6729 = vunpack.c.h.b16 %v3699
    %v6730 = vunpack.c.l.b16 %v3700
    %v6731 = vunpack.c.h.b16 %v3700
    %v6732 = vunpack.c.l.b16 %v3701
    %v6733 = vunpack.c.h.b16 %v3701
    %v6734 = vunpack.c.l.b16 %v3702
    %v6735 = vunpack.c.h.b16 %v3702
    %v6736 = vunpack.c.l.b16 %v3703
    %v6737 = vunpack.c.h.b16 %v3703
    %v6738 = vunpack.c.l.b16 %v3704
    %v6739 = vunpack.c.h.b16 %v3704
    %v6740 = vunpack.c.l.b16 %v3705
    %v6741 = vunpack.c.h.b16 %v3705
    %v6742 = vunpack.c.l.b16 %v3706
    %v6743 = vunpack.c.h.b16 %v3706
    %v6744 = vunpack.c.l.b16 %v3707
    %v6745 = vunpack.c.h.b16 %v3707
    %v6746 = vunpack.c.l.b16 %v3708
    %v6747 = vunpack.c.h.b16 %v3708
    %v6748 = vunpack.c.l.b16 %v3709
    %v6749 = vunpack.c.h.b16 %v3709
    %v6750 = vunpack.c.l.b16 %v3710
    %v6751 = vunpack.c.h.b16 %v3710
    %v6752 = vunpack.c.l.b16 %v3711
    %v6753 = vunpack.c.h.b16 %v3711
    %v6754 = vunpack.c.l.b16 %v3712
    %v6755 = vunpack.c.h.b16 %v3712
    %v6756 = vunpack.c.l.b16 %v3713
    %v6757 = vunpack.c.h.b16 %v3713
    %v6758 = vunpack.c.l.b16 %v3714
    %v6759 = vunpack.c.h.b16 %v3714
    %v6760 = vunpack.c.l.b16 %v3715
    %v6761 = vunpack.c.h.b16 %v3715
    %v6762 = vunpack.c.l.b16 %v3716
    %v6763 = vunpack.c.h.b16 %v3716
    %v6764 = vunpack.c.l.b16 %v3717
    %v6765 = vunpack.c.h.b16 %v3717
    %v6766 = vunpack.c.l.b16 %v3718
    %v6767 = vunpack.c.h.b16 %v3718
    %v6768 = vunpack.c.l.b16 %v3719
    %v6769 = vunpack.c.h.b16 %v3719
    %v6770 = vunpack.c.l.b16 %v3720
    %v6771 = vunpack.c.h.b16 %v3720
    %v6772 = vunpack.c.l.b16 %v3721
    %v6773 = vunpack.c.h.b16 %v3721
    %v6774 = vunpack.c.l.b16 %v3722
    %v6775 = vunpack.c.h.b16 %v3722
    %v6776 = vunpack.c.l.b16 %v3723
    %v6777 = vunpack.c.h.b16 %v3723
    %v6778 = vunpack.c.l.b16 %v3724
    %v6779 = vunpack.c.h.b16 %v3724
    %v6780 = vunpack.c.l.b16 %v3725
    %v6781 = vunpack.c.h.b16 %v3725
    %v6782 = vunpack.c.l.b16 %v3726
    %v6783 = vunpack.c.h.b16 %v3726
    %v6784 = vunpack.c.l.b16 %v3727
    %v6785 = vunpack.c.h.b16 %v3727
    %v6786 = vunpack.c.l.b16 %v3728
    %v6787 = vunpack.c.h.b16 %v3728
    %v6788 = vunpack.c.l.b16 %v3729
    %v6789 = vunpack.c.h.b16 %v3729
    %v6790 = vunpack.c.l.b16 %v3730
    %v6791 = vunpack.c.h.b16 %v3730
    %v6792 = vunpack.c.l.b16 %v3731
    %v6793 = vunpack.c.h.b16 %v3731
    %v6794 = vunpack.c.l.b16 %v3732
    %v6795 = vunpack.c.h.b16 %v3732
    %v6796 = vunpack.c.l.b16 %v3733
    %v6797 = vunpack.c.h.b16 %v3733
    %v6798 = vunpack.c.l.b16 %v3734
    %v6799 = vunpack.c.h.b16 %v3734
    %v6800 = vunpack.c.l.b16 %v3735
    %v6801 = vunpack.c.h.b16 %v3735
    %v6802 = vunpack.c.l.b16 %v3736
    %v6803 = vunpack.c.h.b16 %v3736
    %v6804 = vunpack.c.l.b16 %v3737
    %v6805 = vunpack.c.h.b16 %v3737
    %v6806 = vunpack.c.l.b16 %v3738
    %v6807 = vunpack.c.h.b16 %v3738
    %v6808 = vunpack.c.l.b16 %v3739
    %v6809 = vunpack.c.h.b16 %v3739
    %v6810 = vunpack.c.l.b16 %v3740
    %v6811 = vunpack.c.h.b16 %v3740
    %v6812 = vunpack.c.l.b16 %v3741
    %v6813 = vunpack.c.h.b16 %v3741
    %v6814 = vunpack.c.l.b16 %v3742
    %v6815 = vunpack.c.h.b16 %v3742
    %v6816 = vunpack.c.l.b16 %v3743
    %v6817 = vunpack.c.h.b16 %v3743
    %v6818 = vunpack.c.l.b16 %v3744
    %v6819 = vunpack.c.h.b16 %v3744
    %v6820 = vunpack.c.l.b16 %v3745
    %v6821 = vunpack.c.h.b16 %v3745
    %v6822 = vunpack.c.l.b16 %v3746
    %v6823 = vunpack.c.h.b16 %v3746
    %v6824 = vunpack.c.l.b16 %v3747
    %v6825 = vunpack.c.h.b16 %v3747
    %v6826 = vunpack.c.l.b16 %v3748
    %v6827 = vunpack.c.h.b16 %v3748
    %v6828 = vunpack.c.l.b16 %v3749
    %v6829 = vunpack.c.h.b16 %v3749
    %v6830 = vunpack.c.l.b16 %v3750
    %v6831 = vunpack.c.h.b16 %v3750
    %v6832 = vunpack.c.l.b16 %v3751
    %v6833 = vunpack.c.h.b16 %v3751
    %v6834 = vunpack.c.l.b16 %v3752
    %v6835 = vunpack.c.h.b16 %v3752
    %v6836 = vunpack.c.l.b16 %v3753
    %v6837 = vunpack.c.h.b16 %v3753
    %v6838 = vunpack.c.l.b16 %v3754
    %v6839 = vunpack.c.h.b16 %v3754
    %v6840 = vunpack.c.l.b16 %v3755
    %v6841 = vunpack.c.h.b16 %v3755
    %v6842 = vunpack.c.l.b16 %v3756
    %v6843 = vunpack.c.h.b16 %v3756
    %v6844 = vunpack.c.l.b16 %v3757
    %v6845 = vunpack.c.h.b16 %v3757
    %v6846 = vunpack.c.l.b16 %v3758
    %v6847 = vunpack.c.h.b16 %v3758
    %v6848 = vunpack.c.l.b16 %v3759
    %v6849 = vunpack.c.h.b16 %v3759
    %v6850 = vunpack.c.l.b16 %v3760
    %v6851 = vunpack.c.h.b16 %v3760
    %v6852 = vunpack.c.l.b16 %v3761
    %v6853 = vunpack.c.h.b16 %v3761
    %v6854 = vunpack.c.l.b16 %v3762
    %v6855 = vunpack.c.h.b16 %v3762
    %v6856 = vunpack.c.l.b16 %v3763
    %v6857 = vunpack.c.h.b16 %v3763
    %v6858 = vunpack.c.l.b16 %v3764
    %v6859 = vunpack.c.h.b16 %v3764
    %v6860 = vunpack.c.l.b16 %v3765
    %v6861 = vunpack.c.h.b16 %v3765
    %v6862 = vunpack.c.l.b16 %v3766
    %v6863 = vunpack.c.h.b16 %v3766
    %v6864 = vunpack.c.l.b16 %v3767
    %v6865 = vunpack.c.h.b16 %v3767
    %v6866 = vunpack.c.l.b16 %v3768
    %v6867 = vunpack.c.h.b16 %v3768
    %v6868 = vunpack.c.l.b16 %v3769
    %v6869 = vunpack.c.h.b16 %v3769
    %v6870 = vunpack.c.l.b16 %v3770
    %v6871 = vunpack.c.h.b16 %v3770
    %v6872 = vunpack.c.l.b16 %v3771
    %v6873 = vunpack.c.h.b16 %v3771
    %v6874 = vunpack.c.l.b16 %v3772
    %v6875 = vunpack.c.h.b16 %v3772
    %v6876 = vunpack.c.l.b16 %v3773
    %v6877 = vunpack.c.h.b16 %v3773
    %v6878 = vunpack.c.l.b16 %v3774
    %v6879 = vunpack.c.h.b16 %v3774
    %v6880 = vunpack.c.l.b16 %v3775
    %v6881 = vunpack.c.h.b16 %v3775
    %v6882 = vunpack.c.l.b16 %v3776
    %v6883 = vunpack.c.h.b16 %v3776
    %v6884 = vunpack.c.l.b16 %v3777
    %v6885 = vunpack.c.h.b16 %v3777
    %v6886 = vunpack.c.l.b16 %v3778
    %v6887 = vunpack.c.h.b16 %v3778
    %v6888 = vunpack.c.l.b16 %v3779
    %v6889 = vunpack.c.h.b16 %v3779
    %v6890 = vunpack.c.l.b16 %v3780
    %v6891 = vunpack.c.h.b16 %v3780
    %v6892 = vunpack.c.l.b16 %v3781
    %v6893 = vunpack.c.h.b16 %v3781
    %v6894 = vunpack.c.l.b16 %v3782
    %v6895 = vunpack.c.h.b16 %v3782
    %v6896 = vunpack.c.l.b16 %v3783
    %v6897 = vunpack.c.h.b16 %v3783
    %v6898 = vunpack.c.l.b16 %v3784
    %v6899 = vunpack.c.h.b16 %v3784
    %v6900 = vunpack.c.l.b16 %v3785
    %v6901 = vunpack.c.h.b16 %v3785
    %v6902 = vunpack.c.l.b16 %v3786
    %v6903 = vunpack.c.h.b16 %v3786
    %v6904 = vunpack.c.l.b16 %v3787
    %v6905 = vunpack.c.h.b16 %v3787
    %v6906 = vunpack.c.l.b16 %v3788
    %v6907 = vunpack.c.h.b16 %v3788
    %v6908 = vunpack.c.l.b16 %v3789
    %v6909 = vunpack.c.h.b16 %v3789
    %v6910 = vunpack.c.l.b16 %v3790
    %v6911 = vunpack.c.h.b16 %v3790
    %v6912 = vunpack.c.l.b16 %v3791
    %v6913 = vunpack.c.h.b16 %v3791
    %v6914 = vunpack.c.l.b16 %v3792
    %v6915 = vunpack.c.h.b16 %v3792
    %v6916 = vunpack.c.l.b16 %v3793
    %v6917 = vunpack.c.h.b16 %v3793
    %v6918 = vunpack.c.l.b16 %v3794
    %v6919 = vunpack.c.h.b16 %v3794
    %v6920 = vunpack.c.l.b16 %v3795
    %v6921 = vunpack.c.h.b16 %v3795
    %v6922 = vunpack.c.l.b16 %v3796
    %v6923 = vunpack.c.h.b16 %v3796
    %v6924 = vunpack.c.l.b16 %v3797
    %v6925 = vunpack.c.h.b16 %v3797
    %v6926 = vunpack.c.l.b16 %v3798
    %v6927 = vunpack.c.h.b16 %v3798
    %v6928 = vunpack.c.l.b16 %v3799
    %v6929 = vunpack.c.h.b16 %v3799
    %v6930 = vunpack.c.l.b16 %v3800
    %v6931 = vunpack.c.h.b16 %v3800
    %v6932 = vunpack.c.l.b16 %v3801
    %v6933 = vunpack.c.h.b16 %v3801
    %v6934 = vunpack.c.l.b16 %v3802
    %v6935 = vunpack.c.h.b16 %v3802
    %v6936 = vunpack.c.l.b16 %v3803
    %v6937 = vunpack.c.h.b16 %v3803
    %v6938 = vunpack.c.l.b16 %v3804
    %v6939 = vunpack.c.h.b16 %v3804
    %v6940 = vunpack.c.l.b16 %v3805
    %v6941 = vunpack.c.h.b16 %v3805
    %v6942 = vunpack.c.l.b16 %v3806
    %v6943 = vunpack.c.h.b16 %v3806
    %v6944 = vunpack.c.l.b16 %v3807
    %v6945 = vunpack.c.h.b16 %v3807
    %v6946 = vunpack.c.l.b16 %v3808
    %v6947 = vunpack.c.h.b16 %v3808
    %v6948 = vunpack.c.l.b16 %v3809
    %v6949 = vunpack.c.h.b16 %v3809
    %v6950 = vunpack.c.l.b16 %v3810
    %v6951 = vunpack.c.h.b16 %v3810
    %v6952 = vunpack.c.l.b16 %v3811
    %v6953 = vunpack.c.h.b16 %v3811
    %v6954 = vunpack.c.l.b16 %v3812
    %v6955 = vunpack.c.h.b16 %v3812
    %v6956 = vunpack.c.l.b16 %v3813
    %v6957 = vunpack.c.h.b16 %v3813
    %v6958 = vunpack.c.l.b16 %v3814
    %v6959 = vunpack.c.h.b16 %v3814
    %v6960 = vunpack.c.l.b16 %v3815
    %v6961 = vunpack.c.h.b16 %v3815
    %v6962 = vunpack.c.l.b16 %v3816
    %v6963 = vunpack.c.h.b16 %v3816
    %v6964 = vunpack.c.l.b16 %v3817
    %v6965 = vunpack.c.h.b16 %v3817
    %v6966 = vunpack.c.l.b16 %v3818
    %v6967 = vunpack.c.h.b16 %v3818
    %v6968 = vunpack.c.l.b16 %v3819
    %v6969 = vunpack.c.h.b16 %v3819
    %v6970 = vunpack.c.l.b16 %v3820
    %v6971 = vunpack.c.h.b16 %v3820
    %v6972 = vunpack.c.l.b16 %v3821
    %v6973 = vunpack.c.h.b16 %v3821
    %v6974 = vunpack.c.l.b16 %v3822
    %v6975 = vunpack.c.h.b16 %v3822
    %v6976 = vunpack.c.l.b16 %v3823
    %v6977 = vunpack.c.h.b16 %v3823
    %v6978 = vunpack.c.l.b16 %v3824
    %v6979 = vunpack.c.h.b16 %v3824
    %v6980 = vunpack.c.l.b16 %v3825
    %v6981 = vunpack.c.h.b16 %v3825
    %v6982 = vunpack.c.l.b16 %v3826
    %v6983 = vunpack.c.h.b16 %v3826
    %v6984 = vunpack.c.l.b16 %v3827
    %v6985 = vunpack.c.h.b16 %v3827
    %v6986 = vunpack.c.l.b16 %v3828
    %v6987 = vunpack.c.h.b16 %v3828
    %v6988 = vunpack.c.l.b16 %v3829
    %v6989 = vunpack.c.h.b16 %v3829
    %v6990 = vunpack.c.l.b16 %v3830
    %v6991 = vunpack.c.h.b16 %v3830
    %v6992 = vunpack.c.l.b16 %v3831
    %v6993 = vunpack.c.h.b16 %v3831
    %v6994 = vpack.c.b16 %v4962, %v4946
    %v6995 = vpack.c.b16 %v4963, %v4947
    %v6996 = vpack.c.b16 %v4964, %v4948
    %v6997 = vpack.c.b16 %v4965, %v4949
    %v6998 = vpack.c.b16 %v4966, %v4950
    %v6999 = vpack.c.b16 %v4967, %v4951
    %v7000 = vpack.c.b16 %v4968, %v4952
    %v7001 = vpack.c.b16 %v4969, %v4953
    %v7002 = vpack.c.b16 %v4970, %v4954
    %v7003 = vpack.c.b16 %v4971, %v4955
    %v7004 = vpack.c.b16 %v4972, %v4956
    %v7005 = vpack.c.b16 %v4973, %v4957
    %v7006 = vpack.c.b16 %v4974, %v4958
    %v7007 = vpack.c.b16 %v4975, %v4959
    %v7008 = vpack.c.b16 %v4976, %v4960
    %v7009 = vpack.c.b16 %v4977, %v4961
    %v7010 = vpack.c.b16 %v4994, %v4978
    %v7011 = vpack.c.b16 %v4995, %v4979
    %v7012 = vpack.c.b16 %v4996, %v4980
    %v7013 = vpack.c.b16 %v4997, %v4981
    %v7014 = vpack.c.b16 %v4998, %v4982
    %v7015 = vpack.c.b16 %v4999, %v4983
    %v7016 = vpack.c.b16 %v5000, %v4984
    %v7017 = vpack.c.b16 %v5001, %v4985
    %v7018 = vpack.c.b16 %v5002, %v4986
    %v7019 = vpack.c.b16 %v5003, %v4987
    %v7020 = vpack.c.b16 %v5004, %v4988
    %v7021 = vpack.c.b16 %v5005, %v4989
    %v7022 = vpack.c.b16 %v5006, %v4990
    %v7023 = vpack.c.b16 %v5007, %v4991
    %v7024 = vpack.c.b16 %v5008, %v4992
    %v7025 = vpack.c.b16 %v5009, %v4993
    %v7026 = vpack.c.b16 %v5026, %v5010
    %v7027 = vpack.c.b16 %v5027, %v5011
    %v7028 = vpack.c.b16 %v5028, %v5012
    %v7029 = vpack.c.b16 %v5029, %v5013
    %v7030 = vpack.c.b16 %v5030, %v5014
    %v7031 = vpack.c.b16 %v5031, %v5015
    %v7032 = vpack.c.b16 %v5032, %v5016
    %v7033 = vpack.c.b16 %v5033, %v5017
    %v7034 = vpack.c.b16 %v5034, %v5018
    %v7035 = vpack.c.b16 %v5035, %v5019
    %v7036 = vpack.c.b16 %v5036, %v5020
    %v7037 = vpack.c.b16 %v5037, %v5021
    %v7038 = vpack.c.b16 %v5038, %v5022
    %v7039 = vpack.c.b16 %v5039, %v5023
    %v7040 = vpack.c.b16 %v5040, %v5024
    %v7041 = vpack.c.b16 %v5041, %v5025
    %v7042 = vpack.c.b16 %v5058, %v5042
    %v7043 = vpack.c.b16 %v5059, %v5043
    %v7044 = vpack.c.b16 %v5060, %v5044
    %v7045 = vpack.c.b16 %v5061, %v5045
    %v7046 = vpack.c.b16 %v5062, %v5046
    %v7047 = vpack.c.b16 %v5063, %v5047
    %v7048 = vpack.c.b16 %v5064, %v5048
    %v7049 = vpack.c.b16 %v5065, %v5049
    %v7050 = vpack.c.b16 %v5066, %v5050
    %v7051 = vpack.c.b16 %v5067, %v5051
    %v7052 = vpack.c.b16 %v5068, %v5052
    %v7053 = vpack.c.b16 %v5069, %v5053
    %v7054 = vpack.c.b16 %v5070, %v5054
    %v7055 = vpack.c.b16 %v5071, %v5055
    %v7056 = vpack.c.b16 %v5072, %v5056
    %v7057 = vpack.c.b16 %v5073, %v5057
    %v7058 = vpack.c.b16 %v5090, %v5074
    %v7059 = vpack.c.b16 %v5091, %v5075
    %v7060 = vpack.c.b16 %v5092, %v5076
    %v7061 = vpack.c.b16 %v5093, %v5077
    %v7062 = vpack.c.b16 %v5094, %v5078
    %v7063 = vpack.c.b16 %v5095, %v5079
    %v7064 = vpack.c.b16 %v5096, %v5080
    %v7065 = vpack.c.b16 %v5097, %v5081
    %v7066 = vpack.c.b16 %v5098, %v5082
    %v7067 = vpack.c.b16 %v5099, %v5083
    %v7068 = vpack.c.b16 %v5100, %v5084
    %v7069 = vpack.c.b16 %v5101, %v5085
    %v7070 = vpack.c.b16 %v5102, %v5086
    %v7071 = vpack.c.b16 %v5103, %v5087
    %v7072 = vpack.c.b16 %v5104, %v5088
    %v7073 = vpack.c.b16 %v5105, %v5089
    %v7074 = vpack.c.b16 %v5122, %v5106
    %v7075 = vpack.c.b16 %v5123, %v5107
    %v7076 = vpack.c.b16 %v5124, %v5108
    %v7077 = vpack.c.b16 %v5125, %v5109
    %v7078 = vpack.c.b16 %v5126, %v5110
    %v7079 = vpack.c.b16 %v5127, %v5111
    %v7080 = vpack.c.b16 %v5128, %v5112
    %v7081 = vpack.c.b16 %v5129, %v5113
    %v7082 = vpack.c.b16 %v5130, %v5114
    %v7083 = vpack.c.b16 %v5131, %v5115
    %v7084 = vpack.c.b16 %v5132, %v5116
    %v7085 = vpack.c.b16 %v5133, %v5117
    %v7086 = vpack.c.b16 %v5134, %v5118
    %v7087 = vpack.c.b16 %v5135, %v5119
    %v7088 = vpack.c.b16 %v5136, %v5120
    %v7089 = vpack.c.b16 %v5137, %v5121
    %v7090 = vpack.c.b16 %v5154, %v5138
    %v7091 = vpack.c.b16 %v5155, %v5139
    %v7092 = vpack.c.b16 %v5156, %v5140
    %v7093 = vpack.c.b16 %v5157, %v5141
    %v7094 = vpack.c.b16 %v5158, %v5142
    %v7095 = vpack.c.b16 %v5159, %v5143
    %v7096 = vpack.c.b16 %v5160, %v5144
    %v7097 = vpack.c.b16 %v5161, %v5145
    %v7098 = vpack.c.b16 %v5162, %v5146
    %v7099 = vpack.c.b16 %v5163, %v5147
    %v7100 = vpack.c.b16 %v5164, %v5148
    %v7101 = vpack.c.b16 %v5165, %v5149
    %v7102 = vpack.c.b16 %v5166, %v5150
    %v7103 = vpack.c.b16 %v5167, %v5151
    %v7104 = vpack.c.b16 %v5168, %v5152
    %v7105 = vpack.c.b16 %v5169, %v5153
    %v7106 = vpack.c.b16 %v5186, %v5170
    %v7107 = vpack.c.b16 %v5187, %v5171
    %v7108 = vpack.c.b16 %v5188, %v5172
    %v7109 = vpack.c.b16 %v5189, %v5173
    %v7110 = vpack.c.b16 %v5190, %v5174
    %v7111 = vpack.c.b16 %v5191, %v5175
    %v7112 = vpack.c.b16 %v5192, %v5176
    %v7113 = vpack.c.b16 %v5193, %v5177
    %v7114 = vpack.c.b16 %v5194, %v5178
    %v7115 = vpack.c.b16 %v5195, %v5179
    %v7116 = vpack.c.b16 %v5196, %v5180
    %v7117 = vpack.c.b16 %v5197, %v5181
    %v7118 = vpack.c.b16 %v5198, %v5182
    %v7119 = vpack.c.b16 %v5199, %v5183
    %v7120 = vpack.c.b16 %v5200, %v5184
    %v7121 = vpack.c.b16 %v5201, %v5185
    %v7122 = vpack.c.b16 %v5218, %v5202
    %v7123 = vpack.c.b16 %v5219, %v5203
    %v7124 = vpack.c.b16 %v5220, %v5204
    %v7125 = vpack.c.b16 %v5221, %v5205
    %v7126 = vpack.c.b16 %v5222, %v5206
    %v7127 = vpack.c.b16 %v5223, %v5207
    %v7128 = vpack.c.b16 %v5224, %v5208
    %v7129 = vpack.c.b16 %v5225, %v5209
    %v7130 = vpack.c.b16 %v5226, %v5210
    %v7131 = vpack.c.b16 %v5227, %v5211
    %v7132 = vpack.c.b16 %v5228, %v5212
    %v7133 = vpack.c.b16 %v5229, %v5213
    %v7134 = vpack.c.b16 %v5230, %v5214
    %v7135 = vpack.c.b16 %v5231, %v5215
    %v7136 = vpack.c.b16 %v5232, %v5216
    %v7137 = vpack.c.b16 %v5233, %v5217
    %v7138 = vpack.c.b16 %v5250, %v5234
    %v7139 = vpack.c.b16 %v5251, %v5235
    %v7140 = vpack.c.b16 %v5252, %v5236
    %v7141 = vpack.c.b16 %v5253, %v5237
    %v7142 = vpack.c.b16 %v5254, %v5238
    %v7143 = vpack.c.b16 %v5255, %v5239
    %v7144 = vpack.c.b16 %v5256, %v5240
    %v7145 = vpack.c.b16 %v5257, %v5241
    %v7146 = vpack.c.b16 %v5258, %v5242
    %v7147 = vpack.c.b16 %v5259, %v5243
    %v7148 = vpack.c.b16 %v5260, %v5244
    %v7149 = vpack.c.b16 %v5261, %v5245
    %v7150 = vpack.c.b16 %v5262, %v5246
    %v7151 = vpack.c.b16 %v5263, %v5247
    %v7152 = vpack.c.b16 %v5264, %v5248
    %v7153 = vpack.c.b16 %v5265, %v5249
    %v7154 = vpack.c.b16 %v5282, %v5266
    %v7155 = vpack.c.b16 %v5283, %v5267
    %v7156 = vpack.c.b16 %v5284, %v5268
    %v7157 = vpack.c.b16 %v5285, %v5269
    %v7158 = vpack.c.b16 %v5286, %v5270
    %v7159 = vpack.c.b16 %v5287, %v5271
    %v7160 = vpack.c.b16 %v5288, %v5272
    %v7161 = vpack.c.b16 %v5289, %v5273
    %v7162 = vpack.c.b16 %v5290, %v5274
    %v7163 = vpack.c.b16 %v5291, %v5275
    %v7164 = vpack.c.b16 %v5292, %v5276
    %v7165 = vpack.c.b16 %v5293, %v5277
    %v7166 = vpack.c.b16 %v5294, %v5278
    %v7167 = vpack.c.b16 %v5295, %v5279
    %v7168 = vpack.c.b16 %v5296, %v5280
    %v7169 = vpack.c.b16 %v5297, %v5281
    %v7170 = vpack.c.b16 %v5314, %v5298
    %v7171 = vpack.c.b16 %v5315, %v5299
    %v7172 = vpack.c.b16 %v5316, %v5300
    %v7173 = vpack.c.b16 %v5317, %v5301
    %v7174 = vpack.c.b16 %v5318, %v5302
    %v7175 = vpack.c.b16 %v5319, %v5303
    %v7176 = vpack.c.b16 %v5320, %v5304
    %v7177 = vpack.c.b16 %v5321, %v5305
    %v7178 = vpack.c.b16 %v5322, %v5306
    %v7179 = vpack.c.b16 %v5323, %v5307
    %v7180 = vpack.c.b16 %v5324, %v5308
    %v7181 = vpack.c.b16 %v5325, %v5309
    %v7182 = vpack.c.b16 %v5326, %v5310
    %v7183 = vpack.c.b16 %v5327, %v5311
    %v7184 = vpack.c.b16 %v5328, %v5312
    %v7185 = vpack.c.b16 %v5329, %v5313
    %v7186 = vpack.c.b16 %v5346, %v5330
    %v7187 = vpack.c.b16 %v5347, %v5331
    %v7188 = vpack.c.b16 %v5348, %v5332
    %v7189 = vpack.c.b16 %v5349, %v5333
    %v7190 = vpack.c.b16 %v5350, %v5334
    %v7191 = vpack.c.b16 %v5351, %v5335
    %v7192 = vpack.c.b16 %v5352, %v5336
    %v7193 = vpack.c.b16 %v5353, %v5337
    %v7194 = vpack.c.b16 %v5354, %v5338
    %v7195 = vpack.c.b16 %v5355, %v5339
    %v7196 = vpack.c.b16 %v5356, %v5340
    %v7197 = vpack.c.b16 %v5357, %v5341
    %v7198 = vpack.c.b16 %v5358, %v5342
    %v7199 = vpack.c.b16 %v5359, %v5343
    %v7200 = vpack.c.b16 %v5360, %v5344
    %v7201 = vpack.c.b16 %v5361, %v5345
    %v7202 = vpack.c.b16 %v5378, %v5362
    %v7203 = vpack.c.b16 %v5379, %v5363
    %v7204 = vpack.c.b16 %v5380, %v5364
    %v7205 = vpack.c.b16 %v5381, %v5365
    %v7206 = vpack.c.b16 %v5382, %v5366
    %v7207 = vpack.c.b16 %v5383, %v5367
    %v7208 = vpack.c.b16 %v5384, %v5368
    %v7209 = vpack.c.b16 %v5385, %v5369
    %v7210 = vpack.c.b16 %v5386, %v5370
    %v7211 = vpack.c.b16 %v5387, %v5371
    %v7212 = vpack.c.b16 %v5388, %v5372
    %v7213 = vpack.c.b16 %v5389, %v5373
    %v7214 = vpack.c.b16 %v5390, %v5374
    %v7215 = vpack.c.b16 %v5391, %v5375
    %v7216 = vpack.c.b16 %v5392, %v5376
    %v7217 = vpack.c.b16 %v5393, %v5377
    %v7218 = vpack.c.b16 %v5410, %v5394
    %v7219 = vpack.c.b16 %v5411, %v5395
    %v7220 = vpack.c.b16 %v5412, %v5396
    %v7221 = vpack.c.b16 %v5413, %v5397
    %v7222 = vpack.c.b16 %v5414, %v5398
    %v7223 = vpack.c.b16 %v5415, %v5399
    %v7224 = vpack.c.b16 %v5416, %v5400
    %v7225 = vpack.c.b16 %v5417, %v5401
    %v7226 = vpack.c.b16 %v5418, %v5402
    %v7227 = vpack.c.b16 %v5419, %v5403
    %v7228 = vpack.c.b16 %v5420, %v5404
    %v7229 = vpack.c.b16 %v5421, %v5405
    %v7230 = vpack.c.b16 %v5422, %v5406
    %v7231 = vpack.c.b16 %v5423, %v5407
    %v7232 = vpack.c.b16 %v5424, %v5408
    %v7233 = vpack.c.b16 %v5425, %v5409
    %v7234 = vpack.c.b16 %v5442, %v5426
    %v7235 = vpack.c.b16 %v5443, %v5427
    %v7236 = vpack.c.b16 %v5444, %v5428
    %v7237 = vpack.c.b16 %v5445, %v5429
    %v7238 = vpack.c.b16 %v5446, %v5430
    %v7239 = vpack.c.b16 %v5447, %v5431
    %v7240 = vpack.c.b16 %v5448, %v5432
    %v7241 = vpack.c.b16 %v5449, %v5433
    %v7242 = vpack.c.b16 %v5450, %v5434
    %v7243 = vpack.c.b16 %v5451, %v5435
    %v7244 = vpack.c.b16 %v5452, %v5436
    %v7245 = vpack.c.b16 %v5453, %v5437
    %v7246 = vpack.c.b16 %v5454, %v5438
    %v7247 = vpack.c.b16 %v5455, %v5439
    %v7248 = vpack.c.b16 %v5456, %v5440
    %v7249 = vpack.c.b16 %v5457, %v5441
    %v7250 = vpack.c.b16 %v5474, %v5458
    %v7251 = vpack.c.b16 %v5475, %v5459
    %v7252 = vpack.c.b16 %v5476, %v5460
    %v7253 = vpack.c.b16 %v5477, %v5461
    %v7254 = vpack.c.b16 %v5478, %v5462
    %v7255 = vpack.c.b16 %v5479, %v5463
    %v7256 = vpack.c.b16 %v5480, %v5464
    %v7257 = vpack.c.b16 %v5481, %v5465
    %v7258 = vpack.c.b16 %v5482, %v5466
    %v7259 = vpack.c.b16 %v5483, %v5467
    %v7260 = vpack.c.b16 %v5484, %v5468
    %v7261 = vpack.c.b16 %v5485, %v5469
    %v7262 = vpack.c.b16 %v5486, %v5470
    %v7263 = vpack.c.b16 %v5487, %v5471
    %v7264 = vpack.c.b16 %v5488, %v5472
    %v7265 = vpack.c.b16 %v5489, %v5473
    %v7266 = vpack.c.b16 %v5506, %v5490
    %v7267 = vpack.c.b16 %v5507, %v5491
    %v7268 = vpack.c.b16 %v5508, %v5492
    %v7269 = vpack.c.b16 %v5509, %v5493
    %v7270 = vpack.c.b16 %v5510, %v5494
    %v7271 = vpack.c.b16 %v5511, %v5495
    %v7272 = vpack.c.b16 %v5512, %v5496
    %v7273 = vpack.c.b16 %v5513, %v5497
    %v7274 = vpack.c.b16 %v5514, %v5498
    %v7275 = vpack.c.b16 %v5515, %v5499
    %v7276 = vpack.c.b16 %v5516, %v5500
    %v7277 = vpack.c.b16 %v5517, %v5501
    %v7278 = vpack.c.b16 %v5518, %v5502
    %v7279 = vpack.c.b16 %v5519, %v5503
    %v7280 = vpack.c.b16 %v5520, %v5504
    %v7281 = vpack.c.b16 %v5521, %v5505
    %v7282 = vpack.c.b16 %v5538, %v5522
    %v7283 = vpack.c.b16 %v5539, %v5523
    %v7284 = vpack.c.b16 %v5540, %v5524
    %v7285 = vpack.c.b16 %v5541, %v5525
    %v7286 = vpack.c.b16 %v5542, %v5526
    %v7287 = vpack.c.b16 %v5543, %v5527
    %v7288 = vpack.c.b16 %v5544, %v5528
    %v7289 = vpack.c.b16 %v5545, %v5529
    %v7290 = vpack.c.b16 %v5546, %v5530
    %v7291 = vpack.c.b16 %v5547, %v5531
    %v7292 = vpack.c.b16 %v5548, %v5532
    %v7293 = vpack.c.b16 %v5549, %v5533
    %v7294 = vpack.c.b16 %v5550, %v5534
    %v7295 = vpack.c.b16 %v5551, %v5535
    %v7296 = vpack.c.b16 %v5552, %v5536
    %v7297 = vpack.c.b16 %v5553, %v5537
    %v7298 = vpack.c.b16 %v5570, %v5554
    %v7299 = vpack.c.b16 %v5571, %v5555
    %v7300 = vpack.c.b16 %v5572, %v5556
    %v7301 = vpack.c.b16 %v5573, %v5557
    %v7302 = vpack.c.b16 %v5574, %v5558
    %v7303 = vpack.c.b16 %v5575, %v5559
    %v7304 = vpack.c.b16 %v5576, %v5560
    %v7305 = vpack.c.b16 %v5577, %v5561
    %v7306 = vpack.c.b16 %v5578, %v5562
    %v7307 = vpack.c.b16 %v5579, %v5563
    %v7308 = vpack.c.b16 %v5580, %v5564
    %v7309 = vpack.c.b16 %v5581, %v5565
    %v7310 = vpack.c.b16 %v5582, %v5566
    %v7311 = vpack.c.b16 %v5583, %v5567
    %v7312 = vpack.c.b16 %v5584, %v5568
    %v7313 = vpack.c.b16 %v5585, %v5569
    %v7314 = vpack.c.b16 %v5602, %v5586
    %v7315 = vpack.c.b16 %v5603, %v5587
    %v7316 = vpack.c.b16 %v5604, %v5588
    %v7317 = vpack.c.b16 %v5605, %v5589
    %v7318 = vpack.c.b16 %v5606, %v5590
    %v7319 = vpack.c.b16 %v5607, %v5591
    %v7320 = vpack.c.b16 %v5608, %v5592
    %v7321 = vpack.c.b16 %v5609, %v5593
    %v7322 = vpack.c.b16 %v5610, %v5594
    %v7323 = vpack.c.b16 %v5611, %v5595
    %v7324 = vpack.c.b16 %v5612, %v5596
    %v7325 = vpack.c.b16 %v5613, %v5597
    %v7326 = vpack.c.b16 %v5614, %v5598
    %v7327 = vpack.c.b16 %v5615, %v5599
    %v7328 = vpack.c.b16 %v5616, %v5600
    %v7329 = vpack.c.b16 %v5617, %v5601
    %v7330 = vpack.c.b16 %v5634, %v5618
    %v7331 = vpack.c.b16 %v5635, %v5619
    %v7332 = vpack.c.b16 %v5636, %v5620
    %v7333 = vpack.c.b16 %v5637, %v5621
    %v7334 = vpack.c.b16 %v5638, %v5622
    %v7335 = vpack.c.b16 %v5639, %v5623
    %v7336 = vpack.c.b16 %v5640, %v5624
    %v7337 = vpack.c.b16 %v5641, %v5625
    %v7338 = vpack.c.b16 %v5642, %v5626
    %v7339 = vpack.c.b16 %v5643, %v5627
    %v7340 = vpack.c.b16 %v5644, %v5628
    %v7341 = vpack.c.b16 %v5645, %v5629
    %v7342 = vpack.c.b16 %v5646, %v5630
    %v7343 = vpack.c.b16 %v5647, %v5631
    %v7344 = vpack.c.b16 %v5648, %v5632
    %v7345 = vpack.c.b16 %v5649, %v5633
    %v7346 = vpack.c.b16 %v5666, %v5650
    %v7347 = vpack.c.b16 %v5667, %v5651
    %v7348 = vpack.c.b16 %v5668, %v5652
    %v7349 = vpack.c.b16 %v5669, %v5653
    %v7350 = vpack.c.b16 %v5670, %v5654
    %v7351 = vpack.c.b16 %v5671, %v5655
    %v7352 = vpack.c.b16 %v5672, %v5656
    %v7353 = vpack.c.b16 %v5673, %v5657
    %v7354 = vpack.c.b16 %v5674, %v5658
    %v7355 = vpack.c.b16 %v5675, %v5659
    %v7356 = vpack.c.b16 %v5676, %v5660
    %v7357 = vpack.c.b16 %v5677, %v5661
    %v7358 = vpack.c.b16 %v5678, %v5662
    %v7359 = vpack.c.b16 %v5679, %v5663
    %v7360 = vpack.c.b16 %v5680, %v5664
    %v7361 = vpack.c.b16 %v5681, %v5665
    %v7362 = vpack.c.b16 %v5698, %v5682
    %v7363 = vpack.c.b16 %v5699, %v5683
    %v7364 = vpack.c.b16 %v5700, %v5684
    %v7365 = vpack.c.b16 %v5701, %v5685
    %v7366 = vpack.c.b16 %v5702, %v5686
    %v7367 = vpack.c.b16 %v5703, %v5687
    %v7368 = vpack.c.b16 %v5704, %v5688
    %v7369 = vpack.c.b16 %v5705, %v5689
    %v7370 = vpack.c.b16 %v5706, %v5690
    %v7371 = vpack.c.b16 %v5707, %v5691
    %v7372 = vpack.c.b16 %v5708, %v5692
    %v7373 = vpack.c.b16 %v5709, %v5693
    %v7374 = vpack.c.b16 %v5710, %v5694
    %v7375 = vpack.c.b16 %v5711, %v5695
    %v7376 = vpack.c.b16 %v5712, %v5696
    %v7377 = vpack.c.b16 %v5713, %v5697
    %v7378 = vpack.c.b16 %v5730, %v5714
    %v7379 = vpack.c.b16 %v5731, %v5715
    %v7380 = vpack.c.b16 %v5732, %v5716
    %v7381 = vpack.c.b16 %v5733, %v5717
    %v7382 = vpack.c.b16 %v5734, %v5718
    %v7383 = vpack.c.b16 %v5735, %v5719
    %v7384 = vpack.c.b16 %v5736, %v5720
    %v7385 = vpack.c.b16 %v5737, %v5721
    %v7386 = vpack.c.b16 %v5738, %v5722
    %v7387 = vpack.c.b16 %v5739, %v5723
    %v7388 = vpack.c.b16 %v5740, %v5724
    %v7389 = vpack.c.b16 %v5741, %v5725
    %v7390 = vpack.c.b16 %v5742, %v5726
    %v7391 = vpack.c.b16 %v5743, %v5727
    %v7392 = vpack.c.b16 %v5744, %v5728
    %v7393 = vpack.c.b16 %v5745, %v5729
    %v7394 = vpack.c.b16 %v5762, %v5746
    %v7395 = vpack.c.b16 %v5763, %v5747
    %v7396 = vpack.c.b16 %v5764, %v5748
    %v7397 = vpack.c.b16 %v5765, %v5749
    %v7398 = vpack.c.b16 %v5766, %v5750
    %v7399 = vpack.c.b16 %v5767, %v5751
    %v7400 = vpack.c.b16 %v5768, %v5752
    %v7401 = vpack.c.b16 %v5769, %v5753
    %v7402 = vpack.c.b16 %v5770, %v5754
    %v7403 = vpack.c.b16 %v5771, %v5755
    %v7404 = vpack.c.b16 %v5772, %v5756
    %v7405 = vpack.c.b16 %v5773, %v5757
    %v7406 = vpack.c.b16 %v5774, %v5758
    %v7407 = vpack.c.b16 %v5775, %v5759
    %v7408 = vpack.c.b16 %v5776, %v5760
    %v7409 = vpack.c.b16 %v5777, %v5761
    %v7410 = vpack.c.b16 %v5794, %v5778
    %v7411 = vpack.c.b16 %v5795, %v5779
    %v7412 = vpack.c.b16 %v5796, %v5780
    %v7413 = vpack.c.b16 %v5797, %v5781
    %v7414 = vpack.c.b16 %v5798, %v5782
    %v7415 = vpack.c.b16 %v5799, %v5783
    %v7416 = vpack.c.b16 %v5800, %v5784
    %v7417 = vpack.c.b16 %v5801, %v5785
    %v7418 = vpack.c.b16 %v5802, %v5786
    %v7419 = vpack.c.b16 %v5803, %v5787
    %v7420 = vpack.c.b16 %v5804, %v5788
    %v7421 = vpack.c.b16 %v5805, %v5789
    %v7422 = vpack.c.b16 %v5806, %v5790
    %v7423 = vpack.c.b16 %v5807, %v5791
    %v7424 = vpack.c.b16 %v5808, %v5792
    %v7425 = vpack.c.b16 %v5809, %v5793
    %v7426 = vpack.c.b16 %v5826, %v5810
    %v7427 = vpack.c.b16 %v5827, %v5811
    %v7428 = vpack.c.b16 %v5828, %v5812
    %v7429 = vpack.c.b16 %v5829, %v5813
    %v7430 = vpack.c.b16 %v5830, %v5814
    %v7431 = vpack.c.b16 %v5831, %v5815
    %v7432 = vpack.c.b16 %v5832, %v5816
    %v7433 = vpack.c.b16 %v5833, %v5817
    %v7434 = vpack.c.b16 %v5834, %v5818
    %v7435 = vpack.c.b16 %v5835, %v5819
    %v7436 = vpack.c.b16 %v5836, %v5820
    %v7437 = vpack.c.b16 %v5837, %v5821
    %v7438 = vpack.c.b16 %v5838, %v5822
    %v7439 = vpack.c.b16 %v5839, %v5823
    %v7440 = vpack.c.b16 %v5840, %v5824
    %v7441 = vpack.c.b16 %v5841, %v5825
    %v7442 = vpack.c.b16 %v5858, %v5842
    %v7443 = vpack.c.b16 %v5859, %v5843
    %v7444 = vpack.c.b16 %v5860, %v5844
    %v7445 = vpack.c.b16 %v5861, %v5845
    %v7446 = vpack.c.b16 %v5862, %v5846
    %v7447 = vpack.c.b16 %v5863, %v5847
    %v7448 = vpack.c.b16 %v5864, %v5848
    %v7449 = vpack.c.b16 %v5865, %v5849
    %v7450 = vpack.c.b16 %v5866, %v5850
    %v7451 = vpack.c.b16 %v5867, %v5851
    %v7452 = vpack.c.b16 %v5868, %v5852
    %v7453 = vpack.c.b16 %v5869, %v5853
    %v7454 = vpack.c.b16 %v5870, %v5854
    %v7455 = vpack.c.b16 %v5871, %v5855
    %v7456 = vpack.c.b16 %v5872, %v5856
    %v7457 = vpack.c.b16 %v5873, %v5857
    %v7458 = vpack.c.b16 %v5890, %v5874
    %v7459 = vpack.c.b16 %v5891, %v5875
    %v7460 = vpack.c.b16 %v5892, %v5876
    %v7461 = vpack.c.b16 %v5893, %v5877
    %v7462 = vpack.c.b16 %v5894, %v5878
    %v7463 = vpack.c.b16 %v5895, %v5879
    %v7464 = vpack.c.b16 %v5896, %v5880
    %v7465 = vpack.c.b16 %v5897, %v5881
    %v7466 = vpack.c.b16 %v5898, %v5882
    %v7467 = vpack.c.b16 %v5899, %v5883
    %v7468 = vpack.c.b16 %v5900, %v5884
    %v7469 = vpack.c.b16 %v5901, %v5885
    %v7470 = vpack.c.b16 %v5902, %v5886
    %v7471 = vpack.c.b16 %v5903, %v5887
    %v7472 = vpack.c.b16 %v5904, %v5888
    %v7473 = vpack.c.b16 %v5905, %v5889
    %v7474 = vpack.c.b16 %v5922, %v5906
    %v7475 = vpack.c.b16 %v5923, %v5907
    %v7476 = vpack.c.b16 %v5924, %v5908
    %v7477 = vpack.c.b16 %v5925, %v5909
    %v7478 = vpack.c.b16 %v5926, %v5910
    %v7479 = vpack.c.b16 %v5927, %v5911
    %v7480 = vpack.c.b16 %v5928, %v5912
    %v7481 = vpack.c.b16 %v5929, %v5913
    %v7482 = vpack.c.b16 %v5930, %v5914
    %v7483 = vpack.c.b16 %v5931, %v5915
    %v7484 = vpack.c.b16 %v5932, %v5916
    %v7485 = vpack.c.b16 %v5933, %v5917
    %v7486 = vpack.c.b16 %v5934, %v5918
    %v7487 = vpack.c.b16 %v5935, %v5919
    %v7488 = vpack.c.b16 %v5936, %v5920
    %v7489 = vpack.c.b16 %v5937, %v5921
    %v7490 = vpack.c.b16 %v5954, %v5938
    %v7491 = vpack.c.b16 %v5955, %v5939
    %v7492 = vpack.c.b16 %v5956, %v5940
    %v7493 = vpack.c.b16 %v5957, %v5941
    %v7494 = vpack.c.b16 %v5958, %v5942
    %v7495 = vpack.c.b16 %v5959, %v5943
    %v7496 = vpack.c.b16 %v5960, %v5944
    %v7497 = vpack.c.b16 %v5961, %v5945
    %v7498 = vpack.c.b16 %v5962, %v5946
    %v7499 = vpack.c.b16 %v5963, %v5947
    %v7500 = vpack.c.b16 %v5964, %v5948
    %v7501 = vpack.c.b16 %v5965, %v5949
    %v7502 = vpack.c.b16 %v5966, %v5950
    %v7503 = vpack.c.b16 %v5967, %v5951
    %v7504 = vpack.c.b16 %v5968, %v5952
    %v7505 = vpack.c.b16 %v5969, %v5953
    %v7506 = vpack.c.b16 %v5986, %v5970
    %v7507 = vpack.c.b16 %v5987, %v5971
    %v7508 = vpack.c.b16 %v5988, %v5972
    %v7509 = vpack.c.b16 %v5989, %v5973
    %v7510 = vpack.c.b16 %v5990, %v5974
    %v7511 = vpack.c.b16 %v5991, %v5975
    %v7512 = vpack.c.b16 %v5992, %v5976
    %v7513 = vpack.c.b16 %v5993, %v5977
    %v7514 = vpack.c.b16 %v5994, %v5978
    %v7515 = vpack.c.b16 %v5995, %v5979
    %v7516 = vpack.c.b16 %v5996, %v5980
    %v7517 = vpack.c.b16 %v5997, %v5981
    %v7518 = vpack.c.b16 %v5998, %v5982
    %v7519 = vpack.c.b16 %v5999, %v5983
    %v7520 = vpack.c.b16 %v6000, %v5984
    %v7521 = vpack.c.b16 %v6001, %v5985
    %v7522 = vpack.c.b16 %v6018, %v6002
    %v7523 = vpack.c.b16 %v6019, %v6003
    %v7524 = vpack.c.b16 %v6020, %v6004
    %v7525 = vpack.c.b16 %v6021, %v6005
    %v7526 = vpack.c.b16 %v6022, %v6006
    %v7527 = vpack.c.b16 %v6023, %v6007
    %v7528 = vpack.c.b16 %v6024, %v6008
    %v7529 = vpack.c.b16 %v6025, %v6009
    %v7530 = vpack.c.b16 %v6026, %v6010
    %v7531 = vpack.c.b16 %v6027, %v6011
    %v7532 = vpack.c.b16 %v6028, %v6012
    %v7533 = vpack.c.b16 %v6029, %v6013
    %v7534 = vpack.c.b16 %v6030, %v6014
    %v7535 = vpack.c.b16 %v6031, %v6015
    %v7536 = vpack.c.b16 %v6032, %v6016
    %v7537 = vpack.c.b16 %v6033, %v6017
    %v7538 = vpack.c.b16 %v6050, %v6034
    %v7539 = vpack.c.b16 %v6051, %v6035
    %v7540 = vpack.c.b16 %v6052, %v6036
    %v7541 = vpack.c.b16 %v6053, %v6037
    %v7542 = vpack.c.b16 %v6054, %v6038
    %v7543 = vpack.c.b16 %v6055, %v6039
    %v7544 = vpack.c.b16 %v6056, %v6040
    %v7545 = vpack.c.b16 %v6057, %v6041
    %v7546 = vpack.c.b16 %v6058, %v6042
    %v7547 = vpack.c.b16 %v6059, %v6043
    %v7548 = vpack.c.b16 %v6060, %v6044
    %v7549 = vpack.c.b16 %v6061, %v6045
    %v7550 = vpack.c.b16 %v6062, %v6046
    %v7551 = vpack.c.b16 %v6063, %v6047
    %v7552 = vpack.c.b16 %v6064, %v6048
    %v7553 = vpack.c.b16 %v6065, %v6049
    %v7554 = vpack.c.b16 %v6082, %v6066
    %v7555 = vpack.c.b16 %v6083, %v6067
    %v7556 = vpack.c.b16 %v6084, %v6068
    %v7557 = vpack.c.b16 %v6085, %v6069
    %v7558 = vpack.c.b16 %v6086, %v6070
    %v7559 = vpack.c.b16 %v6087, %v6071
    %v7560 = vpack.c.b16 %v6088, %v6072
    %v7561 = vpack.c.b16 %v6089, %v6073
    %v7562 = vpack.c.b16 %v6090, %v6074
    %v7563 = vpack.c.b16 %v6091, %v6075
    %v7564 = vpack.c.b16 %v6092, %v6076
    %v7565 = vpack.c.b16 %v6093, %v6077
    %v7566 = vpack.c.b16 %v6094, %v6078
    %v7567 = vpack.c.b16 %v6095, %v6079
    %v7568 = vpack.c.b16 %v6096, %v6080
    %v7569 = vpack.c.b16 %v6097, %v6081
    %v7570 = vpack.c.b16 %v6114, %v6098
    %v7571 = vpack.c.b16 %v6115, %v6099
    %v7572 = vpack.c.b16 %v6116, %v6100
    %v7573 = vpack.c.b16 %v6117, %v6101
    %v7574 = vpack.c.b16 %v6118, %v6102
    %v7575 = vpack.c.b16 %v6119, %v6103
    %v7576 = vpack.c.b16 %v6120, %v6104
    %v7577 = vpack.c.b16 %v6121, %v6105
    %v7578 = vpack.c.b16 %v6122, %v6106
    %v7579 = vpack.c.b16 %v6123, %v6107
    %v7580 = vpack.c.b16 %v6124, %v6108
    %v7581 = vpack.c.b16 %v6125, %v6109
    %v7582 = vpack.c.b16 %v6126, %v6110
    %v7583 = vpack.c.b16 %v6127, %v6111
    %v7584 = vpack.c.b16 %v6128, %v6112
    %v7585 = vpack.c.b16 %v6129, %v6113
    %v7586 = vpack.c.b16 %v6146, %v6130
    %v7587 = vpack.c.b16 %v6147, %v6131
    %v7588 = vpack.c.b16 %v6148, %v6132
    %v7589 = vpack.c.b16 %v6149, %v6133
    %v7590 = vpack.c.b16 %v6150, %v6134
    %v7591 = vpack.c.b16 %v6151, %v6135
    %v7592 = vpack.c.b16 %v6152, %v6136
    %v7593 = vpack.c.b16 %v6153, %v6137
    %v7594 = vpack.c.b16 %v6154, %v6138
    %v7595 = vpack.c.b16 %v6155, %v6139
    %v7596 = vpack.c.b16 %v6156, %v6140
    %v7597 = vpack.c.b16 %v6157, %v6141
    %v7598 = vpack.c.b16 %v6158, %v6142
    %v7599 = vpack.c.b16 %v6159, %v6143
    %v7600 = vpack.c.b16 %v6160, %v6144
    %v7601 = vpack.c.b16 %v6161, %v6145
    %v7602 = vpack.c.b16 %v6178, %v6162
    %v7603 = vpack.c.b16 %v6179, %v6163
    %v7604 = vpack.c.b16 %v6180, %v6164
    %v7605 = vpack.c.b16 %v6181, %v6165
    %v7606 = vpack.c.b16 %v6182, %v6166
    %v7607 = vpack.c.b16 %v6183, %v6167
    %v7608 = vpack.c.b16 %v6184, %v6168
    %v7609 = vpack.c.b16 %v6185, %v6169
    %v7610 = vpack.c.b16 %v6186, %v6170
    %v7611 = vpack.c.b16 %v6187, %v6171
    %v7612 = vpack.c.b16 %v6188, %v6172
    %v7613 = vpack.c.b16 %v6189, %v6173
    %v7614 = vpack.c.b16 %v6190, %v6174
    %v7615 = vpack.c.b16 %v6191, %v6175
    %v7616 = vpack.c.b16 %v6192, %v6176
    %v7617 = vpack.c.b16 %v6193, %v6177
    %v7618 = vpack.c.b16 %v6210, %v6194
    %v7619 = vpack.c.b16 %v6211, %v6195
    %v7620 = vpack.c.b16 %v6212, %v6196
    %v7621 = vpack.c.b16 %v6213, %v6197
    %v7622 = vpack.c.b16 %v6214, %v6198
    %v7623 = vpack.c.b16 %v6215, %v6199
    %v7624 = vpack.c.b16 %v6216, %v6200
    %v7625 = vpack.c.b16 %v6217, %v6201
    %v7626 = vpack.c.b16 %v6218, %v6202
    %v7627 = vpack.c.b16 %v6219, %v6203
    %v7628 = vpack.c.b16 %v6220, %v6204
    %v7629 = vpack.c.b16 %v6221, %v6205
    %v7630 = vpack.c.b16 %v6222, %v6206
    %v7631 = vpack.c.b16 %v6223, %v6207
    %v7632 = vpack.c.b16 %v6224, %v6208
    %v7633 = vpack.c.b16 %v6225, %v6209
    %v7634 = vpack.c.b16 %v6242, %v6226
    %v7635 = vpack.c.b16 %v6243, %v6227
    %v7636 = vpack.c.b16 %v6244, %v6228
    %v7637 = vpack.c.b16 %v6245, %v6229
    %v7638 = vpack.c.b16 %v6246, %v6230
    %v7639 = vpack.c.b16 %v6247, %v6231
    %v7640 = vpack.c.b16 %v6248, %v6232
    %v7641 = vpack.c.b16 %v6249, %v6233
    %v7642 = vpack.c.b16 %v6250, %v6234
    %v7643 = vpack.c.b16 %v6251, %v6235
    %v7644 = vpack.c.b16 %v6252, %v6236
    %v7645 = vpack.c.b16 %v6253, %v6237
    %v7646 = vpack.c.b16 %v6254, %v6238
    %v7647 = vpack.c.b16 %v6255, %v6239
    %v7648 = vpack.c.b16 %v6256, %v6240
    %v7649 = vpack.c.b16 %v6257, %v6241
    %v7650 = vpack.c.b16 %v6274, %v6258
    %v7651 = vpack.c.b16 %v6275, %v6259
    %v7652 = vpack.c.b16 %v6276, %v6260
    %v7653 = vpack.c.b16 %v6277, %v6261
    %v7654 = vpack.c.b16 %v6278, %v6262
    %v7655 = vpack.c.b16 %v6279, %v6263
    %v7656 = vpack.c.b16 %v6280, %v6264
    %v7657 = vpack.c.b16 %v6281, %v6265
    %v7658 = vpack.c.b16 %v6282, %v6266
    %v7659 = vpack.c.b16 %v6283, %v6267
    %v7660 = vpack.c.b16 %v6284, %v6268
    %v7661 = vpack.c.b16 %v6285, %v6269
    %v7662 = vpack.c.b16 %v6286, %v6270
    %v7663 = vpack.c.b16 %v6287, %v6271
    %v7664 = vpack.c.b16 %v6288, %v6272
    %v7665 = vpack.c.b16 %v6289, %v6273
    %v7666 = vpack.c.b16 %v6306, %v6290
    %v7667 = vpack.c.b16 %v6307, %v6291
    %v7668 = vpack.c.b16 %v6308, %v6292
    %v7669 = vpack.c.b16 %v6309, %v6293
    %v7670 = vpack.c.b16 %v6310, %v6294
    %v7671 = vpack.c.b16 %v6311, %v6295
    %v7672 = vpack.c.b16 %v6312, %v6296
    %v7673 = vpack.c.b16 %v6313, %v6297
    %v7674 = vpack.c.b16 %v6314, %v6298
    %v7675 = vpack.c.b16 %v6315, %v6299
    %v7676 = vpack.c.b16 %v6316, %v6300
    %v7677 = vpack.c.b16 %v6317, %v6301
    %v7678 = vpack.c.b16 %v6318, %v6302
    %v7679 = vpack.c.b16 %v6319, %v6303
    %v7680 = vpack.c.b16 %v6320, %v6304
    %v7681 = vpack.c.b16 %v6321, %v6305
    %v7682 = vpack.c.b16 %v6338, %v6322
    %v7683 = vpack.c.b16 %v6339, %v6323
    %v7684 = vpack.c.b16 %v6340, %v6324
    %v7685 = vpack.c.b16 %v6341, %v6325
    %v7686 = vpack.c.b16 %v6342, %v6326
    %v7687 = vpack.c.b16 %v6343, %v6327
    %v7688 = vpack.c.b16 %v6344, %v6328
    %v7689 = vpack.c.b16 %v6345, %v6329
    %v7690 = vpack.c.b16 %v6346, %v6330
    %v7691 = vpack.c.b16 %v6347, %v6331
    %v7692 = vpack.c.b16 %v6348, %v6332
    %v7693 = vpack.c.b16 %v6349, %v6333
    %v7694 = vpack.c.b16 %v6350, %v6334
    %v7695 = vpack.c.b16 %v6351, %v6335
    %v7696 = vpack.c.b16 %v6352, %v6336
    %v7697 = vpack.c.b16 %v6353, %v6337
    %v7698 = vpack.c.b16 %v6370, %v6354
    %v7699 = vpack.c.b16 %v6371, %v6355
    %v7700 = vpack.c.b16 %v6372, %v6356
    %v7701 = vpack.c.b16 %v6373, %v6357
    %v7702 = vpack.c.b16 %v6374, %v6358
    %v7703 = vpack.c.b16 %v6375, %v6359
    %v7704 = vpack.c.b16 %v6376, %v6360
    %v7705 = vpack.c.b16 %v6377, %v6361
    %v7706 = vpack.c.b16 %v6378, %v6362
    %v7707 = vpack.c.b16 %v6379, %v6363
    %v7708 = vpack.c.b16 %v6380, %v6364
    %v7709 = vpack.c.b16 %v6381, %v6365
    %v7710 = vpack.c.b16 %v6382, %v6366
    %v7711 = vpack.c.b16 %v6383, %v6367
    %v7712 = vpack.c.b16 %v6384, %v6368
    %v7713 = vpack.c.b16 %v6385, %v6369
    %v7714 = vpack.c.b16 %v6402, %v6386
    %v7715 = vpack.c.b16 %v6403, %v6387
    %v7716 = vpack.c.b16 %v6404, %v6388
    %v7717 = vpack.c.b16 %v6405, %v6389
    %v7718 = vpack.c.b16 %v6406, %v6390
    %v7719 = vpack.c.b16 %v6407, %v6391
    %v7720 = vpack.c.b16 %v6408, %v6392
    %v7721 = vpack.c.b16 %v6409, %v6393
    %v7722 = vpack.c.b16 %v6410, %v6394
    %v7723 = vpack.c.b16 %v6411, %v6395
    %v7724 = vpack.c.b16 %v6412, %v6396
    %v7725 = vpack.c.b16 %v6413, %v6397
    %v7726 = vpack.c.b16 %v6414, %v6398
    %v7727 = vpack.c.b16 %v6415, %v6399
    %v7728 = vpack.c.b16 %v6416, %v6400
    %v7729 = vpack.c.b16 %v6417, %v6401
    %v7730 = vpack.c.b16 %v6434, %v6418
    %v7731 = vpack.c.b16 %v6435, %v6419
    %v7732 = vpack.c.b16 %v6436, %v6420
    %v7733 = vpack.c.b16 %v6437, %v6421
    %v7734 = vpack.c.b16 %v6438, %v6422
    %v7735 = vpack.c.b16 %v6439, %v6423
    %v7736 = vpack.c.b16 %v6440, %v6424
    %v7737 = vpack.c.b16 %v6441, %v6425
    %v7738 = vpack.c.b16 %v6442, %v6426
    %v7739 = vpack.c.b16 %v6443, %v6427
    %v7740 = vpack.c.b16 %v6444, %v6428
    %v7741 = vpack.c.b16 %v6445, %v6429
    %v7742 = vpack.c.b16 %v6446, %v6430
    %v7743 = vpack.c.b16 %v6447, %v6431
    %v7744 = vpack.c.b16 %v6448, %v6432
    %v7745 = vpack.c.b16 %v6449, %v6433
    %v7746 = vpack.c.b16 %v6466, %v6450
    %v7747 = vpack.c.b16 %v6467, %v6451
    %v7748 = vpack.c.b16 %v6468, %v6452
    %v7749 = vpack.c.b16 %v6469, %v6453
    %v7750 = vpack.c.b16 %v6470, %v6454
    %v7751 = vpack.c.b16 %v6471, %v6455
    %v7752 = vpack.c.b16 %v6472, %v6456
    %v7753 = vpack.c.b16 %v6473, %v6457
    %v7754 = vpack.c.b16 %v6474, %v6458
    %v7755 = vpack.c.b16 %v6475, %v6459
    %v7756 = vpack.c.b16 %v6476, %v6460
    %v7757 = vpack.c.b16 %v6477, %v6461
    %v7758 = vpack.c.b16 %v6478, %v6462
    %v7759 = vpack.c.b16 %v6479, %v6463
    %v7760 = vpack.c.b16 %v6480, %v6464
    %v7761 = vpack.c.b16 %v6481, %v6465
    %v7762 = vpack.c.b16 %v6498, %v6482
    %v7763 = vpack.c.b16 %v6499, %v6483
    %v7764 = vpack.c.b16 %v6500, %v6484
    %v7765 = vpack.c.b16 %v6501, %v6485
    %v7766 = vpack.c.b16 %v6502, %v6486
    %v7767 = vpack.c.b16 %v6503, %v6487
    %v7768 = vpack.c.b16 %v6504, %v6488
    %v7769 = vpack.c.b16 %v6505, %v6489
    %v7770 = vpack.c.b16 %v6506, %v6490
    %v7771 = vpack.c.b16 %v6507, %v6491
    %v7772 = vpack.c.b16 %v6508, %v6492
    %v7773 = vpack.c.b16 %v6509, %v6493
    %v7774 = vpack.c.b16 %v6510, %v6494
    %v7775 = vpack.c.b16 %v6511, %v6495
    %v7776 = vpack.c.b16 %v6512, %v6496
    %v7777 = vpack.c.b16 %v6513, %v6497
    %v7778 = vpack.c.b16 %v6530, %v6514
    %v7779 = vpack.c.b16 %v6531, %v6515
    %v7780 = vpack.c.b16 %v6532, %v6516
    %v7781 = vpack.c.b16 %v6533, %v6517
    %v7782 = vpack.c.b16 %v6534, %v6518
    %v7783 = vpack.c.b16 %v6535, %v6519
    %v7784 = vpack.c.b16 %v6536, %v6520
    %v7785 = vpack.c.b16 %v6537, %v6521
    %v7786 = vpack.c.b16 %v6538, %v6522
    %v7787 = vpack.c.b16 %v6539, %v6523
    %v7788 = vpack.c.b16 %v6540, %v6524
    %v7789 = vpack.c.b16 %v6541, %v6525
    %v7790 = vpack.c.b16 %v6542, %v6526
    %v7791 = vpack.c.b16 %v6543, %v6527
    %v7792 = vpack.c.b16 %v6544, %v6528
    %v7793 = vpack.c.b16 %v6545, %v6529
    %v7794 = vpack.c.b16 %v6562, %v6546
    %v7795 = vpack.c.b16 %v6563, %v6547
    %v7796 = vpack.c.b16 %v6564, %v6548
    %v7797 = vpack.c.b16 %v6565, %v6549
    %v7798 = vpack.c.b16 %v6566, %v6550
    %v7799 = vpack.c.b16 %v6567, %v6551
    %v7800 = vpack.c.b16 %v6568, %v6552
    %v7801 = vpack.c.b16 %v6569, %v6553
    %v7802 = vpack.c.b16 %v6570, %v6554
    %v7803 = vpack.c.b16 %v6571, %v6555
    %v7804 = vpack.c.b16 %v6572, %v6556
    %v7805 = vpack.c.b16 %v6573, %v6557
    %v7806 = vpack.c.b16 %v6574, %v6558
    %v7807 = vpack.c.b16 %v6575, %v6559
    %v7808 = vpack.c.b16 %v6576, %v6560
    %v7809 = vpack.c.b16 %v6577, %v6561
    %v7810 = vpack.c.b16 %v6594, %v6578
    %v7811 = vpack.c.b16 %v6595, %v6579
    %v7812 = vpack.c.b16 %v6596, %v6580
    %v7813 = vpack.c.b16 %v6597, %v6581
    %v7814 = vpack.c.b16 %v6598, %v6582
    %v7815 = vpack.c.b16 %v6599, %v6583
    %v7816 = vpack.c.b16 %v6600, %v6584
    %v7817 = vpack.c.b16 %v6601, %v6585
    %v7818 = vpack.c.b16 %v6602, %v6586
    %v7819 = vpack.c.b16 %v6603, %v6587
    %v7820 = vpack.c.b16 %v6604, %v6588
    %v7821 = vpack.c.b16 %v6605, %v6589
    %v7822 = vpack.c.b16 %v6606, %v6590
    %v7823 = vpack.c.b16 %v6607, %v6591
    %v7824 = vpack.c.b16 %v6608, %v6592
    %v7825 = vpack.c.b16 %v6609, %v6593
    %v7826 = vpack.c.b16 %v6626, %v6610
    %v7827 = vpack.c.b16 %v6627, %v6611
    %v7828 = vpack.c.b16 %v6628, %v6612
    %v7829 = vpack.c.b16 %v6629, %v6613
    %v7830 = vpack.c.b16 %v6630, %v6614
    %v7831 = vpack.c.b16 %v6631, %v6615
    %v7832 = vpack.c.b16 %v6632, %v6616
    %v7833 = vpack.c.b16 %v6633, %v6617
    %v7834 = vpack.c.b16 %v6634, %v6618
    %v7835 = vpack.c.b16 %v6635, %v6619
    %v7836 = vpack.c.b16 %v6636, %v6620
    %v7837 = vpack.c.b16 %v6637, %v6621
    %v7838 = vpack.c.b16 %v6638, %v6622
    %v7839 = vpack.c.b16 %v6639, %v6623
    %v7840 = vpack.c.b16 %v6640, %v6624
    %v7841 = vpack.c.b16 %v6641, %v6625
    %v7842 = vpack.c.b16 %v6658, %v6642
    %v7843 = vpack.c.b16 %v6659, %v6643
    %v7844 = vpack.c.b16 %v6660, %v6644
    %v7845 = vpack.c.b16 %v6661, %v6645
    %v7846 = vpack.c.b16 %v6662, %v6646
    %v7847 = vpack.c.b16 %v6663, %v6647
    %v7848 = vpack.c.b16 %v6664, %v6648
    %v7849 = vpack.c.b16 %v6665, %v6649
    %v7850 = vpack.c.b16 %v6666, %v6650
    %v7851 = vpack.c.b16 %v6667, %v6651
    %v7852 = vpack.c.b16 %v6668, %v6652
    %v7853 = vpack.c.b16 %v6669, %v6653
    %v7854 = vpack.c.b16 %v6670, %v6654
    %v7855 = vpack.c.b16 %v6671, %v6655
    %v7856 = vpack.c.b16 %v6672, %v6656
    %v7857 = vpack.c.b16 %v6673, %v6657
    %v7858 = vpack.c.b16 %v6690, %v6674
    %v7859 = vpack.c.b16 %v6691, %v6675
    %v7860 = vpack.c.b16 %v6692, %v6676
    %v7861 = vpack.c.b16 %v6693, %v6677
    %v7862 = vpack.c.b16 %v6694, %v6678
    %v7863 = vpack.c.b16 %v6695, %v6679
    %v7864 = vpack.c.b16 %v6696, %v6680
    %v7865 = vpack.c.b16 %v6697, %v6681
    %v7866 = vpack.c.b16 %v6698, %v6682
    %v7867 = vpack.c.b16 %v6699, %v6683
    %v7868 = vpack.c.b16 %v6700, %v6684
    %v7869 = vpack.c.b16 %v6701, %v6685
    %v7870 = vpack.c.b16 %v6702, %v6686
    %v7871 = vpack.c.b16 %v6703, %v6687
    %v7872 = vpack.c.b16 %v6704, %v6688
    %v7873 = vpack.c.b16 %v6705, %v6689
    %v7874 = vpack.c.b16 %v6722, %v6706
    %v7875 = vpack.c.b16 %v6723, %v6707
    %v7876 = vpack.c.b16 %v6724, %v6708
    %v7877 = vpack.c.b16 %v6725, %v6709
    %v7878 = vpack.c.b16 %v6726, %v6710
    %v7879 = vpack.c.b16 %v6727, %v6711
    %v7880 = vpack.c.b16 %v6728, %v6712
    %v7881 = vpack.c.b16 %v6729, %v6713
    %v7882 = vpack.c.b16 %v6730, %v6714
    %v7883 = vpack.c.b16 %v6731, %v6715
    %v7884 = vpack.c.b16 %v6732, %v6716
    %v7885 = vpack.c.b16 %v6733, %v6717
    %v7886 = vpack.c.b16 %v6734, %v6718
    %v7887 = vpack.c.b16 %v6735, %v6719
    %v7888 = vpack.c.b16 %v6736, %v6720
    %v7889 = vpack.c.b16 %v6737, %v6721
    %v7890 = vpack.c.b16 %v6754, %v6738
    %v7891 = vpack.c.b16 %v6755, %v6739
    %v7892 = vpack.c.b16 %v6756, %v6740
    %v7893 = vpack.c.b16 %v6757, %v6741
    %v7894 = vpack.c.b16 %v6758, %v6742
    %v7895 = vpack.c.b16 %v6759, %v6743
    %v7896 = vpack.c.b16 %v6760, %v6744
    %v7897 = vpack.c.b16 %v6761, %v6745
    %v7898 = vpack.c.b16 %v6762, %v6746
    %v7899 = vpack.c.b16 %v6763, %v6747
    %v7900 = vpack.c.b16 %v6764, %v6748
    %v7901 = vpack.c.b16 %v6765, %v6749
    %v7902 = vpack.c.b16 %v6766, %v6750
    %v7903 = vpack.c.b16 %v6767, %v6751
    %v7904 = vpack.c.b16 %v6768, %v6752
    %v7905 = vpack.c.b16 %v6769, %v6753
    %v7906 = vpack.c.b16 %v6786, %v6770
    %v7907 = vpack.c.b16 %v6787, %v6771
    %v7908 = vpack.c.b16 %v6788, %v6772
    %v7909 = vpack.c.b16 %v6789, %v6773
    %v7910 = vpack.c.b16 %v6790, %v6774
    %v7911 = vpack.c.b16 %v6791, %v6775
    %v7912 = vpack.c.b16 %v6792, %v6776
    %v7913 = vpack.c.b16 %v6793, %v6777
    %v7914 = vpack.c.b16 %v6794, %v6778
    %v7915 = vpack.c.b16 %v6795, %v6779
    %v7916 = vpack.c.b16 %v6796, %v6780
    %v7917 = vpack.c.b16 %v6797, %v6781
    %v7918 = vpack.c.b16 %v6798, %v6782
    %v7919 = vpack.c.b16 %v6799, %v6783
    %v7920 = vpack.c.b16 %v6800, %v6784
    %v7921 = vpack.c.b16 %v6801, %v6785
    %v7922 = vpack.c.b16 %v6818, %v6802
    %v7923 = vpack.c.b16 %v6819, %v6803
    %v7924 = vpack.c.b16 %v6820, %v6804
    %v7925 = vpack.c.b16 %v6821, %v6805
    %v7926 = vpack.c.b16 %v6822, %v6806
    %v7927 = vpack.c.b16 %v6823, %v6807
    %v7928 = vpack.c.b16 %v6824, %v6808
    %v7929 = vpack.c.b16 %v6825, %v6809
    %v7930 = vpack.c.b16 %v6826, %v6810
    %v7931 = vpack.c.b16 %v6827, %v6811
    %v7932 = vpack.c.b16 %v6828, %v6812
    %v7933 = vpack.c.b16 %v6829, %v6813
    %v7934 = vpack.c.b16 %v6830, %v6814
    %v7935 = vpack.c.b16 %v6831, %v6815
    %v7936 = vpack.c.b16 %v6832, %v6816
    %v7937 = vpack.c.b16 %v6833, %v6817
    %v7938 = vpack.c.b16 %v6850, %v6834
    %v7939 = vpack.c.b16 %v6851, %v6835
    %v7940 = vpack.c.b16 %v6852, %v6836
    %v7941 = vpack.c.b16 %v6853, %v6837
    %v7942 = vpack.c.b16 %v6854, %v6838
    %v7943 = vpack.c.b16 %v6855, %v6839
    %v7944 = vpack.c.b16 %v6856, %v6840
    %v7945 = vpack.c.b16 %v6857, %v6841
    %v7946 = vpack.c.b16 %v6858, %v6842
    %v7947 = vpack.c.b16 %v6859, %v6843
    %v7948 = vpack.c.b16 %v6860, %v6844
    %v7949 = vpack.c.b16 %v6861, %v6845
    %v7950 = vpack.c.b16 %v6862, %v6846
    %v7951 = vpack.c.b16 %v6863, %v6847
    %v7952 = vpack.c.b16 %v6864, %v6848
    %v7953 = vpack.c.b16 %v6865, %v6849
    %v7954 = vpack.c.b16 %v6882, %v6866
    %v7955 = vpack.c.b16 %v6883, %v6867
    %v7956 = vpack.c.b16 %v6884, %v6868
    %v7957 = vpack.c.b16 %v6885, %v6869
    %v7958 = vpack.c.b16 %v6886, %v6870
    %v7959 = vpack.c.b16 %v6887, %v6871
    %v7960 = vpack.c.b16 %v6888, %v6872
    %v7961 = vpack.c.b16 %v6889, %v6873
    %v7962 = vpack.c.b16 %v6890, %v6874
    %v7963 = vpack.c.b16 %v6891, %v6875
    %v7964 = vpack.c.b16 %v6892, %v6876
    %v7965 = vpack.c.b16 %v6893, %v6877
    %v7966 = vpack.c.b16 %v6894, %v6878
    %v7967 = vpack.c.b16 %v6895, %v6879
    %v7968 = vpack.c.b16 %v6896, %v6880
    %v7969 = vpack.c.b16 %v6897, %v6881
    %v7970 = vpack.c.b16 %v6914, %v6898
    %v7971 = vpack.c.b16 %v6915, %v6899
    %v7972 = vpack.c.b16 %v6916, %v6900
    %v7973 = vpack.c.b16 %v6917, %v6901
    %v7974 = vpack.c.b16 %v6918, %v6902
    %v7975 = vpack.c.b16 %v6919, %v6903
    %v7976 = vpack.c.b16 %v6920, %v6904
    %v7977 = vpack.c.b16 %v6921, %v6905
    %v7978 = vpack.c.b16 %v6922, %v6906
    %v7979 = vpack.c.b16 %v6923, %v6907
    %v7980 = vpack.c.b16 %v6924, %v6908
    %v7981 = vpack.c.b16 %v6925, %v6909
    %v7982 = vpack.c.b16 %v6926, %v6910
    %v7983 = vpack.c.b16 %v6927, %v6911
    %v7984 = vpack.c.b16 %v6928, %v6912
    %v7985 = vpack.c.b16 %v6929, %v6913
    %v7986 = vpack.c.b16 %v6946, %v6930
    %v7987 = vpack.c.b16 %v6947, %v6931
    %v7988 = vpack.c.b16 %v6948, %v6932
    %v7989 = vpack.c.b16 %v6949, %v6933
    %v7990 = vpack.c.b16 %v6950, %v6934
    %v7991 = vpack.c.b16 %v6951, %v6935
    %v7992 = vpack.c.b16 %v6952, %v6936
    %v7993 = vpack.c.b16 %v6953, %v6937
    %v7994 = vpack.c.b16 %v6954, %v6938
    %v7995 = vpack.c.b16 %v6955, %v6939
    %v7996 = vpack.c.b16 %v6956, %v6940
    %v7997 = vpack.c.b16 %v6957, %v6941
    %v7998 = vpack.c.b16 %v6958, %v6942
    %v7999 = vpack.c.b16 %v6959, %v6943
    %v8000 = vpack.c.b16 %v6960, %v6944
    %v8001 = vpack.c.b16 %v6961, %v6945
    %v8002 = vpack.c.b16 %v6978, %v6962
    %v8003 = vpack.c.b16 %v6979, %v6963
    %v8004 = vpack.c.b16 %v6980, %v6964
    %v8005 = vpack.c.b16 %v6981, %v6965
    %v8006 = vpack.c.b16 %v6982, %v6966
    %v8007 = vpack.c.b16 %v6983, %v6967
    %v8008 = vpack.c.b16 %v6984, %v6968
    %v8009 = vpack.c.b16 %v6985, %v6969
    %v8010 = vpack.c.b16 %v6986, %v6970
    %v8011 = vpack.c.b16 %v6987, %v6971
    %v8012 = vpack.c.b16 %v6988, %v6972
    %v8013 = vpack.c.b16 %v6989, %v6973
    %v8014 = vpack.c.b16 %v6990, %v6974
    %v8015 = vpack.c.b16 %v6991, %v6975
    %v8016 = vpack.c.b16 %v6992, %v6976
    %v8017 = vpack.c.b16 %v6993, %v6977
    %9042 = vmatprep.subr.bf16.mxu0 %v6995
    %9043 = vmatpush1.bf16.msra.mxu0 %v6994
    %9044 = vmatprep.subr.bf16.mxu0 %v7011
    %9045 = vmatpush1.bf16.msra.mxu0 %v7010
    %9046 = vmatprep.subr.bf16.mxu0 %v7027
    %9047 = vmatpush1.bf16.msra.mxu0 %v7026
    %9048 = vmatprep.subr.bf16.mxu0 %v7043
    %9049 = vmatpush1.bf16.msra.mxu0 %v7042
    %9050 = vmatprep.subr.bf16.mxu0 %v7059
    %9051 = vmatpush1.bf16.msra.mxu0 %v7058
    %9052 = vmatprep.subr.bf16.mxu0 %v7075
    %9053 = vmatpush1.bf16.msra.mxu0 %v7074
    %9054 = vmatprep.subr.bf16.mxu0 %v7091
    %9055 = vmatpush1.bf16.msra.mxu0 %v7090
    %9056 = vmatprep.subr.bf16.mxu0 %v7107
    %9057 = vmatpush1.bf16.msra.mxu0 %v7106
    %9058 = vmatprep.subr.bf16.mxu0 %v7123
    %9059 = vmatpush1.bf16.msra.mxu0 %v7122
    %9060 = vmatprep.subr.bf16.mxu0 %v7139
    %9061 = vmatpush1.bf16.msra.mxu0 %v7138
    %9062 = vmatprep.subr.bf16.mxu0 %v7155
    %9063 = vmatpush1.bf16.msra.mxu0 %v7154
    %9064 = vmatprep.subr.bf16.mxu0 %v7171
    %9065 = vmatpush1.bf16.msra.mxu0 %v7170
    %9066 = vmatprep.subr.bf16.mxu0 %v7187
    %9067 = vmatpush1.bf16.msra.mxu0 %v7186
    %9068 = vmatprep.subr.bf16.mxu0 %v7203
    %9069 = vmatpush1.bf16.msra.mxu0 %v7202
    %9070 = vmatprep.subr.bf16.mxu0 %v7219
    %9071 = vmatpush1.bf16.msra.mxu0 %v7218
    %9072 = vmatprep.subr.bf16.mxu0 %v7235
    %9073 = vmatpush1.bf16.msra.mxu0 %v7234
    %9074 = vmatprep.mubr.bf16.mxu0 %v2801
    %9075 = vmatmul.mubr.bf16.gmra.mrb[0].mxu0 %v2800
    %v9076 = vpop.f32.mrb[0].mxu0
    %v9077 = vadd.f32 %v3845, %v9076
    %v9078 = vpop.f32.mrb[0].mxu0
    %v9079 = vadd.f32 %v3849, %v9078
    %v9080 = vpop.f32.mrb[0].mxu0
    %v9081 = vpop.f32.mrb[0].mxu0
    %9082 = vdwg.mxu0
    %9083 = vmatprep.subr.bf16.mxu0 %v7251
    %9084 = vmatpush1.bf16.msra.mxu0 %v7250
    %9085 = vmatprep.subr.bf16.mxu0 %v7267
    %9086 = vmatpush1.bf16.msra.mxu0 %v7266
    %9087 = vmatprep.subr.bf16.mxu0 %v7283
    %9088 = vmatpush1.bf16.msra.mxu0 %v7282
    %9089 = vmatprep.subr.bf16.mxu0 %v7299
    %9090 = vmatpush1.bf16.msra.mxu0 %v7298
    %9091 = vmatprep.subr.bf16.mxu0 %v7315
    %9092 = vmatpush1.bf16.msra.mxu0 %v7314
    %9093 = vmatprep.subr.bf16.mxu0 %v7331
    %9094 = vmatpush1.bf16.msra.mxu0 %v7330
    %9095 = vmatprep.subr.bf16.mxu0 %v7347
    %9096 = vmatpush1.bf16.msra.mxu0 %v7346
    %9097 = vmatprep.subr.bf16.mxu0 %v7363
    %9098 = vmatpush1.bf16.msra.mxu0 %v7362
    %9099 = vmatprep.subr.bf16.mxu0 %v7379
    %9100 = vmatpush1.bf16.msra.mxu0 %v7378
    %9101 = vmatprep.subr.bf16.mxu0 %v7395
    %9102 = vmatpush1.bf16.msra.mxu0 %v7394
    %9103 = vmatprep.subr.bf16.mxu0 %v7411
    %9104 = vmatpush1.bf16.msra.mxu0 %v7410
    %9105 = vmatprep.subr.bf16.mxu0 %v7427
    %9106 = vmatpush1.bf16.msra.mxu0 %v7426
    %9107 = vmatprep.subr.bf16.mxu0 %v7443
    %9108 = vmatpush1.bf16.msra.mxu0 %v7442
    %9109 = vmatprep.subr.bf16.mxu0 %v7459
    %9110 = vmatpush1.bf16.msra.mxu0 %v7458
    %9111 = vmatprep.subr.bf16.mxu0 %v7475
    %9112 = vmatpush1.bf16.msra.mxu0 %v7474
    %9113 = vmatprep.subr.bf16.mxu0 %v7491
    %9114 = vmatpush1.bf16.msra.mxu0 %v7490
    %9115 = vmatprep.mubr.bf16.mxu0 %v2803
    %9116 = vmatmul.mubr.bf16.gmra.mrb[0].mxu0 %v2802
    %v9117 = vpop.f32.mrb[0].mxu0
    %v9118 = vadd.f32 %v9077, %v9117
    %v9119 = vpop.f32.mrb[0].mxu0
    %v9120 = vadd.f32 %v9079, %v9119
    %v9121 = vpop.f32.mrb[0].mxu0
    %v9122 = vpop.f32.mrb[0].mxu0
    %9123 = vdwg.mxu0
    %9124 = vmatprep.subr.bf16.mxu0 %v7507
    %9125 = vmatpush1.bf16.msra.mxu0 %v7506
    %9126 = vmatprep.subr.bf16.mxu0 %v7523
    %9127 = vmatpush1.bf16.msra.mxu0 %v7522
    %9128 = vmatprep.subr.bf16.mxu0 %v7539
    %9129 = vmatpush1.bf16.msra.mxu0 %v7538
    %9130 = vmatprep.subr.bf16.mxu0 %v7555
    %9131 = vmatpush1.bf16.msra.mxu0 %v7554
    %9132 = vmatprep.subr.bf16.mxu0 %v7571
    %9133 = vmatpush1.bf16.msra.mxu0 %v7570
    %9134 = vmatprep.subr.bf16.mxu0 %v7587
    %9135 = vmatpush1.bf16.msra.mxu0 %v7586
    %9136 = vmatprep.subr.bf16.mxu0 %v7603
    %9137 = vmatpush1.bf16.msra.mxu0 %v7602
    %9138 = vmatprep.subr.bf16.mxu0 %v7619
    %9139 = vmatpush1.bf16.msra.mxu0 %v7618
    %9140 = vmatprep.subr.bf16.mxu0 %v7635
    %9141 = vmatpush1.bf16.msra.mxu0 %v7634
    %9142 = vmatprep.subr.bf16.mxu0 %v7651
    %9143 = vmatpush1.bf16.msra.mxu0 %v7650
    %9144 = vmatprep.subr.bf16.mxu0 %v7667
    %9145 = vmatpush1.bf16.msra.mxu0 %v7666
    %9146 = vmatprep.subr.bf16.mxu0 %v7683
    %9147 = vmatpush1.bf16.msra.mxu0 %v7682
    %9148 = vmatprep.subr.bf16.mxu0 %v7699
    %9149 = vmatpush1.bf16.msra.mxu0 %v7698
    %9150 = vmatprep.subr.bf16.mxu0 %v7715
    %9151 = vmatpush1.bf16.msra.mxu0 %v7714
    %9152 = vmatprep.subr.bf16.mxu0 %v7731
    %9153 = vmatpush1.bf16.msra.mxu0 %v7730
    %9154 = vmatprep.subr.bf16.mxu0 %v7747
    %9155 = vmatpush1.bf16.msra.mxu0 %v7746
    %9156 = vmatprep.mubr.bf16.mxu0 %v2805
    %9157 = vmatmul.mubr.bf16.gmra.mrb[0].mxu0 %v2804
    %v9158 = vpop.f32.mrb[0].mxu0
    %v9159 = vadd.f32 %v9118, %v9158
    %v9160 = vpop.f32.mrb[0].mxu0
    %v9161 = vadd.f32 %v9120, %v9160
    %v9162 = vpop.f32.mrb[0].mxu0
    %v9163 = vpop.f32.mrb[0].mxu0
    %9164 = vdwg.mxu0
    %9165 = vmatprep.subr.bf16.mxu0 %v7763
    %9166 = vmatpush1.bf16.msra.mxu0 %v7762
    %9167 = vmatprep.subr.bf16.mxu0 %v7779
    %9168 = vmatpush1.bf16.msra.mxu0 %v7778
    %9169 = vmatprep.subr.bf16.mxu0 %v7795
    %9170 = vmatpush1.bf16.msra.mxu0 %v7794
    %9171 = vmatprep.subr.bf16.mxu0 %v7811
    %9172 = vmatpush1.bf16.msra.mxu0 %v7810
    %9173 = vmatprep.subr.bf16.mxu0 %v7827
    %9174 = vmatpush1.bf16.msra.mxu0 %v7826
    %9175 = vmatprep.subr.bf16.mxu0 %v7843
    %9176 = vmatpush1.bf16.msra.mxu0 %v7842
    %9177 = vmatprep.subr.bf16.mxu0 %v7859
    %9178 = vmatpush1.bf16.msra.mxu0 %v7858
    %9179 = vmatprep.subr.bf16.mxu0 %v7875
    %9180 = vmatpush1.bf16.msra.mxu0 %v7874
    %9181 = vmatprep.subr.bf16.mxu0 %v7891
    %9182 = vmatpush1.bf16.msra.mxu0 %v7890
    %9183 = vmatprep.subr.bf16.mxu0 %v7907
    %9184 = vmatpush1.bf16.msra.mxu0 %v7906
    %9185 = vmatprep.subr.bf16.mxu0 %v7923
    %9186 = vmatpush1.bf16.msra.mxu0 %v7922
    %9187 = vmatprep.subr.bf16.mxu0 %v7939
    %9188 = vmatpush1.bf16.msra.mxu0 %v7938
    %9189 = vmatprep.subr.bf16.mxu0 %v7955
    %9190 = vmatpush1.bf16.msra.mxu0 %v7954
    %9191 = vmatprep.subr.bf16.mxu0 %v7971
    %9192 = vmatpush1.bf16.msra.mxu0 %v7970
    %9193 = vmatprep.subr.bf16.mxu0 %v7987
    %9194 = vmatpush1.bf16.msra.mxu0 %v7986
    %9195 = vmatprep.subr.bf16.mxu0 %v8003
    %9196 = vmatpush1.bf16.msra.mxu0 %v8002
    %9197 = vmatprep.mubr.bf16.mxu0 %v2807
    %9198 = vmatmul.mubr.bf16.gmra.mrb[0].mxu0 %v2806
    %v9199 = vpop.f32.mrb[0].mxu0
    %v9200 = vadd.f32 %v9159, %v9199
    %v9201 = vpop.f32.mrb[0].mxu0
    %v9202 = vadd.f32 %v9161, %v9201
    %v9203 = vpop.f32.mrb[0].mxu0
    %v9204 = vpop.f32.mrb[0].mxu0
    %9205 = vdwg.mxu0
    %9206 = vmatprep.subr.bf16.mxu0 %v6997
    %9207 = vmatpush1.bf16.msra.mxu0 %v6996
    %9208 = vmatprep.subr.bf16.mxu0 %v7013
    %9209 = vmatpush1.bf16.msra.mxu0 %v7012
    %9210 = vmatprep.subr.bf16.mxu0 %v7029
    %9211 = vmatpush1.bf16.msra.mxu0 %v7028
    %9212 = vmatprep.subr.bf16.mxu0 %v7045
    %9213 = vmatpush1.bf16.msra.mxu0 %v7044
    %9214 = vmatprep.subr.bf16.mxu0 %v7061
    %9215 = vmatpush1.bf16.msra.mxu0 %v7060
    %9216 = vmatprep.subr.bf16.mxu0 %v7077
    %9217 = vmatpush1.bf16.msra.mxu0 %v7076
    %9218 = vmatprep.subr.bf16.mxu0 %v7093
    %9219 = vmatpush1.bf16.msra.mxu0 %v7092
    %9220 = vmatprep.subr.bf16.mxu0 %v7109
    %9221 = vmatpush1.bf16.msra.mxu0 %v7108
    %9222 = vmatprep.subr.bf16.mxu0 %v7125
    %9223 = vmatpush1.bf16.msra.mxu0 %v7124
    %9224 = vmatprep.subr.bf16.mxu0 %v7141
    %9225 = vmatpush1.bf16.msra.mxu0 %v7140
    %9226 = vmatprep.subr.bf16.mxu0 %v7157
    %9227 = vmatpush1.bf16.msra.mxu0 %v7156
    %9228 = vmatprep.subr.bf16.mxu0 %v7173
    %9229 = vmatpush1.bf16.msra.mxu0 %v7172
    %9230 = vmatprep.subr.bf16.mxu0 %v7189
    %9231 = vmatpush1.bf16.msra.mxu0 %v7188
    %9232 = vmatprep.subr.bf16.mxu0 %v7205
    %9233 = vmatpush1.bf16.msra.mxu0 %v7204
    %9234 = vmatprep.subr.bf16.mxu0 %v7221
    %9235 = vmatpush1.bf16.msra.mxu0 %v7220
    %9236 = vmatprep.subr.bf16.mxu0 %v7237
    %9237 = vmatpush1.bf16.msra.mxu0 %v7236
    %9238 = vmatprep.mubr.bf16.mxu0 %v2801
    %9239 = vmatmul.mubr.bf16.gmra.mrb[0].mxu0 %v2800
    %v9240 = vpop.f32.mrb[0].mxu0
    %v9241 = vadd.f32 %v3853, %v9240
    %v9242 = vpop.f32.mrb[0].mxu0
    %v9243 = vadd.f32 %v3857, %v9242
    %v9244 = vpop.f32.mrb[0].mxu0
    %v9245 = vpop.f32.mrb[0].mxu0
    %9246 = vdwg.mxu0
    %9247 = vmatprep.subr.bf16.mxu0 %v7253
    %9248 = vmatpush1.bf16.msra.mxu0 %v7252
    %9249 = vmatprep.subr.bf16.mxu0 %v7269
    %9250 = vmatpush1.bf16.msra.mxu0 %v7268
    %9251 = vmatprep.subr.bf16.mxu0 %v7285
    %9252 = vmatpush1.bf16.msra.mxu0 %v7284
    %9253 = vmatprep.subr.bf16.mxu0 %v7301
    %9254 = vmatpush1.bf16.msra.mxu0 %v7300
    %9255 = vmatprep.subr.bf16.mxu0 %v7317
    %9256 = vmatpush1.bf16.msra.mxu0 %v7316
    %9257 = vmatprep.subr.bf16.mxu0 %v7333
    %9258 = vmatpush1.bf16.msra.mxu0 %v7332
    %9259 = vmatprep.subr.bf16.mxu0 %v7349
    %9260 = vmatpush1.bf16.msra.mxu0 %v7348
    %9261 = vmatprep.subr.bf16.mxu0 %v7365
    %9262 = vmatpush1.bf16.msra.mxu0 %v7364
    %9263 = vmatprep.subr.bf16.mxu0 %v7381
    %9264 = vmatpush1.bf16.msra.mxu0 %v7380
    %9265 = vmatprep.subr.bf16.mxu0 %v7397
    %9266 = vmatpush1.bf16.msra.mxu0 %v7396
    %9267 = vmatprep.subr.bf16.mxu0 %v7413
    %9268 = vmatpush1.bf16.msra.mxu0 %v7412
    %9269 = vmatprep.subr.bf16.mxu0 %v7429
    %9270 = vmatpush1.bf16.msra.mxu0 %v7428
    %9271 = vmatprep.subr.bf16.mxu0 %v7445
    %9272 = vmatpush1.bf16.msra.mxu0 %v7444
    %9273 = vmatprep.subr.bf16.mxu0 %v7461
    %9274 = vmatpush1.bf16.msra.mxu0 %v7460
    %9275 = vmatprep.subr.bf16.mxu0 %v7477
    %9276 = vmatpush1.bf16.msra.mxu0 %v7476
    %9277 = vmatprep.subr.bf16.mxu0 %v7493
    %9278 = vmatpush1.bf16.msra.mxu0 %v7492
    %9279 = vmatprep.mubr.bf16.mxu0 %v2803
    %9280 = vmatmul.mubr.bf16.gmra.mrb[0].mxu0 %v2802
    %v9281 = vpop.f32.mrb[0].mxu0
    %v9282 = vadd.f32 %v9241, %v9281
    %v9283 = vpop.f32.mrb[0].mxu0
    %v9284 = vadd.f32 %v9243, %v9283
    %v9285 = vpop.f32.mrb[0].mxu0
    %v9286 = vpop.f32.mrb[0].mxu0
    %9287 = vdwg.mxu0
    %9288 = vmatprep.subr.bf16.mxu0 %v7509
    %9289 = vmatpush1.bf16.msra.mxu0 %v7508
    %9290 = vmatprep.subr.bf16.mxu0 %v7525
    %9291 = vmatpush1.bf16.msra.mxu0 %v7524
    %9292 = vmatprep.subr.bf16.mxu0 %v7541
    %9293 = vmatpush1.bf16.msra.mxu0 %v7540
    %9294 = vmatprep.subr.bf16.mxu0 %v7557
    %9295 = vmatpush1.bf16.msra.mxu0 %v7556
    %9296 = vmatprep.subr.bf16.mxu0 %v7573
    %9297 = vmatpush1.bf16.msra.mxu0 %v7572
    %9298 = vmatprep.subr.bf16.mxu0 %v7589
    %9299 = vmatpush1.bf16.msra.mxu0 %v7588
    %9300 = vmatprep.subr.bf16.mxu0 %v7605
    %9301 = vmatpush1.bf16.msra.mxu0 %v7604
    %9302 = vmatprep.subr.bf16.mxu0 %v7621
    %9303 = vmatpush1.bf16.msra.mxu0 %v7620
    %9304 = vmatprep.subr.bf16.mxu0 %v7637
    %9305 = vmatpush1.bf16.msra.mxu0 %v7636
    %9306 = vmatprep.subr.bf16.mxu0 %v7653
    %9307 = vmatpush1.bf16.msra.mxu0 %v7652
    %9308 = vmatprep.subr.bf16.mxu0 %v7669
    %9309 = vmatpush1.bf16.msra.mxu0 %v7668
    %9310 = vmatprep.subr.bf16.mxu0 %v7685
    %9311 = vmatpush1.bf16.msra.mxu0 %v7684
    %9312 = vmatprep.subr.bf16.mxu0 %v7701
    %9313 = vmatpush1.bf16.msra.mxu0 %v7700
    %9314 = vmatprep.subr.bf16.mxu0 %v7717
    %9315 = vmatpush1.bf16.msra.mxu0 %v7716
    %9316 = vmatprep.subr.bf16.mxu0 %v7733
    %9317 = vmatpush1.bf16.msra.mxu0 %v7732
    %9318 = vmatprep.subr.bf16.mxu0 %v7749
    %9319 = vmatpush1.bf16.msra.mxu0 %v7748
    %9320 = vmatprep.mubr.bf16.mxu0 %v2805
    %9321 = vmatmul.mubr.bf16.gmra.mrb[0].mxu0 %v2804
    %v9322 = vpop.f32.mrb[0].mxu0
    %v9323 = vadd.f32 %v9282, %v9322
    %v9324 = vpop.f32.mrb[0].mxu0
    %v9325 = vadd.f32 %v9284, %v9324
    %v9326 = vpop.f32.mrb[0].mxu0
    %v9327 = vpop.f32.mrb[0].mxu0
    %9328 = vdwg.mxu0
    %9329 = vmatprep.subr.bf16.mxu0 %v7765
    %9330 = vmatpush1.bf16.msra.mxu0 %v7764
    %9331 = vmatprep.subr.bf16.mxu0 %v7781
    %9332 = vmatpush1.bf16.msra.mxu0 %v7780
    %9333 = vmatprep.subr.bf16.mxu0 %v7797
    %9334 = vmatpush1.bf16.msra.mxu0 %v7796
    %9335 = vmatprep.subr.bf16.mxu0 %v7813
    %9336 = vmatpush1.bf16.msra.mxu0 %v7812
    %9337 = vmatprep.subr.bf16.mxu0 %v7829
    %9338 = vmatpush1.bf16.msra.mxu0 %v7828
    %9339 = vmatprep.subr.bf16.mxu0 %v7845
    %9340 = vmatpush1.bf16.msra.mxu0 %v7844
    %9341 = vmatprep.subr.bf16.mxu0 %v7861
    %9342 = vmatpush1.bf16.msra.mxu0 %v7860
    %9343 = vmatprep.subr.bf16.mxu0 %v7877
    %9344 = vmatpush1.bf16.msra.mxu0 %v7876
    %9345 = vmatprep.subr.bf16.mxu0 %v7893
    %9346 = vmatpush1.bf16.msra.mxu0 %v7892
    %9347 = vmatprep.subr.bf16.mxu0 %v7909
    %9348 = vmatpush1.bf16.msra.mxu0 %v7908
    %9349 = vmatprep.subr.bf16.mxu0 %v7925
    %9350 = vmatpush1.bf16.msra.mxu0 %v7924
    %9351 = vmatprep.subr.bf16.mxu0 %v7941
    %9352 = vmatpush1.bf16.msra.mxu0 %v7940
    %9353 = vmatprep.subr.bf16.mxu0 %v7957
    %9354 = vmatpush1.bf16.msra.mxu0 %v7956
    %9355 = vmatprep.subr.bf16.mxu0 %v7973
    %9356 = vmatpush1.bf16.msra.mxu0 %v7972
    %9357 = vmatprep.subr.bf16.mxu0 %v7989
    %9358 = vmatpush1.bf16.msra.mxu0 %v7988
    %9359 = vmatprep.subr.bf16.mxu0 %v8005
    %9360 = vmatpush1.bf16.msra.mxu0 %v8004
    %9361 = vmatprep.mubr.bf16.mxu0 %v2807
    %9362 = vmatmul.mubr.bf16.gmra.mrb[0].mxu0 %v2806
    %v9363 = vpop.f32.mrb[0].mxu0
    %v9364 = vadd.f32 %v9323, %v9363
    %v9365 = vpop.f32.mrb[0].mxu0
    %v9366 = vadd.f32 %v9325, %v9365
    %v9367 = vpop.f32.mrb[0].mxu0
    %v9368 = vpop.f32.mrb[0].mxu0
    %9369 = vdwg.mxu0
    %9370 = vmatprep.subr.bf16.mxu0 %v6999
    %9371 = vmatpush1.bf16.msra.mxu0 %v6998
    %9372 = vmatprep.subr.bf16.mxu0 %v7015
    %9373 = vmatpush1.bf16.msra.mxu0 %v7014
    %9374 = vmatprep.subr.bf16.mxu0 %v7031
    %9375 = vmatpush1.bf16.msra.mxu0 %v7030
    %9376 = vmatprep.subr.bf16.mxu0 %v7047
    %9377 = vmatpush1.bf16.msra.mxu0 %v7046
    %9378 = vmatprep.subr.bf16.mxu0 %v7063
    %9379 = vmatpush1.bf16.msra.mxu0 %v7062
    %9380 = vmatprep.subr.bf16.mxu0 %v7079
    %9381 = vmatpush1.bf16.msra.mxu0 %v7078
    %9382 = vmatprep.subr.bf16.mxu0 %v7095
    %9383 = vmatpush1.bf16.msra.mxu0 %v7094
    %9384 = vmatprep.subr.bf16.mxu0 %v7111
    %9385 = vmatpush1.bf16.msra.mxu0 %v7110
    %9386 = vmatprep.subr.bf16.mxu0 %v7127
    %9387 = vmatpush1.bf16.msra.mxu0 %v7126
    %9388 = vmatprep.subr.bf16.mxu0 %v7143
    %9389 = vmatpush1.bf16.msra.mxu0 %v7142
    %9390 = vmatprep.subr.bf16.mxu0 %v7159
    %9391 = vmatpush1.bf16.msra.mxu0 %v7158
    %9392 = vmatprep.subr.bf16.mxu0 %v7175
    %9393 = vmatpush1.bf16.msra.mxu0 %v7174
    %9394 = vmatprep.subr.bf16.mxu0 %v7191
    %9395 = vmatpush1.bf16.msra.mxu0 %v7190
    %9396 = vmatprep.subr.bf16.mxu0 %v7207
    %9397 = vmatpush1.bf16.msra.mxu0 %v7206
    %9398 = vmatprep.subr.bf16.mxu0 %v7223
    %9399 = vmatpush1.bf16.msra.mxu0 %v7222
    %9400 = vmatprep.subr.bf16.mxu0 %v7239
    %9401 = vmatpush1.bf16.msra.mxu0 %v7238
    %9402 = vmatprep.mubr.bf16.mxu0 %v2801
    %9403 = vmatmul.mubr.bf16.gmra.mrb[0].mxu0 %v2800
    %v9404 = vpop.f32.mrb[0].mxu0
    %v9405 = vadd.f32 %v3861, %v9404
    %v9406 = vpop.f32.mrb[0].mxu0
    %v9407 = vadd.f32 %v3865, %v9406
    %v9408 = vpop.f32.mrb[0].mxu0
    %v9409 = vpop.f32.mrb[0].mxu0
    %9410 = vdwg.mxu0
    %9411 = vmatprep.subr.bf16.mxu0 %v7255
    %9412 = vmatpush1.bf16.msra.mxu0 %v7254
    %9413 = vmatprep.subr.bf16.mxu0 %v7271
    %9414 = vmatpush1.bf16.msra.mxu0 %v7270
    %9415 = vmatprep.subr.bf16.mxu0 %v7287
    %9416 = vmatpush1.bf16.msra.mxu0 %v7286
    %9417 = vmatprep.subr.bf16.mxu0 %v7303
    %9418 = vmatpush1.bf16.msra.mxu0 %v7302
    %9419 = vmatprep.subr.bf16.mxu0 %v7319
    %9420 = vmatpush1.bf16.msra.mxu0 %v7318
    %9421 = vmatprep.subr.bf16.mxu0 %v7335
    %9422 = vmatpush1.bf16.msra.mxu0 %v7334
    %9423 = vmatprep.subr.bf16.mxu0 %v7351
    %9424 = vmatpush1.bf16.msra.mxu0 %v7350
    %9425 = vmatprep.subr.bf16.mxu0 %v7367
    %9426 = vmatpush1.bf16.msra.mxu0 %v7366
    %9427 = vmatprep.subr.bf16.mxu0 %v7383
    %9428 = vmatpush1.bf16.msra.mxu0 %v7382
    %9429 = vmatprep.subr.bf16.mxu0 %v7399
    %9430 = vmatpush1.bf16.msra.mxu0 %v7398
    %9431 = vmatprep.subr.bf16.mxu0 %v7415
    %9432 = vmatpush1.bf16.msra.mxu0 %v7414
    %9433 = vmatprep.subr.bf16.mxu0 %v7431
    %9434 = vmatpush1.bf16.msra.mxu0 %v7430
    %9435 = vmatprep.subr.bf16.mxu0 %v7447
    %9436 = vmatpush1.bf16.msra.mxu0 %v7446
    %9437 = vmatprep.subr.bf16.mxu0 %v7463
    %9438 = vmatpush1.bf16.msra.mxu0 %v7462
    %9439 = vmatprep.subr.bf16.mxu0 %v7479
    %9440 = vmatpush1.bf16.msra.mxu0 %v7478
    %9441 = vmatprep.subr.bf16.mxu0 %v7495
    %9442 = vmatpush1.bf16.msra.mxu0 %v7494
    %9443 = vmatprep.mubr.bf16.mxu0 %v2803
    %9444 = vmatmul.mubr.bf16.gmra.mrb[0].mxu0 %v2802
    %v9445 = vpop.f32.mrb[0].mxu0
    %v9446 = vadd.f32 %v9405, %v9445
    %v9447 = vpop.f32.mrb[0].mxu0
    %v9448 = vadd.f32 %v9407, %v9447
    %v9449 = vpop.f32.mrb[0].mxu0
    %v9450 = vpop.f32.mrb[0].mxu0
    %9451 = vdwg.mxu0
    %9452 = vmatprep.subr.bf16.mxu0 %v7511
    %9453 = vmatpush1.bf16.msra.mxu0 %v7510
    %9454 = vmatprep.subr.bf16.mxu0 %v7527
    %9455 = vmatpush1.bf16.msra.mxu0 %v7526
    %9456 = vmatprep.subr.bf16.mxu0 %v7543
    %9457 = vmatpush1.bf16.msra.mxu0 %v7542
    %9458 = vmatprep.subr.bf16.mxu0 %v7559
    %9459 = vmatpush1.bf16.msra.mxu0 %v7558
    %9460 = vmatprep.subr.bf16.mxu0 %v7575
    %9461 = vmatpush1.bf16.msra.mxu0 %v7574
    %9462 = vmatprep.subr.bf16.mxu0 %v7591
    %9463 = vmatpush1.bf16.msra.mxu0 %v7590
    %9464 = vmatprep.subr.bf16.mxu0 %v7607
    %9465 = vmatpush1.bf16.msra.mxu0 %v7606
    %9466 = vmatprep.subr.bf16.mxu0 %v7623
    %9467 = vmatpush1.bf16.msra.mxu0 %v7622
    %9468 = vmatprep.subr.bf16.mxu0 %v7639
    %9469 = vmatpush1.bf16.msra.mxu0 %v7638
    %9470 = vmatprep.subr.bf16.mxu0 %v7655
    %9471 = vmatpush1.bf16.msra.mxu0 %v7654
    %9472 = vmatprep.subr.bf16.mxu0 %v7671
    %9473 = vmatpush1.bf16.msra.mxu0 %v7670
    %9474 = vmatprep.subr.bf16.mxu0 %v7687
    %9475 = vmatpush1.bf16.msra.mxu0 %v7686
    %9476 = vmatprep.subr.bf16.mxu0 %v7703
    %9477 = vmatpush1.bf16.msra.mxu0 %v7702
    %9478 = vmatprep.subr.bf16.mxu0 %v7719
    %9479 = vmatpush1.bf16.msra.mxu0 %v7718
    %9480 = vmatprep.subr.bf16.mxu0 %v7735
    %9481 = vmatpush1.bf16.msra.mxu0 %v7734
    %9482 = vmatprep.subr.bf16.mxu0 %v7751
    %9483 = vmatpush1.bf16.msra.mxu0 %v7750
    %9484 = vmatprep.mubr.bf16.mxu0 %v2805
    %9485 = vmatmul.mubr.bf16.gmra.mrb[0].mxu0 %v2804
    %v9486 = vpop.f32.mrb[0].mxu0
    %v9487 = vadd.f32 %v9446, %v9486
    %v9488 = vpop.f32.mrb[0].mxu0
    %v9489 = vadd.f32 %v9448, %v9488
    %v9490 = vpop.f32.mrb[0].mxu0
    %v9491 = vpop.f32.mrb[0].mxu0
    %9492 = vdwg.mxu0
    %9493 = vmatprep.subr.bf16.mxu0 %v7767
    %9494 = vmatpush1.bf16.msra.mxu0 %v7766
    %9495 = vmatprep.subr.bf16.mxu0 %v7783
    %9496 = vmatpush1.bf16.msra.mxu0 %v7782
    %9497 = vmatprep.subr.bf16.mxu0 %v7799
    %9498 = vmatpush1.bf16.msra.mxu0 %v7798
    %9499 = vmatprep.subr.bf16.mxu0 %v7815
    %9500 = vmatpush1.bf16.msra.mxu0 %v7814
    %9501 = vmatprep.subr.bf16.mxu0 %v7831
    %9502 = vmatpush1.bf16.msra.mxu0 %v7830
    %9503 = vmatprep.subr.bf16.mxu0 %v7847
    %9504 = vmatpush1.bf16.msra.mxu0 %v7846
    %9505 = vmatprep.subr.bf16.mxu0 %v7863
    %9506 = vmatpush1.bf16.msra.mxu0 %v7862
    %9507 = vmatprep.subr.bf16.mxu0 %v7879
    %9508 = vmatpush1.bf16.msra.mxu0 %v7878
    %9509 = vmatprep.subr.bf16.mxu0 %v7895
    %9510 = vmatpush1.bf16.msra.mxu0 %v7894
    %9511 = vmatprep.subr.bf16.mxu0 %v7911
    %9512 = vmatpush1.bf16.msra.mxu0 %v7910
    %9513 = vmatprep.subr.bf16.mxu0 %v7927
    %9514 = vmatpush1.bf16.msra.mxu0 %v7926
    %9515 = vmatprep.subr.bf16.mxu0 %v7943
    %9516 = vmatpush1.bf16.msra.mxu0 %v7942
    %9517 = vmatprep.subr.bf16.mxu0 %v7959
    %9518 = vmatpush1.bf16.msra.mxu0 %v7958
    %9519 = vmatprep.subr.bf16.mxu0 %v7975
    %9520 = vmatpush1.bf16.msra.mxu0 %v7974
    %9521 = vmatprep.subr.bf16.mxu0 %v7991
    %9522 = vmatpush1.bf16.msra.mxu0 %v7990
    %9523 = vmatprep.subr.bf16.mxu0 %v8007
    %9524 = vmatpush1.bf16.msra.mxu0 %v8006
    %9525 = vmatprep.mubr.bf16.mxu0 %v2807
    %9526 = vmatmul.mubr.bf16.gmra.mrb[0].mxu0 %v2806
    %v9527 = vpop.f32.mrb[0].mxu0
    %v9528 = vadd.f32 %v9487, %v9527
    %v9529 = vpop.f32.mrb[0].mxu0
    %v9530 = vadd.f32 %v9489, %v9529
    %v9531 = vpop.f32.mrb[0].mxu0
    %v9532 = vpop.f32.mrb[0].mxu0
    %9533 = vdwg.mxu0
    %9534 = vmatprep.subr.bf16.mxu0 %v7001
    %9535 = vmatpush1.bf16.msra.mxu0 %v7000
    %9536 = vmatprep.subr.bf16.mxu0 %v7017
    %9537 = vmatpush1.bf16.msra.mxu0 %v7016
    %9538 = vmatprep.subr.bf16.mxu0 %v7033
    %9539 = vmatpush1.bf16.msra.mxu0 %v7032
    %9540 = vmatprep.subr.bf16.mxu0 %v7049
    %9541 = vmatpush1.bf16.msra.mxu0 %v7048
    %9542 = vmatprep.subr.bf16.mxu0 %v7065
    %9543 = vmatpush1.bf16.msra.mxu0 %v7064
    %9544 = vmatprep.subr.bf16.mxu0 %v7081
    %9545 = vmatpush1.bf16.msra.mxu0 %v7080
    %9546 = vmatprep.subr.bf16.mxu0 %v7097
    %9547 = vmatpush1.bf16.msra.mxu0 %v7096
    %9548 = vmatprep.subr.bf16.mxu0 %v7113
    %9549 = vmatpush1.bf16.msra.mxu0 %v7112
    %9550 = vmatprep.subr.bf16.mxu0 %v7129
    %9551 = vmatpush1.bf16.msra.mxu0 %v7128
    %9552 = vmatprep.subr.bf16.mxu0 %v7145
    %9553 = vmatpush1.bf16.msra.mxu0 %v7144
    %9554 = vmatprep.subr.bf16.mxu0 %v7161
    %9555 = vmatpush1.bf16.msra.mxu0 %v7160
    %9556 = vmatprep.subr.bf16.mxu0 %v7177
    %9557 = vmatpush1.bf16.msra.mxu0 %v7176
    %9558 = vmatprep.subr.bf16.mxu0 %v7193
    %9559 = vmatpush1.bf16.msra.mxu0 %v7192
    %9560 = vmatprep.subr.bf16.mxu0 %v7209
    %9561 = vmatpush1.bf16.msra.mxu0 %v7208
    %9562 = vmatprep.subr.bf16.mxu0 %v7225
    %9563 = vmatpush1.bf16.msra.mxu0 %v7224
    %9564 = vmatprep.subr.bf16.mxu0 %v7241
    %9565 = vmatpush1.bf16.msra.mxu0 %v7240
    %9566 = vmatprep.mubr.bf16.mxu0 %v2801
    %9567 = vmatmul.mubr.bf16.gmra.mrb[0].mxu0 %v2800
    %v9568 = vpop.f32.mrb[0].mxu0
    %v9569 = vadd.f32 %v3869, %v9568
    %v9570 = vpop.f32.mrb[0].mxu0
    %v9571 = vadd.f32 %v3873, %v9570
    %v9572 = vpop.f32.mrb[0].mxu0
    %v9573 = vpop.f32.mrb[0].mxu0
    %9574 = vdwg.mxu0
    %9575 = vmatprep.subr.bf16.mxu0 %v7257
    %9576 = vmatpush1.bf16.msra.mxu0 %v7256
    %9577 = vmatprep.subr.bf16.mxu0 %v7273
    %9578 = vmatpush1.bf16.msra.mxu0 %v7272
    %9579 = vmatprep.subr.bf16.mxu0 %v7289
    %9580 = vmatpush1.bf16.msra.mxu0 %v7288
    %9581 = vmatprep.subr.bf16.mxu0 %v7305
    %9582 = vmatpush1.bf16.msra.mxu0 %v7304
    %9583 = vmatprep.subr.bf16.mxu0 %v7321
    %9584 = vmatpush1.bf16.msra.mxu0 %v7320
    %9585 = vmatprep.subr.bf16.mxu0 %v7337
    %9586 = vmatpush1.bf16.msra.mxu0 %v7336
    %9587 = vmatprep.subr.bf16.mxu0 %v7353
    %9588 = vmatpush1.bf16.msra.mxu0 %v7352
    %9589 = vmatprep.subr.bf16.mxu0 %v7369
    %9590 = vmatpush1.bf16.msra.mxu0 %v7368
    %9591 = vmatprep.subr.bf16.mxu0 %v7385
    %9592 = vmatpush1.bf16.msra.mxu0 %v7384
    %9593 = vmatprep.subr.bf16.mxu0 %v7401
    %9594 = vmatpush1.bf16.msra.mxu0 %v7400
    %9595 = vmatprep.subr.bf16.mxu0 %v7417
    %9596 = vmatpush1.bf16.msra.mxu0 %v7416
    %9597 = vmatprep.subr.bf16.mxu0 %v7433
    %9598 = vmatpush1.bf16.msra.mxu0 %v7432
    %9599 = vmatprep.subr.bf16.mxu0 %v7449
    %9600 = vmatpush1.bf16.msra.mxu0 %v7448
    %9601 = vmatprep.subr.bf16.mxu0 %v7465
    %9602 = vmatpush1.bf16.msra.mxu0 %v7464
    %9603 = vmatprep.subr.bf16.mxu0 %v7481
    %9604 = vmatpush1.bf16.msra.mxu0 %v7480
    %9605 = vmatprep.subr.bf16.mxu0 %v7497
    %9606 = vmatpush1.bf16.msra.mxu0 %v7496
    %9607 = vmatprep.mubr.bf16.mxu0 %v2803
    %9608 = vmatmul.mubr.bf16.gmra.mrb[0].mxu0 %v2802
    %v9609 = vpop.f32.mrb[0].mxu0
    %v9610 = vadd.f32 %v9569, %v9609
    %v9611 = vpop.f32.mrb[0].mxu0
    %v9612 = vadd.f32 %v9571, %v9611
    %v9613 = vpop.f32.mrb[0].mxu0
    %v9614 = vpop.f32.mrb[0].mxu0
    %9615 = vdwg.mxu0
    %9616 = vmatprep.subr.bf16.mxu0 %v7513
    %9617 = vmatpush1.bf16.msra.mxu0 %v7512
    %9618 = vmatprep.subr.bf16.mxu0 %v7529
    %9619 = vmatpush1.bf16.msra.mxu0 %v7528
    %9620 = vmatprep.subr.bf16.mxu0 %v7545
    %9621 = vmatpush1.bf16.msra.mxu0 %v7544
    %9622 = vmatprep.subr.bf16.mxu0 %v7561
    %9623 = vmatpush1.bf16.msra.mxu0 %v7560
    %9624 = vmatprep.subr.bf16.mxu0 %v7577
    %9625 = vmatpush1.bf16.msra.mxu0 %v7576
    %9626 = vmatprep.subr.bf16.mxu0 %v7593
    %9627 = vmatpush1.bf16.msra.mxu0 %v7592
    %9628 = vmatprep.subr.bf16.mxu0 %v7609
    %9629 = vmatpush1.bf16.msra.mxu0 %v7608
    %9630 = vmatprep.subr.bf16.mxu0 %v7625
    %9631 = vmatpush1.bf16.msra.mxu0 %v7624
    %9632 = vmatprep.subr.bf16.mxu0 %v7641
    %9633 = vmatpush1.bf16.msra.mxu0 %v7640
    %9634 = vmatprep.subr.bf16.mxu0 %v7657
    %9635 = vmatpush1.bf16.msra.mxu0 %v7656
    %9636 = vmatprep.subr.bf16.mxu0 %v7673
    %9637 = vmatpush1.bf16.msra.mxu0 %v7672
    %9638 = vmatprep.subr.bf16.mxu0 %v7689
    %9639 = vmatpush1.bf16.msra.mxu0 %v7688
    %9640 = vmatprep.subr.bf16.mxu0 %v7705
    %9641 = vmatpush1.bf16.msra.mxu0 %v7704
    %9642 = vmatprep.subr.bf16.mxu0 %v7721
    %9643 = vmatpush1.bf16.msra.mxu0 %v7720
    %9644 = vmatprep.subr.bf16.mxu0 %v7737
    %9645 = vmatpush1.bf16.msra.mxu0 %v7736
    %9646 = vmatprep.subr.bf16.mxu0 %v7753
    %9647 = vmatpush1.bf16.msra.mxu0 %v7752
    %9648 = vmatprep.mubr.bf16.mxu0 %v2805
    %9649 = vmatmul.mubr.bf16.gmra.mrb[0].mxu0 %v2804
    %v9650 = vpop.f32.mrb[0].mxu0
    %v9651 = vadd.f32 %v9610, %v9650
    %v9652 = vpop.f32.mrb[0].mxu0
    %v9653 = vadd.f32 %v9612, %v9652
    %v9654 = vpop.f32.mrb[0].mxu0
    %v9655 = vpop.f32.mrb[0].mxu0
    %9656 = vdwg.mxu0
    %9657 = vmatprep.subr.bf16.mxu0 %v7769
    %9658 = vmatpush1.bf16.msra.mxu0 %v7768
    %9659 = vmatprep.subr.bf16.mxu0 %v7785
    %9660 = vmatpush1.bf16.msra.mxu0 %v7784
    %9661 = vmatprep.subr.bf16.mxu0 %v7801
    %9662 = vmatpush1.bf16.msra.mxu0 %v7800
    %9663 = vmatprep.subr.bf16.mxu0 %v7817
    %9664 = vmatpush1.bf16.msra.mxu0 %v7816
    %9665 = vmatprep.subr.bf16.mxu0 %v7833
    %9666 = vmatpush1.bf16.msra.mxu0 %v7832
    %9667 = vmatprep.subr.bf16.mxu0 %v7849
    %9668 = vmatpush1.bf16.msra.mxu0 %v7848
    %9669 = vmatprep.subr.bf16.mxu0 %v7865
    %9670 = vmatpush1.bf16.msra.mxu0 %v7864
    %9671 = vmatprep.subr.bf16.mxu0 %v7881
    %9672 = vmatpush1.bf16.msra.mxu0 %v7880
    %9673 = vmatprep.subr.bf16.mxu0 %v7897
    %9674 = vmatpush1.bf16.msra.mxu0 %v7896
    %9675 = vmatprep.subr.bf16.mxu0 %v7913
    %9676 = vmatpush1.bf16.msra.mxu0 %v7912
    %9677 = vmatprep.subr.bf16.mxu0 %v7929
    %9678 = vmatpush1.bf16.msra.mxu0 %v7928
    %9679 = vmatprep.subr.bf16.mxu0 %v7945
    %9680 = vmatpush1.bf16.msra.mxu0 %v7944
    %9681 = vmatprep.subr.bf16.mxu0 %v7961
    %9682 = vmatpush1.bf16.msra.mxu0 %v7960
    %9683 = vmatprep.subr.bf16.mxu0 %v7977
    %9684 = vmatpush1.bf16.msra.mxu0 %v7976
    %9685 = vmatprep.subr.bf16.mxu0 %v7993
    %9686 = vmatpush1.bf16.msra.mxu0 %v7992
    %9687 = vmatprep.subr.bf16.mxu0 %v8009
    %9688 = vmatpush1.bf16.msra.mxu0 %v8008
    %9689 = vmatprep.mubr.bf16.mxu0 %v2807
    %9690 = vmatmul.mubr.bf16.gmra.mrb[0].mxu0 %v2806
    %v9691 = vpop.f32.mrb[0].mxu0
    %v9692 = vadd.f32 %v9651, %v9691
    %v9693 = vpop.f32.mrb[0].mxu0
    %v9694 = vadd.f32 %v9653, %v9693
    %v9695 = vpop.f32.mrb[0].mxu0
    %v9696 = vpop.f32.mrb[0].mxu0
    %9697 = vdwg.mxu0
    %9698 = vmatprep.subr.bf16.mxu0 %v7003
    %9699 = vmatpush1.bf16.msra.mxu0 %v7002
    %9700 = vmatprep.subr.bf16.mxu0 %v7019
    %9701 = vmatpush1.bf16.msra.mxu0 %v7018
    %9702 = vmatprep.subr.bf16.mxu0 %v7035
    %9703 = vmatpush1.bf16.msra.mxu0 %v7034
    %9704 = vmatprep.subr.bf16.mxu0 %v7051
    %9705 = vmatpush1.bf16.msra.mxu0 %v7050
    %9706 = vmatprep.subr.bf16.mxu0 %v7067
    %9707 = vmatpush1.bf16.msra.mxu0 %v7066
    %9708 = vmatprep.subr.bf16.mxu0 %v7083
    %9709 = vmatpush1.bf16.msra.mxu0 %v7082
    %9710 = vmatprep.subr.bf16.mxu0 %v7099
    %9711 = vmatpush1.bf16.msra.mxu0 %v7098
    %9712 = vmatprep.subr.bf16.mxu0 %v7115
    %9713 = vmatpush1.bf16.msra.mxu0 %v7114
    %9714 = vmatprep.subr.bf16.mxu0 %v7131
    %9715 = vmatpush1.bf16.msra.mxu0 %v7130
    %9716 = vmatprep.subr.bf16.mxu0 %v7147
    %9717 = vmatpush1.bf16.msra.mxu0 %v7146
    %9718 = vmatprep.subr.bf16.mxu0 %v7163
    %9719 = vmatpush1.bf16.msra.mxu0 %v7162
    %9720 = vmatprep.subr.bf16.mxu0 %v7179
    %9721 = vmatpush1.bf16.msra.mxu0 %v7178
    %9722 = vmatprep.subr.bf16.mxu0 %v7195
    %9723 = vmatpush1.bf16.msra.mxu0 %v7194
    %9724 = vmatprep.subr.bf16.mxu0 %v7211
    %9725 = vmatpush1.bf16.msra.mxu0 %v7210
    %9726 = vmatprep.subr.bf16.mxu0 %v7227
    %9727 = vmatpush1.bf16.msra.mxu0 %v7226
    %9728 = vmatprep.subr.bf16.mxu0 %v7243
    %9729 = vmatpush1.bf16.msra.mxu0 %v7242
    %9730 = vmatprep.mubr.bf16.mxu0 %v2801
    %9731 = vmatmul.mubr.bf16.gmra.mrb[0].mxu0 %v2800
    %v9732 = vpop.f32.mrb[0].mxu0
    %v9733 = vadd.f32 %v3877, %v9732
    %v9734 = vpop.f32.mrb[0].mxu0
    %v9735 = vadd.f32 %v3881, %v9734
    %v9736 = vpop.f32.mrb[0].mxu0
    %v9737 = vpop.f32.mrb[0].mxu0
    %9738 = vdwg.mxu0
    %9739 = vmatprep.subr.bf16.mxu0 %v7259
    %9740 = vmatpush1.bf16.msra.mxu0 %v7258
    %9741 = vmatprep.subr.bf16.mxu0 %v7275
    %9742 = vmatpush1.bf16.msra.mxu0 %v7274
    %9743 = vmatprep.subr.bf16.mxu0 %v7291
    %9744 = vmatpush1.bf16.msra.mxu0 %v7290
    %9745 = vmatprep.subr.bf16.mxu0 %v7307
    %9746 = vmatpush1.bf16.msra.mxu0 %v7306
    %9747 = vmatprep.subr.bf16.mxu0 %v7323
    %9748 = vmatpush1.bf16.msra.mxu0 %v7322
    %9749 = vmatprep.subr.bf16.mxu0 %v7339
    %9750 = vmatpush1.bf16.msra.mxu0 %v7338
    %9751 = vmatprep.subr.bf16.mxu0 %v7355
    %9752 = vmatpush1.bf16.msra.mxu0 %v7354
    %9753 = vmatprep.subr.bf16.mxu0 %v7371
    %9754 = vmatpush1.bf16.msra.mxu0 %v7370
    %9755 = vmatprep.subr.bf16.mxu0 %v7387
    %9756 = vmatpush1.bf16.msra.mxu0 %v7386
    %9757 = vmatprep.subr.bf16.mxu0 %v7403
    %9758 = vmatpush1.bf16.msra.mxu0 %v7402
    %9759 = vmatprep.subr.bf16.mxu0 %v7419
    %9760 = vmatpush1.bf16.msra.mxu0 %v7418
    %9761 = vmatprep.subr.bf16.mxu0 %v7435
    %9762 = vmatpush1.bf16.msra.mxu0 %v7434
    %9763 = vmatprep.subr.bf16.mxu0 %v7451
    %9764 = vmatpush1.bf16.msra.mxu0 %v7450
    %9765 = vmatprep.subr.bf16.mxu0 %v7467
    %9766 = vmatpush1.bf16.msra.mxu0 %v7466
    %9767 = vmatprep.subr.bf16.mxu0 %v7483
    %9768 = vmatpush1.bf16.msra.mxu0 %v7482
    %9769 = vmatprep.subr.bf16.mxu0 %v7499
    %9770 = vmatpush1.bf16.msra.mxu0 %v7498
    %9771 = vmatprep.mubr.bf16.mxu0 %v2803
    %9772 = vmatmul.mubr.bf16.gmra.mrb[0].mxu0 %v2802
    %v9773 = vpop.f32.mrb[0].mxu0
    %v9774 = vadd.f32 %v9733, %v9773
    %v9775 = vpop.f32.mrb[0].mxu0
    %v9776 = vadd.f32 %v9735, %v9775
    %v9777 = vpop.f32.mrb[0].mxu0
    %v9778 = vpop.f32.mrb[0].mxu0
    %9779 = vdwg.mxu0
    %9780 = vmatprep.subr.bf16.mxu0 %v7515
    %9781 = vmatpush1.bf16.msra.mxu0 %v7514
    %9782 = vmatprep.subr.bf16.mxu0 %v7531
    %9783 = vmatpush1.bf16.msra.mxu0 %v7530
    %9784 = vmatprep.subr.bf16.mxu0 %v7547
    %9785 = vmatpush1.bf16.msra.mxu0 %v7546
    %9786 = vmatprep.subr.bf16.mxu0 %v7563
    %9787 = vmatpush1.bf16.msra.mxu0 %v7562
    %9788 = vmatprep.subr.bf16.mxu0 %v7579
    %9789 = vmatpush1.bf16.msra.mxu0 %v7578
    %9790 = vmatprep.subr.bf16.mxu0 %v7595
    %9791 = vmatpush1.bf16.msra.mxu0 %v7594
    %9792 = vmatprep.subr.bf16.mxu0 %v7611
    %9793 = vmatpush1.bf16.msra.mxu0 %v7610
    %9794 = vmatprep.subr.bf16.mxu0 %v7627
    %9795 = vmatpush1.bf16.msra.mxu0 %v7626
    %9796 = vmatprep.subr.bf16.mxu0 %v7643
    %9797 = vmatpush1.bf16.msra.mxu0 %v7642
    %9798 = vmatprep.subr.bf16.mxu0 %v7659
    %9799 = vmatpush1.bf16.msra.mxu0 %v7658
    %9800 = vmatprep.subr.bf16.mxu0 %v7675
    %9801 = vmatpush1.bf16.msra.mxu0 %v7674
    %9802 = vmatprep.subr.bf16.mxu0 %v7691
    %9803 = vmatpush1.bf16.msra.mxu0 %v7690
    %9804 = vmatprep.subr.bf16.mxu0 %v7707
    %9805 = vmatpush1.bf16.msra.mxu0 %v7706
    %9806 = vmatprep.subr.bf16.mxu0 %v7723
    %9807 = vmatpush1.bf16.msra.mxu0 %v7722
    %9808 = vmatprep.subr.bf16.mxu0 %v7739
    %9809 = vmatpush1.bf16.msra.mxu0 %v7738
    %9810 = vmatprep.subr.bf16.mxu0 %v7755
    %9811 = vmatpush1.bf16.msra.mxu0 %v7754
    %9812 = vmatprep.mubr.bf16.mxu0 %v2805
    %9813 = vmatmul.mubr.bf16.gmra.mrb[0].mxu0 %v2804
    %v9814 = vpop.f32.mrb[0].mxu0
    %v9815 = vadd.f32 %v9774, %v9814
    %v9816 = vpop.f32.mrb[0].mxu0
    %v9817 = vadd.f32 %v9776, %v9816
    %v9818 = vpop.f32.mrb[0].mxu0
    %v9819 = vpop.f32.mrb[0].mxu0
    %9820 = vdwg.mxu0
    %9821 = vmatprep.subr.bf16.mxu0 %v7771
    %9822 = vmatpush1.bf16.msra.mxu0 %v7770
    %9823 = vmatprep.subr.bf16.mxu0 %v7787
    %9824 = vmatpush1.bf16.msra.mxu0 %v7786
    %9825 = vmatprep.subr.bf16.mxu0 %v7803
    %9826 = vmatpush1.bf16.msra.mxu0 %v7802
    %9827 = vmatprep.subr.bf16.mxu0 %v7819
    %9828 = vmatpush1.bf16.msra.mxu0 %v7818
    %9829 = vmatprep.subr.bf16.mxu0 %v7835
    %9830 = vmatpush1.bf16.msra.mxu0 %v7834
    %9831 = vmatprep.subr.bf16.mxu0 %v7851
    %9832 = vmatpush1.bf16.msra.mxu0 %v7850
    %9833 = vmatprep.subr.bf16.mxu0 %v7867
    %9834 = vmatpush1.bf16.msra.mxu0 %v7866
    %9835 = vmatprep.subr.bf16.mxu0 %v7883
    %9836 = vmatpush1.bf16.msra.mxu0 %v7882
    %9837 = vmatprep.subr.bf16.mxu0 %v7899
    %9838 = vmatpush1.bf16.msra.mxu0 %v7898
    %9839 = vmatprep.subr.bf16.mxu0 %v7915
    %9840 = vmatpush1.bf16.msra.mxu0 %v7914
    %9841 = vmatprep.subr.bf16.mxu0 %v7931
    %9842 = vmatpush1.bf16.msra.mxu0 %v7930
    %9843 = vmatprep.subr.bf16.mxu0 %v7947
    %9844 = vmatpush1.bf16.msra.mxu0 %v7946
    %9845 = vmatprep.subr.bf16.mxu0 %v7963
    %9846 = vmatpush1.bf16.msra.mxu0 %v7962
    %9847 = vmatprep.subr.bf16.mxu0 %v7979
    %9848 = vmatpush1.bf16.msra.mxu0 %v7978
    %9849 = vmatprep.subr.bf16.mxu0 %v7995
    %9850 = vmatpush1.bf16.msra.mxu0 %v7994
    %9851 = vmatprep.subr.bf16.mxu0 %v8011
    %9852 = vmatpush1.bf16.msra.mxu0 %v8010
    %9853 = vmatprep.mubr.bf16.mxu0 %v2807
    %9854 = vmatmul.mubr.bf16.gmra.mrb[0].mxu0 %v2806
    %v9855 = vpop.f32.mrb[0].mxu0
    %v9856 = vadd.f32 %v9815, %v9855
    %v9857 = vpop.f32.mrb[0].mxu0
    %v9858 = vadd.f32 %v9817, %v9857
    %v9859 = vpop.f32.mrb[0].mxu0
    %v9860 = vpop.f32.mrb[0].mxu0
    %9861 = vdwg.mxu0
    %9862 = vmatprep.subr.bf16.mxu0 %v7005
    %9863 = vmatpush1.bf16.msra.mxu0 %v7004
    %9864 = vmatprep.subr.bf16.mxu0 %v7021
    %9865 = vmatpush1.bf16.msra.mxu0 %v7020
    %9866 = vmatprep.subr.bf16.mxu0 %v7037
    %9867 = vmatpush1.bf16.msra.mxu0 %v7036
    %9868 = vmatprep.subr.bf16.mxu0 %v7053
    %9869 = vmatpush1.bf16.msra.mxu0 %v7052
    %9870 = vmatprep.subr.bf16.mxu0 %v7069
    %9871 = vmatpush1.bf16.msra.mxu0 %v7068
    %9872 = vmatprep.subr.bf16.mxu0 %v7085
    %9873 = vmatpush1.bf16.msra.mxu0 %v7084
    %9874 = vmatprep.subr.bf16.mxu0 %v7101
    %9875 = vmatpush1.bf16.msra.mxu0 %v7100
    %9876 = vmatprep.subr.bf16.mxu0 %v7117
    %9877 = vmatpush1.bf16.msra.mxu0 %v7116
    %9878 = vmatprep.subr.bf16.mxu0 %v7133
    %9879 = vmatpush1.bf16.msra.mxu0 %v7132
    %9880 = vmatprep.subr.bf16.mxu0 %v7149
    %9881 = vmatpush1.bf16.msra.mxu0 %v7148
    %9882 = vmatprep.subr.bf16.mxu0 %v7165
    %9883 = vmatpush1.bf16.msra.mxu0 %v7164
    %9884 = vmatprep.subr.bf16.mxu0 %v7181
    %9885 = vmatpush1.bf16.msra.mxu0 %v7180
    %9886 = vmatprep.subr.bf16.mxu0 %v7197
    %9887 = vmatpush1.bf16.msra.mxu0 %v7196
    %9888 = vmatprep.subr.bf16.mxu0 %v7213
    %9889 = vmatpush1.bf16.msra.mxu0 %v7212
    %9890 = vmatprep.subr.bf16.mxu0 %v7229
    %9891 = vmatpush1.bf16.msra.mxu0 %v7228
    %9892 = vmatprep.subr.bf16.mxu0 %v7245
    %9893 = vmatpush1.bf16.msra.mxu0 %v7244
    %9894 = vmatprep.mubr.bf16.mxu0 %v2801
    %9895 = vmatmul.mubr.bf16.gmra.mrb[0].mxu0 %v2800
    %v9896 = vpop.f32.mrb[0].mxu0
    %v9897 = vadd.f32 %v3885, %v9896
    %v9898 = vpop.f32.mrb[0].mxu0
    %v9899 = vadd.f32 %v3889, %v9898
    %v9900 = vpop.f32.mrb[0].mxu0
    %v9901 = vpop.f32.mrb[0].mxu0
    %9902 = vdwg.mxu0
    %9903 = vmatprep.subr.bf16.mxu0 %v7261
    %9904 = vmatpush1.bf16.msra.mxu0 %v7260
    %9905 = vmatprep.subr.bf16.mxu0 %v7277
    %9906 = vmatpush1.bf16.msra.mxu0 %v7276
    %9907 = vmatprep.subr.bf16.mxu0 %v7293
    %9908 = vmatpush1.bf16.msra.mxu0 %v7292
    %9909 = vmatprep.subr.bf16.mxu0 %v7309
    %9910 = vmatpush1.bf16.msra.mxu0 %v7308
    %9911 = vmatprep.subr.bf16.mxu0 %v7325
    %9912 = vmatpush1.bf16.msra.mxu0 %v7324
    %9913 = vmatprep.subr.bf16.mxu0 %v7341
    %9914 = vmatpush1.bf16.msra.mxu0 %v7340
    %9915 = vmatprep.subr.bf16.mxu0 %v7357
    %9916 = vmatpush1.bf16.msra.mxu0 %v7356
    %9917 = vmatprep.subr.bf16.mxu0 %v7373
    %9918 = vmatpush1.bf16.msra.mxu0 %v7372
    %9919 = vmatprep.subr.bf16.mxu0 %v7389
    %9920 = vmatpush1.bf16.msra.mxu0 %v7388
    %9921 = vmatprep.subr.bf16.mxu0 %v7405
    %9922 = vmatpush1.bf16.msra.mxu0 %v7404
    %9923 = vmatprep.subr.bf16.mxu0 %v7421
    %9924 = vmatpush1.bf16.msra.mxu0 %v7420
    %9925 = vmatprep.subr.bf16.mxu0 %v7437
    %9926 = vmatpush1.bf16.msra.mxu0 %v7436
    %9927 = vmatprep.subr.bf16.mxu0 %v7453
    %9928 = vmatpush1.bf16.msra.mxu0 %v7452
    %9929 = vmatprep.subr.bf16.mxu0 %v7469
    %9930 = vmatpush1.bf16.msra.mxu0 %v7468
    %9931 = vmatprep.subr.bf16.mxu0 %v7485
    %9932 = vmatpush1.bf16.msra.mxu0 %v7484
    %9933 = vmatprep.subr.bf16.mxu0 %v7501
    %9934 = vmatpush1.bf16.msra.mxu0 %v7500
    %9935 = vmatprep.mubr.bf16.mxu0 %v2803
    %9936 = vmatmul.mubr.bf16.gmra.mrb[0].mxu0 %v2802
    %v9937 = vpop.f32.mrb[0].mxu0
    %v9938 = vadd.f32 %v9897, %v9937
    %v9939 = vpop.f32.mrb[0].mxu0
    %v9940 = vadd.f32 %v9899, %v9939
    %v9941 = vpop.f32.mrb[0].mxu0
    %v9942 = vpop.f32.mrb[0].mxu0
    %9943 = vdwg.mxu0
    %9944 = vmatprep.subr.bf16.mxu0 %v7517
    %9945 = vmatpush1.bf16.msra.mxu0 %v7516
    %9946 = vmatprep.subr.bf16.mxu0 %v7533
    %9947 = vmatpush1.bf16.msra.mxu0 %v7532
    %9948 = vmatprep.subr.bf16.mxu0 %v7549
    %9949 = vmatpush1.bf16.msra.mxu0 %v7548
    %9950 = vmatprep.subr.bf16.mxu0 %v7565
    %9951 = vmatpush1.bf16.msra.mxu0 %v7564
    %9952 = vmatprep.subr.bf16.mxu0 %v7581
    %9953 = vmatpush1.bf16.msra.mxu0 %v7580
    %9954 = vmatprep.subr.bf16.mxu0 %v7597
    %9955 = vmatpush1.bf16.msra.mxu0 %v7596
    %9956 = vmatprep.subr.bf16.mxu0 %v7613
    %9957 = vmatpush1.bf16.msra.mxu0 %v7612
    %9958 = vmatprep.subr.bf16.mxu0 %v7629
    %9959 = vmatpush1.bf16.msra.mxu0 %v7628
    %9960 = vmatprep.subr.bf16.mxu0 %v7645
    %9961 = vmatpush1.bf16.msra.mxu0 %v7644
    %9962 = vmatprep.subr.bf16.mxu0 %v7661
    %9963 = vmatpush1.bf16.msra.mxu0 %v7660
    %9964 = vmatprep.subr.bf16.mxu0 %v7677
    %9965 = vmatpush1.bf16.msra.mxu0 %v7676
    %9966 = vmatprep.subr.bf16.mxu0 %v7693
    %9967 = vmatpush1.bf16.msra.mxu0 %v7692
    %9968 = vmatprep.subr.bf16.mxu0 %v7709
    %9969 = vmatpush1.bf16.msra.mxu0 %v7708
    %9970 = vmatprep.subr.bf16.mxu0 %v7725
    %9971 = vmatpush1.bf16.msra.mxu0 %v7724
    %9972 = vmatprep.subr.bf16.mxu0 %v7741
    %9973 = vmatpush1.bf16.msra.mxu0 %v7740
    %9974 = vmatprep.subr.bf16.mxu0 %v7757
    %9975 = vmatpush1.bf16.msra.mxu0 %v7756
    %9976 = vmatprep.mubr.bf16.mxu0 %v2805
    %9977 = vmatmul.mubr.bf16.gmra.mrb[0].mxu0 %v2804
    %v9978 = vpop.f32.mrb[0].mxu0
    %v9979 = vadd.f32 %v9938, %v9978
    %v9980 = vpop.f32.mrb[0].mxu0
    %v9981 = vadd.f32 %v9940, %v9980
    %v9982 = vpop.f32.mrb[0].mxu0
    %v9983 = vpop.f32.mrb[0].mxu0
    %9984 = vdwg.mxu0
    %9985 = vmatprep.subr.bf16.mxu0 %v7773
    %9986 = vmatpush1.bf16.msra.mxu0 %v7772
    %9987 = vmatprep.subr.bf16.mxu0 %v7789
    %9988 = vmatpush1.bf16.msra.mxu0 %v7788
    %9989 = vmatprep.subr.bf16.mxu0 %v7805
    %9990 = vmatpush1.bf16.msra.mxu0 %v7804
    %9991 = vmatprep.subr.bf16.mxu0 %v7821
    %9992 = vmatpush1.bf16.msra.mxu0 %v7820
    %9993 = vmatprep.subr.bf16.mxu0 %v7837
    %9994 = vmatpush1.bf16.msra.mxu0 %v7836
    %9995 = vmatprep.subr.bf16.mxu0 %v7853
    %9996 = vmatpush1.bf16.msra.mxu0 %v7852
    %9997 = vmatprep.subr.bf16.mxu0 %v7869
    %9998 = vmatpush1.bf16.msra.mxu0 %v7868
    %9999 = vmatprep.subr.bf16.mxu0 %v7885
    %10000 = vmatpush1.bf16.msra.mxu0 %v7884
    %10001 = vmatprep.subr.bf16.mxu0 %v7901
    %10002 = vmatpush1.bf16.msra.mxu0 %v7900
    %10003 = vmatprep.subr.bf16.mxu0 %v7917
    %10004 = vmatpush1.bf16.msra.mxu0 %v7916
    %10005 = vmatprep.subr.bf16.mxu0 %v7933
    %10006 = vmatpush1.bf16.msra.mxu0 %v7932
    %10007 = vmatprep.subr.bf16.mxu0 %v7949
    %10008 = vmatpush1.bf16.msra.mxu0 %v7948
    %10009 = vmatprep.subr.bf16.mxu0 %v7965
    %10010 = vmatpush1.bf16.msra.mxu0 %v7964
    %10011 = vmatprep.subr.bf16.mxu0 %v7981
    %10012 = vmatpush1.bf16.msra.mxu0 %v7980
    %10013 = vmatprep.subr.bf16.mxu0 %v7997
    %10014 = vmatpush1.bf16.msra.mxu0 %v7996
    %10015 = vmatprep.subr.bf16.mxu0 %v8013
    %10016 = vmatpush1.bf16.msra.mxu0 %v8012
    %10017 = vmatprep.mubr.bf16.mxu0 %v2807
    %10018 = vmatmul.mubr.bf16.gmra.mrb[0].mxu0 %v2806
    %v10019 = vpop.f32.mrb[0].mxu0
    %v10020 = vadd.f32 %v9979, %v10019
    %v10021 = vpop.f32.mrb[0].mxu0
    %v10022 = vadd.f32 %v9981, %v10021
    %v10023 = vpop.f32.mrb[0].mxu0
    %v10024 = vpop.f32.mrb[0].mxu0
    %10025 = vdwg.mxu0
    %10026 = vmatprep.subr.bf16.mxu0 %v7007
    %10027 = vmatpush1.bf16.msra.mxu0 %v7006
    %10028 = vmatprep.subr.bf16.mxu0 %v7023
    %10029 = vmatpush1.bf16.msra.mxu0 %v7022
    %10030 = vmatprep.subr.bf16.mxu0 %v7039
    %10031 = vmatpush1.bf16.msra.mxu0 %v7038
    %10032 = vmatprep.subr.bf16.mxu0 %v7055
    %10033 = vmatpush1.bf16.msra.mxu0 %v7054
    %10034 = vmatprep.subr.bf16.mxu0 %v7071
    %10035 = vmatpush1.bf16.msra.mxu0 %v7070
    %10036 = vmatprep.subr.bf16.mxu0 %v7087
    %10037 = vmatpush1.bf16.msra.mxu0 %v7086
    %10038 = vmatprep.subr.bf16.mxu0 %v7103
    %10039 = vmatpush1.bf16.msra.mxu0 %v7102
    %10040 = vmatprep.subr.bf16.mxu0 %v7119
    %10041 = vmatpush1.bf16.msra.mxu0 %v7118
    %10042 = vmatprep.subr.bf16.mxu0 %v7135
    %10043 = vmatpush1.bf16.msra.mxu0 %v7134
    %10044 = vmatprep.subr.bf16.mxu0 %v7151
    %10045 = vmatpush1.bf16.msra.mxu0 %v7150
    %10046 = vmatprep.subr.bf16.mxu0 %v7167
    %10047 = vmatpush1.bf16.msra.mxu0 %v7166
    %10048 = vmatprep.subr.bf16.mxu0 %v7183
    %10049 = vmatpush1.bf16.msra.mxu0 %v7182
    %10050 = vmatprep.subr.bf16.mxu0 %v7199
    %10051 = vmatpush1.bf16.msra.mxu0 %v7198
    %10052 = vmatprep.subr.bf16.mxu0 %v7215
    %10053 = vmatpush1.bf16.msra.mxu0 %v7214
    %10054 = vmatprep.subr.bf16.mxu0 %v7231
    %10055 = vmatpush1.bf16.msra.mxu0 %v7230
    %10056 = vmatprep.subr.bf16.mxu0 %v7247
    %10057 = vmatpush1.bf16.msra.mxu0 %v7246
    %10058 = vmatprep.mubr.bf16.mxu0 %v2801
    %10059 = vmatmul.mubr.bf16.gmra.mrb[0].mxu0 %v2800
    %v10060 = vpop.f32.mrb[0].mxu0
    %v10061 = vadd.f32 %v3893, %v10060
    %v10062 = vpop.f32.mrb[0].mxu0
    %v10063 = vadd.f32 %v3897, %v10062
    %v10064 = vpop.f32.mrb[0].mxu0
    %v10065 = vpop.f32.mrb[0].mxu0
    %10066 = vdwg.mxu0
    %10067 = vmatprep.subr.bf16.mxu0 %v7263
    %10068 = vmatpush1.bf16.msra.mxu0 %v7262
    %10069 = vmatprep.subr.bf16.mxu0 %v7279
    %10070 = vmatpush1.bf16.msra.mxu0 %v7278
    %10071 = vmatprep.subr.bf16.mxu0 %v7295
    %10072 = vmatpush1.bf16.msra.mxu0 %v7294
    %10073 = vmatprep.subr.bf16.mxu0 %v7311
    %10074 = vmatpush1.bf16.msra.mxu0 %v7310
    %10075 = vmatprep.subr.bf16.mxu0 %v7327
    %10076 = vmatpush1.bf16.msra.mxu0 %v7326
    %10077 = vmatprep.subr.bf16.mxu0 %v7343
    %10078 = vmatpush1.bf16.msra.mxu0 %v7342
    %10079 = vmatprep.subr.bf16.mxu0 %v7359
    %10080 = vmatpush1.bf16.msra.mxu0 %v7358
    %10081 = vmatprep.subr.bf16.mxu0 %v7375
    %10082 = vmatpush1.bf16.msra.mxu0 %v7374
    %10083 = vmatprep.subr.bf16.mxu0 %v7391
    %10084 = vmatpush1.bf16.msra.mxu0 %v7390
    %10085 = vmatprep.subr.bf16.mxu0 %v7407
    %10086 = vmatpush1.bf16.msra.mxu0 %v7406
    %10087 = vmatprep.subr.bf16.mxu0 %v7423
    %10088 = vmatpush1.bf16.msra.mxu0 %v7422
    %10089 = vmatprep.subr.bf16.mxu0 %v7439
    %10090 = vmatpush1.bf16.msra.mxu0 %v7438
    %10091 = vmatprep.subr.bf16.mxu0 %v7455
    %10092 = vmatpush1.bf16.msra.mxu0 %v7454
    %10093 = vmatprep.subr.bf16.mxu0 %v7471
    %10094 = vmatpush1.bf16.msra.mxu0 %v7470
    %10095 = vmatprep.subr.bf16.mxu0 %v7487
    %10096 = vmatpush1.bf16.msra.mxu0 %v7486
    %10097 = vmatprep.subr.bf16.mxu0 %v7503
    %10098 = vmatpush1.bf16.msra.mxu0 %v7502
    %10099 = vmatprep.mubr.bf16.mxu0 %v2803
    %10100 = vmatmul.mubr.bf16.gmra.mrb[0].mxu0 %v2802
    %v10101 = vpop.f32.mrb[0].mxu0
    %v10102 = vadd.f32 %v10061, %v10101
    %v10103 = vpop.f32.mrb[0].mxu0
    %v10104 = vadd.f32 %v10063, %v10103
    %v10105 = vpop.f32.mrb[0].mxu0
    %v10106 = vpop.f32.mrb[0].mxu0
    %10107 = vdwg.mxu0
    %10108 = vmatprep.subr.bf16.mxu0 %v7519
    %10109 = vmatpush1.bf16.msra.mxu0 %v7518
    %10110 = vmatprep.subr.bf16.mxu0 %v7535
    %10111 = vmatpush1.bf16.msra.mxu0 %v7534
    %10112 = vmatprep.subr.bf16.mxu0 %v7551
    %10113 = vmatpush1.bf16.msra.mxu0 %v7550
    %10114 = vmatprep.subr.bf16.mxu0 %v7567
    %10115 = vmatpush1.bf16.msra.mxu0 %v7566
    %10116 = vmatprep.subr.bf16.mxu0 %v7583
    %10117 = vmatpush1.bf16.msra.mxu0 %v7582
    %10118 = vmatprep.subr.bf16.mxu0 %v7599
    %10119 = vmatpush1.bf16.msra.mxu0 %v7598
    %10120 = vmatprep.subr.bf16.mxu0 %v7615
    %10121 = vmatpush1.bf16.msra.mxu0 %v7614
    %10122 = vmatprep.subr.bf16.mxu0 %v7631
    %10123 = vmatpush1.bf16.msra.mxu0 %v7630
    %10124 = vmatprep.subr.bf16.mxu0 %v7647
    %10125 = vmatpush1.bf16.msra.mxu0 %v7646
    %10126 = vmatprep.subr.bf16.mxu0 %v7663
    %10127 = vmatpush1.bf16.msra.mxu0 %v7662
    %10128 = vmatprep.subr.bf16.mxu0 %v7679
    %10129 = vmatpush1.bf16.msra.mxu0 %v7678
    %10130 = vmatprep.subr.bf16.mxu0 %v7695
    %10131 = vmatpush1.bf16.msra.mxu0 %v7694
    %10132 = vmatprep.subr.bf16.mxu0 %v7711
    %10133 = vmatpush1.bf16.msra.mxu0 %v7710
    %10134 = vmatprep.subr.bf16.mxu0 %v7727
    %10135 = vmatpush1.bf16.msra.mxu0 %v7726
    %10136 = vmatprep.subr.bf16.mxu0 %v7743
    %10137 = vmatpush1.bf16.msra.mxu0 %v7742
    %10138 = vmatprep.subr.bf16.mxu0 %v7759
    %10139 = vmatpush1.bf16.msra.mxu0 %v7758
    %10140 = vmatprep.mubr.bf16.mxu0 %v2805
    %10141 = vmatmul.mubr.bf16.gmra.mrb[0].mxu0 %v2804
    %v10142 = vpop.f32.mrb[0].mxu0
    %v10143 = vadd.f32 %v10102, %v10142
    %v10144 = vpop.f32.mrb[0].mxu0
    %v10145 = vadd.f32 %v10104, %v10144
    %v10146 = vpop.f32.mrb[0].mxu0
    %v10147 = vpop.f32.mrb[0].mxu0
    %10148 = vdwg.mxu0
    %10149 = vmatprep.subr.bf16.mxu0 %v7775
    %10150 = vmatpush1.bf16.msra.mxu0 %v7774
    %10151 = vmatprep.subr.bf16.mxu0 %v7791
    %10152 = vmatpush1.bf16.msra.mxu0 %v7790
    %10153 = vmatprep.subr.bf16.mxu0 %v7807
    %10154 = vmatpush1.bf16.msra.mxu0 %v7806
    %10155 = vmatprep.subr.bf16.mxu0 %v7823
    %10156 = vmatpush1.bf16.msra.mxu0 %v7822
    %10157 = vmatprep.subr.bf16.mxu0 %v7839
    %10158 = vmatpush1.bf16.msra.mxu0 %v7838
    %10159 = vmatprep.subr.bf16.mxu0 %v7855
    %10160 = vmatpush1.bf16.msra.mxu0 %v7854
    %10161 = vmatprep.subr.bf16.mxu0 %v7871
    %10162 = vmatpush1.bf16.msra.mxu0 %v7870
    %10163 = vmatprep.subr.bf16.mxu0 %v7887
    %10164 = vmatpush1.bf16.msra.mxu0 %v7886
    %10165 = vmatprep.subr.bf16.mxu0 %v7903
    %10166 = vmatpush1.bf16.msra.mxu0 %v7902
    %10167 = vmatprep.subr.bf16.mxu0 %v7919
    %10168 = vmatpush1.bf16.msra.mxu0 %v7918
    %10169 = vmatprep.subr.bf16.mxu0 %v7935
    %10170 = vmatpush1.bf16.msra.mxu0 %v7934
    %10171 = vmatprep.subr.bf16.mxu0 %v7951
    %10172 = vmatpush1.bf16.msra.mxu0 %v7950
    %10173 = vmatprep.subr.bf16.mxu0 %v7967
    %10174 = vmatpush1.bf16.msra.mxu0 %v7966
    %10175 = vmatprep.subr.bf16.mxu0 %v7983
    %10176 = vmatpush1.bf16.msra.mxu0 %v7982
    %10177 = vmatprep.subr.bf16.mxu0 %v7999
    %10178 = vmatpush1.bf16.msra.mxu0 %v7998
    %10179 = vmatprep.subr.bf16.mxu0 %v8015
    %10180 = vmatpush1.bf16.msra.mxu0 %v8014
    %10181 = vmatprep.mubr.bf16.mxu0 %v2807
    %10182 = vmatmul.mubr.bf16.gmra.mrb[0].mxu0 %v2806
    %v10183 = vpop.f32.mrb[0].mxu0
    %v10184 = vadd.f32 %v10143, %v10183
    %v10185 = vpop.f32.mrb[0].mxu0
    %v10186 = vadd.f32 %v10145, %v10185
    %v10187 = vpop.f32.mrb[0].mxu0
    %v10188 = vpop.f32.mrb[0].mxu0
    %10189 = vdwg.mxu0
    %10190 = vmatprep.subr.bf16.mxu0 %v7009
    %10191 = vmatpush1.bf16.msra.mxu0 %v7008
    %10192 = vmatprep.subr.bf16.mxu0 %v7025
    %10193 = vmatpush1.bf16.msra.mxu0 %v7024
    %10194 = vmatprep.subr.bf16.mxu0 %v7041
    %10195 = vmatpush1.bf16.msra.mxu0 %v7040
    %10196 = vmatprep.subr.bf16.mxu0 %v7057
    %10197 = vmatpush1.bf16.msra.mxu0 %v7056
    %10198 = vmatprep.subr.bf16.mxu0 %v7073
    %10199 = vmatpush1.bf16.msra.mxu0 %v7072
    %10200 = vmatprep.subr.bf16.mxu0 %v7089
    %10201 = vmatpush1.bf16.msra.mxu0 %v7088
    %10202 = vmatprep.subr.bf16.mxu0 %v7105
    %10203 = vmatpush1.bf16.msra.mxu0 %v7104
    %10204 = vmatprep.subr.bf16.mxu0 %v7121
    %10205 = vmatpush1.bf16.msra.mxu0 %v7120
    %10206 = vmatprep.subr.bf16.mxu0 %v7137
    %10207 = vmatpush1.bf16.msra.mxu0 %v7136
    %10208 = vmatprep.subr.bf16.mxu0 %v7153
    %10209 = vmatpush1.bf16.msra.mxu0 %v7152
    %10210 = vmatprep.subr.bf16.mxu0 %v7169
    %10211 = vmatpush1.bf16.msra.mxu0 %v7168
    %10212 = vmatprep.subr.bf16.mxu0 %v7185
    %10213 = vmatpush1.bf16.msra.mxu0 %v7184
    %10214 = vmatprep.subr.bf16.mxu0 %v7201
    %10215 = vmatpush1.bf16.msra.mxu0 %v7200
    %10216 = vmatprep.subr.bf16.mxu0 %v7217
    %10217 = vmatpush1.bf16.msra.mxu0 %v7216
    %10218 = vmatprep.subr.bf16.mxu0 %v7233
    %10219 = vmatpush1.bf16.msra.mxu0 %v7232
    %10220 = vmatprep.subr.bf16.mxu0 %v7249
    %10221 = vmatpush1.bf16.msra.mxu0 %v7248
    %10222 = vmatprep.mubr.bf16.mxu0 %v2801
    %10223 = vmatmul.mubr.bf16.gmra.mrb[0].mxu0 %v2800
    %v10224 = vpop.f32.mrb[0].mxu0
    %v10225 = vadd.f32 %v3901, %v10224
    %v10226 = vpop.f32.mrb[0].mxu0
    %v10227 = vadd.f32 %v3905, %v10226
    %v10228 = vpop.f32.mrb[0].mxu0
    %v10229 = vpop.f32.mrb[0].mxu0
    %10230 = vdwg.mxu0
    %10231 = vmatprep.subr.bf16.mxu0 %v7265
    %10232 = vmatpush1.bf16.msra.mxu0 %v7264
    %10233 = vmatprep.subr.bf16.mxu0 %v7281
    %10234 = vmatpush1.bf16.msra.mxu0 %v7280
    %10235 = vmatprep.subr.bf16.mxu0 %v7297
    %10236 = vmatpush1.bf16.msra.mxu0 %v7296
    %10237 = vmatprep.subr.bf16.mxu0 %v7313
    %10238 = vmatpush1.bf16.msra.mxu0 %v7312
    %10239 = vmatprep.subr.bf16.mxu0 %v7329
    %10240 = vmatpush1.bf16.msra.mxu0 %v7328
    %10241 = vmatprep.subr.bf16.mxu0 %v7345
    %10242 = vmatpush1.bf16.msra.mxu0 %v7344
    %10243 = vmatprep.subr.bf16.mxu0 %v7361
    %10244 = vmatpush1.bf16.msra.mxu0 %v7360
    %10245 = vmatprep.subr.bf16.mxu0 %v7377
    %10246 = vmatpush1.bf16.msra.mxu0 %v7376
    %10247 = vmatprep.subr.bf16.mxu0 %v7393
    %10248 = vmatpush1.bf16.msra.mxu0 %v7392
    %10249 = vmatprep.subr.bf16.mxu0 %v7409
    %10250 = vmatpush1.bf16.msra.mxu0 %v7408
    %10251 = vmatprep.subr.bf16.mxu0 %v7425
    %10252 = vmatpush1.bf16.msra.mxu0 %v7424
    %10253 = vmatprep.subr.bf16.mxu0 %v7441
    %10254 = vmatpush1.bf16.msra.mxu0 %v7440
    %10255 = vmatprep.subr.bf16.mxu0 %v7457
    %10256 = vmatpush1.bf16.msra.mxu0 %v7456
    %10257 = vmatprep.subr.bf16.mxu0 %v7473
    %10258 = vmatpush1.bf16.msra.mxu0 %v7472
    %10259 = vmatprep.subr.bf16.mxu0 %v7489
    %10260 = vmatpush1.bf16.msra.mxu0 %v7488
    %10261 = vmatprep.subr.bf16.mxu0 %v7505
    %10262 = vmatpush1.bf16.msra.mxu0 %v7504
    %10263 = vmatprep.mubr.bf16.mxu0 %v2803
    %10264 = vmatmul.mubr.bf16.gmra.mrb[0].mxu0 %v2802
    %v10265 = vpop.f32.mrb[0].mxu0
    %v10266 = vadd.f32 %v10225, %v10265
    %v10267 = vpop.f32.mrb[0].mxu0
    %v10268 = vadd.f32 %v10227, %v10267
    %v10269 = vpop.f32.mrb[0].mxu0
    %v10270 = vpop.f32.mrb[0].mxu0
    %10271 = vdwg.mxu0
    %10272 = vmatprep.subr.bf16.mxu0 %v7521
    %10273 = vmatpush1.bf16.msra.mxu0 %v7520
    %10274 = vmatprep.subr.bf16.mxu0 %v7537
    %10275 = vmatpush1.bf16.msra.mxu0 %v7536
    %10276 = vmatprep.subr.bf16.mxu0 %v7553
    %10277 = vmatpush1.bf16.msra.mxu0 %v7552
    %10278 = vmatprep.subr.bf16.mxu0 %v7569
    %10279 = vmatpush1.bf16.msra.mxu0 %v7568
    %10280 = vmatprep.subr.bf16.mxu0 %v7585
    %10281 = vmatpush1.bf16.msra.mxu0 %v7584
    %10282 = vmatprep.subr.bf16.mxu0 %v7601
    %10283 = vmatpush1.bf16.msra.mxu0 %v7600
    %10284 = vmatprep.subr.bf16.mxu0 %v7617
    %10285 = vmatpush1.bf16.msra.mxu0 %v7616
    %10286 = vmatprep.subr.bf16.mxu0 %v7633
    %10287 = vmatpush1.bf16.msra.mxu0 %v7632
    %10288 = vmatprep.subr.bf16.mxu0 %v7649
    %10289 = vmatpush1.bf16.msra.mxu0 %v7648
    %10290 = vmatprep.subr.bf16.mxu0 %v7665
    %10291 = vmatpush1.bf16.msra.mxu0 %v7664
    %10292 = vmatprep.subr.bf16.mxu0 %v7681
    %10293 = vmatpush1.bf16.msra.mxu0 %v7680
    %10294 = vmatprep.subr.bf16.mxu0 %v7697
    %10295 = vmatpush1.bf16.msra.mxu0 %v7696
    %10296 = vmatprep.subr.bf16.mxu0 %v7713
    %10297 = vmatpush1.bf16.msra.mxu0 %v7712
    %10298 = vmatprep.subr.bf16.mxu0 %v7729
    %10299 = vmatpush1.bf16.msra.mxu0 %v7728
    %10300 = vmatprep.subr.bf16.mxu0 %v7745
    %10301 = vmatpush1.bf16.msra.mxu0 %v7744
    %10302 = vmatprep.subr.bf16.mxu0 %v7761
    %10303 = vmatpush1.bf16.msra.mxu0 %v7760
    %10304 = vmatprep.mubr.bf16.mxu0 %v2805
    %10305 = vmatmul.mubr.bf16.gmra.mrb[0].mxu0 %v2804
    %v10306 = vpop.f32.mrb[0].mxu0
    %v10307 = vadd.f32 %v10266, %v10306
    %v10308 = vpop.f32.mrb[0].mxu0
    %v10309 = vadd.f32 %v10268, %v10308
    %v10310 = vpop.f32.mrb[0].mxu0
    %v10311 = vpop.f32.mrb[0].mxu0
    %10312 = vdwg.mxu0
    %10313 = vmatprep.subr.bf16.mxu0 %v7777
    %10314 = vmatpush1.bf16.msra.mxu0 %v7776
    %10315 = vmatprep.subr.bf16.mxu0 %v7793
    %10316 = vmatpush1.bf16.msra.mxu0 %v7792
    %10317 = vmatprep.subr.bf16.mxu0 %v7809
    %10318 = vmatpush1.bf16.msra.mxu0 %v7808
    %10319 = vmatprep.subr.bf16.mxu0 %v7825
    %10320 = vmatpush1.bf16.msra.mxu0 %v7824
    %10321 = vmatprep.subr.bf16.mxu0 %v7841
    %10322 = vmatpush1.bf16.msra.mxu0 %v7840
    %10323 = vmatprep.subr.bf16.mxu0 %v7857
    %10324 = vmatpush1.bf16.msra.mxu0 %v7856
    %10325 = vmatprep.subr.bf16.mxu0 %v7873
    %10326 = vmatpush1.bf16.msra.mxu0 %v7872
    %10327 = vmatprep.subr.bf16.mxu0 %v7889
    %10328 = vmatpush1.bf16.msra.mxu0 %v7888
    %10329 = vmatprep.subr.bf16.mxu0 %v7905
    %10330 = vmatpush1.bf16.msra.mxu0 %v7904
    %10331 = vmatprep.subr.bf16.mxu0 %v7921
    %10332 = vmatpush1.bf16.msra.mxu0 %v7920
    %10333 = vmatprep.subr.bf16.mxu0 %v7937
    %10334 = vmatpush1.bf16.msra.mxu0 %v7936
    %10335 = vmatprep.subr.bf16.mxu0 %v7953
    %10336 = vmatpush1.bf16.msra.mxu0 %v7952
    %10337 = vmatprep.subr.bf16.mxu0 %v7969
    %10338 = vmatpush1.bf16.msra.mxu0 %v7968
    %10339 = vmatprep.subr.bf16.mxu0 %v7985
    %10340 = vmatpush1.bf16.msra.mxu0 %v7984
    %10341 = vmatprep.subr.bf16.mxu0 %v8001
    %10342 = vmatpush1.bf16.msra.mxu0 %v8000
    %10343 = vmatprep.subr.bf16.mxu0 %v8017
    %10344 = vmatpush1.bf16.msra.mxu0 %v8016
    %10345 = vmatprep.mubr.bf16.mxu0 %v2807
    %10346 = vmatmul.mubr.bf16.gmra.mrb[0].mxu0 %v2806
    %v10347 = vpop.f32.mrb[0].mxu0
    %v10348 = vadd.f32 %v10307, %v10347
    %v10349 = vpop.f32.mrb[0].mxu0
    %v10350 = vadd.f32 %v10309, %v10349
    %v10351 = vpop.f32.mrb[0].mxu0
    %v10352 = vpop.f32.mrb[0].mxu0
    %10353 = vdwg.mxu0
    %v10354 = vmax.f32 %v9200, 0.0
    %v10355 = vmax.f32 %v9202, 0.0
    %v10356 = vmax.f32 %v9364, 0.0
    %v10357 = vmax.f32 %v9366, 0.0
    %v10358 = vmax.f32 %v9528, 0.0
    %v10359 = vmax.f32 %v9530, 0.0
    %v10360 = vmax.f32 %v9692, 0.0
    %v10361 = vmax.f32 %v9694, 0.0
    %v10362 = vmax.f32 %v9856, 0.0
    %v10363 = vmax.f32 %v9858, 0.0
    %v10364 = vmax.f32 %v10020, 0.0
    %v10365 = vmax.f32 %v10022, 0.0
    %v10366 = vmax.f32 %v10184, 0.0
    %v10367 = vmax.f32 %v10186, 0.0
    %v10368 = vmax.f32 %v10348, 0.0
    %v10369 = vmax.f32 %v10350, 0.0
    %v10370 = vpack.c.bf16 %v10354, %v10354
    %v10371 = vpack.c.bf16 %v10355, %v10355
    %v10372 = vpack.c.bf16 %v10356, %v10356
    %v10373 = vpack.c.bf16 %v10357, %v10357
    %v10374 = vpack.c.bf16 %v10358, %v10358
    %v10375 = vpack.c.bf16 %v10359, %v10359
    %v10376 = vpack.c.bf16 %v10360, %v10360
    %v10377 = vpack.c.bf16 %v10361, %v10361
    %v10378 = vpack.c.bf16 %v10362, %v10362
    %v10379 = vpack.c.bf16 %v10363, %v10363
    %v10380 = vpack.c.bf16 %v10364, %v10364
    %v10381 = vpack.c.bf16 %v10365, %v10365
    %v10382 = vpack.c.bf16 %v10366, %v10366
    %v10383 = vpack.c.bf16 %v10367, %v10367
    %v10384 = vpack.c.bf16 %v10368, %v10368
    %v10385 = vpack.c.bf16 %v10369, %v10369
    %v10386 = vld [vmem:[%s4] sm:$0xf]
    %v10387 = vld [vmem:[%s4 + $0x4] sm:$0xf]
    %v10388 = vld [vmem:[%s4 + $0x8] sm:$0xf]
    %v10389 = vld [vmem:[%s4 + $0xc] sm:$0xf]
    %v10390 = vld [vmem:[%s4 + $0x10] sm:$0xf]
    %v10391 = vld [vmem:[%s4 + $0x14] sm:$0xf]
    %v10392 = vld [vmem:[%s4 + $0x18] sm:$0xf]
    %v10393 = vld [vmem:[%s4 + $0x1c] sm:$0xf]
    %v10394 = vld [vmem:[%s4 + $0x20] sm:$0xf]
    %v10395 = vld [vmem:[%s4 + $0x24] sm:$0xf]
    %v10396 = vld [vmem:[%s4 + $0x28] sm:$0xf]
    %v10397 = vld [vmem:[%s4 + $0x2c] sm:$0xf]
    %v10398 = vld [vmem:[%s4 + $0x30] sm:$0xf]
    %v10399 = vld [vmem:[%s4 + $0x34] sm:$0xf]
    %v10400 = vld [vmem:[%s4 + $0x38] sm:$0xf]
    %v10401 = vld [vmem:[%s4 + $0x3c] sm:$0xf]
    %v10402 = vld [vmem:[%s4 + $0x40] sm:$0xf]
    %v10403 = vld [vmem:[%s4 + $0x44] sm:$0xf]
    %v10404 = vld [vmem:[%s4 + $0x48] sm:$0xf]
    %v10405 = vld [vmem:[%s4 + $0x4c] sm:$0xf]
    %v10406 = vld [vmem:[%s4 + $0x50] sm:$0xf]
    %v10407 = vld [vmem:[%s4 + $0x54] sm:$0xf]
    %v10408 = vld [vmem:[%s4 + $0x58] sm:$0xf]
    %v10409 = vld [vmem:[%s4 + $0x5c] sm:$0xf]
    %v10410 = vld [vmem:[%s4 + $0x60] sm:$0xf]
    %v10411 = vld [vmem:[%s4 + $0x64] sm:$0xf]
    %v10412 = vld [vmem:[%s4 + $0x68] sm:$0xf]
    %v10413 = vld [vmem:[%s4 + $0x6c] sm:$0xf]
    %v10414 = vld [vmem:[%s4 + $0x70] sm:$0xf]
    %v10415 = vld [vmem:[%s4 + $0x74] sm:$0xf]
    %v10416 = vld [vmem:[%s4 + $0x78] sm:$0xf]
    %v10417 = vld [vmem:[%s4 + $0x7c] sm:$0xf]
    %v10418 = vld [vmem:[%s4 + $0x80] sm:$0xf]
    %v10419 = vld [vmem:[%s4 + $0x84] sm:$0xf]
    %v10420 = vld [vmem:[%s4 + $0x88] sm:$0xf]
    %v10421 = vld [vmem:[%s4 + $0x8c] sm:$0xf]
    %v10422 = vld [vmem:[%s4 + $0x90] sm:$0xf]
    %v10423 = vld [vmem:[%s4 + $0x94] sm:$0xf]
    %v10424 = vld [vmem:[%s4 + $0x98] sm:$0xf]
    %v10425 = vld [vmem:[%s4 + $0x9c] sm:$0xf]
    %v10426 = vld [vmem:[%s4 + $0xa0] sm:$0xf]
    %v10427 = vld [vmem:[%s4 + $0xa4] sm:$0xf]
    %v10428 = vld [vmem:[%s4 + $0xa8] sm:$0xf]
    %v10429 = vld [vmem:[%s4 + $0xac] sm:$0xf]
    %v10430 = vld [vmem:[%s4 + $0xb0] sm:$0xf]
    %v10431 = vld [vmem:[%s4 + $0xb4] sm:$0xf]
    %v10432 = vld [vmem:[%s4 + $0xb8] sm:$0xf]
    %v10433 = vld [vmem:[%s4 + $0xbc] sm:$0xf]
    %v10434 = vld [vmem:[%s4 + $0xc0] sm:$0xf]
    %v10435 = vld [vmem:[%s4 + $0xc4] sm:$0xf]
    %v10436 = vld [vmem:[%s4 + $0xc8] sm:$0xf]
    %v10437 = vld [vmem:[%s4 + $0xcc] sm:$0xf]
    %v10438 = vld [vmem:[%s4 + $0xd0] sm:$0xf]
    %v10439 = vld [vmem:[%s4 + $0xd4] sm:$0xf]
    %v10440 = vld [vmem:[%s4 + $0xd8] sm:$0xf]
    %v10441 = vld [vmem:[%s4 + $0xdc] sm:$0xf]
    %v10442 = vld [vmem:[%s4 + $0xe0] sm:$0xf]
    %v10443 = vld [vmem:[%s4 + $0xe4] sm:$0xf]
    %v10444 = vld [vmem:[%s4 + $0xe8] sm:$0xf]
    %v10445 = vld [vmem:[%s4 + $0xec] sm:$0xf]
    %v10446 = vld [vmem:[%s4 + $0xf0] sm:$0xf]
    %v10447 = vld [vmem:[%s4 + $0xf4] sm:$0xf]
    %v10448 = vld [vmem:[%s4 + $0xf8] sm:$0xf]
    %v10449 = vld [vmem:[%s4 + $0xfc] sm:$0xf]
    %v10450 = vld [vmem:[%s4 + $0x100] sm:$0xf]
    %v10451 = vld [vmem:[%s4 + $0x104] sm:$0xf]
    %v10452 = vld [vmem:[%s4 + $0x108] sm:$0xf]
    %v10453 = vld [vmem:[%s4 + $0x10c] sm:$0xf]
    %v10454 = vld [vmem:[%s4 + $0x110] sm:$0xf]
    %v10455 = vld [vmem:[%s4 + $0x114] sm:$0xf]
    %v10456 = vld [vmem:[%s4 + $0x118] sm:$0xf]
    %v10457 = vld [vmem:[%s4 + $0x11c] sm:$0xf]
    %v10458 = vld [vmem:[%s4 + $0x120] sm:$0xf]
    %v10459 = vld [vmem:[%s4 + $0x124] sm:$0xf]
    %v10460 = vld [vmem:[%s4 + $0x128] sm:$0xf]
    %v10461 = vld [vmem:[%s4 + $0x12c] sm:$0xf]
    %v10462 = vld [vmem:[%s4 + $0x130] sm:$0xf]
    %v10463 = vld [vmem:[%s4 + $0x134] sm:$0xf]
    %v10464 = vld [vmem:[%s4 + $0x138] sm:$0xf]
    %v10465 = vld [vmem:[%s4 + $0x13c] sm:$0xf]
    %v10466 = vld [vmem:[%s4 + $0x140] sm:$0xf]
    %v10467 = vld [vmem:[%s4 + $0x144] sm:$0xf]
    %v10468 = vld [vmem:[%s4 + $0x148] sm:$0xf]
    %v10469 = vld [vmem:[%s4 + $0x14c] sm:$0xf]
    %v10470 = vld [vmem:[%s4 + $0x150] sm:$0xf]
    %v10471 = vld [vmem:[%s4 + $0x154] sm:$0xf]
    %v10472 = vld [vmem:[%s4 + $0x158] sm:$0xf]
    %v10473 = vld [vmem:[%s4 + $0x15c] sm:$0xf]
    %v10474 = vld [vmem:[%s4 + $0x160] sm:$0xf]
    %v10475 = vld [vmem:[%s4 + $0x164] sm:$0xf]
    %v10476 = vld [vmem:[%s4 + $0x168] sm:$0xf]
    %v10477 = vld [vmem:[%s4 + $0x16c] sm:$0xf]
    %v10478 = vld [vmem:[%s4 + $0x170] sm:$0xf]
    %v10479 = vld [vmem:[%s4 + $0x174] sm:$0xf]
    %v10480 = vld [vmem:[%s4 + $0x178] sm:$0xf]
    %v10481 = vld [vmem:[%s4 + $0x17c] sm:$0xf]
    %v10482 = vld [vmem:[%s4 + $0x180] sm:$0xf]
    %v10483 = vld [vmem:[%s4 + $0x184] sm:$0xf]
    %v10484 = vld [vmem:[%s4 + $0x188] sm:$0xf]
    %v10485 = vld [vmem:[%s4 + $0x18c] sm:$0xf]
    %v10486 = vld [vmem:[%s4 + $0x190] sm:$0xf]
    %v10487 = vld [vmem:[%s4 + $0x194] sm:$0xf]
    %v10488 = vld [vmem:[%s4 + $0x198] sm:$0xf]
    %v10489 = vld [vmem:[%s4 + $0x19c] sm:$0xf]
    %v10490 = vld [vmem:[%s4 + $0x1a0] sm:$0xf]
    %v10491 = vld [vmem:[%s4 + $0x1a4] sm:$0xf]
    %v10492 = vld [vmem:[%s4 + $0x1a8] sm:$0xf]
    %v10493 = vld [vmem:[%s4 + $0x1ac] sm:$0xf]
    %v10494 = vld [vmem:[%s4 + $0x1b0] sm:$0xf]
    %v10495 = vld [vmem:[%s4 + $0x1b4] sm:$0xf]
    %v10496 = vld [vmem:[%s4 + $0x1b8] sm:$0xf]
    %v10497 = vld [vmem:[%s4 + $0x1bc] sm:$0xf]
    %v10498 = vld [vmem:[%s4 + $0x1c0] sm:$0xf]
    %v10499 = vld [vmem:[%s4 + $0x1c4] sm:$0xf]
    %v10500 = vld [vmem:[%s4 + $0x1c8] sm:$0xf]
    %v10501 = vld [vmem:[%s4 + $0x1cc] sm:$0xf]
    %v10502 = vld [vmem:[%s4 + $0x1d0] sm:$0xf]
    %v10503 = vld [vmem:[%s4 + $0x1d4] sm:$0xf]
    %v10504 = vld [vmem:[%s4 + $0x1d8] sm:$0xf]
    %v10505 = vld [vmem:[%s4 + $0x1dc] sm:$0xf]
    %v10506 = vld [vmem:[%s4 + $0x1e0] sm:$0xf]
    %v10507 = vld [vmem:[%s4 + $0x1e4] sm:$0xf]
    %v10508 = vld [vmem:[%s4 + $0x1e8] sm:$0xf]
    %v10509 = vld [vmem:[%s4 + $0x1ec] sm:$0xf]
    %v10510 = vld [vmem:[%s4 + $0x1f0] sm:$0xf]
    %v10511 = vld [vmem:[%s4 + $0x1f4] sm:$0xf]
    %v10512 = vld [vmem:[%s4 + $0x1f8] sm:$0xf]
    %v10513 = vld [vmem:[%s4 + $0x1fc] sm:$0xf]
    %v10514 = vld [vmem:[%s4 + $0x200] sm:$0xf]
    %v10515 = vld [vmem:[%s4 + $0x204] sm:$0xf]
    %v10516 = vld [vmem:[%s4 + $0x208] sm:$0xf]
    %v10517 = vld [vmem:[%s4 + $0x20c] sm:$0xf]
    %v10518 = vld [vmem:[%s4 + $0x210] sm:$0xf]
    %v10519 = vld [vmem:[%s4 + $0x214] sm:$0xf]
    %v10520 = vld [vmem:[%s4 + $0x218] sm:$0xf]
    %v10521 = vld [vmem:[%s4 + $0x21c] sm:$0xf]
    %v10522 = vld [vmem:[%s4 + $0x220] sm:$0xf]
    %v10523 = vld [vmem:[%s4 + $0x224] sm:$0xf]
    %v10524 = vld [vmem:[%s4 + $0x228] sm:$0xf]
    %v10525 = vld [vmem:[%s4 + $0x22c] sm:$0xf]
    %v10526 = vld [vmem:[%s4 + $0x230] sm:$0xf]
    %v10527 = vld [vmem:[%s4 + $0x234] sm:$0xf]
    %v10528 = vld [vmem:[%s4 + $0x238] sm:$0xf]
    %v10529 = vld [vmem:[%s4 + $0x23c] sm:$0xf]
    %v10530 = vld [vmem:[%s4 + $0x240] sm:$0xf]
    %v10531 = vld [vmem:[%s4 + $0x244] sm:$0xf]
    %v10532 = vld [vmem:[%s4 + $0x248] sm:$0xf]
    %v10533 = vld [vmem:[%s4 + $0x24c] sm:$0xf]
    %v10534 = vld [vmem:[%s4 + $0x250] sm:$0xf]
    %v10535 = vld [vmem:[%s4 + $0x254] sm:$0xf]
    %v10536 = vld [vmem:[%s4 + $0x258] sm:$0xf]
    %v10537 = vld [vmem:[%s4 + $0x25c] sm:$0xf]
    %v10538 = vld [vmem:[%s4 + $0x260] sm:$0xf]
    %v10539 = vld [vmem:[%s4 + $0x264] sm:$0xf]
    %v10540 = vld [vmem:[%s4 + $0x268] sm:$0xf]
    %v10541 = vld [vmem:[%s4 + $0x26c] sm:$0xf]
    %v10542 = vld [vmem:[%s4 + $0x270] sm:$0xf]
    %v10543 = vld [vmem:[%s4 + $0x274] sm:$0xf]
    %v10544 = vld [vmem:[%s4 + $0x278] sm:$0xf]
    %v10545 = vld [vmem:[%s4 + $0x27c] sm:$0xf]
    %v10546 = vld [vmem:[%s4 + $0x280] sm:$0xf]
    %v10547 = vld [vmem:[%s4 + $0x284] sm:$0xf]
    %v10548 = vld [vmem:[%s4 + $0x288] sm:$0xf]
    %v10549 = vld [vmem:[%s4 + $0x28c] sm:$0xf]
    %v10550 = vld [vmem:[%s4 + $0x290] sm:$0xf]
    %v10551 = vld [vmem:[%s4 + $0x294] sm:$0xf]
    %v10552 = vld [vmem:[%s4 + $0x298] sm:$0xf]
    %v10553 = vld [vmem:[%s4 + $0x29c] sm:$0xf]
    %v10554 = vld [vmem:[%s4 + $0x2a0] sm:$0xf]
    %v10555 = vld [vmem:[%s4 + $0x2a4] sm:$0xf]
    %v10556 = vld [vmem:[%s4 + $0x2a8] sm:$0xf]
    %v10557 = vld [vmem:[%s4 + $0x2ac] sm:$0xf]
    %v10558 = vld [vmem:[%s4 + $0x2b0] sm:$0xf]
    %v10559 = vld [vmem:[%s4 + $0x2b4] sm:$0xf]
    %v10560 = vld [vmem:[%s4 + $0x2b8] sm:$0xf]
    %v10561 = vld [vmem:[%s4 + $0x2bc] sm:$0xf]
    %v10562 = vld [vmem:[%s4 + $0x2c0] sm:$0xf]
    %v10563 = vld [vmem:[%s4 + $0x2c4] sm:$0xf]
    %v10564 = vld [vmem:[%s4 + $0x2c8] sm:$0xf]
    %v10565 = vld [vmem:[%s4 + $0x2cc] sm:$0xf]
    %v10566 = vld [vmem:[%s4 + $0x2d0] sm:$0xf]
    %v10567 = vld [vmem:[%s4 + $0x2d4] sm:$0xf]
    %v10568 = vld [vmem:[%s4 + $0x2d8] sm:$0xf]
    %v10569 = vld [vmem:[%s4 + $0x2dc] sm:$0xf]
    %v10570 = vld [vmem:[%s4 + $0x2e0] sm:$0xf]
    %v10571 = vld [vmem:[%s4 + $0x2e4] sm:$0xf]
    %v10572 = vld [vmem:[%s4 + $0x2e8] sm:$0xf]
    %v10573 = vld [vmem:[%s4 + $0x2ec] sm:$0xf]
    %v10574 = vld [vmem:[%s4 + $0x2f0] sm:$0xf]
    %v10575 = vld [vmem:[%s4 + $0x2f4] sm:$0xf]
    %v10576 = vld [vmem:[%s4 + $0x2f8] sm:$0xf]
    %v10577 = vld [vmem:[%s4 + $0x2fc] sm:$0xf]
    %v10578 = vld [vmem:[%s4 + $0x300] sm:$0xf]
    %v10579 = vld [vmem:[%s4 + $0x304] sm:$0xf]
    %v10580 = vld [vmem:[%s4 + $0x308] sm:$0xf]
    %v10581 = vld [vmem:[%s4 + $0x30c] sm:$0xf]
    %v10582 = vld [vmem:[%s4 + $0x310] sm:$0xf]
    %v10583 = vld [vmem:[%s4 + $0x314] sm:$0xf]
    %v10584 = vld [vmem:[%s4 + $0x318] sm:$0xf]
    %v10585 = vld [vmem:[%s4 + $0x31c] sm:$0xf]
    %v10586 = vld [vmem:[%s4 + $0x320] sm:$0xf]
    %v10587 = vld [vmem:[%s4 + $0x324] sm:$0xf]
    %v10588 = vld [vmem:[%s4 + $0x328] sm:$0xf]
    %v10589 = vld [vmem:[%s4 + $0x32c] sm:$0xf]
    %v10590 = vld [vmem:[%s4 + $0x330] sm:$0xf]
    %v10591 = vld [vmem:[%s4 + $0x334] sm:$0xf]
    %v10592 = vld [vmem:[%s4 + $0x338] sm:$0xf]
    %v10593 = vld [vmem:[%s4 + $0x33c] sm:$0xf]
    %v10594 = vld [vmem:[%s4 + $0x340] sm:$0xf]
    %v10595 = vld [vmem:[%s4 + $0x344] sm:$0xf]
    %v10596 = vld [vmem:[%s4 + $0x348] sm:$0xf]
    %v10597 = vld [vmem:[%s4 + $0x34c] sm:$0xf]
    %v10598 = vld [vmem:[%s4 + $0x350] sm:$0xf]
    %v10599 = vld [vmem:[%s4 + $0x354] sm:$0xf]
    %v10600 = vld [vmem:[%s4 + $0x358] sm:$0xf]
    %v10601 = vld [vmem:[%s4 + $0x35c] sm:$0xf]
    %v10602 = vld [vmem:[%s4 + $0x360] sm:$0xf]
    %v10603 = vld [vmem:[%s4 + $0x364] sm:$0xf]
    %v10604 = vld [vmem:[%s4 + $0x368] sm:$0xf]
    %v10605 = vld [vmem:[%s4 + $0x36c] sm:$0xf]
    %v10606 = vld [vmem:[%s4 + $0x370] sm:$0xf]
    %v10607 = vld [vmem:[%s4 + $0x374] sm:$0xf]
    %v10608 = vld [vmem:[%s4 + $0x378] sm:$0xf]
    %v10609 = vld [vmem:[%s4 + $0x37c] sm:$0xf]
    %v10610 = vld [vmem:[%s4 + $0x380] sm:$0xf]
    %v10611 = vld [vmem:[%s4 + $0x384] sm:$0xf]
    %v10612 = vld [vmem:[%s4 + $0x388] sm:$0xf]
    %v10613 = vld [vmem:[%s4 + $0x38c] sm:$0xf]
    %v10614 = vld [vmem:[%s4 + $0x390] sm:$0xf]
    %v10615 = vld [vmem:[%s4 + $0x394] sm:$0xf]
    %v10616 = vld [vmem:[%s4 + $0x398] sm:$0xf]
    %v10617 = vld [vmem:[%s4 + $0x39c] sm:$0xf]
    %v10618 = vld [vmem:[%s4 + $0x3a0] sm:$0xf]
    %v10619 = vld [vmem:[%s4 + $0x3a4] sm:$0xf]
    %v10620 = vld [vmem:[%s4 + $0x3a8] sm:$0xf]
    %v10621 = vld [vmem:[%s4 + $0x3ac] sm:$0xf]
    %v10622 = vld [vmem:[%s4 + $0x3b0] sm:$0xf]
    %v10623 = vld [vmem:[%s4 + $0x3b4] sm:$0xf]
    %v10624 = vld [vmem:[%s4 + $0x3b8] sm:$0xf]
    %v10625 = vld [vmem:[%s4 + $0x3bc] sm:$0xf]
    %v10626 = vld [vmem:[%s4 + $0x3c0] sm:$0xf]
    %v10627 = vld [vmem:[%s4 + $0x3c4] sm:$0xf]
    %v10628 = vld [vmem:[%s4 + $0x3c8] sm:$0xf]
    %v10629 = vld [vmem:[%s4 + $0x3cc] sm:$0xf]
    %v10630 = vld [vmem:[%s4 + $0x3d0] sm:$0xf]
    %v10631 = vld [vmem:[%s4 + $0x3d4] sm:$0xf]
    %v10632 = vld [vmem:[%s4 + $0x3d8] sm:$0xf]
    %v10633 = vld [vmem:[%s4 + $0x3dc] sm:$0xf]
    %v10634 = vld [vmem:[%s4 + $0x3e0] sm:$0xf]
    %v10635 = vld [vmem:[%s4 + $0x3e4] sm:$0xf]
    %v10636 = vld [vmem:[%s4 + $0x3e8] sm:$0xf]
    %v10637 = vld [vmem:[%s4 + $0x3ec] sm:$0xf]
    %v10638 = vld [vmem:[%s4 + $0x3f0] sm:$0xf]
    %v10639 = vld [vmem:[%s4 + $0x3f4] sm:$0xf]
    %v10640 = vld [vmem:[%s4 + $0x3f8] sm:$0xf]
    %v10641 = vld [vmem:[%s4 + $0x3fc] sm:$0xf]
    %v10642 = vld [vmem:[#allocation9 + $0x6] ss:$0 sm:$0xff]
    %v10899 = vunpack.c.l.b16 %v10386
    %v10900 = vunpack.c.l.b16 %v10387
    %v10901 = vunpack.c.l.b16 %v10388
    %v10902 = vunpack.c.l.b16 %v10389
    %v10903 = vunpack.c.l.b16 %v10390
    %v10904 = vunpack.c.l.b16 %v10391
    %v10905 = vunpack.c.l.b16 %v10392
    %v10906 = vunpack.c.l.b16 %v10393
    %v10907 = vunpack.c.l.b16 %v10394
    %v10908 = vunpack.c.l.b16 %v10395
    %v10909 = vunpack.c.l.b16 %v10396
    %v10910 = vunpack.c.l.b16 %v10397
    %v10911 = vunpack.c.l.b16 %v10398
    %v10912 = vunpack.c.l.b16 %v10399
    %v10913 = vunpack.c.l.b16 %v10400
    %v10914 = vunpack.c.l.b16 %v10401
    %v10915 = vunpack.c.l.b16 %v10402
    %v10916 = vunpack.c.l.b16 %v10403
    %v10917 = vunpack.c.l.b16 %v10404
    %v10918 = vunpack.c.l.b16 %v10405
    %v10919 = vunpack.c.l.b16 %v10406
    %v10920 = vunpack.c.l.b16 %v10407
    %v10921 = vunpack.c.l.b16 %v10408
    %v10922 = vunpack.c.l.b16 %v10409
    %v10923 = vunpack.c.l.b16 %v10410
    %v10924 = vunpack.c.l.b16 %v10411
    %v10925 = vunpack.c.l.b16 %v10412
    %v10926 = vunpack.c.l.b16 %v10413
    %v10927 = vunpack.c.l.b16 %v10414
    %v10928 = vunpack.c.l.b16 %v10415
    %v10929 = vunpack.c.l.b16 %v10416
    %v10930 = vunpack.c.l.b16 %v10417
    %v10931 = vunpack.c.l.b16 %v10418
    %v10932 = vunpack.c.l.b16 %v10419
    %v10933 = vunpack.c.l.b16 %v10420
    %v10934 = vunpack.c.l.b16 %v10421
    %v10935 = vunpack.c.l.b16 %v10422
    %v10936 = vunpack.c.l.b16 %v10423
    %v10937 = vunpack.c.l.b16 %v10424
    %v10938 = vunpack.c.l.b16 %v10425
    %v10939 = vunpack.c.l.b16 %v10426
    %v10940 = vunpack.c.l.b16 %v10427
    %v10941 = vunpack.c.l.b16 %v10428
    %v10942 = vunpack.c.l.b16 %v10429
    %v10943 = vunpack.c.l.b16 %v10430
    %v10944 = vunpack.c.l.b16 %v10431
    %v10945 = vunpack.c.l.b16 %v10432
    %v10946 = vunpack.c.l.b16 %v10433
    %v10947 = vunpack.c.l.b16 %v10434
    %v10948 = vunpack.c.l.b16 %v10435
    %v10949 = vunpack.c.l.b16 %v10436
    %v10950 = vunpack.c.l.b16 %v10437
    %v10951 = vunpack.c.l.b16 %v10438
    %v10952 = vunpack.c.l.b16 %v10439
    %v10953 = vunpack.c.l.b16 %v10440
    %v10954 = vunpack.c.l.b16 %v10441
    %v10955 = vunpack.c.l.b16 %v10442
    %v10956 = vunpack.c.l.b16 %v10443
    %v10957 = vunpack.c.l.b16 %v10444
    %v10958 = vunpack.c.l.b16 %v10445
    %v10959 = vunpack.c.l.b16 %v10446
    %v10960 = vunpack.c.l.b16 %v10447
    %v10961 = vunpack.c.l.b16 %v10448
    %v10962 = vunpack.c.l.b16 %v10449
    %v10963 = vunpack.c.l.b16 %v10450
    %v10964 = vunpack.c.l.b16 %v10451
    %v10965 = vunpack.c.l.b16 %v10452
    %v10966 = vunpack.c.l.b16 %v10453
    %v10967 = vunpack.c.l.b16 %v10454
    %v10968 = vunpack.c.l.b16 %v10455
    %v10969 = vunpack.c.l.b16 %v10456
    %v10970 = vunpack.c.l.b16 %v10457
    %v10971 = vunpack.c.l.b16 %v10458
    %v10972 = vunpack.c.l.b16 %v10459
    %v10973 = vunpack.c.l.b16 %v10460
    %v10974 = vunpack.c.l.b16 %v10461
    %v10975 = vunpack.c.l.b16 %v10462
    %v10976 = vunpack.c.l.b16 %v10463
    %v10977 = vunpack.c.l.b16 %v10464
    %v10978 = vunpack.c.l.b16 %v10465
    %v10979 = vunpack.c.l.b16 %v10466
    %v10980 = vunpack.c.l.b16 %v10467
    %v10981 = vunpack.c.l.b16 %v10468
    %v10982 = vunpack.c.l.b16 %v10469
    %v10983 = vunpack.c.l.b16 %v10470
    %v10984 = vunpack.c.l.b16 %v10471
    %v10985 = vunpack.c.l.b16 %v10472
    %v10986 = vunpack.c.l.b16 %v10473
    %v10987 = vunpack.c.l.b16 %v10474
    %v10988 = vunpack.c.l.b16 %v10475
    %v10989 = vunpack.c.l.b16 %v10476
    %v10990 = vunpack.c.l.b16 %v10477
    %v10991 = vunpack.c.l.b16 %v10478
    %v10992 = vunpack.c.l.b16 %v10479
    %v10993 = vunpack.c.l.b16 %v10480
    %v10994 = vunpack.c.l.b16 %v10481
    %v10995 = vunpack.c.l.b16 %v10482
    %v10996 = vunpack.c.l.b16 %v10483
    %v10997 = vunpack.c.l.b16 %v10484
    %v10998 = vunpack.c.l.b16 %v10485
    %v10999 = vunpack.c.l.b16 %v10486
    %v11000 = vunpack.c.l.b16 %v10487
    %v11001 = vunpack.c.l.b16 %v10488
    %v11002 = vunpack.c.l.b16 %v10489
    %v11003 = vunpack.c.l.b16 %v10490
    %v11004 = vunpack.c.l.b16 %v10491
    %v11005 = vunpack.c.l.b16 %v10492
    %v11006 = vunpack.c.l.b16 %v10493
    %v11007 = vunpack.c.l.b16 %v10494
    %v11008 = vunpack.c.l.b16 %v10495
    %v11009 = vunpack.c.l.b16 %v10496
    %v11010 = vunpack.c.l.b16 %v10497
    %v11011 = vunpack.c.l.b16 %v10498
    %v11012 = vunpack.c.l.b16 %v10499
    %v11013 = vunpack.c.l.b16 %v10500
    %v11014 = vunpack.c.l.b16 %v10501
    %v11015 = vunpack.c.l.b16 %v10502
    %v11016 = vunpack.c.l.b16 %v10503
    %v11017 = vunpack.c.l.b16 %v10504
    %v11018 = vunpack.c.l.b16 %v10505
    %v11019 = vunpack.c.l.b16 %v10506
    %v11020 = vunpack.c.l.b16 %v10507
    %v11021 = vunpack.c.l.b16 %v10508
    %v11022 = vunpack.c.l.b16 %v10509
    %v11023 = vunpack.c.l.b16 %v10510
    %v11024 = vunpack.c.l.b16 %v10511
    %v11025 = vunpack.c.l.b16 %v10512
    %v11026 = vunpack.c.l.b16 %v10513
    %v11027 = vunpack.c.l.b16 %v10514
    %v11028 = vunpack.c.l.b16 %v10515
    %v11029 = vunpack.c.l.b16 %v10516
    %v11030 = vunpack.c.l.b16 %v10517
    %v11031 = vunpack.c.l.b16 %v10518
    %v11032 = vunpack.c.l.b16 %v10519
    %v11033 = vunpack.c.l.b16 %v10520
    %v11034 = vunpack.c.l.b16 %v10521
    %v11035 = vunpack.c.l.b16 %v10522
    %v11036 = vunpack.c.l.b16 %v10523
    %v11037 = vunpack.c.l.b16 %v10524
    %v11038 = vunpack.c.l.b16 %v10525
    %v11039 = vunpack.c.l.b16 %v10526
    %v11040 = vunpack.c.l.b16 %v10527
    %v11041 = vunpack.c.l.b16 %v10528
    %v11042 = vunpack.c.l.b16 %v10529
    %v11043 = vunpack.c.l.b16 %v10530
    %v11044 = vunpack.c.l.b16 %v10531
    %v11045 = vunpack.c.l.b16 %v10532
    %v11046 = vunpack.c.l.b16 %v10533
    %v11047 = vunpack.c.l.b16 %v10534
    %v11048 = vunpack.c.l.b16 %v10535
    %v11049 = vunpack.c.l.b16 %v10536
    %v11050 = vunpack.c.l.b16 %v10537
    %v11051 = vunpack.c.l.b16 %v10538
    %v11052 = vunpack.c.l.b16 %v10539
    %v11053 = vunpack.c.l.b16 %v10540
    %v11054 = vunpack.c.l.b16 %v10541
    %v11055 = vunpack.c.l.b16 %v10542
    %v11056 = vunpack.c.l.b16 %v10543
    %v11057 = vunpack.c.l.b16 %v10544
    %v11058 = vunpack.c.l.b16 %v10545
    %v11059 = vunpack.c.l.b16 %v10546
    %v11060 = vunpack.c.l.b16 %v10547
    %v11061 = vunpack.c.l.b16 %v10548
    %v11062 = vunpack.c.l.b16 %v10549
    %v11063 = vunpack.c.l.b16 %v10550
    %v11064 = vunpack.c.l.b16 %v10551
    %v11065 = vunpack.c.l.b16 %v10552
    %v11066 = vunpack.c.l.b16 %v10553
    %v11067 = vunpack.c.l.b16 %v10554
    %v11068 = vunpack.c.l.b16 %v10555
    %v11069 = vunpack.c.l.b16 %v10556
    %v11070 = vunpack.c.l.b16 %v10557
    %v11071 = vunpack.c.l.b16 %v10558
    %v11072 = vunpack.c.l.b16 %v10559
    %v11073 = vunpack.c.l.b16 %v10560
    %v11074 = vunpack.c.l.b16 %v10561
    %v11075 = vunpack.c.l.b16 %v10562
    %v11076 = vunpack.c.l.b16 %v10563
    %v11077 = vunpack.c.l.b16 %v10564
    %v11078 = vunpack.c.l.b16 %v10565
    %v11079 = vunpack.c.l.b16 %v10566
    %v11080 = vunpack.c.l.b16 %v10567
    %v11081 = vunpack.c.l.b16 %v10568
    %v11082 = vunpack.c.l.b16 %v10569
    %v11083 = vunpack.c.l.b16 %v10570
    %v11084 = vunpack.c.l.b16 %v10571
    %v11085 = vunpack.c.l.b16 %v10572
    %v11086 = vunpack.c.l.b16 %v10573
    %v11087 = vunpack.c.l.b16 %v10574
    %v11088 = vunpack.c.l.b16 %v10575
    %v11089 = vunpack.c.l.b16 %v10576
    %v11090 = vunpack.c.l.b16 %v10577
    %v11091 = vunpack.c.l.b16 %v10578
    %v11092 = vunpack.c.l.b16 %v10579
    %v11093 = vunpack.c.l.b16 %v10580
    %v11094 = vunpack.c.l.b16 %v10581
    %v11095 = vunpack.c.l.b16 %v10582
    %v11096 = vunpack.c.l.b16 %v10583
    %v11097 = vunpack.c.l.b16 %v10584
    %v11098 = vunpack.c.l.b16 %v10585
    %v11099 = vunpack.c.l.b16 %v10586
    %v11100 = vunpack.c.l.b16 %v10587
    %v11101 = vunpack.c.l.b16 %v10588
    %v11102 = vunpack.c.l.b16 %v10589
    %v11103 = vunpack.c.l.b16 %v10590
    %v11104 = vunpack.c.l.b16 %v10591
    %v11105 = vunpack.c.l.b16 %v10592
    %v11106 = vunpack.c.l.b16 %v10593
    %v11107 = vunpack.c.l.b16 %v10594
    %v11108 = vunpack.c.l.b16 %v10595
    %v11109 = vunpack.c.l.b16 %v10596
    %v11110 = vunpack.c.l.b16 %v10597
    %v11111 = vunpack.c.l.b16 %v10598
    %v11112 = vunpack.c.l.b16 %v10599
    %v11113 = vunpack.c.l.b16 %v10600
    %v11114 = vunpack.c.l.b16 %v10601
    %v11115 = vunpack.c.l.b16 %v10602
    %v11116 = vunpack.c.l.b16 %v10603
    %v11117 = vunpack.c.l.b16 %v10604
    %v11118 = vunpack.c.l.b16 %v10605
    %v11119 = vunpack.c.l.b16 %v10606
    %v11120 = vunpack.c.l.b16 %v10607
    %v11121 = vunpack.c.l.b16 %v10608
    %v11122 = vunpack.c.l.b16 %v10609
    %v11123 = vunpack.c.l.b16 %v10610
    %v11124 = vunpack.c.l.b16 %v10611
    %v11125 = vunpack.c.l.b16 %v10612
    %v11126 = vunpack.c.l.b16 %v10613
    %v11127 = vunpack.c.l.b16 %v10614
    %v11128 = vunpack.c.l.b16 %v10615
    %v11129 = vunpack.c.l.b16 %v10616
    %v11130 = vunpack.c.l.b16 %v10617
    %v11131 = vunpack.c.l.b16 %v10618
    %v11132 = vunpack.c.l.b16 %v10619
    %v11133 = vunpack.c.l.b16 %v10620
    %v11134 = vunpack.c.l.b16 %v10621
    %v11135 = vunpack.c.l.b16 %v10622
    %v11136 = vunpack.c.l.b16 %v10623
    %v11137 = vunpack.c.l.b16 %v10624
    %v11138 = vunpack.c.l.b16 %v10625
    %v11139 = vunpack.c.l.b16 %v10626
    %v11140 = vunpack.c.l.b16 %v10627
    %v11141 = vunpack.c.l.b16 %v10628
    %v11142 = vunpack.c.l.b16 %v10629
    %v11143 = vunpack.c.l.b16 %v10630
    %v11144 = vunpack.c.l.b16 %v10631
    %v11145 = vunpack.c.l.b16 %v10632
    %v11146 = vunpack.c.l.b16 %v10633
    %v11147 = vunpack.c.l.b16 %v10634
    %v11148 = vunpack.c.l.b16 %v10635
    %v11149 = vunpack.c.l.b16 %v10636
    %v11150 = vunpack.c.l.b16 %v10637
    %v11151 = vunpack.c.l.b16 %v10638
    %v11152 = vunpack.c.l.b16 %v10639
    %v11153 = vunpack.c.l.b16 %v10640
    %v11154 = vunpack.c.l.b16 %v10641
    %v11155 = vpack.c.b16 %v10900, %v10899
    %v11156 = vpack.c.b16 %v10902, %v10901
    %v11157 = vpack.c.b16 %v10904, %v10903
    %v11158 = vpack.c.b16 %v10906, %v10905
    %v11159 = vpack.c.b16 %v10908, %v10907
    %v11160 = vpack.c.b16 %v10910, %v10909
    %v11161 = vpack.c.b16 %v10912, %v10911
    %v11162 = vpack.c.b16 %v10914, %v10913
    %v11163 = vpack.c.b16 %v10916, %v10915
    %v11164 = vpack.c.b16 %v10918, %v10917
    %v11165 = vpack.c.b16 %v10920, %v10919
    %v11166 = vpack.c.b16 %v10922, %v10921
    %v11167 = vpack.c.b16 %v10924, %v10923
    %v11168 = vpack.c.b16 %v10926, %v10925
    %v11169 = vpack.c.b16 %v10928, %v10927
    %v11170 = vpack.c.b16 %v10930, %v10929
    %v11171 = vpack.c.b16 %v10932, %v10931
    %v11172 = vpack.c.b16 %v10934, %v10933
    %v11173 = vpack.c.b16 %v10936, %v10935
    %v11174 = vpack.c.b16 %v10938, %v10937
    %v11175 = vpack.c.b16 %v10940, %v10939
    %v11176 = vpack.c.b16 %v10942, %v10941
    %v11177 = vpack.c.b16 %v10944, %v10943
    %v11178 = vpack.c.b16 %v10946, %v10945
    %v11179 = vpack.c.b16 %v10948, %v10947
    %v11180 = vpack.c.b16 %v10950, %v10949
    %v11181 = vpack.c.b16 %v10952, %v10951
    %v11182 = vpack.c.b16 %v10954, %v10953
    %v11183 = vpack.c.b16 %v10956, %v10955
    %v11184 = vpack.c.b16 %v10958, %v10957
    %v11185 = vpack.c.b16 %v10960, %v10959
    %v11186 = vpack.c.b16 %v10962, %v10961
    %v11187 = vpack.c.b16 %v10964, %v10963
    %v11188 = vpack.c.b16 %v10966, %v10965
    %v11189 = vpack.c.b16 %v10968, %v10967
    %v11190 = vpack.c.b16 %v10970, %v10969
    %v11191 = vpack.c.b16 %v10972, %v10971
    %v11192 = vpack.c.b16 %v10974, %v10973
    %v11193 = vpack.c.b16 %v10976, %v10975
    %v11194 = vpack.c.b16 %v10978, %v10977
    %v11195 = vpack.c.b16 %v10980, %v10979
    %v11196 = vpack.c.b16 %v10982, %v10981
    %v11197 = vpack.c.b16 %v10984, %v10983
    %v11198 = vpack.c.b16 %v10986, %v10985
    %v11199 = vpack.c.b16 %v10988, %v10987
    %v11200 = vpack.c.b16 %v10990, %v10989
    %v11201 = vpack.c.b16 %v10992, %v10991
    %v11202 = vpack.c.b16 %v10994, %v10993
    %v11203 = vpack.c.b16 %v10996, %v10995
    %v11204 = vpack.c.b16 %v10998, %v10997
    %v11205 = vpack.c.b16 %v11000, %v10999
    %v11206 = vpack.c.b16 %v11002, %v11001
    %v11207 = vpack.c.b16 %v11004, %v11003
    %v11208 = vpack.c.b16 %v11006, %v11005
    %v11209 = vpack.c.b16 %v11008, %v11007
    %v11210 = vpack.c.b16 %v11010, %v11009
    %v11211 = vpack.c.b16 %v11012, %v11011
    %v11212 = vpack.c.b16 %v11014, %v11013
    %v11213 = vpack.c.b16 %v11016, %v11015
    %v11214 = vpack.c.b16 %v11018, %v11017
    %v11215 = vpack.c.b16 %v11020, %v11019
    %v11216 = vpack.c.b16 %v11022, %v11021
    %v11217 = vpack.c.b16 %v11024, %v11023
    %v11218 = vpack.c.b16 %v11026, %v11025
    %v11219 = vpack.c.b16 %v11028, %v11027
    %v11220 = vpack.c.b16 %v11030, %v11029
    %v11221 = vpack.c.b16 %v11032, %v11031
    %v11222 = vpack.c.b16 %v11034, %v11033
    %v11223 = vpack.c.b16 %v11036, %v11035
    %v11224 = vpack.c.b16 %v11038, %v11037
    %v11225 = vpack.c.b16 %v11040, %v11039
    %v11226 = vpack.c.b16 %v11042, %v11041
    %v11227 = vpack.c.b16 %v11044, %v11043
    %v11228 = vpack.c.b16 %v11046, %v11045
    %v11229 = vpack.c.b16 %v11048, %v11047
    %v11230 = vpack.c.b16 %v11050, %v11049
    %v11231 = vpack.c.b16 %v11052, %v11051
    %v11232 = vpack.c.b16 %v11054, %v11053
    %v11233 = vpack.c.b16 %v11056, %v11055
    %v11234 = vpack.c.b16 %v11058, %v11057
    %v11235 = vpack.c.b16 %v11060, %v11059
    %v11236 = vpack.c.b16 %v11062, %v11061
    %v11237 = vpack.c.b16 %v11064, %v11063
    %v11238 = vpack.c.b16 %v11066, %v11065
    %v11239 = vpack.c.b16 %v11068, %v11067
    %v11240 = vpack.c.b16 %v11070, %v11069
    %v11241 = vpack.c.b16 %v11072, %v11071
    %v11242 = vpack.c.b16 %v11074, %v11073
    %v11243 = vpack.c.b16 %v11076, %v11075
    %v11244 = vpack.c.b16 %v11078, %v11077
    %v11245 = vpack.c.b16 %v11080, %v11079
    %v11246 = vpack.c.b16 %v11082, %v11081
    %v11247 = vpack.c.b16 %v11084, %v11083
    %v11248 = vpack.c.b16 %v11086, %v11085
    %v11249 = vpack.c.b16 %v11088, %v11087
    %v11250 = vpack.c.b16 %v11090, %v11089
    %v11251 = vpack.c.b16 %v11092, %v11091
    %v11252 = vpack.c.b16 %v11094, %v11093
    %v11253 = vpack.c.b16 %v11096, %v11095
    %v11254 = vpack.c.b16 %v11098, %v11097
    %v11255 = vpack.c.b16 %v11100, %v11099
    %v11256 = vpack.c.b16 %v11102, %v11101
    %v11257 = vpack.c.b16 %v11104, %v11103
    %v11258 = vpack.c.b16 %v11106, %v11105
    %v11259 = vpack.c.b16 %v11108, %v11107
    %v11260 = vpack.c.b16 %v11110, %v11109
    %v11261 = vpack.c.b16 %v11112, %v11111
    %v11262 = vpack.c.b16 %v11114, %v11113
    %v11263 = vpack.c.b16 %v11116, %v11115
    %v11264 = vpack.c.b16 %v11118, %v11117
    %v11265 = vpack.c.b16 %v11120, %v11119
    %v11266 = vpack.c.b16 %v11122, %v11121
    %v11267 = vpack.c.b16 %v11124, %v11123
    %v11268 = vpack.c.b16 %v11126, %v11125
    %v11269 = vpack.c.b16 %v11128, %v11127
    %v11270 = vpack.c.b16 %v11130, %v11129
    %v11271 = vpack.c.b16 %v11132, %v11131
    %v11272 = vpack.c.b16 %v11134, %v11133
    %v11273 = vpack.c.b16 %v11136, %v11135
    %v11274 = vpack.c.b16 %v11138, %v11137
    %v11275 = vpack.c.b16 %v11140, %v11139
    %v11276 = vpack.c.b16 %v11142, %v11141
    %v11277 = vpack.c.b16 %v11144, %v11143
    %v11278 = vpack.c.b16 %v11146, %v11145
    %v11279 = vpack.c.b16 %v11148, %v11147
    %v11280 = vpack.c.b16 %v11150, %v11149
    %v11281 = vpack.c.b16 %v11152, %v11151
    %v11282 = vpack.c.b16 %v11154, %v11153
    %11411 = vmatprep.subr.bf16.mxu0 0
    %11412 = vmatpush1.bf16.msra.mxu0 %v11155
    %11413 = vmatprep.subr.bf16.mxu0 0
    %11414 = vmatpush1.bf16.msra.mxu0 %v11156
    %11415 = vmatprep.subr.bf16.mxu0 0
    %11416 = vmatpush1.bf16.msra.mxu0 %v11157
    %11417 = vmatprep.subr.bf16.mxu0 0
    %11418 = vmatpush1.bf16.msra.mxu0 %v11158
    %11419 = vmatprep.subr.bf16.mxu0 0
    %11420 = vmatpush1.bf16.msra.mxu0 %v11159
    %11421 = vmatprep.subr.bf16.mxu0 0
    %11422 = vmatpush1.bf16.msra.mxu0 %v11160
    %11423 = vmatprep.subr.bf16.mxu0 0
    %11424 = vmatpush1.bf16.msra.mxu0 %v11161
    %11425 = vmatprep.subr.bf16.mxu0 0
    %11426 = vmatpush1.bf16.msra.mxu0 %v11162
    %11427 = vmatprep.subr.bf16.mxu0 0
    %11428 = vmatpush1.bf16.msra.mxu0 %v11163
    %11429 = vmatprep.subr.bf16.mxu0 0
    %11430 = vmatpush1.bf16.msra.mxu0 %v11164
    %11431 = vmatprep.subr.bf16.mxu0 0
    %11432 = vmatpush1.bf16.msra.mxu0 %v11165
    %11433 = vmatprep.subr.bf16.mxu0 0
    %11434 = vmatpush1.bf16.msra.mxu0 %v11166
    %11435 = vmatprep.subr.bf16.mxu0 0
    %11436 = vmatpush1.bf16.msra.mxu0 %v11167
    %11437 = vmatprep.subr.bf16.mxu0 0
    %11438 = vmatpush1.bf16.msra.mxu0 %v11168
    %11439 = vmatprep.subr.bf16.mxu0 0
    %11440 = vmatpush1.bf16.msra.mxu0 %v11169
    %11441 = vmatprep.subr.bf16.mxu0 0
    %11442 = vmatpush1.bf16.msra.mxu0 %v11170
    %11443 = vmatprep.mubr.bf16.mxu0 %v10371
    %11444 = vmatmul.mubr.bf16.gmra.mrb[0].mxu0 %v10370
    %v11445 = vpop.f32.mrb[0].mxu0
    %v11446 = vadd.f32 %v10642, %v11445
    %v11447 = vpop.f32.mrb[0].mxu0
    %v11448 = vpop.f32.mrb[0].mxu0
    %v11449 = vpop.f32.mrb[0].mxu0
    %11450 = vdwg.mxu0
    %11451 = vmatprep.subr.bf16.mxu0 0
    %11452 = vmatpush1.bf16.msra.mxu0 %v11171
    %11453 = vmatprep.subr.bf16.mxu0 0
    %11454 = vmatpush1.bf16.msra.mxu0 %v11172
    %11455 = vmatprep.subr.bf16.mxu0 0
    %11456 = vmatpush1.bf16.msra.mxu0 %v11173
    %11457 = vmatprep.subr.bf16.mxu0 0
    %11458 = vmatpush1.bf16.msra.mxu0 %v11174
    %11459 = vmatprep.subr.bf16.mxu0 0
    %11460 = vmatpush1.bf16.msra.mxu0 %v11175
    %11461 = vmatprep.subr.bf16.mxu0 0
    %11462 = vmatpush1.bf16.msra.mxu0 %v11176
    %11463 = vmatprep.subr.bf16.mxu0 0
    %11464 = vmatpush1.bf16.msra.mxu0 %v11177
    %11465 = vmatprep.subr.bf16.mxu0 0
    %11466 = vmatpush1.bf16.msra.mxu0 %v11178
    %11467 = vmatprep.subr.bf16.mxu0 0
    %11468 = vmatpush1.bf16.msra.mxu0 %v11179
    %11469 = vmatprep.subr.bf16.mxu0 0
    %11470 = vmatpush1.bf16.msra.mxu0 %v11180
    %11471 = vmatprep.subr.bf16.mxu0 0
    %11472 = vmatpush1.bf16.msra.mxu0 %v11181
    %11473 = vmatprep.subr.bf16.mxu0 0
    %11474 = vmatpush1.bf16.msra.mxu0 %v11182
    %11475 = vmatprep.subr.bf16.mxu0 0
    %11476 = vmatpush1.bf16.msra.mxu0 %v11183
    %11477 = vmatprep.subr.bf16.mxu0 0
    %11478 = vmatpush1.bf16.msra.mxu0 %v11184
    %11479 = vmatprep.subr.bf16.mxu0 0
    %11480 = vmatpush1.bf16.msra.mxu0 %v11185
    %11481 = vmatprep.subr.bf16.mxu0 0
    %11482 = vmatpush1.bf16.msra.mxu0 %v11186
    %11483 = vmatprep.mubr.bf16.mxu0 %v10373
    %11484 = vmatmul.mubr.bf16.gmra.mrb[0].mxu0 %v10372
    %v11485 = vpop.f32.mrb[0].mxu0
    %v11486 = vadd.f32 %v11446, %v11485
    %v11487 = vpop.f32.mrb[0].mxu0
    %v11488 = vpop.f32.mrb[0].mxu0
    %v11489 = vpop.f32.mrb[0].mxu0
    %11490 = vdwg.mxu0
    %11491 = vmatprep.subr.bf16.mxu0 0
    %11492 = vmatpush1.bf16.msra.mxu0 %v11187
    %11493 = vmatprep.subr.bf16.mxu0 0
    %11494 = vmatpush1.bf16.msra.mxu0 %v11188
    %11495 = vmatprep.subr.bf16.mxu0 0
    %11496 = vmatpush1.bf16.msra.mxu0 %v11189
    %11497 = vmatprep.subr.bf16.mxu0 0
    %11498 = vmatpush1.bf16.msra.mxu0 %v11190
    %11499 = vmatprep.subr.bf16.mxu0 0
    %11500 = vmatpush1.bf16.msra.mxu0 %v11191
    %11501 = vmatprep.subr.bf16.mxu0 0
    %11502 = vmatpush1.bf16.msra.mxu0 %v11192
    %11503 = vmatprep.subr.bf16.mxu0 0
    %11504 = vmatpush1.bf16.msra.mxu0 %v11193
    %11505 = vmatprep.subr.bf16.mxu0 0
    %11506 = vmatpush1.bf16.msra.mxu0 %v11194
    %11507 = vmatprep.subr.bf16.mxu0 0
    %11508 = vmatpush1.bf16.msra.mxu0 %v11195
    %11509 = vmatprep.subr.bf16.mxu0 0
    %11510 = vmatpush1.bf16.msra.mxu0 %v11196
    %11511 = vmatprep.subr.bf16.mxu0 0
    %11512 = vmatpush1.bf16.msra.mxu0 %v11197
    %11513 = vmatprep.subr.bf16.mxu0 0
    %11514 = vmatpush1.bf16.msra.mxu0 %v11198
    %11515 = vmatprep.subr.bf16.mxu0 0
    %11516 = vmatpush1.bf16.msra.mxu0 %v11199
    %11517 = vmatprep.subr.bf16.mxu0 0
    %11518 = vmatpush1.bf16.msra.mxu0 %v11200
    %11519 = vmatprep.subr.bf16.mxu0 0
    %11520 = vmatpush1.bf16.msra.mxu0 %v11201
    %11521 = vmatprep.subr.bf16.mxu0 0
    %11522 = vmatpush1.bf16.msra.mxu0 %v11202
    %11523 = vmatprep.mubr.bf16.mxu0 %v10375
    %11524 = vmatmul.mubr.bf16.gmra.mrb[0].mxu0 %v10374
    %v11525 = vpop.f32.mrb[0].mxu0
    %v11526 = vadd.f32 %v11486, %v11525
    %v11527 = vpop.f32.mrb[0].mxu0
    %v11528 = vpop.f32.mrb[0].mxu0
    %v11529 = vpop.f32.mrb[0].mxu0
    %11530 = vdwg.mxu0
    %11531 = vmatprep.subr.bf16.mxu0 0
    %11532 = vmatpush1.bf16.msra.mxu0 %v11203
    %11533 = vmatprep.subr.bf16.mxu0 0
    %11534 = vmatpush1.bf16.msra.mxu0 %v11204
    %11535 = vmatprep.subr.bf16.mxu0 0
    %11536 = vmatpush1.bf16.msra.mxu0 %v11205
    %11537 = vmatprep.subr.bf16.mxu0 0
    %11538 = vmatpush1.bf16.msra.mxu0 %v11206
    %11539 = vmatprep.subr.bf16.mxu0 0
    %11540 = vmatpush1.bf16.msra.mxu0 %v11207
    %11541 = vmatprep.subr.bf16.mxu0 0
    %11542 = vmatpush1.bf16.msra.mxu0 %v11208
    %11543 = vmatprep.subr.bf16.mxu0 0
    %11544 = vmatpush1.bf16.msra.mxu0 %v11209
    %11545 = vmatprep.subr.bf16.mxu0 0
    %11546 = vmatpush1.bf16.msra.mxu0 %v11210
    %11547 = vmatprep.subr.bf16.mxu0 0
    %11548 = vmatpush1.bf16.msra.mxu0 %v11211
    %11549 = vmatprep.subr.bf16.mxu0 0
    %11550 = vmatpush1.bf16.msra.mxu0 %v11212
    %11551 = vmatprep.subr.bf16.mxu0 0
    %11552 = vmatpush1.bf16.msra.mxu0 %v11213
    %11553 = vmatprep.subr.bf16.mxu0 0
    %11554 = vmatpush1.bf16.msra.mxu0 %v11214
    %11555 = vmatprep.subr.bf16.mxu0 0
    %11556 = vmatpush1.bf16.msra.mxu0 %v11215
    %11557 = vmatprep.subr.bf16.mxu0 0
    %11558 = vmatpush1.bf16.msra.mxu0 %v11216
    %11559 = vmatprep.subr.bf16.mxu0 0
    %11560 = vmatpush1.bf16.msra.mxu0 %v11217
    %11561 = vmatprep.subr.bf16.mxu0 0
    %11562 = vmatpush1.bf16.msra.mxu0 %v11218
    %11563 = vmatprep.mubr.bf16.mxu0 %v10377
    %11564 = vmatmul.mubr.bf16.gmra.mrb[0].mxu0 %v10376
    %v11565 = vpop.f32.mrb[0].mxu0
    %v11566 = vadd.f32 %v11526, %v11565
    %v11567 = vpop.f32.mrb[0].mxu0
    %v11568 = vpop.f32.mrb[0].mxu0
    %v11569 = vpop.f32.mrb[0].mxu0
    %11570 = vdwg.mxu0
    %11571 = vmatprep.subr.bf16.mxu0 0
    %11572 = vmatpush1.bf16.msra.mxu0 %v11219
    %11573 = vmatprep.subr.bf16.mxu0 0
    %11574 = vmatpush1.bf16.msra.mxu0 %v11220
    %11575 = vmatprep.subr.bf16.mxu0 0
    %11576 = vmatpush1.bf16.msra.mxu0 %v11221
    %11577 = vmatprep.subr.bf16.mxu0 0
    %11578 = vmatpush1.bf16.msra.mxu0 %v11222
    %11579 = vmatprep.subr.bf16.mxu0 0
    %11580 = vmatpush1.bf16.msra.mxu0 %v11223
    %11581 = vmatprep.subr.bf16.mxu0 0
    %11582 = vmatpush1.bf16.msra.mxu0 %v11224
    %11583 = vmatprep.subr.bf16.mxu0 0
    %11584 = vmatpush1.bf16.msra.mxu0 %v11225
    %11585 = vmatprep.subr.bf16.mxu0 0
    %11586 = vmatpush1.bf16.msra.mxu0 %v11226
    %11587 = vmatprep.subr.bf16.mxu0 0
    %11588 = vmatpush1.bf16.msra.mxu0 %v11227
    %11589 = vmatprep.subr.bf16.mxu0 0
    %11590 = vmatpush1.bf16.msra.mxu0 %v11228
    %11591 = vmatprep.subr.bf16.mxu0 0
    %11592 = vmatpush1.bf16.msra.mxu0 %v11229
    %11593 = vmatprep.subr.bf16.mxu0 0
    %11594 = vmatpush1.bf16.msra.mxu0 %v11230
    %11595 = vmatprep.subr.bf16.mxu0 0
    %11596 = vmatpush1.bf16.msra.mxu0 %v11231
    %11597 = vmatprep.subr.bf16.mxu0 0
    %11598 = vmatpush1.bf16.msra.mxu0 %v11232
    %11599 = vmatprep.subr.bf16.mxu0 0
    %11600 = vmatpush1.bf16.msra.mxu0 %v11233
    %11601 = vmatprep.subr.bf16.mxu0 0
    %11602 = vmatpush1.bf16.msra.mxu0 %v11234
    %11603 = vmatprep.mubr.bf16.mxu0 %v10379
    %11604 = vmatmul.mubr.bf16.gmra.mrb[0].mxu0 %v10378
    %v11605 = vpop.f32.mrb[0].mxu0
    %v11606 = vadd.f32 %v11566, %v11605
    %v11607 = vpop.f32.mrb[0].mxu0
    %v11608 = vpop.f32.mrb[0].mxu0
    %v11609 = vpop.f32.mrb[0].mxu0
    %11610 = vdwg.mxu0
    %11611 = vmatprep.subr.bf16.mxu0 0
    %11612 = vmatpush1.bf16.msra.mxu0 %v11235
    %11613 = vmatprep.subr.bf16.mxu0 0
    %11614 = vmatpush1.bf16.msra.mxu0 %v11236
    %11615 = vmatprep.subr.bf16.mxu0 0
    %11616 = vmatpush1.bf16.msra.mxu0 %v11237
    %11617 = vmatprep.subr.bf16.mxu0 0
    %11618 = vmatpush1.bf16.msra.mxu0 %v11238
    %11619 = vmatprep.subr.bf16.mxu0 0
    %11620 = vmatpush1.bf16.msra.mxu0 %v11239
    %11621 = vmatprep.subr.bf16.mxu0 0
    %11622 = vmatpush1.bf16.msra.mxu0 %v11240
    %11623 = vmatprep.subr.bf16.mxu0 0
    %11624 = vmatpush1.bf16.msra.mxu0 %v11241
    %11625 = vmatprep.subr.bf16.mxu0 0
    %11626 = vmatpush1.bf16.msra.mxu0 %v11242
    %11627 = vmatprep.subr.bf16.mxu0 0
    %11628 = vmatpush1.bf16.msra.mxu0 %v11243
    %11629 = vmatprep.subr.bf16.mxu0 0
    %11630 = vmatpush1.bf16.msra.mxu0 %v11244
    %11631 = vmatprep.subr.bf16.mxu0 0
    %11632 = vmatpush1.bf16.msra.mxu0 %v11245
    %11633 = vmatprep.subr.bf16.mxu0 0
    %11634 = vmatpush1.bf16.msra.mxu0 %v11246
    %11635 = vmatprep.subr.bf16.mxu0 0
    %11636 = vmatpush1.bf16.msra.mxu0 %v11247
    %11637 = vmatprep.subr.bf16.mxu0 0
    %11638 = vmatpush1.bf16.msra.mxu0 %v11248
    %11639 = vmatprep.subr.bf16.mxu0 0
    %11640 = vmatpush1.bf16.msra.mxu0 %v11249
    %11641 = vmatprep.subr.bf16.mxu0 0
    %11642 = vmatpush1.bf16.msra.mxu0 %v11250
    %11643 = vmatprep.mubr.bf16.mxu0 %v10381
    %11644 = vmatmul.mubr.bf16.gmra.mrb[0].mxu0 %v10380
    %v11645 = vpop.f32.mrb[0].mxu0
    %v11646 = vadd.f32 %v11606, %v11645
    %v11647 = vpop.f32.mrb[0].mxu0
    %v11648 = vpop.f32.mrb[0].mxu0
    %v11649 = vpop.f32.mrb[0].mxu0
    %11650 = vdwg.mxu0
    %11651 = vmatprep.subr.bf16.mxu0 0
    %11652 = vmatpush1.bf16.msra.mxu0 %v11251
    %11653 = vmatprep.subr.bf16.mxu0 0
    %11654 = vmatpush1.bf16.msra.mxu0 %v11252
    %11655 = vmatprep.subr.bf16.mxu0 0
    %11656 = vmatpush1.bf16.msra.mxu0 %v11253
    %11657 = vmatprep.subr.bf16.mxu0 0
    %11658 = vmatpush1.bf16.msra.mxu0 %v11254
    %11659 = vmatprep.subr.bf16.mxu0 0
    %11660 = vmatpush1.bf16.msra.mxu0 %v11255
    %11661 = vmatprep.subr.bf16.mxu0 0
    %11662 = vmatpush1.bf16.msra.mxu0 %v11256
    %11663 = vmatprep.subr.bf16.mxu0 0
    %11664 = vmatpush1.bf16.msra.mxu0 %v11257
    %11665 = vmatprep.subr.bf16.mxu0 0
    %11666 = vmatpush1.bf16.msra.mxu0 %v11258
    %11667 = vmatprep.subr.bf16.mxu0 0
    %11668 = vmatpush1.bf16.msra.mxu0 %v11259
    %11669 = vmatprep.subr.bf16.mxu0 0
    %11670 = vmatpush1.bf16.msra.mxu0 %v11260
    %11671 = vmatprep.subr.bf16.mxu0 0
    %11672 = vmatpush1.bf16.msra.mxu0 %v11261
    %11673 = vmatprep.subr.bf16.mxu0 0
    %11674 = vmatpush1.bf16.msra.mxu0 %v11262
    %11675 = vmatprep.subr.bf16.mxu0 0
    %11676 = vmatpush1.bf16.msra.mxu0 %v11263
    %11677 = vmatprep.subr.bf16.mxu0 0
    %11678 = vmatpush1.bf16.msra.mxu0 %v11264
    %11679 = vmatprep.subr.bf16.mxu0 0
    %11680 = vmatpush1.bf16.msra.mxu0 %v11265
    %11681 = vmatprep.subr.bf16.mxu0 0
    %11682 = vmatpush1.bf16.msra.mxu0 %v11266
    %11683 = vmatprep.mubr.bf16.mxu0 %v10383
    %11684 = vmatmul.mubr.bf16.gmra.mrb[0].mxu0 %v10382
    %v11685 = vpop.f32.mrb[0].mxu0
    %v11686 = vadd.f32 %v11646, %v11685
    %v11687 = vpop.f32.mrb[0].mxu0
    %v11688 = vpop.f32.mrb[0].mxu0
    %v11689 = vpop.f32.mrb[0].mxu0
    %11690 = vdwg.mxu0
    %11691 = vmatprep.subr.bf16.mxu0 0
    %11692 = vmatpush1.bf16.msra.mxu0 %v11267
    %11693 = vmatprep.subr.bf16.mxu0 0
    %11694 = vmatpush1.bf16.msra.mxu0 %v11268
    %11695 = vmatprep.subr.bf16.mxu0 0
    %11696 = vmatpush1.bf16.msra.mxu0 %v11269
    %11697 = vmatprep.subr.bf16.mxu0 0
    %11698 = vmatpush1.bf16.msra.mxu0 %v11270
    %11699 = vmatprep.subr.bf16.mxu0 0
    %11700 = vmatpush1.bf16.msra.mxu0 %v11271
    %11701 = vmatprep.subr.bf16.mxu0 0
    %11702 = vmatpush1.bf16.msra.mxu0 %v11272
    %11703 = vmatprep.subr.bf16.mxu0 0
    %11704 = vmatpush1.bf16.msra.mxu0 %v11273
    %11705 = vmatprep.subr.bf16.mxu0 0
    %11706 = vmatpush1.bf16.msra.mxu0 %v11274
    %11707 = vmatprep.subr.bf16.mxu0 0
    %11708 = vmatpush1.bf16.msra.mxu0 %v11275
    %11709 = vmatprep.subr.bf16.mxu0 0
    %11710 = vmatpush1.bf16.msra.mxu0 %v11276
    %11711 = vmatprep.subr.bf16.mxu0 0
    %11712 = vmatpush1.bf16.msra.mxu0 %v11277
    %11713 = vmatprep.subr.bf16.mxu0 0
    %11714 = vmatpush1.bf16.msra.mxu0 %v11278
    %11715 = vmatprep.subr.bf16.mxu0 0
    %11716 = vmatpush1.bf16.msra.mxu0 %v11279
    %11717 = vmatprep.subr.bf16.mxu0 0
    %11718 = vmatpush1.bf16.msra.mxu0 %v11280
    %11719 = vmatprep.subr.bf16.mxu0 0
    %11720 = vmatpush1.bf16.msra.mxu0 %v11281
    %11721 = vmatprep.subr.bf16.mxu0 0
    %11722 = vmatpush1.bf16.msra.mxu0 %v11282
    %11723 = vmatprep.mubr.bf16.mxu0 %v10385
    %11724 = vmatmul.mubr.bf16.gmra.mrb[0].mxu0 %v10384
    %v11725 = vpop.f32.mrb[0].mxu0
    %v11726 = vadd.f32 %v11686, %v11725
    %v11727 = vpop.f32.mrb[0].mxu0
    %v11728 = vpop.f32.mrb[0].mxu0
    %v11729 = vpop.f32.mrb[0].mxu0
    %11730 = vdwg.mxu0
    %v11731 = vxor.u32 %v11726, 2147483648
    %v11732 = vmul.f32 %v11731, 1.442695
    %v11733 = vpow.pop %v11732
    %v11734 = vadd.f32 %v11733, 1.0
    %v11735 = vrcp.pop %v11734
    %v11736 = vmul.f32 1.0, %v11735
    %vm11737 = vcmask 517120
    %11738 = vst.msk [vmem:[%s6] sm:$0x3] %vm11737, %v11736
    // Predicated region
    $region46: #{generator_forward.1} parent=1 // pred_check
      _
    $region47: #{generator_forward.1} parent=1 // pred_check_branch
      %11740 = sbr.rel (0) target = $region49
    $region48: #{generator_forward.1} parent=1 // pred_region
      _
    $region49: #{generator_forward.1} parent=1 // pred_fallthru
      _
    // Predicated region
    $region50: #{generator_forward.1} parent=1 // pred_check
      _
    $region51: #{generator_forward.1} parent=1 // pred_check_branch
      %11742 = sbr.rel (0) target = $region53
    $region52: #{generator_forward.1} parent=1 // pred_region
      _
    $region53: #{generator_forward.1} parent=1 // pred_fallthru
      _
    %11743 = vsyncpa [#allocation3], 1
    %11744 = vsyncpa [#allocation5], 1
    %11745 = vsyncpa [#allocation8], 1

</llo_original>
